<compile_context>
chip_gen: v7x
topology: tpu7x:2x2x1
jax: 0.10.0
libtpu: 0.0.40
codegen_flags: <defaults>
</compile_context>

<pallas_src>
import functools

import jax
import jax.numpy as jnp
from jax import lax
from jax.experimental import pallas as pl
from jax.experimental.pallas import tpu as pltpu


_CONV_CHANNELS = [
    (2, 64), (64, 64),                                   # block 1 -> MaxPool
    (64, 128), (128, 128),                               # block 2 -> MaxPool
    (128, 256), (256, 256), (256, 256), (256, 512),      # block 3 -> AvgPool
]
_BN_EPS = 1e-5
_N_CONV = len(_CONV_CHANNELS)
_FC1_OUT = 4096


# ----------------------------------------------------------------------------
# Small exact 0/1 matrices (built from iota inside the kernel, f32 = exact)
# ----------------------------------------------------------------------------

def _pool_mats(rows_out, rows_in, dtype):
    """Even/odd row selection matrices for MaxPool1d(2, 2) on the flat slab."""
    p = lax.broadcasted_iota(jnp.int32, (rows_out, rows_in), 0)
    q = lax.broadcasted_iota(jnp.int32, (rows_out, rows_in), 1)
    s_even = jnp.where(q == 2 * p, 1.0, 0.0).astype(dtype)
    s_odd = jnp.where(q == 2 * p + 1, 1.0, 0.0).astype(dtype)
    return s_even, s_odd


def _avg_mat(n, rows_in, length, dtype):
    """Per-sample row-summing matrix for AdaptiveAvgPool1d(1)."""
    s = lax.broadcasted_iota(jnp.int32, (n, rows_in), 0)
    q = lax.broadcasted_iota(jnp.int32, (n, rows_in), 1)
    sel = (q >= s * length) & (q < (s + 1) * length)
    return jnp.where(sel, 1.0, 0.0).astype(dtype)


# ----------------------------------------------------------------------------
# The fused kernel: grid axis j streams fc1 column tiles
# ----------------------------------------------------------------------------

def _vgg1d_kernel(*refs, n, l0, n_fc1_tiles):
    x_ref = refs[0]
    conv_refs = refs[1:1 + 3 * _N_CONV]
    (fc1w_ref, fc1s_ref, fc1b_ref,
     fc2w_ref, fc2b_ref) = refs[1 + 3 * _N_CONV:6 + 3 * _N_CONV]
    o_ref = refs[6 + 3 * _N_CONV]
    pooled_ref = refs[7 + 3 * _N_CONV]      # VMEM scratch (n, 512) f32
    acc_ref = refs[8 + 3 * _N_CONV]         # VMEM scratch (n, 1)   f32

    j = pl.program_id(0)

    # ---- feature stack: run once, park pooled activations in VMEM ----------
    @pl.when(j == 0)
    def _features():
        # Boundary masks for the padded k=3 conv taps, built once per distinct
        # sequence length (16 / 8 / 4) and reused by every layer at that
        # length (JAX does not CSE iota/where across the unrolled loop).
        mask_cache = {}

        def taps(x, length):
            rows = x.shape[0]
            if length not in mask_cache:
                pos = jnp.bitwise_and(
                    lax.broadcasted_iota(jnp.int32, (rows, 1), 0), length - 1)
                mask_cache[length] = (pos != 0, pos != (length - 1))
            m_prev, m_next = mask_cache[length]
            # roll on the row (sublane) axis is an XLU op; the per-sample
            # boundary mask zeroes the rows that wrapped across samples.
            x_m1 = jnp.where(m_prev, pltpu.roll(x, 1, axis=0), 0.0)
            x_p1 = jnp.where(m_next, pltpu.roll(x, rows - 1, axis=0), 0.0)
            return x_m1, x_p1

        def conv_bn_relu(x, w_ref, scale_ref, bias_ref, length):
            # x: (rows, Cin) f32 ; w_ref: (3, Cin, Cout) bf16 ; scale/bias f32
            x_m1, x_p1 = taps(x, length)
            acc = jnp.dot(x_m1.astype(jnp.bfloat16), w_ref[0],
                          preferred_element_type=jnp.float32)
            acc = acc + jnp.dot(x.astype(jnp.bfloat16), w_ref[1],
                                preferred_element_type=jnp.float32)
            acc = acc + jnp.dot(x_p1.astype(jnp.bfloat16), w_ref[2],
                                preferred_element_type=jnp.float32)
            # folded BatchNorm + ReLU epilogue in f32
            return jnp.maximum(acc * scale_ref[...] + bias_ref[...], 0.0)

        def maxpool2(x):
            rows = x.shape[0]
            s_even, s_odd = _pool_mats(rows // 2, rows, jnp.float32)
            even = jnp.dot(s_even, x, preferred_element_type=jnp.float32)
            odd = jnp.dot(s_odd, x, preferred_element_type=jnp.float32)
            return jnp.maximum(even, odd)

        x = x_ref[...].astype(jnp.float32)          # (N*L0, Cin0)
        length = l0
        layer = 0
        for n_convs, do_pool in ((2, True), (2, True), (4, False)):
            for _ in range(n_convs):
                x = conv_bn_relu(x,
                                 conv_refs[3 * layer + 0],
                                 conv_refs[3 * layer + 1],
                                 conv_refs[3 * layer + 2],
                                 length)
                layer += 1
            if do_pool:
                x = maxpool2(x)
                length //= 2

        # AdaptiveAvgPool1d(1): per-sample row sum, then scale.
        avg = _avg_mat(n, x.shape[0], length, jnp.float32)
        pooled_ref[...] = jnp.dot(avg, x, preferred_element_type=jnp.float32) \
            * (1.0 / length)                        # (N, 512)
        acc_ref[...] = jnp.zeros_like(acc_ref)

    # ---- classifier: one fc1 column tile + partial fc2 reduction per step ---
    # int8 weight tile dequantized exactly in f32 via per-output-channel scale.
    w_tile = fc1w_ref[...].astype(jnp.float32)                 # (512, tile)
    h = jnp.dot(pooled_ref[...], w_tile,
                preferred_element_type=jnp.float32)            # (N, tile)
    h = jnp.maximum(h * fc1s_ref[...] + fc1b_ref[...], 0.0)    # dequant+bias+ReLU
    # fc2 as multiply + lane reduction (avoids a (4096,1) masked-lane matmul).
    acc_ref[...] += jnp.sum(h * fc2w_ref[...], axis=1, keepdims=True)

    @pl.when(j == n_fc1_tiles - 1)
    def _finalize():
        logits = acc_ref[...] + fc2b_ref[...]
        o_ref[...] = 1.0 / (1.0 + jnp.exp(-logits))            # sigmoid, (N, 1)


# ----------------------------------------------------------------------------
# pallas_call wrapper
# ----------------------------------------------------------------------------

def vgg1d_forward(x_ncl, params, fc1_tiles=4):
    n, c0, l0 = x_ncl.shape
    if l0 < 4 or (l0 & (l0 - 1)) != 0:
        raise ValueError("VGG1D Pallas kernel requires a power-of-two length >= 4")
    if _FC1_OUT % fc1_tiles != 0:
        raise ValueError("fc1_tiles must divide 4096")
    tile = _FC1_OUT // fc1_tiles

    # PyTorch NCL -> channels-last -> flat (N*L, C): channels on the lane axis,
    # batch folded into the matmul M dimension.
    x_flat = jnp.transpose(x_ncl, (0, 2, 1)).reshape(n * l0, c0).astype(jnp.float32)

    def const2(shape):
        return pl.BlockSpec(shape, lambda j: (0, 0))

    def const3(shape):
        return pl.BlockSpec(shape, lambda j: (0, 0, 0))

    inputs = [x_flat]
    in_specs = [const2(x_flat.shape)]
    for (w, scale, bias) in params["convs"]:
        inputs += [w, scale, bias]
        in_specs += [const3(w.shape), const2(scale.shape), const2(bias.shape)]
    inputs += [params["fc1_wq"], params["fc1_scale"], params["fc1_b"],
               params["fc2_w"], params["fc2_b"]]
    in_specs += [
        pl.BlockSpec((512, tile), lambda j: (0, j)),   # fc1 int8 weight tiles (streamed)
        pl.BlockSpec((1, tile), lambda j: (0, j)),     # fc1 per-channel scale
        pl.BlockSpec((1, tile), lambda j: (0, j)),     # fc1 bias
        pl.BlockSpec((1, tile), lambda j: (0, j)),     # fc2 weight slice
        const2((1, 1)),                                # fc2 bias
    ]

    kernel = functools.partial(_vgg1d_kernel, n=n, l0=l0, n_fc1_tiles=fc1_tiles)
    return pl.pallas_call(
        kernel,
        out_shape=jax.ShapeDtypeStruct((n, 1), jnp.float32),
        grid_spec=pltpu.PrefetchScalarGridSpec(
            num_scalar_prefetch=0,
            grid=(fc1_tiles,),
            in_specs=in_specs,
            out_specs=pl.BlockSpec((n, 1), lambda j: (0, 0)),
            scratch_shapes=[pltpu.VMEM((n, 512), jnp.float32),   # pooled
                            pltpu.VMEM((n, 1), jnp.float32)]),   # logit accumulator
        compiler_params=pltpu.CompilerParams(
            dimension_semantics=("arbitrary",),        # output accumulated over axis
            vmem_limit_bytes=32 * 1024 * 1024),        # ~6 MiB used; safe on v7x 64 MiB
    )(*inputs)


# ----------------------------------------------------------------------------
# Parameter construction (PyTorch __init__ shapes, BN folded in eval mode)
# ----------------------------------------------------------------------------

def init_params(key):
    params = {"convs": []}
    for (cin, cout) in _CONV_CHANNELS:
        key, kw, kb = jax.random.split(key, 3)
        fan_in = float(cin * 3)
        w_torch = jax.random.normal(kw, (cout, cin, 3), jnp.float32) / jnp.sqrt(fan_in)
        conv_b = jax.random.normal(kb, (cout,), jnp.float32) * 0.01
        # BatchNorm1d at __init__ (eval mode): gamma=1, beta=0, mean=0, var=1.
        gamma = jnp.ones((cout,), jnp.float32)
        beta = jnp.zeros((cout,), jnp.float32)
        run_mean = jnp.zeros((cout,), jnp.float32)
        run_var = jnp.ones((cout,), jnp.float32)
        scale = gamma / jnp.sqrt(run_var + _BN_EPS)
        bias = (conv_b - run_mean) * scale + beta
        # (Cout, Cin, 3) -> (3, Cin, Cout); bf16 weights for the MXU / half DMA.
        w = jnp.transpose(w_torch, (2, 1, 0)).astype(jnp.bfloat16)
        params["convs"].append((w, scale.reshape(1, cout), bias.reshape(1, cout)))

    key, k1, k2, k3, k4 = jax.random.split(key, 5)
    fc1_w = jax.random.normal(k1, (512, _FC1_OUT), jnp.float32) / jnp.sqrt(512.0)
    # int8 per-output-channel quantization (storage format: the model's fc1
    # weight is exactly wq * scale; the kernel dequantizes in the f32 epilogue).
    fc1_scale = jnp.maximum(jnp.max(jnp.abs(fc1_w), axis=0, keepdims=True) / 127.0,
                            1e-8)                                   # (1, 4096)
    params["fc1_wq"] = jnp.clip(jnp.round(fc1_w / fc1_scale),
                                -127, 127).astype(jnp.int8)          # (512, 4096)
    params["fc1_scale"] = fc1_scale
    params["fc1_b"] = (jax.random.normal(k2, (_FC1_OUT,), jnp.float32) * 0.01
                       ).reshape(1, _FC1_OUT)
    # fc2 weight kept as a (1, 4096) f32 row (applied as multiply + reduction).
    params["fc2_w"] = jax.random.normal(k3, (1, _FC1_OUT), jnp.float32) / jnp.sqrt(4096.0)
    params["fc2_b"] = (jax.random.normal(k4, (1,), jnp.float32) * 0.01).reshape(1, 1)
    return params


if __name__ == "__main__":
    key = jax.random.PRNGKey(0)
    key, kx = jax.random.split(key)

    # PyTorch-convention input: (batch=2, in_channels=2, length=16)
    x = jax.random.normal(kx, (2, 2, 16), jnp.float32)
    params = init_params(key)

    fwd = jax.jit(vgg1d_forward)
    out = jax.block_until_ready(fwd(x, params))

    assert out.shape == (2, 1)
    assert bool(jnp.all(jnp.isfinite(out)))
    assert bool(jnp.all((out >= 0.0) & (out <= 1.0)))
    print("KERNEL_OK")
</pallas_src>

<mosaic_0001>
module attributes {stable_mosaic.version = 11 : i64} {
  func.func @_vgg1d_kernel(%arg0: i32, %arg1: memref<32x2xf32, #tpu.memory_space<vmem>>, %arg2: memref<3x2x64xbf16, #tpu.memory_space<vmem>>, %arg3: memref<1x64xf32, #tpu.memory_space<vmem>>, %arg4: memref<1x64xf32, #tpu.memory_space<vmem>>, %arg5: memref<3x64x64xbf16, #tpu.memory_space<vmem>>, %arg6: memref<1x64xf32, #tpu.memory_space<vmem>>, %arg7: memref<1x64xf32, #tpu.memory_space<vmem>>, %arg8: memref<3x64x128xbf16, #tpu.memory_space<vmem>>, %arg9: memref<1x128xf32, #tpu.memory_space<vmem>>, %arg10: memref<1x128xf32, #tpu.memory_space<vmem>>, %arg11: memref<3x128x128xbf16, #tpu.memory_space<vmem>>, %arg12: memref<1x128xf32, #tpu.memory_space<vmem>>, %arg13: memref<1x128xf32, #tpu.memory_space<vmem>>, %arg14: memref<3x128x256xbf16, #tpu.memory_space<vmem>>, %arg15: memref<1x256xf32, #tpu.memory_space<vmem>>, %arg16: memref<1x256xf32, #tpu.memory_space<vmem>>, %arg17: memref<3x256x256xbf16, #tpu.memory_space<vmem>>, %arg18: memref<1x256xf32, #tpu.memory_space<vmem>>, %arg19: memref<1x256xf32, #tpu.memory_space<vmem>>, %arg20: memref<3x256x256xbf16, #tpu.memory_space<vmem>>, %arg21: memref<1x256xf32, #tpu.memory_space<vmem>>, %arg22: memref<1x256xf32, #tpu.memory_space<vmem>>, %arg23: memref<3x256x512xbf16, #tpu.memory_space<vmem>>, %arg24: memref<1x512xf32, #tpu.memory_space<vmem>>, %arg25: memref<1x512xf32, #tpu.memory_space<vmem>>, %arg26: memref<512x1024xi8, #tpu.memory_space<vmem>>, %arg27: memref<1x1024xf32, #tpu.memory_space<vmem>>, %arg28: memref<1x1024xf32, #tpu.memory_space<vmem>>, %arg29: memref<1x1024xf32, #tpu.memory_space<vmem>>, %arg30: memref<1x1xf32, #tpu.memory_space<vmem>>, %arg31: memref<2x1xf32, #tpu.memory_space<vmem>>, %arg32: memref<2x512xf32, #tpu.memory_space<vmem>>, %arg33: memref<2x1xf32, #tpu.memory_space<vmem>>) attributes {dimension_semantics = [#tpu.dimension_semantics<arbitrary>], iteration_bounds = array<i64: 4>, scalar_prefetch = 0 : i64, scratch_operands = 2 : i64, tpu.core_type = #tpu.core_type<tc>, window_params = [{pipeline_mode = #tpu.pipeline_mode<synchronous>, transform_indices = @transform_0, window_bounds = array<i64: 32, 2>}, {pipeline_mode = #tpu.pipeline_mode<synchronous>, transform_indices = @transform_1, window_bounds = array<i64: 3, 2, 64>}, {pipeline_mode = #tpu.pipeline_mode<synchronous>, transform_indices = @transform_2, window_bounds = array<i64: 1, 64>}, {pipeline_mode = #tpu.pipeline_mode<synchronous>, transform_indices = @transform_3, window_bounds = array<i64: 1, 64>}, {pipeline_mode = #tpu.pipeline_mode<synchronous>, transform_indices = @transform_4, window_bounds = array<i64: 3, 64, 64>}, {pipeline_mode = #tpu.pipeline_mode<synchronous>, transform_indices = @transform_5, window_bounds = array<i64: 1, 64>}, {pipeline_mode = #tpu.pipeline_mode<synchronous>, transform_indices = @transform_6, window_bounds = array<i64: 1, 64>}, {pipeline_mode = #tpu.pipeline_mode<synchronous>, transform_indices = @transform_7, window_bounds = array<i64: 3, 64, 128>}, {pipeline_mode = #tpu.pipeline_mode<synchronous>, transform_indices = @transform_8, window_bounds = array<i64: 1, 128>}, {pipeline_mode = #tpu.pipeline_mode<synchronous>, transform_indices = @transform_9, window_bounds = array<i64: 1, 128>}, {pipeline_mode = #tpu.pipeline_mode<synchronous>, transform_indices = @transform_10, window_bounds = array<i64: 3, 128, 128>}, {pipeline_mode = #tpu.pipeline_mode<synchronous>, transform_indices = @transform_11, window_bounds = array<i64: 1, 128>}, {pipeline_mode = #tpu.pipeline_mode<synchronous>, transform_indices = @transform_12, window_bounds = array<i64: 1, 128>}, {pipeline_mode = #tpu.pipeline_mode<synchronous>, transform_indices = @transform_13, window_bounds = array<i64: 3, 128, 256>}, {pipeline_mode = #tpu.pipeline_mode<synchronous>, transform_indices = @transform_14, window_bounds = array<i64: 1, 256>}, {pipeline_mode = #tpu.pipeline_mode<synchronous>, transform_indices = @transform_15, window_bounds = array<i64: 1, 256>}, {pipeline_mode = #tpu.pipeline_mode<synchronous>, transform_indices = @transform_16, window_bounds = array<i64: 3, 256, 256>}, {pipeline_mode = #tpu.pipeline_mode<synchronous>, transform_indices = @transform_17, window_bounds = array<i64: 1, 256>}, {pipeline_mode = #tpu.pipeline_mode<synchronous>, transform_indices = @transform_18, window_bounds = array<i64: 1, 256>}, {pipeline_mode = #tpu.pipeline_mode<synchronous>, transform_indices = @transform_19, window_bounds = array<i64: 3, 256, 256>}, {pipeline_mode = #tpu.pipeline_mode<synchronous>, transform_indices = @transform_20, window_bounds = array<i64: 1, 256>}, {pipeline_mode = #tpu.pipeline_mode<synchronous>, transform_indices = @transform_21, window_bounds = array<i64: 1, 256>}, {pipeline_mode = #tpu.pipeline_mode<synchronous>, transform_indices = @transform_22, window_bounds = array<i64: 3, 256, 512>}, {pipeline_mode = #tpu.pipeline_mode<synchronous>, transform_indices = @transform_23, window_bounds = array<i64: 1, 512>}, {pipeline_mode = #tpu.pipeline_mode<synchronous>, transform_indices = @transform_24, window_bounds = array<i64: 1, 512>}, {transform_indices = @transform_25, window_bounds = array<i64: 512, 1024>}, {transform_indices = @transform_26, window_bounds = array<i64: 1, 1024>}, {transform_indices = @transform_27, window_bounds = array<i64: 1, 1024>}, {transform_indices = @transform_28, window_bounds = array<i64: 1, 1024>}, {pipeline_mode = #tpu.pipeline_mode<synchronous>, transform_indices = @transform_29, window_bounds = array<i64: 1, 1>}, {pipeline_mode = #tpu.pipeline_mode<synchronous>, transform_indices = @transform_30, window_bounds = array<i64: 2, 1>}]} {
    %c0_i32 = arith.constant 0 : i32
    %0 = arith.cmpi eq, %arg0, %c0_i32 : i32
    %1 = arith.extui %0 : i1 to i32
    %c0_i32_0 = arith.constant 0 : i32
    %2 = arith.cmpi ne, %1, %c0_i32_0 : i32
    scf.if %2 {
      %c0_17 = arith.constant 0 : index
      %c0_18 = arith.constant 0 : index
      %26 = vector.load %arg1[%c0_17, %c0_18] : memref<32x2xf32, #tpu.memory_space<vmem>>, vector<32x2xf32>
      %27 = tpu.iota {dimensions = array<i32: 0>} : vector<32x1xi32>
      %c15_i32 = arith.constant 15 : i32
      %28 = vector.broadcast %c15_i32 : i32 to vector<32x1xi32>
      %29 = arith.andi %27, %28 : vector<32x1xi32>
      %c0_i32_19 = arith.constant 0 : i32
      %30 = vector.broadcast %c0_i32_19 : i32 to vector<32x1xi32>
      %31 = arith.cmpi ne, %29, %30 : vector<32x1xi32>
      %c15_i32_20 = arith.constant 15 : i32
      %32 = vector.broadcast %c15_i32_20 : i32 to vector<32x1xi32>
      %33 = arith.cmpi ne, %29, %32 : vector<32x1xi32>
      %c1_i32 = arith.constant 1 : i32
      %34 = tpu.dynamic_rotate %26 by %c1_i32 dim 0 : vector<32x2xf32>, i32 -> vector<32x2xf32>
      %cst_21 = arith.constant 0.000000e+00 : f32
      %35 = vector.shape_cast %31 : vector<32x1xi1> to vector<32x1xi1>
      %36 = vector.broadcast %35 : vector<32x1xi1> to vector<32x2xi1>
      %37 = vector.broadcast %cst_21 : f32 to vector<32x2xf32>
      %38 = arith.select %36, %34, %37 : vector<32x2xi1>, vector<32x2xf32>
      %c31_i32 = arith.constant 31 : i32
      %39 = tpu.dynamic_rotate %26 by %c31_i32 dim 0 : vector<32x2xf32>, i32 -> vector<32x2xf32>
      %cst_22 = arith.constant 0.000000e+00 : f32
      %40 = vector.shape_cast %33 : vector<32x1xi1> to vector<32x1xi1>
      %41 = vector.broadcast %40 : vector<32x1xi1> to vector<32x2xi1>
      %42 = vector.broadcast %cst_22 : f32 to vector<32x2xf32>
      %43 = arith.select %41, %39, %42 : vector<32x2xi1>, vector<32x2xf32>
      %44 = arith.truncf %38 : vector<32x2xf32> to vector<32x2xbf16>
      %c0_23 = arith.constant 0 : index
      %c0_24 = arith.constant 0 : index
      %c0_25 = arith.constant 0 : index
      %45 = vector.load %arg2[%c0_23, %c0_24, %c0_25] : memref<3x2x64xbf16, #tpu.memory_space<vmem>>, vector<1x2x64xbf16>
      %46 = vector.shape_cast %45 : vector<1x2x64xbf16> to vector<2x64xbf16>
      %cst_26 = arith.constant dense<0.000000e+00> : vector<32x64xf32>
      %47 = tpu.matmul %44, %46, %cst_26 {dimension_numbers = #tpu.dot_dimension_numbers<[1], [0], [0], [1], [0, 0, 1, 1], [], []>} : vector<32x2xbf16>, vector<2x64xbf16>, vector<32x64xf32> -> vector<32x64xf32>
      %48 = arith.truncf %26 : vector<32x2xf32> to vector<32x2xbf16>
      %c1 = arith.constant 1 : index
      %c0_27 = arith.constant 0 : index
      %c0_28 = arith.constant 0 : index
      %49 = vector.load %arg2[%c1, %c0_27, %c0_28] : memref<3x2x64xbf16, #tpu.memory_space<vmem>>, vector<1x2x64xbf16>
      %50 = vector.shape_cast %49 : vector<1x2x64xbf16> to vector<2x64xbf16>
      %cst_29 = arith.constant dense<0.000000e+00> : vector<32x64xf32>
      %51 = tpu.matmul %48, %50, %cst_29 {dimension_numbers = #tpu.dot_dimension_numbers<[1], [0], [0], [1], [0, 0, 1, 1], [], []>} : vector<32x2xbf16>, vector<2x64xbf16>, vector<32x64xf32> -> vector<32x64xf32>
      %52 = arith.addf %47, %51 : vector<32x64xf32>
      %53 = arith.truncf %43 : vector<32x2xf32> to vector<32x2xbf16>
      %c2 = arith.constant 2 : index
      %c0_30 = arith.constant 0 : index
      %c0_31 = arith.constant 0 : index
      %54 = vector.load %arg2[%c2, %c0_30, %c0_31] : memref<3x2x64xbf16, #tpu.memory_space<vmem>>, vector<1x2x64xbf16>
      %55 = vector.shape_cast %54 : vector<1x2x64xbf16> to vector<2x64xbf16>
      %cst_32 = arith.constant dense<0.000000e+00> : vector<32x64xf32>
      %56 = tpu.matmul %53, %55, %cst_32 {dimension_numbers = #tpu.dot_dimension_numbers<[1], [0], [0], [1], [0, 0, 1, 1], [], []>} : vector<32x2xbf16>, vector<2x64xbf16>, vector<32x64xf32> -> vector<32x64xf32>
      %57 = arith.addf %52, %56 : vector<32x64xf32>
      %c0_33 = arith.constant 0 : index
      %c0_34 = arith.constant 0 : index
      %58 = vector.load %arg3[%c0_33, %c0_34] : memref<1x64xf32, #tpu.memory_space<vmem>>, vector<1x64xf32>
      %59 = vector.broadcast %58 : vector<1x64xf32> to vector<32x64xf32>
      %60 = arith.mulf %57, %59 : vector<32x64xf32>
      %c0_35 = arith.constant 0 : index
      %c0_36 = arith.constant 0 : index
      %61 = vector.load %arg4[%c0_35, %c0_36] : memref<1x64xf32, #tpu.memory_space<vmem>>, vector<1x64xf32>
      %62 = vector.broadcast %61 : vector<1x64xf32> to vector<32x64xf32>
      %63 = arith.addf %60, %62 : vector<32x64xf32>
      %cst_37 = arith.constant 0.000000e+00 : f32
      %64 = vector.broadcast %cst_37 : f32 to vector<32x64xf32>
      %65 = arith.maximumf %63, %64 : vector<32x64xf32>
      %c1_i32_38 = arith.constant 1 : i32
      %66 = tpu.dynamic_rotate %65 by %c1_i32_38 dim 0 : vector<32x64xf32>, i32 -> vector<32x64xf32>
      %cst_39 = arith.constant 0.000000e+00 : f32
      %67 = vector.shape_cast %31 : vector<32x1xi1> to vector<32x1xi1>
      %68 = vector.broadcast %67 : vector<32x1xi1> to vector<32x64xi1>
      %69 = vector.broadcast %cst_39 : f32 to vector<32x64xf32>
      %70 = arith.select %68, %66, %69 : vector<32x64xi1>, vector<32x64xf32>
      %c31_i32_40 = arith.constant 31 : i32
      %71 = tpu.dynamic_rotate %65 by %c31_i32_40 dim 0 : vector<32x64xf32>, i32 -> vector<32x64xf32>
      %cst_41 = arith.constant 0.000000e+00 : f32
      %72 = vector.shape_cast %33 : vector<32x1xi1> to vector<32x1xi1>
      %73 = vector.broadcast %72 : vector<32x1xi1> to vector<32x64xi1>
      %74 = vector.broadcast %cst_41 : f32 to vector<32x64xf32>
      %75 = arith.select %73, %71, %74 : vector<32x64xi1>, vector<32x64xf32>
      %76 = arith.truncf %70 : vector<32x64xf32> to vector<32x64xbf16>
      %c0_42 = arith.constant 0 : index
      %c0_43 = arith.constant 0 : index
      %c0_44 = arith.constant 0 : index
      %77 = vector.load %arg5[%c0_42, %c0_43, %c0_44] : memref<3x64x64xbf16, #tpu.memory_space<vmem>>, vector<1x64x64xbf16>
      %78 = vector.shape_cast %77 : vector<1x64x64xbf16> to vector<64x64xbf16>
      %cst_45 = arith.constant dense<0.000000e+00> : vector<32x64xf32>
      %79 = tpu.matmul %76, %78, %cst_45 {dimension_numbers = #tpu.dot_dimension_numbers<[1], [0], [0], [1], [0, 0, 1, 1], [], []>} : vector<32x64xbf16>, vector<64x64xbf16>, vector<32x64xf32> -> vector<32x64xf32>
      %80 = arith.truncf %65 : vector<32x64xf32> to vector<32x64xbf16>
      %c1_46 = arith.constant 1 : index
      %c0_47 = arith.constant 0 : index
      %c0_48 = arith.constant 0 : index
      %81 = vector.load %arg5[%c1_46, %c0_47, %c0_48] : memref<3x64x64xbf16, #tpu.memory_space<vmem>>, vector<1x64x64xbf16>
      %82 = vector.shape_cast %81 : vector<1x64x64xbf16> to vector<64x64xbf16>
      %cst_49 = arith.constant dense<0.000000e+00> : vector<32x64xf32>
      %83 = tpu.matmul %80, %82, %cst_49 {dimension_numbers = #tpu.dot_dimension_numbers<[1], [0], [0], [1], [0, 0, 1, 1], [], []>} : vector<32x64xbf16>, vector<64x64xbf16>, vector<32x64xf32> -> vector<32x64xf32>
      %84 = arith.addf %79, %83 : vector<32x64xf32>
      %85 = arith.truncf %75 : vector<32x64xf32> to vector<32x64xbf16>
      %c2_50 = arith.constant 2 : index
      %c0_51 = arith.constant 0 : index
      %c0_52 = arith.constant 0 : index
      %86 = vector.load %arg5[%c2_50, %c0_51, %c0_52] : memref<3x64x64xbf16, #tpu.memory_space<vmem>>, vector<1x64x64xbf16>
      %87 = vector.shape_cast %86 : vector<1x64x64xbf16> to vector<64x64xbf16>
      %cst_53 = arith.constant dense<0.000000e+00> : vector<32x64xf32>
      %88 = tpu.matmul %85, %87, %cst_53 {dimension_numbers = #tpu.dot_dimension_numbers<[1], [0], [0], [1], [0, 0, 1, 1], [], []>} : vector<32x64xbf16>, vector<64x64xbf16>, vector<32x64xf32> -> vector<32x64xf32>
      %89 = arith.addf %84, %88 : vector<32x64xf32>
      %c0_54 = arith.constant 0 : index
      %c0_55 = arith.constant 0 : index
      %90 = vector.load %arg6[%c0_54, %c0_55] : memref<1x64xf32, #tpu.memory_space<vmem>>, vector<1x64xf32>
      %91 = vector.broadcast %90 : vector<1x64xf32> to vector<32x64xf32>
      %92 = arith.mulf %89, %91 : vector<32x64xf32>
      %c0_56 = arith.constant 0 : index
      %c0_57 = arith.constant 0 : index
      %93 = vector.load %arg7[%c0_56, %c0_57] : memref<1x64xf32, #tpu.memory_space<vmem>>, vector<1x64xf32>
      %94 = vector.broadcast %93 : vector<1x64xf32> to vector<32x64xf32>
      %95 = arith.addf %92, %94 : vector<32x64xf32>
      %cst_58 = arith.constant 0.000000e+00 : f32
      %96 = vector.broadcast %cst_58 : f32 to vector<32x64xf32>
      %97 = arith.maximumf %95, %96 : vector<32x64xf32>
      %98 = tpu.iota {dimensions = array<i32: 0>} : vector<16x32xi32>
      %99 = tpu.iota {dimensions = array<i32: 1>} : vector<16x32xi32>
      %c2_i32 = arith.constant 2 : i32
      %100 = vector.broadcast %c2_i32 : i32 to vector<16x32xi32>
      %101 = arith.muli %100, %98 : vector<16x32xi32>
      %102 = arith.cmpi eq, %99, %101 : vector<16x32xi32>
      %cst_59 = arith.constant 1.000000e+00 : f32
      %cst_60 = arith.constant 0.000000e+00 : f32
      %103 = vector.broadcast %cst_59 : f32 to vector<16x32xf32>
      %104 = vector.broadcast %cst_60 : f32 to vector<16x32xf32>
      %105 = arith.select %102, %103, %104 : vector<16x32xi1>, vector<16x32xf32>
      %c2_i32_61 = arith.constant 2 : i32
      %106 = vector.broadcast %c2_i32_61 : i32 to vector<16x32xi32>
      %107 = arith.muli %106, %98 : vector<16x32xi32>
      %c1_i32_62 = arith.constant 1 : i32
      %108 = vector.broadcast %c1_i32_62 : i32 to vector<16x32xi32>
      %109 = arith.addi %107, %108 : vector<16x32xi32>
      %110 = arith.cmpi eq, %99, %109 : vector<16x32xi32>
      %cst_63 = arith.constant 1.000000e+00 : f32
      %cst_64 = arith.constant 0.000000e+00 : f32
      %111 = vector.broadcast %cst_63 : f32 to vector<16x32xf32>
      %112 = vector.broadcast %cst_64 : f32 to vector<16x32xf32>
      %113 = arith.select %110, %111, %112 : vector<16x32xi1>, vector<16x32xf32>
      %cst_65 = arith.constant dense<0.000000e+00> : vector<16x64xf32>
      %114 = tpu.matmul %105, %97, %cst_65 {dimension_numbers = #tpu.dot_dimension_numbers<[1], [0], [0], [1], [0, 0, 1, 1], [], []>} : vector<16x32xf32>, vector<32x64xf32>, vector<16x64xf32> -> vector<16x64xf32>
      %cst_66 = arith.constant dense<0.000000e+00> : vector<16x64xf32>
      %115 = tpu.matmul %113, %97, %cst_66 {dimension_numbers = #tpu.dot_dimension_numbers<[1], [0], [0], [1], [0, 0, 1, 1], [], []>} : vector<16x32xf32>, vector<32x64xf32>, vector<16x64xf32> -> vector<16x64xf32>
      %116 = arith.maximumf %114, %115 : vector<16x64xf32>
      %117 = tpu.iota {dimensions = array<i32: 0>} : vector<16x1xi32>
      %c7_i32 = arith.constant 7 : i32
      %118 = vector.broadcast %c7_i32 : i32 to vector<16x1xi32>
      %119 = arith.andi %117, %118 : vector<16x1xi32>
      %c0_i32_67 = arith.constant 0 : i32
      %120 = vector.broadcast %c0_i32_67 : i32 to vector<16x1xi32>
      %121 = arith.cmpi ne, %119, %120 : vector<16x1xi32>
      %c7_i32_68 = arith.constant 7 : i32
      %122 = vector.broadcast %c7_i32_68 : i32 to vector<16x1xi32>
      %123 = arith.cmpi ne, %119, %122 : vector<16x1xi32>
      %c1_i32_69 = arith.constant 1 : i32
      %124 = tpu.dynamic_rotate %116 by %c1_i32_69 dim 0 : vector<16x64xf32>, i32 -> vector<16x64xf32>
      %cst_70 = arith.constant 0.000000e+00 : f32
      %125 = vector.shape_cast %121 : vector<16x1xi1> to vector<16x1xi1>
      %126 = vector.broadcast %125 : vector<16x1xi1> to vector<16x64xi1>
      %127 = vector.broadcast %cst_70 : f32 to vector<16x64xf32>
      %128 = arith.select %126, %124, %127 : vector<16x64xi1>, vector<16x64xf32>
      %c15_i32_71 = arith.constant 15 : i32
      %129 = tpu.dynamic_rotate %116 by %c15_i32_71 dim 0 : vector<16x64xf32>, i32 -> vector<16x64xf32>
      %cst_72 = arith.constant 0.000000e+00 : f32
      %130 = vector.shape_cast %123 : vector<16x1xi1> to vector<16x1xi1>
      %131 = vector.broadcast %130 : vector<16x1xi1> to vector<16x64xi1>
      %132 = vector.broadcast %cst_72 : f32 to vector<16x64xf32>
      %133 = arith.select %131, %129, %132 : vector<16x64xi1>, vector<16x64xf32>
      %134 = arith.truncf %128 : vector<16x64xf32> to vector<16x64xbf16>
      %c0_73 = arith.constant 0 : index
      %c0_74 = arith.constant 0 : index
      %c0_75 = arith.constant 0 : index
      %135 = vector.load %arg8[%c0_73, %c0_74, %c0_75] : memref<3x64x128xbf16, #tpu.memory_space<vmem>>, vector<1x64x128xbf16>
      %136 = vector.shape_cast %135 : vector<1x64x128xbf16> to vector<64x128xbf16>
      %cst_76 = arith.constant dense<0.000000e+00> : vector<16x128xf32>
      %137 = tpu.matmul %134, %136, %cst_76 {dimension_numbers = #tpu.dot_dimension_numbers<[1], [0], [0], [1], [0, 0, 1, 1], [], []>} : vector<16x64xbf16>, vector<64x128xbf16>, vector<16x128xf32> -> vector<16x128xf32>
      %138 = arith.truncf %116 : vector<16x64xf32> to vector<16x64xbf16>
      %c1_77 = arith.constant 1 : index
      %c0_78 = arith.constant 0 : index
      %c0_79 = arith.constant 0 : index
      %139 = vector.load %arg8[%c1_77, %c0_78, %c0_79] : memref<3x64x128xbf16, #tpu.memory_space<vmem>>, vector<1x64x128xbf16>
      %140 = vector.shape_cast %139 : vector<1x64x128xbf16> to vector<64x128xbf16>
      %cst_80 = arith.constant dense<0.000000e+00> : vector<16x128xf32>
      %141 = tpu.matmul %138, %140, %cst_80 {dimension_numbers = #tpu.dot_dimension_numbers<[1], [0], [0], [1], [0, 0, 1, 1], [], []>} : vector<16x64xbf16>, vector<64x128xbf16>, vector<16x128xf32> -> vector<16x128xf32>
      %142 = arith.addf %137, %141 : vector<16x128xf32>
      %143 = arith.truncf %133 : vector<16x64xf32> to vector<16x64xbf16>
      %c2_81 = arith.constant 2 : index
      %c0_82 = arith.constant 0 : index
      %c0_83 = arith.constant 0 : index
      %144 = vector.load %arg8[%c2_81, %c0_82, %c0_83] : memref<3x64x128xbf16, #tpu.memory_space<vmem>>, vector<1x64x128xbf16>
      %145 = vector.shape_cast %144 : vector<1x64x128xbf16> to vector<64x128xbf16>
      %cst_84 = arith.constant dense<0.000000e+00> : vector<16x128xf32>
      %146 = tpu.matmul %143, %145, %cst_84 {dimension_numbers = #tpu.dot_dimension_numbers<[1], [0], [0], [1], [0, 0, 1, 1], [], []>} : vector<16x64xbf16>, vector<64x128xbf16>, vector<16x128xf32> -> vector<16x128xf32>
      %147 = arith.addf %142, %146 : vector<16x128xf32>
      %c0_85 = arith.constant 0 : index
      %c0_86 = arith.constant 0 : index
      %148 = vector.load %arg9[%c0_85, %c0_86] : memref<1x128xf32, #tpu.memory_space<vmem>>, vector<1x128xf32>
      %149 = vector.broadcast %148 : vector<1x128xf32> to vector<16x128xf32>
      %150 = arith.mulf %147, %149 : vector<16x128xf32>
      %c0_87 = arith.constant 0 : index
      %c0_88 = arith.constant 0 : index
      %151 = vector.load %arg10[%c0_87, %c0_88] : memref<1x128xf32, #tpu.memory_space<vmem>>, vector<1x128xf32>
      %152 = vector.broadcast %151 : vector<1x128xf32> to vector<16x128xf32>
      %153 = arith.addf %150, %152 : vector<16x128xf32>
      %cst_89 = arith.constant 0.000000e+00 : f32
      %154 = vector.broadcast %cst_89 : f32 to vector<16x128xf32>
      %155 = arith.maximumf %153, %154 : vector<16x128xf32>
      %c1_i32_90 = arith.constant 1 : i32
      %156 = tpu.dynamic_rotate %155 by %c1_i32_90 dim 0 : vector<16x128xf32>, i32 -> vector<16x128xf32>
      %cst_91 = arith.constant 0.000000e+00 : f32
      %157 = vector.shape_cast %121 : vector<16x1xi1> to vector<16x1xi1>
      %158 = vector.broadcast %157 : vector<16x1xi1> to vector<16x128xi1>
      %159 = vector.broadcast %cst_91 : f32 to vector<16x128xf32>
      %160 = arith.select %158, %156, %159 : vector<16x128xi1>, vector<16x128xf32>
      %c15_i32_92 = arith.constant 15 : i32
      %161 = tpu.dynamic_rotate %155 by %c15_i32_92 dim 0 : vector<16x128xf32>, i32 -> vector<16x128xf32>
      %cst_93 = arith.constant 0.000000e+00 : f32
      %162 = vector.shape_cast %123 : vector<16x1xi1> to vector<16x1xi1>
      %163 = vector.broadcast %162 : vector<16x1xi1> to vector<16x128xi1>
      %164 = vector.broadcast %cst_93 : f32 to vector<16x128xf32>
      %165 = arith.select %163, %161, %164 : vector<16x128xi1>, vector<16x128xf32>
      %166 = arith.truncf %160 : vector<16x128xf32> to vector<16x128xbf16>
      %c0_94 = arith.constant 0 : index
      %c0_95 = arith.constant 0 : index
      %c0_96 = arith.constant 0 : index
      %167 = vector.load %arg11[%c0_94, %c0_95, %c0_96] : memref<3x128x128xbf16, #tpu.memory_space<vmem>>, vector<1x128x128xbf16>
      %168 = vector.shape_cast %167 : vector<1x128x128xbf16> to vector<128x128xbf16>
      %cst_97 = arith.constant dense<0.000000e+00> : vector<16x128xf32>
      %169 = tpu.matmul %166, %168, %cst_97 {dimension_numbers = #tpu.dot_dimension_numbers<[1], [0], [0], [1], [0, 0, 1, 1], [], []>} : vector<16x128xbf16>, vector<128x128xbf16>, vector<16x128xf32> -> vector<16x128xf32>
      %170 = arith.truncf %155 : vector<16x128xf32> to vector<16x128xbf16>
      %c1_98 = arith.constant 1 : index
      %c0_99 = arith.constant 0 : index
      %c0_100 = arith.constant 0 : index
      %171 = vector.load %arg11[%c1_98, %c0_99, %c0_100] : memref<3x128x128xbf16, #tpu.memory_space<vmem>>, vector<1x128x128xbf16>
      %172 = vector.shape_cast %171 : vector<1x128x128xbf16> to vector<128x128xbf16>
      %cst_101 = arith.constant dense<0.000000e+00> : vector<16x128xf32>
      %173 = tpu.matmul %170, %172, %cst_101 {dimension_numbers = #tpu.dot_dimension_numbers<[1], [0], [0], [1], [0, 0, 1, 1], [], []>} : vector<16x128xbf16>, vector<128x128xbf16>, vector<16x128xf32> -> vector<16x128xf32>
      %174 = arith.addf %169, %173 : vector<16x128xf32>
      %175 = arith.truncf %165 : vector<16x128xf32> to vector<16x128xbf16>
      %c2_102 = arith.constant 2 : index
      %c0_103 = arith.constant 0 : index
      %c0_104 = arith.constant 0 : index
      %176 = vector.load %arg11[%c2_102, %c0_103, %c0_104] : memref<3x128x128xbf16, #tpu.memory_space<vmem>>, vector<1x128x128xbf16>
      %177 = vector.shape_cast %176 : vector<1x128x128xbf16> to vector<128x128xbf16>
      %cst_105 = arith.constant dense<0.000000e+00> : vector<16x128xf32>
      %178 = tpu.matmul %175, %177, %cst_105 {dimension_numbers = #tpu.dot_dimension_numbers<[1], [0], [0], [1], [0, 0, 1, 1], [], []>} : vector<16x128xbf16>, vector<128x128xbf16>, vector<16x128xf32> -> vector<16x128xf32>
      %179 = arith.addf %174, %178 : vector<16x128xf32>
      %c0_106 = arith.constant 0 : index
      %c0_107 = arith.constant 0 : index
      %180 = vector.load %arg12[%c0_106, %c0_107] : memref<1x128xf32, #tpu.memory_space<vmem>>, vector<1x128xf32>
      %181 = vector.broadcast %180 : vector<1x128xf32> to vector<16x128xf32>
      %182 = arith.mulf %179, %181 : vector<16x128xf32>
      %c0_108 = arith.constant 0 : index
      %c0_109 = arith.constant 0 : index
      %183 = vector.load %arg13[%c0_108, %c0_109] : memref<1x128xf32, #tpu.memory_space<vmem>>, vector<1x128xf32>
      %184 = vector.broadcast %183 : vector<1x128xf32> to vector<16x128xf32>
      %185 = arith.addf %182, %184 : vector<16x128xf32>
      %cst_110 = arith.constant 0.000000e+00 : f32
      %186 = vector.broadcast %cst_110 : f32 to vector<16x128xf32>
      %187 = arith.maximumf %185, %186 : vector<16x128xf32>
      %188 = tpu.iota {dimensions = array<i32: 0>} : vector<8x16xi32>
      %189 = tpu.iota {dimensions = array<i32: 1>} : vector<8x16xi32>
      %c2_i32_111 = arith.constant 2 : i32
      %190 = vector.broadcast %c2_i32_111 : i32 to vector<8x16xi32>
      %191 = arith.muli %190, %188 : vector<8x16xi32>
      %192 = arith.cmpi eq, %189, %191 : vector<8x16xi32>
      %cst_112 = arith.constant 1.000000e+00 : f32
      %cst_113 = arith.constant 0.000000e+00 : f32
      %193 = vector.broadcast %cst_112 : f32 to vector<8x16xf32>
      %194 = vector.broadcast %cst_113 : f32 to vector<8x16xf32>
      %195 = arith.select %192, %193, %194 : vector<8x16xi1>, vector<8x16xf32>
      %c2_i32_114 = arith.constant 2 : i32
      %196 = vector.broadcast %c2_i32_114 : i32 to vector<8x16xi32>
      %197 = arith.muli %196, %188 : vector<8x16xi32>
      %c1_i32_115 = arith.constant 1 : i32
      %198 = vector.broadcast %c1_i32_115 : i32 to vector<8x16xi32>
      %199 = arith.addi %197, %198 : vector<8x16xi32>
      %200 = arith.cmpi eq, %189, %199 : vector<8x16xi32>
      %cst_116 = arith.constant 1.000000e+00 : f32
      %cst_117 = arith.constant 0.000000e+00 : f32
      %201 = vector.broadcast %cst_116 : f32 to vector<8x16xf32>
      %202 = vector.broadcast %cst_117 : f32 to vector<8x16xf32>
      %203 = arith.select %200, %201, %202 : vector<8x16xi1>, vector<8x16xf32>
      %cst_118 = arith.constant dense<0.000000e+00> : vector<8x128xf32>
      %204 = tpu.matmul %195, %187, %cst_118 {dimension_numbers = #tpu.dot_dimension_numbers<[1], [0], [0], [1], [0, 0, 1, 1], [], []>} : vector<8x16xf32>, vector<16x128xf32>, vector<8x128xf32> -> vector<8x128xf32>
      %cst_119 = arith.constant dense<0.000000e+00> : vector<8x128xf32>
      %205 = tpu.matmul %203, %187, %cst_119 {dimension_numbers = #tpu.dot_dimension_numbers<[1], [0], [0], [1], [0, 0, 1, 1], [], []>} : vector<8x16xf32>, vector<16x128xf32>, vector<8x128xf32> -> vector<8x128xf32>
      %206 = arith.maximumf %204, %205 : vector<8x128xf32>
      %207 = tpu.iota {dimensions = array<i32: 0>} : vector<8x1xi32>
      %c3_i32_120 = arith.constant 3 : i32
      %208 = vector.broadcast %c3_i32_120 : i32 to vector<8x1xi32>
      %209 = arith.andi %207, %208 : vector<8x1xi32>
      %c0_i32_121 = arith.constant 0 : i32
      %210 = vector.broadcast %c0_i32_121 : i32 to vector<8x1xi32>
      %211 = arith.cmpi ne, %209, %210 : vector<8x1xi32>
      %c3_i32_122 = arith.constant 3 : i32
      %212 = vector.broadcast %c3_i32_122 : i32 to vector<8x1xi32>
      %213 = arith.cmpi ne, %209, %212 : vector<8x1xi32>
      %c1_i32_123 = arith.constant 1 : i32
      %214 = tpu.dynamic_rotate %206 by %c1_i32_123 dim 0 : vector<8x128xf32>, i32 -> vector<8x128xf32>
      %cst_124 = arith.constant 0.000000e+00 : f32
      %215 = vector.shape_cast %211 : vector<8x1xi1> to vector<8x1xi1>
      %216 = vector.broadcast %215 : vector<8x1xi1> to vector<8x128xi1>
      %217 = vector.broadcast %cst_124 : f32 to vector<8x128xf32>
      %218 = arith.select %216, %214, %217 : vector<8x128xi1>, vector<8x128xf32>
      %c7_i32_125 = arith.constant 7 : i32
      %219 = tpu.dynamic_rotate %206 by %c7_i32_125 dim 0 : vector<8x128xf32>, i32 -> vector<8x128xf32>
      %cst_126 = arith.constant 0.000000e+00 : f32
      %220 = vector.shape_cast %213 : vector<8x1xi1> to vector<8x1xi1>
      %221 = vector.broadcast %220 : vector<8x1xi1> to vector<8x128xi1>
      %222 = vector.broadcast %cst_126 : f32 to vector<8x128xf32>
      %223 = arith.select %221, %219, %222 : vector<8x128xi1>, vector<8x128xf32>
      %224 = arith.truncf %218 : vector<8x128xf32> to vector<8x128xbf16>
      %c0_127 = arith.constant 0 : index
      %c0_128 = arith.constant 0 : index
      %c0_129 = arith.constant 0 : index
      %225 = vector.load %arg14[%c0_127, %c0_128, %c0_129] : memref<3x128x256xbf16, #tpu.memory_space<vmem>>, vector<1x128x256xbf16>
      %226 = vector.shape_cast %225 : vector<1x128x256xbf16> to vector<128x256xbf16>
      %cst_130 = arith.constant dense<0.000000e+00> : vector<8x256xf32>
      %227 = tpu.matmul %224, %226, %cst_130 {dimension_numbers = #tpu.dot_dimension_numbers<[1], [0], [0], [1], [0, 0, 1, 1], [], []>} : vector<8x128xbf16>, vector<128x256xbf16>, vector<8x256xf32> -> vector<8x256xf32>
      %228 = arith.truncf %206 : vector<8x128xf32> to vector<8x128xbf16>
      %c1_131 = arith.constant 1 : index
      %c0_132 = arith.constant 0 : index
      %c0_133 = arith.constant 0 : index
      %229 = vector.load %arg14[%c1_131, %c0_132, %c0_133] : memref<3x128x256xbf16, #tpu.memory_space<vmem>>, vector<1x128x256xbf16>
      %230 = vector.shape_cast %229 : vector<1x128x256xbf16> to vector<128x256xbf16>
      %cst_134 = arith.constant dense<0.000000e+00> : vector<8x256xf32>
      %231 = tpu.matmul %228, %230, %cst_134 {dimension_numbers = #tpu.dot_dimension_numbers<[1], [0], [0], [1], [0, 0, 1, 1], [], []>} : vector<8x128xbf16>, vector<128x256xbf16>, vector<8x256xf32> -> vector<8x256xf32>
      %232 = arith.addf %227, %231 : vector<8x256xf32>
      %233 = arith.truncf %223 : vector<8x128xf32> to vector<8x128xbf16>
      %c2_135 = arith.constant 2 : index
      %c0_136 = arith.constant 0 : index
      %c0_137 = arith.constant 0 : index
      %234 = vector.load %arg14[%c2_135, %c0_136, %c0_137] : memref<3x128x256xbf16, #tpu.memory_space<vmem>>, vector<1x128x256xbf16>
      %235 = vector.shape_cast %234 : vector<1x128x256xbf16> to vector<128x256xbf16>
      %cst_138 = arith.constant dense<0.000000e+00> : vector<8x256xf32>
      %236 = tpu.matmul %233, %235, %cst_138 {dimension_numbers = #tpu.dot_dimension_numbers<[1], [0], [0], [1], [0, 0, 1, 1], [], []>} : vector<8x128xbf16>, vector<128x256xbf16>, vector<8x256xf32> -> vector<8x256xf32>
      %237 = arith.addf %232, %236 : vector<8x256xf32>
      %c0_139 = arith.constant 0 : index
      %c0_140 = arith.constant 0 : index
      %238 = vector.load %arg15[%c0_139, %c0_140] : memref<1x256xf32, #tpu.memory_space<vmem>>, vector<1x256xf32>
      %239 = vector.broadcast %238 : vector<1x256xf32> to vector<8x256xf32>
      %240 = arith.mulf %237, %239 : vector<8x256xf32>
      %c0_141 = arith.constant 0 : index
      %c0_142 = arith.constant 0 : index
      %241 = vector.load %arg16[%c0_141, %c0_142] : memref<1x256xf32, #tpu.memory_space<vmem>>, vector<1x256xf32>
      %242 = vector.broadcast %241 : vector<1x256xf32> to vector<8x256xf32>
      %243 = arith.addf %240, %242 : vector<8x256xf32>
      %cst_143 = arith.constant 0.000000e+00 : f32
      %244 = vector.broadcast %cst_143 : f32 to vector<8x256xf32>
      %245 = arith.maximumf %243, %244 : vector<8x256xf32>
      %c1_i32_144 = arith.constant 1 : i32
      %246 = tpu.dynamic_rotate %245 by %c1_i32_144 dim 0 : vector<8x256xf32>, i32 -> vector<8x256xf32>
      %cst_145 = arith.constant 0.000000e+00 : f32
      %247 = vector.shape_cast %211 : vector<8x1xi1> to vector<8x1xi1>
      %248 = vector.broadcast %247 : vector<8x1xi1> to vector<8x256xi1>
      %249 = vector.broadcast %cst_145 : f32 to vector<8x256xf32>
      %250 = arith.select %248, %246, %249 : vector<8x256xi1>, vector<8x256xf32>
      %c7_i32_146 = arith.constant 7 : i32
      %251 = tpu.dynamic_rotate %245 by %c7_i32_146 dim 0 : vector<8x256xf32>, i32 -> vector<8x256xf32>
      %cst_147 = arith.constant 0.000000e+00 : f32
      %252 = vector.shape_cast %213 : vector<8x1xi1> to vector<8x1xi1>
      %253 = vector.broadcast %252 : vector<8x1xi1> to vector<8x256xi1>
      %254 = vector.broadcast %cst_147 : f32 to vector<8x256xf32>
      %255 = arith.select %253, %251, %254 : vector<8x256xi1>, vector<8x256xf32>
      %256 = arith.truncf %250 : vector<8x256xf32> to vector<8x256xbf16>
      %c0_148 = arith.constant 0 : index
      %c0_149 = arith.constant 0 : index
      %c0_150 = arith.constant 0 : index
      %257 = vector.load %arg17[%c0_148, %c0_149, %c0_150] : memref<3x256x256xbf16, #tpu.memory_space<vmem>>, vector<1x256x256xbf16>
      %258 = vector.shape_cast %257 : vector<1x256x256xbf16> to vector<256x256xbf16>
      %cst_151 = arith.constant dense<0.000000e+00> : vector<8x256xf32>
      %259 = tpu.matmul %256, %258, %cst_151 {dimension_numbers = #tpu.dot_dimension_numbers<[1], [0], [0], [1], [0, 0, 1, 1], [], []>} : vector<8x256xbf16>, vector<256x256xbf16>, vector<8x256xf32> -> vector<8x256xf32>
      %260 = arith.truncf %245 : vector<8x256xf32> to vector<8x256xbf16>
      %c1_152 = arith.constant 1 : index
      %c0_153 = arith.constant 0 : index
      %c0_154 = arith.constant 0 : index
      %261 = vector.load %arg17[%c1_152, %c0_153, %c0_154] : memref<3x256x256xbf16, #tpu.memory_space<vmem>>, vector<1x256x256xbf16>
      %262 = vector.shape_cast %261 : vector<1x256x256xbf16> to vector<256x256xbf16>
      %cst_155 = arith.constant dense<0.000000e+00> : vector<8x256xf32>
      %263 = tpu.matmul %260, %262, %cst_155 {dimension_numbers = #tpu.dot_dimension_numbers<[1], [0], [0], [1], [0, 0, 1, 1], [], []>} : vector<8x256xbf16>, vector<256x256xbf16>, vector<8x256xf32> -> vector<8x256xf32>
      %264 = arith.addf %259, %263 : vector<8x256xf32>
      %265 = arith.truncf %255 : vector<8x256xf32> to vector<8x256xbf16>
      %c2_156 = arith.constant 2 : index
      %c0_157 = arith.constant 0 : index
      %c0_158 = arith.constant 0 : index
      %266 = vector.load %arg17[%c2_156, %c0_157, %c0_158] : memref<3x256x256xbf16, #tpu.memory_space<vmem>>, vector<1x256x256xbf16>
      %267 = vector.shape_cast %266 : vector<1x256x256xbf16> to vector<256x256xbf16>
      %cst_159 = arith.constant dense<0.000000e+00> : vector<8x256xf32>
      %268 = tpu.matmul %265, %267, %cst_159 {dimension_numbers = #tpu.dot_dimension_numbers<[1], [0], [0], [1], [0, 0, 1, 1], [], []>} : vector<8x256xbf16>, vector<256x256xbf16>, vector<8x256xf32> -> vector<8x256xf32>
      %269 = arith.addf %264, %268 : vector<8x256xf32>
      %c0_160 = arith.constant 0 : index
      %c0_161 = arith.constant 0 : index
      %270 = vector.load %arg18[%c0_160, %c0_161] : memref<1x256xf32, #tpu.memory_space<vmem>>, vector<1x256xf32>
      %271 = vector.broadcast %270 : vector<1x256xf32> to vector<8x256xf32>
      %272 = arith.mulf %269, %271 : vector<8x256xf32>
      %c0_162 = arith.constant 0 : index
      %c0_163 = arith.constant 0 : index
      %273 = vector.load %arg19[%c0_162, %c0_163] : memref<1x256xf32, #tpu.memory_space<vmem>>, vector<1x256xf32>
      %274 = vector.broadcast %273 : vector<1x256xf32> to vector<8x256xf32>
      %275 = arith.addf %272, %274 : vector<8x256xf32>
      %cst_164 = arith.constant 0.000000e+00 : f32
      %276 = vector.broadcast %cst_164 : f32 to vector<8x256xf32>
      %277 = arith.maximumf %275, %276 : vector<8x256xf32>
      %c1_i32_165 = arith.constant 1 : i32
      %278 = tpu.dynamic_rotate %277 by %c1_i32_165 dim 0 : vector<8x256xf32>, i32 -> vector<8x256xf32>
      %cst_166 = arith.constant 0.000000e+00 : f32
      %279 = vector.shape_cast %211 : vector<8x1xi1> to vector<8x1xi1>
      %280 = vector.broadcast %279 : vector<8x1xi1> to vector<8x256xi1>
      %281 = vector.broadcast %cst_166 : f32 to vector<8x256xf32>
      %282 = arith.select %280, %278, %281 : vector<8x256xi1>, vector<8x256xf32>
      %c7_i32_167 = arith.constant 7 : i32
      %283 = tpu.dynamic_rotate %277 by %c7_i32_167 dim 0 : vector<8x256xf32>, i32 -> vector<8x256xf32>
      %cst_168 = arith.constant 0.000000e+00 : f32
      %284 = vector.shape_cast %213 : vector<8x1xi1> to vector<8x1xi1>
      %285 = vector.broadcast %284 : vector<8x1xi1> to vector<8x256xi1>
      %286 = vector.broadcast %cst_168 : f32 to vector<8x256xf32>
      %287 = arith.select %285, %283, %286 : vector<8x256xi1>, vector<8x256xf32>
      %288 = arith.truncf %282 : vector<8x256xf32> to vector<8x256xbf16>
      %c0_169 = arith.constant 0 : index
      %c0_170 = arith.constant 0 : index
      %c0_171 = arith.constant 0 : index
      %289 = vector.load %arg20[%c0_169, %c0_170, %c0_171] : memref<3x256x256xbf16, #tpu.memory_space<vmem>>, vector<1x256x256xbf16>
      %290 = vector.shape_cast %289 : vector<1x256x256xbf16> to vector<256x256xbf16>
      %cst_172 = arith.constant dense<0.000000e+00> : vector<8x256xf32>
      %291 = tpu.matmul %288, %290, %cst_172 {dimension_numbers = #tpu.dot_dimension_numbers<[1], [0], [0], [1], [0, 0, 1, 1], [], []>} : vector<8x256xbf16>, vector<256x256xbf16>, vector<8x256xf32> -> vector<8x256xf32>
      %292 = arith.truncf %277 : vector<8x256xf32> to vector<8x256xbf16>
      %c1_173 = arith.constant 1 : index
      %c0_174 = arith.constant 0 : index
      %c0_175 = arith.constant 0 : index
      %293 = vector.load %arg20[%c1_173, %c0_174, %c0_175] : memref<3x256x256xbf16, #tpu.memory_space<vmem>>, vector<1x256x256xbf16>
      %294 = vector.shape_cast %293 : vector<1x256x256xbf16> to vector<256x256xbf16>
      %cst_176 = arith.constant dense<0.000000e+00> : vector<8x256xf32>
      %295 = tpu.matmul %292, %294, %cst_176 {dimension_numbers = #tpu.dot_dimension_numbers<[1], [0], [0], [1], [0, 0, 1, 1], [], []>} : vector<8x256xbf16>, vector<256x256xbf16>, vector<8x256xf32> -> vector<8x256xf32>
      %296 = arith.addf %291, %295 : vector<8x256xf32>
      %297 = arith.truncf %287 : vector<8x256xf32> to vector<8x256xbf16>
      %c2_177 = arith.constant 2 : index
      %c0_178 = arith.constant 0 : index
      %c0_179 = arith.constant 0 : index
      %298 = vector.load %arg20[%c2_177, %c0_178, %c0_179] : memref<3x256x256xbf16, #tpu.memory_space<vmem>>, vector<1x256x256xbf16>
      %299 = vector.shape_cast %298 : vector<1x256x256xbf16> to vector<256x256xbf16>
      %cst_180 = arith.constant dense<0.000000e+00> : vector<8x256xf32>
      %300 = tpu.matmul %297, %299, %cst_180 {dimension_numbers = #tpu.dot_dimension_numbers<[1], [0], [0], [1], [0, 0, 1, 1], [], []>} : vector<8x256xbf16>, vector<256x256xbf16>, vector<8x256xf32> -> vector<8x256xf32>
      %301 = arith.addf %296, %300 : vector<8x256xf32>
      %c0_181 = arith.constant 0 : index
      %c0_182 = arith.constant 0 : index
      %302 = vector.load %arg21[%c0_181, %c0_182] : memref<1x256xf32, #tpu.memory_space<vmem>>, vector<1x256xf32>
      %303 = vector.broadcast %302 : vector<1x256xf32> to vector<8x256xf32>
      %304 = arith.mulf %301, %303 : vector<8x256xf32>
      %c0_183 = arith.constant 0 : index
      %c0_184 = arith.constant 0 : index
      %305 = vector.load %arg22[%c0_183, %c0_184] : memref<1x256xf32, #tpu.memory_space<vmem>>, vector<1x256xf32>
      %306 = vector.broadcast %305 : vector<1x256xf32> to vector<8x256xf32>
      %307 = arith.addf %304, %306 : vector<8x256xf32>
      %cst_185 = arith.constant 0.000000e+00 : f32
      %308 = vector.broadcast %cst_185 : f32 to vector<8x256xf32>
      %309 = arith.maximumf %307, %308 : vector<8x256xf32>
      %c1_i32_186 = arith.constant 1 : i32
      %310 = tpu.dynamic_rotate %309 by %c1_i32_186 dim 0 : vector<8x256xf32>, i32 -> vector<8x256xf32>
      %cst_187 = arith.constant 0.000000e+00 : f32
      %311 = vector.shape_cast %211 : vector<8x1xi1> to vector<8x1xi1>
      %312 = vector.broadcast %311 : vector<8x1xi1> to vector<8x256xi1>
      %313 = vector.broadcast %cst_187 : f32 to vector<8x256xf32>
      %314 = arith.select %312, %310, %313 : vector<8x256xi1>, vector<8x256xf32>
      %c7_i32_188 = arith.constant 7 : i32
      %315 = tpu.dynamic_rotate %309 by %c7_i32_188 dim 0 : vector<8x256xf32>, i32 -> vector<8x256xf32>
      %cst_189 = arith.constant 0.000000e+00 : f32
      %316 = vector.shape_cast %213 : vector<8x1xi1> to vector<8x1xi1>
      %317 = vector.broadcast %316 : vector<8x1xi1> to vector<8x256xi1>
      %318 = vector.broadcast %cst_189 : f32 to vector<8x256xf32>
      %319 = arith.select %317, %315, %318 : vector<8x256xi1>, vector<8x256xf32>
      %320 = arith.truncf %314 : vector<8x256xf32> to vector<8x256xbf16>
      %c0_190 = arith.constant 0 : index
      %c0_191 = arith.constant 0 : index
      %c0_192 = arith.constant 0 : index
      %321 = vector.load %arg23[%c0_190, %c0_191, %c0_192] : memref<3x256x512xbf16, #tpu.memory_space<vmem>>, vector<1x256x512xbf16>
      %322 = vector.shape_cast %321 : vector<1x256x512xbf16> to vector<256x512xbf16>
      %cst_193 = arith.constant dense<0.000000e+00> : vector<8x512xf32>
      %323 = tpu.matmul %320, %322, %cst_193 {dimension_numbers = #tpu.dot_dimension_numbers<[1], [0], [0], [1], [0, 0, 1, 1], [], []>} : vector<8x256xbf16>, vector<256x512xbf16>, vector<8x512xf32> -> vector<8x512xf32>
      %324 = arith.truncf %309 : vector<8x256xf32> to vector<8x256xbf16>
      %c1_194 = arith.constant 1 : index
      %c0_195 = arith.constant 0 : index
      %c0_196 = arith.constant 0 : index
      %325 = vector.load %arg23[%c1_194, %c0_195, %c0_196] : memref<3x256x512xbf16, #tpu.memory_space<vmem>>, vector<1x256x512xbf16>
      %326 = vector.shape_cast %325 : vector<1x256x512xbf16> to vector<256x512xbf16>
      %cst_197 = arith.constant dense<0.000000e+00> : vector<8x512xf32>
      %327 = tpu.matmul %324, %326, %cst_197 {dimension_numbers = #tpu.dot_dimension_numbers<[1], [0], [0], [1], [0, 0, 1, 1], [], []>} : vector<8x256xbf16>, vector<256x512xbf16>, vector<8x512xf32> -> vector<8x512xf32>
      %328 = arith.addf %323, %327 : vector<8x512xf32>
      %329 = arith.truncf %319 : vector<8x256xf32> to vector<8x256xbf16>
      %c2_198 = arith.constant 2 : index
      %c0_199 = arith.constant 0 : index
      %c0_200 = arith.constant 0 : index
      %330 = vector.load %arg23[%c2_198, %c0_199, %c0_200] : memref<3x256x512xbf16, #tpu.memory_space<vmem>>, vector<1x256x512xbf16>
      %331 = vector.shape_cast %330 : vector<1x256x512xbf16> to vector<256x512xbf16>
      %cst_201 = arith.constant dense<0.000000e+00> : vector<8x512xf32>
      %332 = tpu.matmul %329, %331, %cst_201 {dimension_numbers = #tpu.dot_dimension_numbers<[1], [0], [0], [1], [0, 0, 1, 1], [], []>} : vector<8x256xbf16>, vector<256x512xbf16>, vector<8x512xf32> -> vector<8x512xf32>
      %333 = arith.addf %328, %332 : vector<8x512xf32>
      %c0_202 = arith.constant 0 : index
      %c0_203 = arith.constant 0 : index
      %334 = vector.load %arg24[%c0_202, %c0_203] : memref<1x512xf32, #tpu.memory_space<vmem>>, vector<1x512xf32>
      %335 = vector.broadcast %334 : vector<1x512xf32> to vector<8x512xf32>
      %336 = arith.mulf %333, %335 : vector<8x512xf32>
      %c0_204 = arith.constant 0 : index
      %c0_205 = arith.constant 0 : index
      %337 = vector.load %arg25[%c0_204, %c0_205] : memref<1x512xf32, #tpu.memory_space<vmem>>, vector<1x512xf32>
      %338 = vector.broadcast %337 : vector<1x512xf32> to vector<8x512xf32>
      %339 = arith.addf %336, %338 : vector<8x512xf32>
      %cst_206 = arith.constant 0.000000e+00 : f32
      %340 = vector.broadcast %cst_206 : f32 to vector<8x512xf32>
      %341 = arith.maximumf %339, %340 : vector<8x512xf32>
      %342 = tpu.iota {dimensions = array<i32: 0>} : vector<2x8xi32>
      %343 = tpu.iota {dimensions = array<i32: 1>} : vector<2x8xi32>
      %c4_i32 = arith.constant 4 : i32
      %344 = vector.broadcast %c4_i32 : i32 to vector<2x8xi32>
      %345 = arith.muli %342, %344 : vector<2x8xi32>
      %346 = arith.cmpi sge, %343, %345 : vector<2x8xi32>
      %c1_i32_207 = arith.constant 1 : i32
      %347 = vector.broadcast %c1_i32_207 : i32 to vector<2x8xi32>
      %348 = arith.addi %342, %347 : vector<2x8xi32>
      %c4_i32_208 = arith.constant 4 : i32
      %349 = vector.broadcast %c4_i32_208 : i32 to vector<2x8xi32>
      %350 = arith.muli %348, %349 : vector<2x8xi32>
      %351 = arith.cmpi slt, %343, %350 : vector<2x8xi32>
      %352 = arith.andi %346, %351 : vector<2x8xi1>
      %cst_209 = arith.constant 1.000000e+00 : f32
      %cst_210 = arith.constant 0.000000e+00 : f32
      %353 = vector.broadcast %cst_209 : f32 to vector<2x8xf32>
      %354 = vector.broadcast %cst_210 : f32 to vector<2x8xf32>
      %355 = arith.select %352, %353, %354 : vector<2x8xi1>, vector<2x8xf32>
      %cst_211 = arith.constant dense<0.000000e+00> : vector<2x512xf32>
      %356 = tpu.matmul %355, %341, %cst_211 {dimension_numbers = #tpu.dot_dimension_numbers<[1], [0], [0], [1], [0, 0, 1, 1], [], []>} : vector<2x8xf32>, vector<8x512xf32>, vector<2x512xf32> -> vector<2x512xf32>
      %cst_212 = arith.constant 2.500000e-01 : f32
      %357 = vector.broadcast %cst_212 : f32 to vector<2x512xf32>
      %358 = arith.mulf %356, %357 : vector<2x512xf32>
      %c0_213 = arith.constant 0 : index
      %c0_214 = arith.constant 0 : index
      %359 = vector.load %arg32[%c0_213, %c0_214] : memref<2x512xf32, #tpu.memory_space<vmem>>, vector<2x512xf32>
      tpu.vector_store %arg32[%c0_213, %c0_214], %358 {strides = array<i32>} : memref<2x512xf32, #tpu.memory_space<vmem>>, vector<2x512xf32>,
      %cst_215 = arith.constant 0.000000e+00 : f32
      %360 = vector.broadcast %cst_215 : f32 to vector<2x1xf32>
      %c0_216 = arith.constant 0 : index
      %c0_217 = arith.constant 0 : index
      %361 = vector.load %arg33[%c0_216, %c0_217] : memref<2x1xf32, #tpu.memory_space<vmem>>, vector<2x1xf32>
      tpu.vector_store %arg33[%c0_216, %c0_217], %360 {strides = array<i32>} : memref<2x1xf32, #tpu.memory_space<vmem>>, vector<2x1xf32>,
    } else {
    }
    %c0 = arith.constant 0 : index
    %c0_1 = arith.constant 0 : index
    %3 = vector.load %arg26[%c0, %c0_1] : memref<512x1024xi8, #tpu.memory_space<vmem>>, vector<512x1024xi8>
    %4 = arith.sitofp %3 : vector<512x1024xi8> to vector<512x1024xf32>
    %c0_2 = arith.constant 0 : index
    %c0_3 = arith.constant 0 : index
    %5 = vector.load %arg32[%c0_2, %c0_3] : memref<2x512xf32, #tpu.memory_space<vmem>>, vector<2x512xf32>
    %cst = arith.constant dense<0.000000e+00> : vector<2x1024xf32>
    %6 = tpu.matmul %5, %4, %cst {dimension_numbers = #tpu.dot_dimension_numbers<[1], [0], [0], [1], [0, 0, 1, 1], [], []>} : vector<2x512xf32>, vector<512x1024xf32>, vector<2x1024xf32> -> vector<2x1024xf32>
    %c0_4 = arith.constant 0 : index
    %c0_5 = arith.constant 0 : index
    %7 = vector.load %arg27[%c0_4, %c0_5] : memref<1x1024xf32, #tpu.memory_space<vmem>>, vector<1x1024xf32>
    %8 = vector.broadcast %7 : vector<1x1024xf32> to vector<2x1024xf32>
    %9 = arith.mulf %6, %8 : vector<2x1024xf32>
    %c0_6 = arith.constant 0 : index
    %c0_7 = arith.constant 0 : index
    %10 = vector.load %arg28[%c0_6, %c0_7] : memref<1x1024xf32, #tpu.memory_space<vmem>>, vector<1x1024xf32>
    %11 = vector.broadcast %10 : vector<1x1024xf32> to vector<2x1024xf32>
    %12 = arith.addf %9, %11 : vector<2x1024xf32>
    %cst_8 = arith.constant 0.000000e+00 : f32
    %13 = vector.broadcast %cst_8 : f32 to vector<2x1024xf32>
    %14 = arith.maximumf %12, %13 : vector<2x1024xf32>
    %c0_9 = arith.constant 0 : index
    %c0_10 = arith.constant 0 : index
    %15 = vector.load %arg33[%c0_9, %c0_10] : memref<2x1xf32, #tpu.memory_space<vmem>>, vector<2x1xf32>
    %c0_11 = arith.constant 0 : index
    %c0_12 = arith.constant 0 : index
    %16 = vector.load %arg29[%c0_11, %c0_12] : memref<1x1024xf32, #tpu.memory_space<vmem>>, vector<1x1024xf32>
    %17 = vector.broadcast %16 : vector<1x1024xf32> to vector<2x1024xf32>
    %18 = arith.mulf %14, %17 : vector<2x1024xf32>
    %cst_13 = arith.constant dense<0.000000e+00> : vector<2xf32>
    %19 = vector.multi_reduction <add>, %18, %cst_13 [1] : vector<2x1024xf32> to vector<2xf32>
    %20 = vector.shape_cast %19 : vector<2xf32> to vector<2x1xf32>
    %21 = arith.addf %15, %20 : vector<2x1xf32>
    %c0_14 = arith.constant 0 : index
    %c0_15 = arith.constant 0 : index
    %22 = vector.load %arg33[%c0_14, %c0_15] : memref<2x1xf32, #tpu.memory_space<vmem>>, vector<2x1xf32>
    tpu.vector_store %arg33[%c0_14, %c0_15], %21 {strides = array<i32>} : memref<2x1xf32, #tpu.memory_space<vmem>>, vector<2x1xf32>,
    %c3_i32 = arith.constant 3 : i32
    %23 = arith.cmpi eq, %arg0, %c3_i32 : i32
    %24 = arith.extui %23 : i1 to i32
    %c0_i32_16 = arith.constant 0 : i32
    %25 = arith.cmpi ne, %24, %c0_i32_16 : i32
    scf.if %25 {
      %c0_17 = arith.constant 0 : index
      %c0_18 = arith.constant 0 : index
      %26 = vector.load %arg33[%c0_17, %c0_18] : memref<2x1xf32, #tpu.memory_space<vmem>>, vector<2x1xf32>
      %c0_19 = arith.constant 0 : index
      %c0_20 = arith.constant 0 : index
      %27 = vector.load %arg30[%c0_19, %c0_20] : memref<1x1xf32, #tpu.memory_space<vmem>>, vector<1x1xf32>
      %28 = vector.broadcast %27 : vector<1x1xf32> to vector<2x1xf32>
      %29 = arith.addf %26, %28 : vector<2x1xf32>
      %cst_21 = arith.constant 0.000000e+00 : f32
      %30 = vector.broadcast %cst_21 : f32 to vector<2x1xf32>
      %31 = arith.subf %30, %29 : vector<2x1xf32>
      %32 = math.exp %31 : vector<2x1xf32>
      %cst_22 = arith.constant 1.000000e+00 : f32
      %33 = vector.broadcast %cst_22 : f32 to vector<2x1xf32>
      %34 = arith.addf %33, %32 : vector<2x1xf32>
      %cst_23 = arith.constant 1.000000e+00 : f32
      %35 = vector.broadcast %cst_23 : f32 to vector<2x1xf32>
      %36 = arith.divf %35, %34 : vector<2x1xf32>
      %c0_24 = arith.constant 0 : index
      %c0_25 = arith.constant 0 : index
      %37 = vector.load %arg31[%c0_24, %c0_25] : memref<2x1xf32, #tpu.memory_space<vmem>>, vector<2x1xf32>
      tpu.vector_store %arg31[%c0_24, %c0_25], %36 {strides = array<i32>} : memref<2x1xf32, #tpu.memory_space<vmem>>, vector<2x1xf32>,
    } else {
    }
    return
  }
  func.func @transform_0(%arg0: i32) -> (i32, i32) {
    %c0_i32 = arith.constant 0 : i32
    %c0_i32_0 = arith.constant 0 : i32
    %c0_i32_1 = arith.constant 0 : i32
    return %c0_i32, %c0_i32_0 : i32, i32
  }
  func.func @transform_1(%arg0: i32) -> (i32, i32, i32) {
    %c0_i32 = arith.constant 0 : i32
    %c0_i32_0 = arith.constant 0 : i32
    %c0_i32_1 = arith.constant 0 : i32
    %c0_i32_2 = arith.constant 0 : i32
    return %c0_i32, %c0_i32_0, %c0_i32_1 : i32, i32, i32
  }
  func.func @transform_2(%arg0: i32) -> (i32, i32) {
    %c0_i32 = arith.constant 0 : i32
    %c0_i32_0 = arith.constant 0 : i32
    %c0_i32_1 = arith.constant 0 : i32
    return %c0_i32, %c0_i32_0 : i32, i32
  }
  func.func @transform_3(%arg0: i32) -> (i32, i32) {
    %c0_i32 = arith.constant 0 : i32
    %c0_i32_0 = arith.constant 0 : i32
    %c0_i32_1 = arith.constant 0 : i32
    return %c0_i32, %c0_i32_0 : i32, i32
  }
  func.func @transform_4(%arg0: i32) -> (i32, i32, i32) {
    %c0_i32 = arith.constant 0 : i32
    %c0_i32_0 = arith.constant 0 : i32
    %c0_i32_1 = arith.constant 0 : i32
    %c0_i32_2 = arith.constant 0 : i32
    return %c0_i32, %c0_i32_0, %c0_i32_1 : i32, i32, i32
  }
  func.func @transform_5(%arg0: i32) -> (i32, i32) {
    %c0_i32 = arith.constant 0 : i32
    %c0_i32_0 = arith.constant 0 : i32
    %c0_i32_1 = arith.constant 0 : i32
    return %c0_i32, %c0_i32_0 : i32, i32
  }
  func.func @transform_6(%arg0: i32) -> (i32, i32) {
    %c0_i32 = arith.constant 0 : i32
    %c0_i32_0 = arith.constant 0 : i32
    %c0_i32_1 = arith.constant 0 : i32
    return %c0_i32, %c0_i32_0 : i32, i32
  }
  func.func @transform_7(%arg0: i32) -> (i32, i32, i32) {
    %c0_i32 = arith.constant 0 : i32
    %c0_i32_0 = arith.constant 0 : i32
    %c0_i32_1 = arith.constant 0 : i32
    %c0_i32_2 = arith.constant 0 : i32
    return %c0_i32, %c0_i32_0, %c0_i32_1 : i32, i32, i32
  }
  func.func @transform_8(%arg0: i32) -> (i32, i32) {
    %c0_i32 = arith.constant 0 : i32
    %c0_i32_0 = arith.constant 0 : i32
    %c0_i32_1 = arith.constant 0 : i32
    return %c0_i32, %c0_i32_0 : i32, i32
  }
  func.func @transform_9(%arg0: i32) -> (i32, i32) {
    %c0_i32 = arith.constant 0 : i32
    %c0_i32_0 = arith.constant 0 : i32
    %c0_i32_1 = arith.constant 0 : i32
    return %c0_i32, %c0_i32_0 : i32, i32
  }
  func.func @transform_10(%arg0: i32) -> (i32, i32, i32) {
    %c0_i32 = arith.constant 0 : i32
    %c0_i32_0 = arith.constant 0 : i32
    %c0_i32_1 = arith.constant 0 : i32
    %c0_i32_2 = arith.constant 0 : i32
    return %c0_i32, %c0_i32_0, %c0_i32_1 : i32, i32, i32
  }
  func.func @transform_11(%arg0: i32) -> (i32, i32) {
    %c0_i32 = arith.constant 0 : i32
    %c0_i32_0 = arith.constant 0 : i32
    %c0_i32_1 = arith.constant 0 : i32
    return %c0_i32, %c0_i32_0 : i32, i32
  }
  func.func @transform_12(%arg0: i32) -> (i32, i32) {
    %c0_i32 = arith.constant 0 : i32
    %c0_i32_0 = arith.constant 0 : i32
    %c0_i32_1 = arith.constant 0 : i32
    return %c0_i32, %c0_i32_0 : i32, i32
  }
  func.func @transform_13(%arg0: i32) -> (i32, i32, i32) {
    %c0_i32 = arith.constant 0 : i32
    %c0_i32_0 = arith.constant 0 : i32
    %c0_i32_1 = arith.constant 0 : i32
    %c0_i32_2 = arith.constant 0 : i32
    return %c0_i32, %c0_i32_0, %c0_i32_1 : i32, i32, i32
  }
  func.func @transform_14(%arg0: i32) -> (i32, i32) {
    %c0_i32 = arith.constant 0 : i32
    %c0_i32_0 = arith.constant 0 : i32
    %c0_i32_1 = arith.constant 0 : i32
    return %c0_i32, %c0_i32_0 : i32, i32
  }
  func.func @transform_15(%arg0: i32) -> (i32, i32) {
    %c0_i32 = arith.constant 0 : i32
    %c0_i32_0 = arith.constant 0 : i32
    %c0_i32_1 = arith.constant 0 : i32
    return %c0_i32, %c0_i32_0 : i32, i32
  }
  func.func @transform_16(%arg0: i32) -> (i32, i32, i32) {
    %c0_i32 = arith.constant 0 : i32
    %c0_i32_0 = arith.constant 0 : i32
    %c0_i32_1 = arith.constant 0 : i32
    %c0_i32_2 = arith.constant 0 : i32
    return %c0_i32, %c0_i32_0, %c0_i32_1 : i32, i32, i32
  }
  func.func @transform_17(%arg0: i32) -> (i32, i32) {
    %c0_i32 = arith.constant 0 : i32
    %c0_i32_0 = arith.constant 0 : i32
    %c0_i32_1 = arith.constant 0 : i32
    return %c0_i32, %c0_i32_0 : i32, i32
  }
  func.func @transform_18(%arg0: i32) -> (i32, i32) {
    %c0_i32 = arith.constant 0 : i32
    %c0_i32_0 = arith.constant 0 : i32
    %c0_i32_1 = arith.constant 0 : i32
    return %c0_i32, %c0_i32_0 : i32, i32
  }
  func.func @transform_19(%arg0: i32) -> (i32, i32, i32) {
    %c0_i32 = arith.constant 0 : i32
    %c0_i32_0 = arith.constant 0 : i32
    %c0_i32_1 = arith.constant 0 : i32
    %c0_i32_2 = arith.constant 0 : i32
    return %c0_i32, %c0_i32_0, %c0_i32_1 : i32, i32, i32
  }
  func.func @transform_20(%arg0: i32) -> (i32, i32) {
    %c0_i32 = arith.constant 0 : i32
    %c0_i32_0 = arith.constant 0 : i32
    %c0_i32_1 = arith.constant 0 : i32
    return %c0_i32, %c0_i32_0 : i32, i32
  }
  func.func @transform_21(%arg0: i32) -> (i32, i32) {
    %c0_i32 = arith.constant 0 : i32
    %c0_i32_0 = arith.constant 0 : i32
    %c0_i32_1 = arith.constant 0 : i32
    return %c0_i32, %c0_i32_0 : i32, i32
  }
  func.func @transform_22(%arg0: i32) -> (i32, i32, i32) {
    %c0_i32 = arith.constant 0 : i32
    %c0_i32_0 = arith.constant 0 : i32
    %c0_i32_1 = arith.constant 0 : i32
    %c0_i32_2 = arith.constant 0 : i32
    return %c0_i32, %c0_i32_0, %c0_i32_1 : i32, i32, i32
  }
  func.func @transform_23(%arg0: i32) -> (i32, i32) {
    %c0_i32 = arith.constant 0 : i32
    %c0_i32_0 = arith.constant 0 : i32
    %c0_i32_1 = arith.constant 0 : i32
    return %c0_i32, %c0_i32_0 : i32, i32
  }
  func.func @transform_24(%arg0: i32) -> (i32, i32) {
    %c0_i32 = arith.constant 0 : i32
    %c0_i32_0 = arith.constant 0 : i32
    %c0_i32_1 = arith.constant 0 : i32
    return %c0_i32, %c0_i32_0 : i32, i32
  }
  func.func @transform_25(%arg0: i32) -> (i32, i32) {
    %c0_i32 = arith.constant 0 : i32
    %c0_i32_0 = arith.constant 0 : i32
    return %c0_i32, %arg0 : i32, i32
  }
  func.func @transform_26(%arg0: i32) -> (i32, i32) {
    %c0_i32 = arith.constant 0 : i32
    %c0_i32_0 = arith.constant 0 : i32
    return %c0_i32, %arg0 : i32, i32
  }
  func.func @transform_27(%arg0: i32) -> (i32, i32) {
    %c0_i32 = arith.constant 0 : i32
    %c0_i32_0 = arith.constant 0 : i32
    return %c0_i32, %arg0 : i32, i32
  }
  func.func @transform_28(%arg0: i32) -> (i32, i32) {
    %c0_i32 = arith.constant 0 : i32
    %c0_i32_0 = arith.constant 0 : i32
    return %c0_i32, %arg0 : i32, i32
  }
  func.func @transform_29(%arg0: i32) -> (i32, i32) {
    %c0_i32 = arith.constant 0 : i32
    %c0_i32_0 = arith.constant 0 : i32
    %c0_i32_1 = arith.constant 0 : i32
    return %c0_i32, %c0_i32_0 : i32, i32
  }
  func.func @transform_30(%arg0: i32) -> (i32, i32) {
    %c0_i32 = arith.constant 0 : i32
    %c0_i32_0 = arith.constant 0 : i32
    %c0_i32_1 = arith.constant 0 : i32
    return %c0_i32, %c0_i32_0 : i32, i32
  }
}

</mosaic_0001>

<llo_original>
// kernel: vgg1d_forward.1
$region0: #{vgg1d_forward.1}
  #allocation0 [shape = 'u32[]', space=smem, size = 0x4, offset = 0x4, fixed_abs, tag = 'smem constant byte address 0x4 - core index']
  #allocation1 [shape = 'u32[144,128]{1,0:T(1,128)}', space=vmem, size = 0x12000, scoped, tag = 'internal scratch']
  #allocation2 [shape = 'f32[2,512]{1,0:T(2,128)}', space=vmem, size = 0x1000, scoped, tag = 'scratch operand']
  #allocation3 [shape = 'f32[2,1]{1,0:T(2,128)}', space=vmem, size = 0x400, scoped, tag = 'scratch operand']
  #allocation4 [shape = 'f32[1,1]{1,0:T(1,128)S(1)}', space=vmem, size = 0x200, scoped, tag = 'scoped memory for vgg1d_forward.1']
  %s0 = inlined_call_operand.smem [shape: u32[31], index: -1, kind: input, shape index: {}]
  %s1 = sld [smem:[%s0]]
  %s2 = scalar_lea.smem %s0, 1
  %s3 = sld [smem:[%s2]]
  %s4 = scalar_lea.smem %s0, 2
  %s5 = sld [smem:[%s4]]
  %s6 = scalar_lea.smem %s0, 3
  %s7 = sld [smem:[%s6]]
  %s8 = scalar_lea.smem %s0, 4
  %s9 = sld [smem:[%s8]]
  %s10 = scalar_lea.smem %s0, 5
  %s11 = sld [smem:[%s10]]
  %s12 = scalar_lea.smem %s0, 6
  %s13 = sld [smem:[%s12]]
  %s14 = scalar_lea.smem %s0, 7
  %s15 = sld [smem:[%s14]]
  %s16 = scalar_lea.smem %s0, 8
  %s17 = sld [smem:[%s16]]
  %s18 = scalar_lea.smem %s0, 9
  %s19 = sld [smem:[%s18]]
  %s20 = scalar_lea.smem %s0, 10
  %s21 = sld [smem:[%s20]]
  %s22 = scalar_lea.smem %s0, 11
  %s23 = sld [smem:[%s22]]
  %s24 = scalar_lea.smem %s0, 12
  %s25 = sld [smem:[%s24]]
  %s26 = scalar_lea.smem %s0, 13
  %s27 = sld [smem:[%s26]]
  %s28 = scalar_lea.smem %s0, 14
  %s29 = sld [smem:[%s28]]
  %s30 = scalar_lea.smem %s0, 15
  %s31 = sld [smem:[%s30]]
  %s32 = scalar_lea.smem %s0, 16
  %s33 = sld [smem:[%s32]]
  %s34 = scalar_lea.smem %s0, 17
  %s35 = sld [smem:[%s34]]
  %s36 = scalar_lea.smem %s0, 18
  %s37 = sld [smem:[%s36]]
  %s38 = scalar_lea.smem %s0, 19
  %s39 = sld [smem:[%s38]]
  %s40 = scalar_lea.smem %s0, 20
  %s41 = sld [smem:[%s40]]
  %s42 = scalar_lea.smem %s0, 21
  %s43 = sld [smem:[%s42]]
  %s44 = scalar_lea.smem %s0, 22
  %s45 = sld [smem:[%s44]]
  %s46 = scalar_lea.smem %s0, 23
  %s47 = sld [smem:[%s46]]
  %s48 = scalar_lea.smem %s0, 24
  %s49 = sld [smem:[%s48]]
  %s50 = scalar_lea.smem %s0, 25
  %s51 = sld [smem:[%s50]]
  %s52 = scalar_lea.smem %s0, 26
  %s53 = sld [smem:[%s52]]
  %s54 = scalar_lea.smem %s0, 27
  %s55 = sld [smem:[%s54]]
  %s56 = scalar_lea.smem %s0, 28
  %s57 = sld [smem:[%s56]]
  %s58 = scalar_lea.smem %s0, 29
  %s59 = sld [smem:[%s58]]
  %s60 = scalar_lea.smem %s0, 30
  %s61 = sld [smem:[%s60]]
  %s62 = sld [smem:[#allocation0]]
  $region273: #{vgg1d_forward.1} parent=0
    _
  %s64 = ssub.s32 1, %s62
  %s65 = scalar_select 0, %s64, %s62
  %v66 = vstv %s59
  %67 = vst [vmem:[#allocation4] sm:$0x1] %v66
  $region1: #{vgg1d_forward.1} parent=0
    #allocation5 [shape = 'u8[1536]{0}', space=vmem, size = 0x800, scoped, tag = 'input window, operand 1, single buffered']
    #allocation6 [shape = 's32[2]{0}', space=sflag, size = 0x8, scoped, tag = 'scoped memory for vgg1d_forward.1']
    #allocation7 [shape = 'u8[512]{0}', space=vmem, size = 0x400, scoped, tag = 'input window, operand 2, single buffered']
    #allocation8 [shape = 's32[1]{0}', space=sflag, size = 0x4, scoped, tag = 'scoped memory for vgg1d_forward.1']
    #allocation9 [shape = 'u8[512]{0}', space=vmem, size = 0x400, scoped, tag = 'input window, operand 3, single buffered']
    #allocation10 [shape = 'u8[49152]{0}', space=vmem, size = 0xc000, scoped, tag = 'input window, operand 4, single buffered']
    #allocation11 [shape = 's32[1]{0}', space=sflag, size = 0x4, scoped, tag = 'scoped memory for vgg1d_forward.1']
    #allocation12 [shape = 'u8[512]{0}', space=vmem, size = 0x400, scoped, tag = 'input window, operand 5, single buffered']
    #allocation13 [shape = 'u8[512]{0}', space=vmem, size = 0x400, scoped, tag = 'input window, operand 6, single buffered']
    #allocation14 [shape = 's32[1]{0}', space=sflag, size = 0x4, scoped, tag = 'scoped memory for vgg1d_forward.1']
    #allocation15 [shape = 'u8[49152]{0}', space=vmem, size = 0xc000, scoped, tag = 'input window, operand 7, single buffered']
    #allocation16 [shape = 'u8[512]{0}', space=vmem, size = 0x400, scoped, tag = 'input window, operand 8, single buffered']
    #allocation17 [shape = 's32[1]{0}', space=sflag, size = 0x4, scoped, tag = 'scoped memory for vgg1d_forward.1']
    #allocation18 [shape = 'u8[512]{0}', space=vmem, size = 0x400, scoped, tag = 'input window, operand 9, single buffered']
    #allocation19 [shape = 'u8[98304]{0}', space=vmem, size = 0x18000, scoped, tag = 'input window, operand 10, single buffered']
    #allocation20 [shape = 's32[1]{0}', space=sflag, size = 0x4, scoped, tag = 'scoped memory for vgg1d_forward.1']
    #allocation21 [shape = 'u8[512]{0}', space=vmem, size = 0x400, scoped, tag = 'input window, operand 11, single buffered']
    #allocation22 [shape = 'u8[512]{0}', space=vmem, size = 0x400, scoped, tag = 'input window, operand 12, single buffered']
    #allocation23 [shape = 's32[1]{0}', space=sflag, size = 0x4, scoped, tag = 'scoped memory for vgg1d_forward.1']
    #allocation24 [shape = 'u8[196608]{0}', space=vmem, size = 0x30000, scoped, tag = 'input window, operand 13, single buffered']
    #allocation25 [shape = 'u8[1024]{0}', space=vmem, size = 0x400, scoped, tag = 'input window, operand 14, single buffered']
    #allocation26 [shape = 's32[1]{0}', space=sflag, size = 0x4, scoped, tag = 'scoped memory for vgg1d_forward.1']
    #allocation27 [shape = 'u8[1024]{0}', space=vmem, size = 0x400, scoped, tag = 'input window, operand 15, single buffered']
    #allocation28 [shape = 'u8[393216]{0}', space=vmem, size = 0x60000, scoped, tag = 'input window, operand 16, single buffered']
    #allocation29 [shape = 's32[1]{0}', space=sflag, size = 0x4, scoped, tag = 'scoped memory for vgg1d_forward.1']
    #allocation30 [shape = 'u8[1024]{0}', space=vmem, size = 0x400, scoped, tag = 'input window, operand 17, single buffered']
    #allocation31 [shape = 'u8[1024]{0}', space=vmem, size = 0x400, scoped, tag = 'input window, operand 18, single buffered']
    #allocation32 [shape = 's32[1]{0}', space=sflag, size = 0x4, scoped, tag = 'scoped memory for vgg1d_forward.1']
    #allocation33 [shape = 'u8[393216]{0}', space=vmem, size = 0x60000, scoped, tag = 'input window, operand 19, single buffered']
    #allocation34 [shape = 'u8[1024]{0}', space=vmem, size = 0x400, scoped, tag = 'input window, operand 20, single buffered']
    #allocation35 [shape = 's32[1]{0}', space=sflag, size = 0x4, scoped, tag = 'scoped memory for vgg1d_forward.1']
    #allocation36 [shape = 'u8[1024]{0}', space=vmem, size = 0x400, scoped, tag = 'input window, operand 21, single buffered']
    #allocation37 [shape = 'u8[786432]{0}', space=vmem, size = 0xc0000, scoped, tag = 'input window, operand 22, single buffered']
    #allocation38 [shape = 's32[1]{0}', space=sflag, size = 0x4, scoped, tag = 'scoped memory for vgg1d_forward.1']
    #allocation39 [shape = 'u8[2048]{0}', space=vmem, size = 0x800, scoped, tag = 'input window, operand 23, single buffered']
    #allocation40 [shape = 'u8[2048]{0}', space=vmem, size = 0x800, scoped, tag = 'input window, operand 24, single buffered']
    #allocation41 [shape = 's32[1]{0}', space=sflag, size = 0x4, scoped, tag = 'scoped memory for vgg1d_forward.1']
    #allocation42 [shape = 'u8[1048576]{0}', space=vmem, size = 0x100000, scoped, tag = 'input window, operand 25']
    #allocation43 [shape = 'u8[8192]{0}', space=vmem, size = 0x2000, scoped, tag = 'input window, operand 26']
    #allocation44 [shape = 'u8[8192]{0}', space=vmem, size = 0x2000, scoped, tag = 'input window, operand 27']
    #allocation45 [shape = 'u8[8192]{0}', space=vmem, size = 0x2000, scoped, tag = 'input window, operand 28']
    %68 = vsyncpa [#allocation6], 0
    %69 = vsyncpa [#allocation8], 0
    %70 = vsyncpa [#allocation11], 0
    %71 = vsyncpa [#allocation14], 0
    %72 = vsyncpa [#allocation17], 0
    %73 = vsyncpa [#allocation20], 0
    %74 = vsyncpa [#allocation23], 0
    %75 = vsyncpa [#allocation26], 0
    %76 = vsyncpa [#allocation29], 0
    %77 = vsyncpa [#allocation32], 0
    %78 = vsyncpa [#allocation35], 0
    %79 = vsyncpa [#allocation38], 0
    %80 = vsyncpa [#allocation41], 0
    loop: start=0, step=1, limit=6
    $region2: #{vgg1d_forward.1} parent=1 // loop_pre_header
      _
    $region3: #{vgg1d_forward.1} parent=1 // loop_header
      %s82 = sphi 0, %s86
      %p83 = scmp.ge.s32.totalorder %s82, 6
      %s90 = sphi 0, %s90
      %s92 = sphi 0, %s90
      %s93 = sphi 0, %s92
      %s107 = sphi 0, %s93
      %s111 = sphi 0, %s111
      %s113 = sphi 0, %s111
      %s114 = sphi 0, %s113
      %s128 = sphi 0, %s114
      %s132 = sphi 0, %s132
      %s134 = sphi 0, %s132
      %s135 = sphi 0, %s134
      %s149 = sphi 0, %s135
      %s153 = sphi 0, %s153
      %s155 = sphi 0, %s153
      %s156 = sphi 0, %s155
      %s170 = sphi 0, %s156
      %s174 = sphi 0, %s174
      %s176 = sphi 0, %s174
      %s177 = sphi 0, %s176
      %s191 = sphi 0, %s177
      %s195 = sphi 0, %s195
      %s197 = sphi 0, %s195
      %s198 = sphi 0, %s197
      %s212 = sphi 0, %s198
      %s216 = sphi 0, %s216
      %s218 = sphi 0, %s216
      %s219 = sphi 0, %s218
      %s233 = sphi 0, %s219
      %s237 = sphi 0, %s237
      %s239 = sphi 0, %s237
      %s240 = sphi 0, %s239
      %s254 = sphi 0, %s240
      %s258 = sphi 0, %s258
      %s260 = sphi 0, %s258
      %s261 = sphi 0, %s260
      %s275 = sphi 0, %s261
      %s279 = sphi 0, %s279
      %s281 = sphi 0, %s279
      %s282 = sphi 0, %s281
      %s296 = sphi 0, %s282
      %s300 = sphi 0, %s300
      %s302 = sphi 0, %s300
      %s303 = sphi 0, %s302
      %s317 = sphi 0, %s303
      %s321 = sphi 0, %s321
      %s323 = sphi 0, %s321
      %s324 = sphi 0, %s323
      %s338 = sphi 0, %s324
      %s342 = sphi 0, %s342
      %s344 = sphi 0, %s342
      %s345 = sphi 0, %s344
      %s359 = sphi 0, %s345
      %s363 = sphi 0, %s363
      %s365 = sphi 0, %s363
      %s366 = sphi 0, %s365
      %s380 = sphi 0, %s366
      %s384 = sphi 0, %s384
      %s386 = sphi 0, %s384
      %s387 = sphi 0, %s386
      %s401 = sphi 0, %s387
      %s405 = sphi 0, %s405
      %s407 = sphi 0, %s405
      %s408 = sphi 0, %s407
      %s422 = sphi 0, %s408
      %s426 = sphi 0, %s426
      %s428 = sphi 0, %s426
      %s429 = sphi 0, %s428
      %s443 = sphi 0, %s429
      %s447 = sphi 0, %s447
      %s449 = sphi 0, %s447
      %s450 = sphi 0, %s449
      %s464 = sphi 0, %s450
      %s468 = sphi 0, %s468
      %s470 = sphi 0, %s468
      %s471 = sphi 0, %s470
      %s485 = sphi 0, %s471
      %s489 = sphi 0, %s489
      %s491 = sphi 0, %s489
      %s492 = sphi 0, %s491
      %s506 = sphi 0, %s492
      %s510 = sphi 0, %s510
      %s512 = sphi 0, %s510
      %s513 = sphi 0, %s512
      %s527 = sphi 0, %s513
      %s531 = sphi 0, %s531
      %s533 = sphi 0, %s531
      %s534 = sphi 0, %s533
      %s548 = sphi 0, %s534
      %s552 = sphi 0, %s552
      %s554 = sphi 0, %s552
      %s555 = sphi 0, %s554
      %s569 = sphi 0, %s555
      %s573 = sphi 0, %s573
      %s575 = sphi 0, %s573
      %s576 = sphi 0, %s575
      %s590 = sphi 0, %s576
      %s594 = sphi 0, %s594
      %s596 = sphi 0, %s594
      %s597 = sphi 0, %s596
      %s611 = sphi 0, %s597
      %s617 = sphi 0, %s619
      %s620 = sphi 0, %s617
      %s621 = sphi 0, %s620
      %s637 = sphi 0, %s621
      %s643 = sphi 0, %s645
      %s646 = sphi 0, %s643
      %s647 = sphi 0, %s646
      %s663 = sphi 0, %s647
      %s669 = sphi 0, %s671
      %s672 = sphi 0, %s669
      %s673 = sphi 0, %s672
      %s689 = sphi 0, %s673
      %s695 = sphi 0, %s697
      %s698 = sphi 0, %s695
      %s699 = sphi 0, %s698
      %s715 = sphi 0, %s699
      %s719 = sphi 0, %s719
      %s721 = sphi 0, %s719
      %s722 = sphi 0, %s721
      %s736 = sphi 0, %s722
      %s740 = sphi 0, %s740
      %s742 = sphi 0, %s740
      %s743 = sphi 0, %s742
      %s757 = sphi 0, %s743
    $region4: #{vgg1d_forward.1} parent=1 // loop_header_branch
      %85 = sbr.rel (%p83) target = $region8
    $region5: #{vgg1d_forward.1} parent=1 // loop_body
      %s87 = ssub.s32 %s82, 1
      %s88 = ssub.s32 %s82, 2
      %s89 = sadd.s32 %s82, 1
      %s91 = sadd.s32 %s90, 1
      %p94 = scmp.eq.s32.totalorder %s82, 3
      %p95 = scmp.ne.s32.totalorder %s90, %s92
      %p96 = scmp.eq.s32.totalorder %s82, 0
      %p97 = por %p95, %p96
      %p98 = scmp.ne.s32.totalorder %s90, %s92
      %p99 = scmp.eq.s32.totalorder %s87, 3
      %p100 = por %p98, %p99
      %p101 = scmp.ne.s32.totalorder %s92, %s93
      %p102 = scmp.eq.s32.totalorder %s87, 0
      %p103 = por %p101, %p102
      %p104 = scmp.ne.s32.totalorder %s92, %s93
      %p105 = scmp.eq.s32.totalorder %s88, 3
      %p106 = por %p104, %p105
      %p108 = scmp.ne.s32.totalorder %s93, %s107
      %p109 = scmp.eq.s32.totalorder %s88, 0
      %p110 = por %p108, %p109
      %s112 = sadd.s32 %s111, 1
      %p115 = scmp.eq.s32.totalorder %s82, 3
      %p116 = scmp.ne.s32.totalorder %s111, %s113
      %p117 = scmp.eq.s32.totalorder %s82, 0
      %p118 = por %p116, %p117
      %p119 = scmp.ne.s32.totalorder %s111, %s113
      %p120 = scmp.eq.s32.totalorder %s87, 3
      %p121 = por %p119, %p120
      %p122 = scmp.ne.s32.totalorder %s113, %s114
      %p123 = scmp.eq.s32.totalorder %s87, 0
      %p124 = por %p122, %p123
      %p125 = scmp.ne.s32.totalorder %s113, %s114
      %p126 = scmp.eq.s32.totalorder %s88, 3
      %p127 = por %p125, %p126
      %p129 = scmp.ne.s32.totalorder %s114, %s128
      %p130 = scmp.eq.s32.totalorder %s88, 0
      %p131 = por %p129, %p130
      %s133 = sadd.s32 %s132, 1
      %p136 = scmp.eq.s32.totalorder %s82, 3
      %p137 = scmp.ne.s32.totalorder %s132, %s134
      %p138 = scmp.eq.s32.totalorder %s82, 0
      %p139 = por %p137, %p138
      %p140 = scmp.ne.s32.totalorder %s132, %s134
      %p141 = scmp.eq.s32.totalorder %s87, 3
      %p142 = por %p140, %p141
      %p143 = scmp.ne.s32.totalorder %s134, %s135
      %p144 = scmp.eq.s32.totalorder %s87, 0
      %p145 = por %p143, %p144
      %p146 = scmp.ne.s32.totalorder %s134, %s135
      %p147 = scmp.eq.s32.totalorder %s88, 3
      %p148 = por %p146, %p147
      %p150 = scmp.ne.s32.totalorder %s135, %s149
      %p151 = scmp.eq.s32.totalorder %s88, 0
      %p152 = por %p150, %p151
      %s154 = sadd.s32 %s153, 1
      %p157 = scmp.eq.s32.totalorder %s82, 3
      %p158 = scmp.ne.s32.totalorder %s153, %s155
      %p159 = scmp.eq.s32.totalorder %s82, 0
      %p160 = por %p158, %p159
      %p161 = scmp.ne.s32.totalorder %s153, %s155
      %p162 = scmp.eq.s32.totalorder %s87, 3
      %p163 = por %p161, %p162
      %p164 = scmp.ne.s32.totalorder %s155, %s156
      %p165 = scmp.eq.s32.totalorder %s87, 0
      %p166 = por %p164, %p165
      %p167 = scmp.ne.s32.totalorder %s155, %s156
      %p168 = scmp.eq.s32.totalorder %s88, 3
      %p169 = por %p167, %p168
      %p171 = scmp.ne.s32.totalorder %s156, %s170
      %p172 = scmp.eq.s32.totalorder %s88, 0
      %p173 = por %p171, %p172
      %s175 = sadd.s32 %s174, 1
      %p178 = scmp.eq.s32.totalorder %s82, 3
      %p179 = scmp.ne.s32.totalorder %s174, %s176
      %p180 = scmp.eq.s32.totalorder %s82, 0
      %p181 = por %p179, %p180
      %p182 = scmp.ne.s32.totalorder %s174, %s176
      %p183 = scmp.eq.s32.totalorder %s87, 3
      %p184 = por %p182, %p183
      %p185 = scmp.ne.s32.totalorder %s176, %s177
      %p186 = scmp.eq.s32.totalorder %s87, 0
      %p187 = por %p185, %p186
      %p188 = scmp.ne.s32.totalorder %s176, %s177
      %p189 = scmp.eq.s32.totalorder %s88, 3
      %p190 = por %p188, %p189
      %p192 = scmp.ne.s32.totalorder %s177, %s191
      %p193 = scmp.eq.s32.totalorder %s88, 0
      %p194 = por %p192, %p193
      %s196 = sadd.s32 %s195, 1
      %p199 = scmp.eq.s32.totalorder %s82, 3
      %p200 = scmp.ne.s32.totalorder %s195, %s197
      %p201 = scmp.eq.s32.totalorder %s82, 0
      %p202 = por %p200, %p201
      %p203 = scmp.ne.s32.totalorder %s195, %s197
      %p204 = scmp.eq.s32.totalorder %s87, 3
      %p205 = por %p203, %p204
      %p206 = scmp.ne.s32.totalorder %s197, %s198
      %p207 = scmp.eq.s32.totalorder %s87, 0
      %p208 = por %p206, %p207
      %p209 = scmp.ne.s32.totalorder %s197, %s198
      %p210 = scmp.eq.s32.totalorder %s88, 3
      %p211 = por %p209, %p210
      %p213 = scmp.ne.s32.totalorder %s198, %s212
      %p214 = scmp.eq.s32.totalorder %s88, 0
      %p215 = por %p213, %p214
      %s217 = sadd.s32 %s216, 1
      %p220 = scmp.eq.s32.totalorder %s82, 3
      %p221 = scmp.ne.s32.totalorder %s216, %s218
      %p222 = scmp.eq.s32.totalorder %s82, 0
      %p223 = por %p221, %p222
      %p224 = scmp.ne.s32.totalorder %s216, %s218
      %p225 = scmp.eq.s32.totalorder %s87, 3
      %p226 = por %p224, %p225
      %p227 = scmp.ne.s32.totalorder %s218, %s219
      %p228 = scmp.eq.s32.totalorder %s87, 0
      %p229 = por %p227, %p228
      %p230 = scmp.ne.s32.totalorder %s218, %s219
      %p231 = scmp.eq.s32.totalorder %s88, 3
      %p232 = por %p230, %p231
      %p234 = scmp.ne.s32.totalorder %s219, %s233
      %p235 = scmp.eq.s32.totalorder %s88, 0
      %p236 = por %p234, %p235
      %s238 = sadd.s32 %s237, 1
      %p241 = scmp.eq.s32.totalorder %s82, 3
      %p242 = scmp.ne.s32.totalorder %s237, %s239
      %p243 = scmp.eq.s32.totalorder %s82, 0
      %p244 = por %p242, %p243
      %p245 = scmp.ne.s32.totalorder %s237, %s239
      %p246 = scmp.eq.s32.totalorder %s87, 3
      %p247 = por %p245, %p246
      %p248 = scmp.ne.s32.totalorder %s239, %s240
      %p249 = scmp.eq.s32.totalorder %s87, 0
      %p250 = por %p248, %p249
      %p251 = scmp.ne.s32.totalorder %s239, %s240
      %p252 = scmp.eq.s32.totalorder %s88, 3
      %p253 = por %p251, %p252
      %p255 = scmp.ne.s32.totalorder %s240, %s254
      %p256 = scmp.eq.s32.totalorder %s88, 0
      %p257 = por %p255, %p256
      %s259 = sadd.s32 %s258, 1
      %p262 = scmp.eq.s32.totalorder %s82, 3
      %p263 = scmp.ne.s32.totalorder %s258, %s260
      %p264 = scmp.eq.s32.totalorder %s82, 0
      %p265 = por %p263, %p264
      %p266 = scmp.ne.s32.totalorder %s258, %s260
      %p267 = scmp.eq.s32.totalorder %s87, 3
      %p268 = por %p266, %p267
      %p269 = scmp.ne.s32.totalorder %s260, %s261
      %p270 = scmp.eq.s32.totalorder %s87, 0
      %p271 = por %p269, %p270
      %p272 = scmp.ne.s32.totalorder %s260, %s261
      %p273 = scmp.eq.s32.totalorder %s88, 3
      %p274 = por %p272, %p273
      %p276 = scmp.ne.s32.totalorder %s261, %s275
      %p277 = scmp.eq.s32.totalorder %s88, 0
      %p278 = por %p276, %p277
      %s280 = sadd.s32 %s279, 1
      %p283 = scmp.eq.s32.totalorder %s82, 3
      %p284 = scmp.ne.s32.totalorder %s279, %s281
      %p285 = scmp.eq.s32.totalorder %s82, 0
      %p286 = por %p284, %p285
      %p287 = scmp.ne.s32.totalorder %s279, %s281
      %p288 = scmp.eq.s32.totalorder %s87, 3
      %p289 = por %p287, %p288
      %p290 = scmp.ne.s32.totalorder %s281, %s282
      %p291 = scmp.eq.s32.totalorder %s87, 0
      %p292 = por %p290, %p291
      %p293 = scmp.ne.s32.totalorder %s281, %s282
      %p294 = scmp.eq.s32.totalorder %s88, 3
      %p295 = por %p293, %p294
      %p297 = scmp.ne.s32.totalorder %s282, %s296
      %p298 = scmp.eq.s32.totalorder %s88, 0
      %p299 = por %p297, %p298
      %s301 = sadd.s32 %s300, 1
      %p304 = scmp.eq.s32.totalorder %s82, 3
      %p305 = scmp.ne.s32.totalorder %s300, %s302
      %p306 = scmp.eq.s32.totalorder %s82, 0
      %p307 = por %p305, %p306
      %p308 = scmp.ne.s32.totalorder %s300, %s302
      %p309 = scmp.eq.s32.totalorder %s87, 3
      %p310 = por %p308, %p309
      %p311 = scmp.ne.s32.totalorder %s302, %s303
      %p312 = scmp.eq.s32.totalorder %s87, 0
      %p313 = por %p311, %p312
      %p314 = scmp.ne.s32.totalorder %s302, %s303
      %p315 = scmp.eq.s32.totalorder %s88, 3
      %p316 = por %p314, %p315
      %p318 = scmp.ne.s32.totalorder %s303, %s317
      %p319 = scmp.eq.s32.totalorder %s88, 0
      %p320 = por %p318, %p319
      %s322 = sadd.s32 %s321, 1
      %p325 = scmp.eq.s32.totalorder %s82, 3
      %p326 = scmp.ne.s32.totalorder %s321, %s323
      %p327 = scmp.eq.s32.totalorder %s82, 0
      %p328 = por %p326, %p327
      %p329 = scmp.ne.s32.totalorder %s321, %s323
      %p330 = scmp.eq.s32.totalorder %s87, 3
      %p331 = por %p329, %p330
      %p332 = scmp.ne.s32.totalorder %s323, %s324
      %p333 = scmp.eq.s32.totalorder %s87, 0
      %p334 = por %p332, %p333
      %p335 = scmp.ne.s32.totalorder %s323, %s324
      %p336 = scmp.eq.s32.totalorder %s88, 3
      %p337 = por %p335, %p336
      %p339 = scmp.ne.s32.totalorder %s324, %s338
      %p340 = scmp.eq.s32.totalorder %s88, 0
      %p341 = por %p339, %p340
      %s343 = sadd.s32 %s342, 1
      %p346 = scmp.eq.s32.totalorder %s82, 3
      %p347 = scmp.ne.s32.totalorder %s342, %s344
      %p348 = scmp.eq.s32.totalorder %s82, 0
      %p349 = por %p347, %p348
      %p350 = scmp.ne.s32.totalorder %s342, %s344
      %p351 = scmp.eq.s32.totalorder %s87, 3
      %p352 = por %p350, %p351
      %p353 = scmp.ne.s32.totalorder %s344, %s345
      %p354 = scmp.eq.s32.totalorder %s87, 0
      %p355 = por %p353, %p354
      %p356 = scmp.ne.s32.totalorder %s344, %s345
      %p357 = scmp.eq.s32.totalorder %s88, 3
      %p358 = por %p356, %p357
      %p360 = scmp.ne.s32.totalorder %s345, %s359
      %p361 = scmp.eq.s32.totalorder %s88, 0
      %p362 = por %p360, %p361
      %s364 = sadd.s32 %s363, 1
      %p367 = scmp.eq.s32.totalorder %s82, 3
      %p368 = scmp.ne.s32.totalorder %s363, %s365
      %p369 = scmp.eq.s32.totalorder %s82, 0
      %p370 = por %p368, %p369
      %p371 = scmp.ne.s32.totalorder %s363, %s365
      %p372 = scmp.eq.s32.totalorder %s87, 3
      %p373 = por %p371, %p372
      %p374 = scmp.ne.s32.totalorder %s365, %s366
      %p375 = scmp.eq.s32.totalorder %s87, 0
      %p376 = por %p374, %p375
      %p377 = scmp.ne.s32.totalorder %s365, %s366
      %p378 = scmp.eq.s32.totalorder %s88, 3
      %p379 = por %p377, %p378
      %p381 = scmp.ne.s32.totalorder %s366, %s380
      %p382 = scmp.eq.s32.totalorder %s88, 0
      %p383 = por %p381, %p382
      %s385 = sadd.s32 %s384, 1
      %p388 = scmp.eq.s32.totalorder %s82, 3
      %p389 = scmp.ne.s32.totalorder %s384, %s386
      %p390 = scmp.eq.s32.totalorder %s82, 0
      %p391 = por %p389, %p390
      %p392 = scmp.ne.s32.totalorder %s384, %s386
      %p393 = scmp.eq.s32.totalorder %s87, 3
      %p394 = por %p392, %p393
      %p395 = scmp.ne.s32.totalorder %s386, %s387
      %p396 = scmp.eq.s32.totalorder %s87, 0
      %p397 = por %p395, %p396
      %p398 = scmp.ne.s32.totalorder %s386, %s387
      %p399 = scmp.eq.s32.totalorder %s88, 3
      %p400 = por %p398, %p399
      %p402 = scmp.ne.s32.totalorder %s387, %s401
      %p403 = scmp.eq.s32.totalorder %s88, 0
      %p404 = por %p402, %p403
      %s406 = sadd.s32 %s405, 1
      %p409 = scmp.eq.s32.totalorder %s82, 3
      %p410 = scmp.ne.s32.totalorder %s405, %s407
      %p411 = scmp.eq.s32.totalorder %s82, 0
      %p412 = por %p410, %p411
      %p413 = scmp.ne.s32.totalorder %s405, %s407
      %p414 = scmp.eq.s32.totalorder %s87, 3
      %p415 = por %p413, %p414
      %p416 = scmp.ne.s32.totalorder %s407, %s408
      %p417 = scmp.eq.s32.totalorder %s87, 0
      %p418 = por %p416, %p417
      %p419 = scmp.ne.s32.totalorder %s407, %s408
      %p420 = scmp.eq.s32.totalorder %s88, 3
      %p421 = por %p419, %p420
      %p423 = scmp.ne.s32.totalorder %s408, %s422
      %p424 = scmp.eq.s32.totalorder %s88, 0
      %p425 = por %p423, %p424
      %s427 = sadd.s32 %s426, 1
      %p430 = scmp.eq.s32.totalorder %s82, 3
      %p431 = scmp.ne.s32.totalorder %s426, %s428
      %p432 = scmp.eq.s32.totalorder %s82, 0
      %p433 = por %p431, %p432
      %p434 = scmp.ne.s32.totalorder %s426, %s428
      %p435 = scmp.eq.s32.totalorder %s87, 3
      %p436 = por %p434, %p435
      %p437 = scmp.ne.s32.totalorder %s428, %s429
      %p438 = scmp.eq.s32.totalorder %s87, 0
      %p439 = por %p437, %p438
      %p440 = scmp.ne.s32.totalorder %s428, %s429
      %p441 = scmp.eq.s32.totalorder %s88, 3
      %p442 = por %p440, %p441
      %p444 = scmp.ne.s32.totalorder %s429, %s443
      %p445 = scmp.eq.s32.totalorder %s88, 0
      %p446 = por %p444, %p445
      %s448 = sadd.s32 %s447, 1
      %p451 = scmp.eq.s32.totalorder %s82, 3
      %p452 = scmp.ne.s32.totalorder %s447, %s449
      %p453 = scmp.eq.s32.totalorder %s82, 0
      %p454 = por %p452, %p453
      %p455 = scmp.ne.s32.totalorder %s447, %s449
      %p456 = scmp.eq.s32.totalorder %s87, 3
      %p457 = por %p455, %p456
      %p458 = scmp.ne.s32.totalorder %s449, %s450
      %p459 = scmp.eq.s32.totalorder %s87, 0
      %p460 = por %p458, %p459
      %p461 = scmp.ne.s32.totalorder %s449, %s450
      %p462 = scmp.eq.s32.totalorder %s88, 3
      %p463 = por %p461, %p462
      %p465 = scmp.ne.s32.totalorder %s450, %s464
      %p466 = scmp.eq.s32.totalorder %s88, 0
      %p467 = por %p465, %p466
      %s469 = sadd.s32 %s468, 1
      %p472 = scmp.eq.s32.totalorder %s82, 3
      %p473 = scmp.ne.s32.totalorder %s468, %s470
      %p474 = scmp.eq.s32.totalorder %s82, 0
      %p475 = por %p473, %p474
      %p476 = scmp.ne.s32.totalorder %s468, %s470
      %p477 = scmp.eq.s32.totalorder %s87, 3
      %p478 = por %p476, %p477
      %p479 = scmp.ne.s32.totalorder %s470, %s471
      %p480 = scmp.eq.s32.totalorder %s87, 0
      %p481 = por %p479, %p480
      %p482 = scmp.ne.s32.totalorder %s470, %s471
      %p483 = scmp.eq.s32.totalorder %s88, 3
      %p484 = por %p482, %p483
      %p486 = scmp.ne.s32.totalorder %s471, %s485
      %p487 = scmp.eq.s32.totalorder %s88, 0
      %p488 = por %p486, %p487
      %s490 = sadd.s32 %s489, 1
      %p493 = scmp.eq.s32.totalorder %s82, 3
      %p494 = scmp.ne.s32.totalorder %s489, %s491
      %p495 = scmp.eq.s32.totalorder %s82, 0
      %p496 = por %p494, %p495
      %p497 = scmp.ne.s32.totalorder %s489, %s491
      %p498 = scmp.eq.s32.totalorder %s87, 3
      %p499 = por %p497, %p498
      %p500 = scmp.ne.s32.totalorder %s491, %s492
      %p501 = scmp.eq.s32.totalorder %s87, 0
      %p502 = por %p500, %p501
      %p503 = scmp.ne.s32.totalorder %s491, %s492
      %p504 = scmp.eq.s32.totalorder %s88, 3
      %p505 = por %p503, %p504
      %p507 = scmp.ne.s32.totalorder %s492, %s506
      %p508 = scmp.eq.s32.totalorder %s88, 0
      %p509 = por %p507, %p508
      %s511 = sadd.s32 %s510, 1
      %p514 = scmp.eq.s32.totalorder %s82, 3
      %p515 = scmp.ne.s32.totalorder %s510, %s512
      %p516 = scmp.eq.s32.totalorder %s82, 0
      %p517 = por %p515, %p516
      %p518 = scmp.ne.s32.totalorder %s510, %s512
      %p519 = scmp.eq.s32.totalorder %s87, 3
      %p520 = por %p518, %p519
      %p521 = scmp.ne.s32.totalorder %s512, %s513
      %p522 = scmp.eq.s32.totalorder %s87, 0
      %p523 = por %p521, %p522
      %p524 = scmp.ne.s32.totalorder %s512, %s513
      %p525 = scmp.eq.s32.totalorder %s88, 3
      %p526 = por %p524, %p525
      %p528 = scmp.ne.s32.totalorder %s513, %s527
      %p529 = scmp.eq.s32.totalorder %s88, 0
      %p530 = por %p528, %p529
      %s532 = sadd.s32 %s531, 1
      %p535 = scmp.eq.s32.totalorder %s82, 3
      %p536 = scmp.ne.s32.totalorder %s531, %s533
      %p537 = scmp.eq.s32.totalorder %s82, 0
      %p538 = por %p536, %p537
      %p539 = scmp.ne.s32.totalorder %s531, %s533
      %p540 = scmp.eq.s32.totalorder %s87, 3
      %p541 = por %p539, %p540
      %p542 = scmp.ne.s32.totalorder %s533, %s534
      %p543 = scmp.eq.s32.totalorder %s87, 0
      %p544 = por %p542, %p543
      %p545 = scmp.ne.s32.totalorder %s533, %s534
      %p546 = scmp.eq.s32.totalorder %s88, 3
      %p547 = por %p545, %p546
      %p549 = scmp.ne.s32.totalorder %s534, %s548
      %p550 = scmp.eq.s32.totalorder %s88, 0
      %p551 = por %p549, %p550
      %s553 = sadd.s32 %s552, 1
      %p556 = scmp.eq.s32.totalorder %s82, 3
      %p557 = scmp.ne.s32.totalorder %s552, %s554
      %p558 = scmp.eq.s32.totalorder %s82, 0
      %p559 = por %p557, %p558
      %p560 = scmp.ne.s32.totalorder %s552, %s554
      %p561 = scmp.eq.s32.totalorder %s87, 3
      %p562 = por %p560, %p561
      %p563 = scmp.ne.s32.totalorder %s554, %s555
      %p564 = scmp.eq.s32.totalorder %s87, 0
      %p565 = por %p563, %p564
      %p566 = scmp.ne.s32.totalorder %s554, %s555
      %p567 = scmp.eq.s32.totalorder %s88, 3
      %p568 = por %p566, %p567
      %p570 = scmp.ne.s32.totalorder %s555, %s569
      %p571 = scmp.eq.s32.totalorder %s88, 0
      %p572 = por %p570, %p571
      %s574 = sadd.s32 %s573, 1
      %p577 = scmp.eq.s32.totalorder %s82, 3
      %p578 = scmp.ne.s32.totalorder %s573, %s575
      %p579 = scmp.eq.s32.totalorder %s82, 0
      %p580 = por %p578, %p579
      %p581 = scmp.ne.s32.totalorder %s573, %s575
      %p582 = scmp.eq.s32.totalorder %s87, 3
      %p583 = por %p581, %p582
      %p584 = scmp.ne.s32.totalorder %s575, %s576
      %p585 = scmp.eq.s32.totalorder %s87, 0
      %p586 = por %p584, %p585
      %p587 = scmp.ne.s32.totalorder %s575, %s576
      %p588 = scmp.eq.s32.totalorder %s88, 3
      %p589 = por %p587, %p588
      %p591 = scmp.ne.s32.totalorder %s576, %s590
      %p592 = scmp.eq.s32.totalorder %s88, 0
      %p593 = por %p591, %p592
      %s595 = sadd.s32 %s594, 1
      %p598 = scmp.eq.s32.totalorder %s82, 3
      %p599 = scmp.ne.s32.totalorder %s594, %s596
      %p600 = scmp.eq.s32.totalorder %s82, 0
      %p601 = por %p599, %p600
      %p602 = scmp.ne.s32.totalorder %s594, %s596
      %p603 = scmp.eq.s32.totalorder %s87, 3
      %p604 = por %p602, %p603
      %p605 = scmp.ne.s32.totalorder %s596, %s597
      %p606 = scmp.eq.s32.totalorder %s87, 0
      %p607 = por %p605, %p606
      %p608 = scmp.ne.s32.totalorder %s596, %s597
      %p609 = scmp.eq.s32.totalorder %s88, 3
      %p610 = por %p608, %p609
      %p612 = scmp.ne.s32.totalorder %s597, %s611
      %p613 = scmp.eq.s32.totalorder %s88, 0
      %p614 = por %p612, %p613
      %s615 = ssub.s32 %s82, %s89
      %p616 = scmp.eq.s32.totalorder %s615, 0
      %s618 = sadd.s32 %s617, 1
      %s619 = scalar_select %p616, %s617, %s618
      %p622 = pneg %p616
      %p623 = scmp.eq.s32.totalorder %s82, 3
      %p624 = por %p622, %p623
      %p625 = scmp.ne.s32.totalorder %s617, %s620
      %p626 = scmp.eq.s32.totalorder %s82, 0
      %p627 = por %p625, %p626
      %p628 = scmp.ne.s32.totalorder %s617, %s620
      %p629 = scmp.eq.s32.totalorder %s87, 3
      %p630 = por %p628, %p629
      %p631 = scmp.ne.s32.totalorder %s620, %s621
      %p632 = scmp.eq.s32.totalorder %s87, 0
      %p633 = por %p631, %p632
      %p634 = scmp.ne.s32.totalorder %s620, %s621
      %p635 = scmp.eq.s32.totalorder %s88, 3
      %p636 = por %p634, %p635
      %p638 = scmp.ne.s32.totalorder %s621, %s637
      %p639 = scmp.eq.s32.totalorder %s88, 0
      %p640 = por %p638, %p639
      %s641 = ssub.s32 %s82, %s89
      %p642 = scmp.eq.s32.totalorder %s641, 0
      %s644 = sadd.s32 %s643, 1
      %s645 = scalar_select %p642, %s643, %s644
      %p648 = pneg %p642
      %p649 = scmp.eq.s32.totalorder %s82, 3
      %p650 = por %p648, %p649
      %p651 = scmp.ne.s32.totalorder %s643, %s646
      %p652 = scmp.eq.s32.totalorder %s82, 0
      %p653 = por %p651, %p652
      %p654 = scmp.ne.s32.totalorder %s643, %s646
      %p655 = scmp.eq.s32.totalorder %s87, 3
      %p656 = por %p654, %p655
      %p657 = scmp.ne.s32.totalorder %s646, %s647
      %p658 = scmp.eq.s32.totalorder %s87, 0
      %p659 = por %p657, %p658
      %p660 = scmp.ne.s32.totalorder %s646, %s647
      %p661 = scmp.eq.s32.totalorder %s88, 3
      %p662 = por %p660, %p661
      %p664 = scmp.ne.s32.totalorder %s647, %s663
      %p665 = scmp.eq.s32.totalorder %s88, 0
      %p666 = por %p664, %p665
      %s667 = ssub.s32 %s82, %s89
      %p668 = scmp.eq.s32.totalorder %s667, 0
      %s670 = sadd.s32 %s669, 1
      %s671 = scalar_select %p668, %s669, %s670
      %p674 = pneg %p668
      %p675 = scmp.eq.s32.totalorder %s82, 3
      %p676 = por %p674, %p675
      %p677 = scmp.ne.s32.totalorder %s669, %s672
      %p678 = scmp.eq.s32.totalorder %s82, 0
      %p679 = por %p677, %p678
      %p680 = scmp.ne.s32.totalorder %s669, %s672
      %p681 = scmp.eq.s32.totalorder %s87, 3
      %p682 = por %p680, %p681
      %p683 = scmp.ne.s32.totalorder %s672, %s673
      %p684 = scmp.eq.s32.totalorder %s87, 0
      %p685 = por %p683, %p684
      %p686 = scmp.ne.s32.totalorder %s672, %s673
      %p687 = scmp.eq.s32.totalorder %s88, 3
      %p688 = por %p686, %p687
      %p690 = scmp.ne.s32.totalorder %s673, %s689
      %p691 = scmp.eq.s32.totalorder %s88, 0
      %p692 = por %p690, %p691
      %s693 = ssub.s32 %s82, %s89
      %p694 = scmp.eq.s32.totalorder %s693, 0
      %s696 = sadd.s32 %s695, 1
      %s697 = scalar_select %p694, %s695, %s696
      %p700 = pneg %p694
      %p701 = scmp.eq.s32.totalorder %s82, 3
      %p702 = por %p700, %p701
      %p703 = scmp.ne.s32.totalorder %s695, %s698
      %p704 = scmp.eq.s32.totalorder %s82, 0
      %p705 = por %p703, %p704
      %p706 = scmp.ne.s32.totalorder %s695, %s698
      %p707 = scmp.eq.s32.totalorder %s87, 3
      %p708 = por %p706, %p707
      %p709 = scmp.ne.s32.totalorder %s698, %s699
      %p710 = scmp.eq.s32.totalorder %s87, 0
      %p711 = por %p709, %p710
      %p712 = scmp.ne.s32.totalorder %s698, %s699
      %p713 = scmp.eq.s32.totalorder %s88, 3
      %p714 = por %p712, %p713
      %p716 = scmp.ne.s32.totalorder %s699, %s715
      %p717 = scmp.eq.s32.totalorder %s88, 0
      %p718 = por %p716, %p717
      %s720 = sadd.s32 %s719, 1
      %p723 = scmp.eq.s32.totalorder %s82, 3
      %p724 = scmp.ne.s32.totalorder %s719, %s721
      %p725 = scmp.eq.s32.totalorder %s82, 0
      %p726 = por %p724, %p725
      %p727 = scmp.ne.s32.totalorder %s719, %s721
      %p728 = scmp.eq.s32.totalorder %s87, 3
      %p729 = por %p727, %p728
      %p730 = scmp.ne.s32.totalorder %s721, %s722
      %p731 = scmp.eq.s32.totalorder %s87, 0
      %p732 = por %p730, %p731
      %p733 = scmp.ne.s32.totalorder %s721, %s722
      %p734 = scmp.eq.s32.totalorder %s88, 3
      %p735 = por %p733, %p734
      %p737 = scmp.ne.s32.totalorder %s722, %s736
      %p738 = scmp.eq.s32.totalorder %s88, 0
      %p739 = por %p737, %p738
      %s741 = sadd.s32 %s740, 1
      %p744 = scmp.eq.s32.totalorder %s82, 3
      %p745 = scmp.ne.s32.totalorder %s740, %s742
      %p746 = scmp.eq.s32.totalorder %s82, 0
      %p747 = por %p745, %p746
      %p748 = scmp.ne.s32.totalorder %s740, %s742
      %p749 = scmp.eq.s32.totalorder %s87, 3
      %p750 = por %p748, %p749
      %p751 = scmp.ne.s32.totalorder %s742, %s743
      %p752 = scmp.eq.s32.totalorder %s87, 0
      %p753 = por %p751, %p752
      %p754 = scmp.ne.s32.totalorder %s742, %s743
      %p755 = scmp.eq.s32.totalorder %s88, 3
      %p756 = por %p754, %p755
      %p758 = scmp.ne.s32.totalorder %s743, %s757
      %p759 = scmp.eq.s32.totalorder %s88, 0
      %p760 = por %p758, %p759
      %p761 = scmp.le.s32.totalorder 1, %s82
      %p762 = scmp.lt.s32.totalorder %s82, 5
      %p763 = pnand %p761, %p762
      %p764 = pneg %p763
      // Predicated region
      $region9: #{vgg1d_forward.1} parent=5 // pred_check
        _
      $region10: #{vgg1d_forward.1} parent=5 // pred_check_branch
        %766 = sbr.rel (%p763) target = $region12
      $region11: #{vgg1d_forward.1} parent=5 // pred_region
        %s767 = ssub.s32 %s82, 1
        // Predicated region
        $region13: #{vgg1d_forward.1} parent=11 // pred_check
          %p768 = pneg %p103
        $region14: #{vgg1d_forward.1} parent=11 // pred_check_branch
          %770 = sbr.rel (%p768) target = $region16
        $region15: #{vgg1d_forward.1} parent=11 // pred_region
          _
        $region16: #{vgg1d_forward.1} parent=11 // pred_fallthru
          _
        // Predicated region
        $region17: #{vgg1d_forward.1} parent=11 // pred_check
          %p771 = pneg %p124
        $region18: #{vgg1d_forward.1} parent=11 // pred_check_branch
          %773 = sbr.rel (%p771) target = $region20
        $region19: #{vgg1d_forward.1} parent=11 // pred_region
          %s775 = ssub.s32 48, 48
          %776 = vsyncadd [#allocation6], %s775
          %s777 = sshll.u32 [#allocation5], 4
          %s778 = int_to_ptr.vmem [resolvable:$true] %s777
          %783 = dma.hbm_to_vmem [thread:$0]  %s3, 48, %s778, [#allocation6], 16, 16, 1
        $region20: #{vgg1d_forward.1} parent=11 // pred_fallthru
          _
        // Predicated region
        $region21: #{vgg1d_forward.1} parent=11 // pred_check
          %p784 = pneg %p145
        $region22: #{vgg1d_forward.1} parent=11 // pred_check_branch
          %786 = sbr.rel (%p784) target = $region24
        $region23: #{vgg1d_forward.1} parent=11 // pred_region
          %s788 = ssub.s32 16, 16
          %789 = vsyncadd [#allocation8], %s788
          %s791 = sshll.u32 [#allocation7], 4
          %s792 = int_to_ptr.vmem [resolvable:$true] %s791
          %794 = dma.hbm_to_vmem [thread:$0]  %s5, 16, %s792, [#allocation8]
        $region24: #{vgg1d_forward.1} parent=11 // pred_fallthru
          _
        // Predicated region
        $region25: #{vgg1d_forward.1} parent=11 // pred_check
          %p795 = pneg %p166
        $region26: #{vgg1d_forward.1} parent=11 // pred_check_branch
          %797 = sbr.rel (%p795) target = $region28
        $region27: #{vgg1d_forward.1} parent=11 // pred_region
          %s799 = ssub.s32 16, 16
          %800 = vsyncadd [#allocation8], %s799
          %s802 = sshll.u32 [#allocation9], 4
          %s803 = int_to_ptr.vmem [resolvable:$true] %s802
          %805 = dma.hbm_to_vmem [thread:$0]  %s7, 16, %s803, [#allocation8]
        $region28: #{vgg1d_forward.1} parent=11 // pred_fallthru
          _
        // Predicated region
        $region29: #{vgg1d_forward.1} parent=11 // pred_check
          %p806 = pneg %p187
        $region30: #{vgg1d_forward.1} parent=11 // pred_check_branch
          %808 = sbr.rel (%p806) target = $region32
        $region31: #{vgg1d_forward.1} parent=11 // pred_region
          %s810 = ssub.s32 1536, 1536
          %811 = vsyncadd [#allocation11], %s810
          %s812 = sshll.u32 [#allocation10], 4
          %s813 = int_to_ptr.vmem [resolvable:$true] %s812
          %818 = dma.hbm_to_vmem [thread:$0]  %s9, 1536, %s813, [#allocation11], 64, 64, 4
        $region32: #{vgg1d_forward.1} parent=11 // pred_fallthru
          _
        // Predicated region
        $region33: #{vgg1d_forward.1} parent=11 // pred_check
          %p819 = pneg %p208
        $region34: #{vgg1d_forward.1} parent=11 // pred_check_branch
          %821 = sbr.rel (%p819) target = $region36
        $region35: #{vgg1d_forward.1} parent=11 // pred_region
          %s823 = ssub.s32 16, 16
          %824 = vsyncadd [#allocation11], %s823
          %s826 = sshll.u32 [#allocation12], 4
          %s827 = int_to_ptr.vmem [resolvable:$true] %s826
          %829 = dma.hbm_to_vmem [thread:$0]  %s11, 16, %s827, [#allocation11]
        $region36: #{vgg1d_forward.1} parent=11 // pred_fallthru
          _
        // Predicated region
        $region37: #{vgg1d_forward.1} parent=11 // pred_check
          %p830 = pneg %p229
        $region38: #{vgg1d_forward.1} parent=11 // pred_check_branch
          %832 = sbr.rel (%p830) target = $region40
        $region39: #{vgg1d_forward.1} parent=11 // pred_region
          %s834 = ssub.s32 16, 16
          %835 = vsyncadd [#allocation14], %s834
          %s837 = sshll.u32 [#allocation13], 4
          %s838 = int_to_ptr.vmem [resolvable:$true] %s837
          %840 = dma.hbm_to_vmem [thread:$0]  %s13, 16, %s838, [#allocation14]
        $region40: #{vgg1d_forward.1} parent=11 // pred_fallthru
          _
        // Predicated region
        $region41: #{vgg1d_forward.1} parent=11 // pred_check
          %p841 = pneg %p250
        $region42: #{vgg1d_forward.1} parent=11 // pred_check_branch
          %843 = sbr.rel (%p841) target = $region44
        $region43: #{vgg1d_forward.1} parent=11 // pred_region
          %s845 = ssub.s32 1536, 1536
          %846 = vsyncadd [#allocation14], %s845
          %s847 = sshll.u32 [#allocation15], 4
          %s848 = int_to_ptr.vmem [resolvable:$true] %s847
          %853 = dma.hbm_to_vmem [thread:$0]  %s15, 1536, %s848, [#allocation14], 64, 64, 4
        $region44: #{vgg1d_forward.1} parent=11 // pred_fallthru
          _
        // Predicated region
        $region45: #{vgg1d_forward.1} parent=11 // pred_check
          %p854 = pneg %p271
        $region46: #{vgg1d_forward.1} parent=11 // pred_check_branch
          %856 = sbr.rel (%p854) target = $region48
        $region47: #{vgg1d_forward.1} parent=11 // pred_region
          %s858 = ssub.s32 16, 16
          %859 = vsyncadd [#allocation17], %s858
          %s861 = sshll.u32 [#allocation16], 4
          %s862 = int_to_ptr.vmem [resolvable:$true] %s861
          %864 = dma.hbm_to_vmem [thread:$0]  %s17, 16, %s862, [#allocation17]
        $region48: #{vgg1d_forward.1} parent=11 // pred_fallthru
          _
        // Predicated region
        $region49: #{vgg1d_forward.1} parent=11 // pred_check
          %p865 = pneg %p292
        $region50: #{vgg1d_forward.1} parent=11 // pred_check_branch
          %867 = sbr.rel (%p865) target = $region52
        $region51: #{vgg1d_forward.1} parent=11 // pred_region
          %s869 = ssub.s32 16, 16
          %870 = vsyncadd [#allocation17], %s869
          %s872 = sshll.u32 [#allocation18], 4
          %s873 = int_to_ptr.vmem [resolvable:$true] %s872
          %875 = dma.hbm_to_vmem [thread:$0]  %s19, 16, %s873, [#allocation17]
        $region52: #{vgg1d_forward.1} parent=11 // pred_fallthru
          _
        // Predicated region
        $region53: #{vgg1d_forward.1} parent=11 // pred_check
          %p876 = pneg %p313
        $region54: #{vgg1d_forward.1} parent=11 // pred_check_branch
          %878 = sbr.rel (%p876) target = $region56
        $region55: #{vgg1d_forward.1} parent=11 // pred_region
          %s880 = ssub.s32 3072, 3072
          %881 = vsyncadd [#allocation20], %s880
          %s882 = sshll.u32 [#allocation19], 4
          %s883 = int_to_ptr.vmem [resolvable:$true] %s882
          %888 = dma.hbm_to_vmem [thread:$0]  %s21, 3072, %s883, [#allocation20], 64, 64, 4
        $region56: #{vgg1d_forward.1} parent=11 // pred_fallthru
          _
        // Predicated region
        $region57: #{vgg1d_forward.1} parent=11 // pred_check
          %p889 = pneg %p334
        $region58: #{vgg1d_forward.1} parent=11 // pred_check_branch
          %891 = sbr.rel (%p889) target = $region60
        $region59: #{vgg1d_forward.1} parent=11 // pred_region
          %s893 = ssub.s32 16, 16
          %894 = vsyncadd [#allocation20], %s893
          %s896 = sshll.u32 [#allocation21], 4
          %s897 = int_to_ptr.vmem [resolvable:$true] %s896
          %899 = dma.hbm_to_vmem [thread:$0]  %s23, 16, %s897, [#allocation20]
        $region60: #{vgg1d_forward.1} parent=11 // pred_fallthru
          _
        // Predicated region
        $region61: #{vgg1d_forward.1} parent=11 // pred_check
          %p900 = pneg %p355
        $region62: #{vgg1d_forward.1} parent=11 // pred_check_branch
          %902 = sbr.rel (%p900) target = $region64
        $region63: #{vgg1d_forward.1} parent=11 // pred_region
          %s904 = ssub.s32 16, 16
          %905 = vsyncadd [#allocation23], %s904
          %s907 = sshll.u32 [#allocation22], 4
          %s908 = int_to_ptr.vmem [resolvable:$true] %s907
          %910 = dma.hbm_to_vmem [thread:$0]  %s25, 16, %s908, [#allocation23]
        $region64: #{vgg1d_forward.1} parent=11 // pred_fallthru
          _
        // Predicated region
        $region65: #{vgg1d_forward.1} parent=11 // pred_check
          %p911 = pneg %p376
        $region66: #{vgg1d_forward.1} parent=11 // pred_check_branch
          %913 = sbr.rel (%p911) target = $region68
        $region67: #{vgg1d_forward.1} parent=11 // pred_region
          %s915 = ssub.s32 6144, 6144
          %916 = vsyncadd [#allocation23], %s915
          %s917 = sshll.u32 [#allocation24], 4
          %s918 = int_to_ptr.vmem [resolvable:$true] %s917
          %923 = dma.hbm_to_vmem [thread:$0]  %s27, 6144, %s918, [#allocation23], 128, 128, 8
        $region68: #{vgg1d_forward.1} parent=11 // pred_fallthru
          _
        // Predicated region
        $region69: #{vgg1d_forward.1} parent=11 // pred_check
          %p924 = pneg %p397
        $region70: #{vgg1d_forward.1} parent=11 // pred_check_branch
          %926 = sbr.rel (%p924) target = $region72
        $region71: #{vgg1d_forward.1} parent=11 // pred_region
          %s928 = ssub.s32 32, 32
          %929 = vsyncadd [#allocation26], %s928
          %s931 = sshll.u32 [#allocation25], 4
          %s932 = int_to_ptr.vmem [resolvable:$true] %s931
          %934 = dma.hbm_to_vmem [thread:$0]  %s29, 32, %s932, [#allocation26]
        $region72: #{vgg1d_forward.1} parent=11 // pred_fallthru
          _
        // Predicated region
        $region73: #{vgg1d_forward.1} parent=11 // pred_check
          %p935 = pneg %p418
        $region74: #{vgg1d_forward.1} parent=11 // pred_check_branch
          %937 = sbr.rel (%p935) target = $region76
        $region75: #{vgg1d_forward.1} parent=11 // pred_region
          %s939 = ssub.s32 32, 32
          %940 = vsyncadd [#allocation26], %s939
          %s942 = sshll.u32 [#allocation27], 4
          %s943 = int_to_ptr.vmem [resolvable:$true] %s942
          %945 = dma.hbm_to_vmem [thread:$0]  %s31, 32, %s943, [#allocation26]
        $region76: #{vgg1d_forward.1} parent=11 // pred_fallthru
          _
        // Predicated region
        $region77: #{vgg1d_forward.1} parent=11 // pred_check
          %p946 = pneg %p439
        $region78: #{vgg1d_forward.1} parent=11 // pred_check_branch
          %948 = sbr.rel (%p946) target = $region80
        $region79: #{vgg1d_forward.1} parent=11 // pred_region
          %s950 = ssub.s32 12288, 12288
          %951 = vsyncadd [#allocation29], %s950
          %s952 = sshll.u32 [#allocation28], 4
          %s953 = int_to_ptr.vmem [resolvable:$true] %s952
          %958 = dma.hbm_to_vmem [thread:$0]  %s33, 12288, %s953, [#allocation29], 128, 128, 8
        $region80: #{vgg1d_forward.1} parent=11 // pred_fallthru
          _
        // Predicated region
        $region81: #{vgg1d_forward.1} parent=11 // pred_check
          %p959 = pneg %p460
        $region82: #{vgg1d_forward.1} parent=11 // pred_check_branch
          %961 = sbr.rel (%p959) target = $region84
        $region83: #{vgg1d_forward.1} parent=11 // pred_region
          %s963 = ssub.s32 32, 32
          %964 = vsyncadd [#allocation29], %s963
          %s966 = sshll.u32 [#allocation30], 4
          %s967 = int_to_ptr.vmem [resolvable:$true] %s966
          %969 = dma.hbm_to_vmem [thread:$0]  %s35, 32, %s967, [#allocation29]
        $region84: #{vgg1d_forward.1} parent=11 // pred_fallthru
          _
        // Predicated region
        $region85: #{vgg1d_forward.1} parent=11 // pred_check
          %p970 = pneg %p481
        $region86: #{vgg1d_forward.1} parent=11 // pred_check_branch
          %972 = sbr.rel (%p970) target = $region88
        $region87: #{vgg1d_forward.1} parent=11 // pred_region
          %s974 = ssub.s32 32, 32
          %975 = vsyncadd [#allocation32], %s974
          %s977 = sshll.u32 [#allocation31], 4
          %s978 = int_to_ptr.vmem [resolvable:$true] %s977
          %980 = dma.hbm_to_vmem [thread:$0]  %s37, 32, %s978, [#allocation32]
        $region88: #{vgg1d_forward.1} parent=11 // pred_fallthru
          _
        // Predicated region
        $region89: #{vgg1d_forward.1} parent=11 // pred_check
          %p981 = pneg %p502
        $region90: #{vgg1d_forward.1} parent=11 // pred_check_branch
          %983 = sbr.rel (%p981) target = $region92
        $region91: #{vgg1d_forward.1} parent=11 // pred_region
          %s985 = ssub.s32 12288, 12288
          %986 = vsyncadd [#allocation32], %s985
          %s987 = sshll.u32 [#allocation33], 4
          %s988 = int_to_ptr.vmem [resolvable:$true] %s987
          %993 = dma.hbm_to_vmem [thread:$0]  %s39, 12288, %s988, [#allocation32], 128, 128, 8
        $region92: #{vgg1d_forward.1} parent=11 // pred_fallthru
          _
        // Predicated region
        $region93: #{vgg1d_forward.1} parent=11 // pred_check
          %p994 = pneg %p523
        $region94: #{vgg1d_forward.1} parent=11 // pred_check_branch
          %996 = sbr.rel (%p994) target = $region96
        $region95: #{vgg1d_forward.1} parent=11 // pred_region
          %s998 = ssub.s32 32, 32
          %999 = vsyncadd [#allocation35], %s998
          %s1001 = sshll.u32 [#allocation34], 4
          %s1002 = int_to_ptr.vmem [resolvable:$true] %s1001
          %1004 = dma.hbm_to_vmem [thread:$0]  %s41, 32, %s1002, [#allocation35]
        $region96: #{vgg1d_forward.1} parent=11 // pred_fallthru
          _
        // Predicated region
        $region97: #{vgg1d_forward.1} parent=11 // pred_check
          %p1005 = pneg %p544
        $region98: #{vgg1d_forward.1} parent=11 // pred_check_branch
          %1007 = sbr.rel (%p1005) target = $region100
        $region99: #{vgg1d_forward.1} parent=11 // pred_region
          %s1009 = ssub.s32 32, 32
          %1010 = vsyncadd [#allocation35], %s1009
          %s1012 = sshll.u32 [#allocation36], 4
          %s1013 = int_to_ptr.vmem [resolvable:$true] %s1012
          %1015 = dma.hbm_to_vmem [thread:$0]  %s43, 32, %s1013, [#allocation35]
        $region100: #{vgg1d_forward.1} parent=11 // pred_fallthru
          _
        // Predicated region
        $region101: #{vgg1d_forward.1} parent=11 // pred_check
          %p1016 = pneg %p565
        $region102: #{vgg1d_forward.1} parent=11 // pred_check_branch
          %1018 = sbr.rel (%p1016) target = $region104
        $region103: #{vgg1d_forward.1} parent=11 // pred_region
          %s1020 = ssub.s32 24576, 24576
          %1021 = vsyncadd [#allocation38], %s1020
          %s1022 = sshll.u32 [#allocation37], 4
          %s1023 = int_to_ptr.vmem [resolvable:$true] %s1022
          %1028 = dma.hbm_to_vmem [thread:$0]  %s45, 24576, %s1023, [#allocation38], 256, 256, 16
        $region104: #{vgg1d_forward.1} parent=11 // pred_fallthru
          _
        // Predicated region
        $region105: #{vgg1d_forward.1} parent=11 // pred_check
          %p1029 = pneg %p586
        $region106: #{vgg1d_forward.1} parent=11 // pred_check_branch
          %1031 = sbr.rel (%p1029) target = $region108
        $region107: #{vgg1d_forward.1} parent=11 // pred_region
          %s1033 = ssub.s32 64, 64
          %1034 = vsyncadd [#allocation38], %s1033
          %s1036 = sshll.u32 [#allocation39], 4
          %s1037 = int_to_ptr.vmem [resolvable:$true] %s1036
          %1039 = dma.hbm_to_vmem [thread:$0]  %s47, 64, %s1037, [#allocation38]
        $region108: #{vgg1d_forward.1} parent=11 // pred_fallthru
          _
        // Predicated region
        $region109: #{vgg1d_forward.1} parent=11 // pred_check
          %p1040 = pneg %p607
        $region110: #{vgg1d_forward.1} parent=11 // pred_check_branch
          %1042 = sbr.rel (%p1040) target = $region112
        $region111: #{vgg1d_forward.1} parent=11 // pred_region
          %s1044 = ssub.s32 64, 64
          %1045 = vsyncadd [#allocation41], %s1044
          %s1047 = sshll.u32 [#allocation40], 4
          %s1048 = int_to_ptr.vmem [resolvable:$true] %s1047
          %1050 = dma.hbm_to_vmem [thread:$0]  %s49, 64, %s1048, [#allocation41]
        $region112: #{vgg1d_forward.1} parent=11 // pred_fallthru
          _
        // Predicated region
        $region113: #{vgg1d_forward.1} parent=11 // pred_check
          %p1051 = pneg %p732
        $region114: #{vgg1d_forward.1} parent=11 // pred_check_branch
          %1053 = sbr.rel (%p1051) target = $region116
        $region115: #{vgg1d_forward.1} parent=11 // pred_region
          _
        $region116: #{vgg1d_forward.1} parent=11 // pred_fallthru
          _
      $region12: #{vgg1d_forward.1} parent=5 // pred_fallthru
        _
      %p1054 = scmp.lt.s32.totalorder %s82, 4
      // Predicated region
      $region117: #{vgg1d_forward.1} parent=5 // pred_check
        %p1055 = pneg %p1054
      $region118: #{vgg1d_forward.1} parent=5 // pred_check_branch
        %1057 = sbr.rel (%p1055) target = $region120
      $region119: #{vgg1d_forward.1} parent=5 // pred_region
        // Predicated region
        $region121: #{vgg1d_forward.1} parent=119 // pred_check
          %p1058 = pneg %p627
        $region122: #{vgg1d_forward.1} parent=119 // pred_check_branch
          %1060 = sbr.rel (%p1058) target = $region124
        $region123: #{vgg1d_forward.1} parent=119 // pred_region
          %s1061 = sand.u32 %s82, 1
          %s1062 = scalar_lea.sflag [#allocation6], %s1061
          %s1063 = sand.u32 %s617, 1
          %s1064 = smul.addr %s1063, 1024
          %s1065 = scalar_lea.vmem [#allocation42], %s1064
          %s1066 = smul.u32 8, %s82
          %s1068 = ssub.s32 16384, 16384
          %1069 = vsyncadd %s1062, %s1068
          %s1070 = smul.addr %s1066, 128
          %s1071 = scalar_lea.hbm %s51, %s1070
          %s1072 = sshll.u32 %s1065, 4
          %s1073 = int_to_ptr.vmem [resolvable:$true] %s1072
          %1078 = dma.hbm_to_vmem [thread:$0]  %s1071, 16384, %s1073, %s1062, 4096, 1024, 64
        $region124: #{vgg1d_forward.1} parent=119 // pred_fallthru
          _
        // Predicated region
        $region125: #{vgg1d_forward.1} parent=119 // pred_check
          %p1079 = pneg %p653
        $region126: #{vgg1d_forward.1} parent=119 // pred_check_branch
          %1081 = sbr.rel (%p1079) target = $region128
        $region127: #{vgg1d_forward.1} parent=119 // pred_region
          %s1082 = sand.u32 %s82, 1
          %s1083 = scalar_lea.sflag [#allocation6], %s1082
          %s1084 = sand.u32 %s643, 1
          %s1085 = smul.addr %s1084, 8
          %s1086 = scalar_lea.vmem [#allocation43], %s1085
          %s1087 = smul.u32 8, %s82
          %s1089 = ssub.s32 128, 128
          %1090 = vsyncadd %s1083, %s1089
          %s1091 = smul.addr %s1087, 16
          %s1092 = scalar_lea.hbm %s53, %s1091
          %s1094 = sshll.u32 %s1086, 4
          %s1095 = int_to_ptr.vmem [resolvable:$true] %s1094
          %1097 = dma.hbm_to_vmem [thread:$0]  %s1092, 128, %s1095, %s1083
        $region128: #{vgg1d_forward.1} parent=119 // pred_fallthru
          _
        // Predicated region
        $region129: #{vgg1d_forward.1} parent=119 // pred_check
          %p1098 = pneg %p679
        $region130: #{vgg1d_forward.1} parent=119 // pred_check_branch
          %1100 = sbr.rel (%p1098) target = $region132
        $region131: #{vgg1d_forward.1} parent=119 // pred_region
          %s1101 = sand.u32 %s82, 1
          %s1102 = scalar_lea.sflag [#allocation6], %s1101
          %s1103 = sand.u32 %s669, 1
          %s1104 = smul.addr %s1103, 8
          %s1105 = scalar_lea.vmem [#allocation44], %s1104
          %s1106 = smul.u32 8, %s82
          %s1108 = ssub.s32 128, 128
          %1109 = vsyncadd %s1102, %s1108
          %s1110 = smul.addr %s1106, 16
          %s1111 = scalar_lea.hbm %s55, %s1110
          %s1113 = sshll.u32 %s1105, 4
          %s1114 = int_to_ptr.vmem [resolvable:$true] %s1113
          %1116 = dma.hbm_to_vmem [thread:$0]  %s1111, 128, %s1114, %s1102
        $region132: #{vgg1d_forward.1} parent=119 // pred_fallthru
          _
        // Predicated region
        $region133: #{vgg1d_forward.1} parent=119 // pred_check
          %p1117 = pneg %p705
        $region134: #{vgg1d_forward.1} parent=119 // pred_check_branch
          %1119 = sbr.rel (%p1117) target = $region136
        $region135: #{vgg1d_forward.1} parent=119 // pred_region
          %s1120 = sand.u32 %s82, 1
          %s1121 = scalar_lea.sflag [#allocation6], %s1120
          %s1122 = sand.u32 %s695, 1
          %s1123 = smul.addr %s1122, 8
          %s1124 = scalar_lea.vmem [#allocation45], %s1123
          %s1125 = smul.u32 8, %s82
          %s1127 = ssub.s32 128, 128
          %1128 = vsyncadd %s1121, %s1127
          %s1129 = smul.addr %s1125, 16
          %s1130 = scalar_lea.hbm %s57, %s1129
          %s1132 = sshll.u32 %s1124, 4
          %s1133 = int_to_ptr.vmem [resolvable:$true] %s1132
          %1135 = dma.hbm_to_vmem [thread:$0]  %s1130, 128, %s1133, %s1121
        $region136: #{vgg1d_forward.1} parent=119 // pred_fallthru
          _
      $region120: #{vgg1d_forward.1} parent=5 // pred_fallthru
        _
      %p1136 = scmp.le.s32.totalorder 1, %s82
      %p1137 = scmp.lt.s32.totalorder %s82, 5
      %p1138 = pnand %p1136, %p1137
      %p1139 = pneg %p1138
      // Predicated region
      $region137: #{vgg1d_forward.1} parent=5 // pred_check
        _
      $region138: #{vgg1d_forward.1} parent=5 // pred_check_branch
        %1141 = sbr.rel (%p1138) target = $region140
      $region139: #{vgg1d_forward.1} parent=5 // pred_region
        %s1142 = ssub.s32 %s82, 1
        // Predicated region
        $region141: #{vgg1d_forward.1} parent=139 // pred_check
          %p1143 = pneg %p124
        $region142: #{vgg1d_forward.1} parent=139 // pred_check_branch
          %1145 = sbr.rel (%p1143) target = $region144
        $region143: #{vgg1d_forward.1} parent=139 // pred_region
          %1146 = dma.done [#allocation6], 48
        $region144: #{vgg1d_forward.1} parent=139 // pred_fallthru
          _
        // Predicated region
        $region145: #{vgg1d_forward.1} parent=139 // pred_check
          %p1147 = pneg %p145
        $region146: #{vgg1d_forward.1} parent=139 // pred_check_branch
          %1149 = sbr.rel (%p1147) target = $region148
        $region147: #{vgg1d_forward.1} parent=139 // pred_region
          %1150 = dma.done [#allocation8], 16
        $region148: #{vgg1d_forward.1} parent=139 // pred_fallthru
          _
        // Predicated region
        $region149: #{vgg1d_forward.1} parent=139 // pred_check
          %p1151 = pneg %p166
        $region150: #{vgg1d_forward.1} parent=139 // pred_check_branch
          %1153 = sbr.rel (%p1151) target = $region152
        $region151: #{vgg1d_forward.1} parent=139 // pred_region
          %1154 = dma.done [#allocation8], 16
        $region152: #{vgg1d_forward.1} parent=139 // pred_fallthru
          _
        // Predicated region
        $region153: #{vgg1d_forward.1} parent=139 // pred_check
          %p1155 = pneg %p187
        $region154: #{vgg1d_forward.1} parent=139 // pred_check_branch
          %1157 = sbr.rel (%p1155) target = $region156
        $region155: #{vgg1d_forward.1} parent=139 // pred_region
          %1158 = dma.done [#allocation11], 1536
        $region156: #{vgg1d_forward.1} parent=139 // pred_fallthru
          _
        // Predicated region
        $region157: #{vgg1d_forward.1} parent=139 // pred_check
          %p1159 = pneg %p208
        $region158: #{vgg1d_forward.1} parent=139 // pred_check_branch
          %1161 = sbr.rel (%p1159) target = $region160
        $region159: #{vgg1d_forward.1} parent=139 // pred_region
          %1162 = dma.done [#allocation11], 16
        $region160: #{vgg1d_forward.1} parent=139 // pred_fallthru
          _
        // Predicated region
        $region161: #{vgg1d_forward.1} parent=139 // pred_check
          %p1163 = pneg %p229
        $region162: #{vgg1d_forward.1} parent=139 // pred_check_branch
          %1165 = sbr.rel (%p1163) target = $region164
        $region163: #{vgg1d_forward.1} parent=139 // pred_region
          %1166 = dma.done [#allocation14], 16
        $region164: #{vgg1d_forward.1} parent=139 // pred_fallthru
          _
        // Predicated region
        $region165: #{vgg1d_forward.1} parent=139 // pred_check
          %p1167 = pneg %p250
        $region166: #{vgg1d_forward.1} parent=139 // pred_check_branch
          %1169 = sbr.rel (%p1167) target = $region168
        $region167: #{vgg1d_forward.1} parent=139 // pred_region
          %1170 = dma.done [#allocation14], 1536
        $region168: #{vgg1d_forward.1} parent=139 // pred_fallthru
          _
        // Predicated region
        $region169: #{vgg1d_forward.1} parent=139 // pred_check
          %p1171 = pneg %p271
        $region170: #{vgg1d_forward.1} parent=139 // pred_check_branch
          %1173 = sbr.rel (%p1171) target = $region172
        $region171: #{vgg1d_forward.1} parent=139 // pred_region
          %1174 = dma.done [#allocation17], 16
        $region172: #{vgg1d_forward.1} parent=139 // pred_fallthru
          _
        // Predicated region
        $region173: #{vgg1d_forward.1} parent=139 // pred_check
          %p1175 = pneg %p292
        $region174: #{vgg1d_forward.1} parent=139 // pred_check_branch
          %1177 = sbr.rel (%p1175) target = $region176
        $region175: #{vgg1d_forward.1} parent=139 // pred_region
          %1178 = dma.done [#allocation17], 16
        $region176: #{vgg1d_forward.1} parent=139 // pred_fallthru
          _
        // Predicated region
        $region177: #{vgg1d_forward.1} parent=139 // pred_check
          %p1179 = pneg %p313
        $region178: #{vgg1d_forward.1} parent=139 // pred_check_branch
          %1181 = sbr.rel (%p1179) target = $region180
        $region179: #{vgg1d_forward.1} parent=139 // pred_region
          %1182 = dma.done [#allocation20], 3072
        $region180: #{vgg1d_forward.1} parent=139 // pred_fallthru
          _
        // Predicated region
        $region181: #{vgg1d_forward.1} parent=139 // pred_check
          %p1183 = pneg %p334
        $region182: #{vgg1d_forward.1} parent=139 // pred_check_branch
          %1185 = sbr.rel (%p1183) target = $region184
        $region183: #{vgg1d_forward.1} parent=139 // pred_region
          %1186 = dma.done [#allocation20], 16
        $region184: #{vgg1d_forward.1} parent=139 // pred_fallthru
          _
        // Predicated region
        $region185: #{vgg1d_forward.1} parent=139 // pred_check
          %p1187 = pneg %p355
        $region186: #{vgg1d_forward.1} parent=139 // pred_check_branch
          %1189 = sbr.rel (%p1187) target = $region188
        $region187: #{vgg1d_forward.1} parent=139 // pred_region
          %1190 = dma.done [#allocation23], 16
        $region188: #{vgg1d_forward.1} parent=139 // pred_fallthru
          _
        // Predicated region
        $region189: #{vgg1d_forward.1} parent=139 // pred_check
          %p1191 = pneg %p376
        $region190: #{vgg1d_forward.1} parent=139 // pred_check_branch
          %1193 = sbr.rel (%p1191) target = $region192
        $region191: #{vgg1d_forward.1} parent=139 // pred_region
          %1194 = dma.done [#allocation23], 6144
        $region192: #{vgg1d_forward.1} parent=139 // pred_fallthru
          _
        // Predicated region
        $region193: #{vgg1d_forward.1} parent=139 // pred_check
          %p1195 = pneg %p397
        $region194: #{vgg1d_forward.1} parent=139 // pred_check_branch
          %1197 = sbr.rel (%p1195) target = $region196
        $region195: #{vgg1d_forward.1} parent=139 // pred_region
          %1198 = dma.done [#allocation26], 32
        $region196: #{vgg1d_forward.1} parent=139 // pred_fallthru
          _
        // Predicated region
        $region197: #{vgg1d_forward.1} parent=139 // pred_check
          %p1199 = pneg %p418
        $region198: #{vgg1d_forward.1} parent=139 // pred_check_branch
          %1201 = sbr.rel (%p1199) target = $region200
        $region199: #{vgg1d_forward.1} parent=139 // pred_region
          %1202 = dma.done [#allocation26], 32
        $region200: #{vgg1d_forward.1} parent=139 // pred_fallthru
          _
        // Predicated region
        $region201: #{vgg1d_forward.1} parent=139 // pred_check
          %p1203 = pneg %p439
        $region202: #{vgg1d_forward.1} parent=139 // pred_check_branch
          %1205 = sbr.rel (%p1203) target = $region204
        $region203: #{vgg1d_forward.1} parent=139 // pred_region
          %1206 = dma.done [#allocation29], 12288
        $region204: #{vgg1d_forward.1} parent=139 // pred_fallthru
          _
        // Predicated region
        $region205: #{vgg1d_forward.1} parent=139 // pred_check
          %p1207 = pneg %p460
        $region206: #{vgg1d_forward.1} parent=139 // pred_check_branch
          %1209 = sbr.rel (%p1207) target = $region208
        $region207: #{vgg1d_forward.1} parent=139 // pred_region
          %1210 = dma.done [#allocation29], 32
        $region208: #{vgg1d_forward.1} parent=139 // pred_fallthru
          _
        // Predicated region
        $region209: #{vgg1d_forward.1} parent=139 // pred_check
          %p1211 = pneg %p481
        $region210: #{vgg1d_forward.1} parent=139 // pred_check_branch
          %1213 = sbr.rel (%p1211) target = $region212
        $region211: #{vgg1d_forward.1} parent=139 // pred_region
          %1214 = dma.done [#allocation32], 32
        $region212: #{vgg1d_forward.1} parent=139 // pred_fallthru
          _
        // Predicated region
        $region213: #{vgg1d_forward.1} parent=139 // pred_check
          %p1215 = pneg %p502
        $region214: #{vgg1d_forward.1} parent=139 // pred_check_branch
          %1217 = sbr.rel (%p1215) target = $region216
        $region215: #{vgg1d_forward.1} parent=139 // pred_region
          %1218 = dma.done [#allocation32], 12288
        $region216: #{vgg1d_forward.1} parent=139 // pred_fallthru
          _
        // Predicated region
        $region217: #{vgg1d_forward.1} parent=139 // pred_check
          %p1219 = pneg %p523
        $region218: #{vgg1d_forward.1} parent=139 // pred_check_branch
          %1221 = sbr.rel (%p1219) target = $region220
        $region219: #{vgg1d_forward.1} parent=139 // pred_region
          %1222 = dma.done [#allocation35], 32
        $region220: #{vgg1d_forward.1} parent=139 // pred_fallthru
          _
        // Predicated region
        $region221: #{vgg1d_forward.1} parent=139 // pred_check
          %p1223 = pneg %p544
        $region222: #{vgg1d_forward.1} parent=139 // pred_check_branch
          %1225 = sbr.rel (%p1223) target = $region224
        $region223: #{vgg1d_forward.1} parent=139 // pred_region
          %1226 = dma.done [#allocation35], 32
        $region224: #{vgg1d_forward.1} parent=139 // pred_fallthru
          _
        // Predicated region
        $region225: #{vgg1d_forward.1} parent=139 // pred_check
          %p1227 = pneg %p565
        $region226: #{vgg1d_forward.1} parent=139 // pred_check_branch
          %1229 = sbr.rel (%p1227) target = $region228
        $region227: #{vgg1d_forward.1} parent=139 // pred_region
          %1230 = dma.done [#allocation38], 24576
        $region228: #{vgg1d_forward.1} parent=139 // pred_fallthru
          _
        // Predicated region
        $region229: #{vgg1d_forward.1} parent=139 // pred_check
          %p1231 = pneg %p586
        $region230: #{vgg1d_forward.1} parent=139 // pred_check_branch
          %1233 = sbr.rel (%p1231) target = $region232
        $region231: #{vgg1d_forward.1} parent=139 // pred_region
          %1234 = dma.done [#allocation38], 64
        $region232: #{vgg1d_forward.1} parent=139 // pred_fallthru
          _
        // Predicated region
        $region233: #{vgg1d_forward.1} parent=139 // pred_check
          %p1235 = pneg %p607
        $region234: #{vgg1d_forward.1} parent=139 // pred_check_branch
          %1237 = sbr.rel (%p1235) target = $region236
        $region235: #{vgg1d_forward.1} parent=139 // pred_region
          %1238 = dma.done [#allocation41], 64
        $region236: #{vgg1d_forward.1} parent=139 // pred_fallthru
          _
        %s1239 = sand.u32 %s87, 1
        %s1240 = scalar_lea.sflag [#allocation6], %s1239
        %s1241 = sand.u32 %s620, 1
        %s1242 = smul.addr %s1241, 1024
        %s1243 = scalar_lea.vmem [#allocation42], %s1242
        // Predicated region
        $region237: #{vgg1d_forward.1} parent=139 // pred_check
          %p1244 = pneg %p633
        $region238: #{vgg1d_forward.1} parent=139 // pred_check_branch
          %1246 = sbr.rel (%p1244) target = $region240
        $region239: #{vgg1d_forward.1} parent=139 // pred_region
          %1247 = dma.done %s1240, 16384
        $region240: #{vgg1d_forward.1} parent=139 // pred_fallthru
          _
        %s1248 = sand.u32 %s87, 1
        %s1249 = scalar_lea.sflag [#allocation6], %s1248
        %s1250 = sand.u32 %s646, 1
        %s1251 = smul.addr %s1250, 8
        %s1252 = scalar_lea.vmem [#allocation43], %s1251
        // Predicated region
        $region241: #{vgg1d_forward.1} parent=139 // pred_check
          %p1253 = pneg %p659
        $region242: #{vgg1d_forward.1} parent=139 // pred_check_branch
          %1255 = sbr.rel (%p1253) target = $region244
        $region243: #{vgg1d_forward.1} parent=139 // pred_region
          %1256 = dma.done %s1249, 128
        $region244: #{vgg1d_forward.1} parent=139 // pred_fallthru
          _
        %s1257 = sand.u32 %s87, 1
        %s1258 = scalar_lea.sflag [#allocation6], %s1257
        %s1259 = sand.u32 %s672, 1
        %s1260 = smul.addr %s1259, 8
        %s1261 = scalar_lea.vmem [#allocation44], %s1260
        // Predicated region
        $region245: #{vgg1d_forward.1} parent=139 // pred_check
          %p1262 = pneg %p685
        $region246: #{vgg1d_forward.1} parent=139 // pred_check_branch
          %1264 = sbr.rel (%p1262) target = $region248
        $region247: #{vgg1d_forward.1} parent=139 // pred_region
          %1265 = dma.done %s1258, 128
        $region248: #{vgg1d_forward.1} parent=139 // pred_fallthru
          _
        %s1266 = sand.u32 %s87, 1
        %s1267 = scalar_lea.sflag [#allocation6], %s1266
        %s1268 = sand.u32 %s698, 1
        %s1269 = smul.addr %s1268, 8
        %s1270 = scalar_lea.vmem [#allocation45], %s1269
        // Predicated region
        $region249: #{vgg1d_forward.1} parent=139 // pred_check
          %p1271 = pneg %p711
        $region250: #{vgg1d_forward.1} parent=139 // pred_check_branch
          %1273 = sbr.rel (%p1271) target = $region252
        $region251: #{vgg1d_forward.1} parent=139 // pred_region
          %1274 = dma.done %s1267, 128
        $region252: #{vgg1d_forward.1} parent=139 // pred_fallthru
          _
        %p1275 = pneg %p103
        %p1276 = pneg %p100
        %p1277 = pneg %p124
        %p1278 = pneg %p121
        %p1279 = pneg %p145
        %p1280 = pneg %p142
        %p1281 = pneg %p166
        %p1282 = pneg %p163
        %p1283 = pneg %p187
        %p1284 = pneg %p184
        %p1285 = pneg %p208
        %p1286 = pneg %p205
        %p1287 = pneg %p229
        %p1288 = pneg %p226
        %p1289 = pneg %p250
        %p1290 = pneg %p247
        %p1291 = pneg %p271
        %p1292 = pneg %p268
        %p1293 = pneg %p292
        %p1294 = pneg %p289
        %p1295 = pneg %p313
        %p1296 = pneg %p310
        %p1297 = pneg %p334
        %p1298 = pneg %p331
        %p1299 = pneg %p355
        %p1300 = pneg %p352
        %p1301 = pneg %p376
        %p1302 = pneg %p373
        %p1303 = pneg %p397
        %p1304 = pneg %p394
        %p1305 = pneg %p418
        %p1306 = pneg %p415
        %p1307 = pneg %p439
        %p1308 = pneg %p436
        %p1309 = pneg %p460
        %p1310 = pneg %p457
        %p1311 = pneg %p481
        %p1312 = pneg %p478
        %p1313 = pneg %p502
        %p1314 = pneg %p499
        %p1315 = pneg %p523
        %p1316 = pneg %p520
        %p1317 = pneg %p544
        %p1318 = pneg %p541
        %p1319 = pneg %p565
        %p1320 = pneg %p562
        %p1321 = pneg %p586
        %p1322 = pneg %p583
        %p1323 = pneg %p607
        %p1324 = pneg %p604
        %s1325 = sand.u32 %s87, 1
        %s1326 = scalar_lea.sflag [#allocation6], %s1325
        %s1327 = sand.u32 %s620, 1
        %s1328 = smul.addr %s1327, 1024
        %s1329 = scalar_lea.vmem [#allocation42], %s1328
        %p1330 = pneg %p633
        %p1331 = pneg %p630
        %s1332 = sand.u32 %s87, 1
        %s1333 = scalar_lea.sflag [#allocation6], %s1332
        %s1334 = sand.u32 %s646, 1
        %s1335 = smul.addr %s1334, 8
        %s1336 = scalar_lea.vmem [#allocation43], %s1335
        %p1337 = pneg %p659
        %p1338 = pneg %p656
        %s1339 = sand.u32 %s87, 1
        %s1340 = scalar_lea.sflag [#allocation6], %s1339
        %s1341 = sand.u32 %s672, 1
        %s1342 = smul.addr %s1341, 8
        %s1343 = scalar_lea.vmem [#allocation44], %s1342
        %p1344 = pneg %p685
        %p1345 = pneg %p682
        %s1346 = sand.u32 %s87, 1
        %s1347 = scalar_lea.sflag [#allocation6], %s1346
        %s1348 = sand.u32 %s698, 1
        %s1349 = smul.addr %s1348, 8
        %s1350 = scalar_lea.vmem [#allocation45], %s1349
        %p1351 = pneg %p711
        %p1352 = pneg %p708
        %p1353 = pneg %p732
        %p1354 = pneg %p729
        %p1355 = pneg %p753
        %p1356 = pneg %p750
        %s1357 = smul.u32 8, %s87
        %s1358 = smul.u32 8, %s87
        %s1359 = smul.u32 8, %s87
        %s1360 = smul.u32 8, %s87
        %p1362 = scmp.eq.s32.totalorder %s87, 0
        // Predicated region
        $region253: #{vgg1d_forward.1} parent=139 // pred_check
          %p1363 = pneg %p1362
        $region254: #{vgg1d_forward.1} parent=139 // pred_check_branch
          %1365 = sbr.rel (%p1363) target = $region256
        $region255: #{vgg1d_forward.1} parent=139 // pred_region
          %v1366 = vld [vmem:[%s1] sm:$0xff]
          %v1367 = vld [vmem:[%s1 + $0x8] sm:$0xff]
          %v1368 = vld [vmem:[%s1 + $0x10] sm:$0xff]
          %v1369 = vld [vmem:[%s1 + $0x18] sm:$0xff]
          %v1370 = vlaneseq
          %v1371 = vshrl.u32 %v1370, 7
          %v1372 = vadd.s32 %v1371, 8
          %v1373 = vadd.s32 %v1371, 16
          %v1374 = vadd.s32 %v1371, 24
          %v1375 = vand.u32 %v1371, 15
          %v1376 = vand.u32 %v1372, 15
          %v1377 = vand.u32 %v1373, 15
          %v1378 = vand.u32 %v1374, 15
          %vm1379 = vcmp.ne.s32.totalorder %v1375, 0
          %vm1380 = vcmp.ne.s32.totalorder %v1376, 0
          %vm1381 = vcmp.ne.s32.totalorder %v1377, 0
          %vm1382 = vcmp.ne.s32.totalorder %v1378, 0
          %vm1383 = vcmp.ne.s32.totalorder %v1375, 15
          %vm1384 = vcmp.ne.s32.totalorder %v1376, 15
          %vm1385 = vcmp.ne.s32.totalorder %v1377, 15
          %vm1386 = vcmp.ne.s32.totalorder %v1378, 15
          %v1387 = vrot.slane %v1366, 7
          %v1388 = vrot.slane %v1367, 7
          %v1389 = vrot.slane %v1368, 7
          %v1390 = vrot.slane %v1369, 7
          %vm1391 = vcmp.lt.s32.totalorder %v1371, 1
          %v1392 = vsel %vm1391, %v1389, %v1390
          %v1393 = vsel %vm1391, %v1388, %v1389
          %v1394 = vsel %vm1391, %v1387, %v1388
          %v1395 = vsel %vm1391, %v1390, %v1387
          %v1396 = vsel %vm1379, 1, 0
          %v1397 = vsel %vm1380, 1, 0
          %v1398 = vsel %vm1381, 1, 0
          %v1399 = vsel %vm1382, 1, 0
          %vm1400 = vcmp.eq.s32.totalorder %v1396, 1
          %vm1401 = vcmp.eq.s32.totalorder %v1397, 1
          %vm1402 = vcmp.eq.s32.totalorder %v1398, 1
          %vm1403 = vcmp.eq.s32.totalorder %v1399, 1
          %v1404 = vsel %vm1400, %v1395, 0.0
          %v1405 = vsel %vm1401, %v1394, 0.0
          %v1406 = vsel %vm1402, %v1393, 0.0
          %v1407 = vsel %vm1403, %v1392, 0.0
          %v1408 = vrot.slane %v1366, 1
          %v1409 = vrot.slane %v1367, 1
          %v1410 = vrot.slane %v1368, 1
          %v1411 = vrot.slane %v1369, 1
          %vm1412 = vcmp.lt.s32.totalorder %v1371, 7
          %v1413 = vsel %vm1412, %v1410, %v1411
          %v1414 = vsel %vm1412, %v1409, %v1410
          %v1415 = vsel %vm1412, %v1408, %v1409
          %v1416 = vsel %vm1412, %v1411, %v1408
          %v1417 = vsel %vm1383, 1, 0
          %v1418 = vsel %vm1384, 1, 0
          %v1419 = vsel %vm1385, 1, 0
          %v1420 = vsel %vm1386, 1, 0
          %vm1421 = vcmp.eq.s32.totalorder %v1417, 1
          %vm1422 = vcmp.eq.s32.totalorder %v1418, 1
          %vm1423 = vcmp.eq.s32.totalorder %v1419, 1
          %vm1424 = vcmp.eq.s32.totalorder %v1420, 1
          %v1425 = vsel %vm1421, %v1415, 0.0
          %v1426 = vsel %vm1422, %v1414, 0.0
          %v1427 = vsel %vm1423, %v1413, 0.0
          %v1428 = vsel %vm1424, %v1416, 0.0
          %v1429 = vpack.c.bf16 %v1405, %v1404
          %v1430 = vpack.c.bf16 %v1407, %v1406
          %v1431 = vld [vmem:[#allocation5] sm:$0x1]
          %v1432 = vpack.c.bf16 %v1367, %v1366
          %v1433 = vpack.c.bf16 %v1369, %v1368
          %s1434 = scalar_lea.vmem [#allocation5], 1
          %v1435 = vld [vmem:[%s1434] sm:$0x1]
          %vm1436 = vcmask 15360
          %v1438 = vsel %vm1436, %v1432, 0
          %v1441 = vsel %vm1436, %v1433, 0
          %vm1443 = vcmask 1040384
          %v1445 = vsel %vm1443, %v1435, 0
          %1447 = vmatprep.subr.bf16.mxu0 0
          %1448 = vmatpush1.bf16.msra.mxu0 %v1445
          %1449 = vmatprep.subr.bf16.mxu0 0
          %1450 = vmatpush1.bf16.msra.mxu0 0
          %1451 = vmatprep.subr.bf16.mxu0 0
          %1452 = vmatpush1.bf16.msra.mxu0 0
          %1453 = vmatprep.subr.bf16.mxu0 0
          %1454 = vmatpush1.bf16.msra.mxu0 0
          %1455 = vmatprep.subr.bf16.mxu0 0
          %1456 = vmatpush1.bf16.msra.mxu0 0
          %1457 = vmatprep.subr.bf16.mxu0 0
          %1458 = vmatpush1.bf16.msra.mxu0 0
          %1459 = vmatprep.subr.bf16.mxu0 0
          %1460 = vmatpush1.bf16.msra.mxu0 0
          %1461 = vmatprep.subr.bf16.mxu0 0
          %1462 = vmatpush1.bf16.msra.mxu0 0
          %1463 = vmatprep.subr.bf16.mxu0 0
          %1464 = vmatpush1.bf16.msra.mxu0 0
          %1465 = vmatprep.subr.bf16.mxu0 0
          %1466 = vmatpush1.bf16.msra.mxu0 0
          %1467 = vmatprep.subr.bf16.mxu0 0
          %1468 = vmatpush1.bf16.msra.mxu0 0
          %1469 = vmatprep.subr.bf16.mxu0 0
          %1470 = vmatpush1.bf16.msra.mxu0 0
          %1471 = vmatprep.subr.bf16.mxu0 0
          %1472 = vmatpush1.bf16.msra.mxu0 0
          %1473 = vmatprep.subr.bf16.mxu0 0
          %1474 = vmatpush1.bf16.msra.mxu0 0
          %1475 = vmatprep.subr.bf16.mxu0 0
          %1476 = vmatpush1.bf16.msra.mxu0 0
          %1477 = vmatprep.subr.bf16.mxu0 0
          %1478 = vmatpush1.bf16.msra.mxu0 0
          %1479 = vmatprep.mubr.bf16.mxu0 0
          %1480 = vmatmul.mubr.bf16.gmra.mrb[0].mxu0 %v1438
          %v1481 = vpop.f32.mrb[0].mxu0
          %v1482 = vadd.f32 0.0, %v1481
          %v1483 = vpop.f32.mrb[0].mxu0
          %v1484 = vpop.f32.mrb[0].mxu0
          %v1485 = vadd.f32 0.0, %v1484
          %v1486 = vpop.f32.mrb[0].mxu0
          %1487 = vmatprep.mubr.bf16.mxu0 0
          %1488 = vmatmul.mubr.bf16.gmra.mrb[0].mxu0 %v1441
          %v1489 = vpop.f32.mrb[0].mxu0
          %v1490 = vadd.f32 0.0, %v1489
          %v1491 = vpop.f32.mrb[0].mxu0
          %v1492 = vpop.f32.mrb[0].mxu0
          %v1493 = vadd.f32 0.0, %v1492
          %v1494 = vpop.f32.mrb[0].mxu0
          %1495 = vdwg.mxu0
          %v1497 = vsel %vm1436, %v1429, 0
          %v1500 = vsel %vm1436, %v1430, 0
          %v1503 = vsel %vm1443, %v1431, 0
          %1505 = vmatprep.subr.bf16.mxu0 0
          %1506 = vmatpush1.bf16.msra.mxu0 %v1503
          %1507 = vmatprep.subr.bf16.mxu0 0
          %1508 = vmatpush1.bf16.msra.mxu0 0
          %1509 = vmatprep.subr.bf16.mxu0 0
          %1510 = vmatpush1.bf16.msra.mxu0 0
          %1511 = vmatprep.subr.bf16.mxu0 0
          %1512 = vmatpush1.bf16.msra.mxu0 0
          %1513 = vmatprep.subr.bf16.mxu0 0
          %1514 = vmatpush1.bf16.msra.mxu0 0
          %1515 = vmatprep.subr.bf16.mxu0 0
          %1516 = vmatpush1.bf16.msra.mxu0 0
          %1517 = vmatprep.subr.bf16.mxu0 0
          %1518 = vmatpush1.bf16.msra.mxu0 0
          %1519 = vmatprep.subr.bf16.mxu0 0
          %1520 = vmatpush1.bf16.msra.mxu0 0
          %1521 = vmatprep.subr.bf16.mxu0 0
          %1522 = vmatpush1.bf16.msra.mxu0 0
          %1523 = vmatprep.subr.bf16.mxu0 0
          %1524 = vmatpush1.bf16.msra.mxu0 0
          %1525 = vmatprep.subr.bf16.mxu0 0
          %1526 = vmatpush1.bf16.msra.mxu0 0
          %1527 = vmatprep.subr.bf16.mxu0 0
          %1528 = vmatpush1.bf16.msra.mxu0 0
          %1529 = vmatprep.subr.bf16.mxu0 0
          %1530 = vmatpush1.bf16.msra.mxu0 0
          %1531 = vmatprep.subr.bf16.mxu0 0
          %1532 = vmatpush1.bf16.msra.mxu0 0
          %1533 = vmatprep.subr.bf16.mxu0 0
          %1534 = vmatpush1.bf16.msra.mxu0 0
          %1535 = vmatprep.subr.bf16.mxu0 0
          %1536 = vmatpush1.bf16.msra.mxu0 0
          %1537 = vmatprep.mubr.bf16.mxu0 0
          %1538 = vmatmul.mubr.bf16.gmra.mrb[0].mxu0 %v1497
          %v1539 = vpop.f32.mrb[0].mxu0
          %v1540 = vadd.f32 %v1482, %v1539
          %v1541 = vpop.f32.mrb[0].mxu0
          %v1542 = vpop.f32.mrb[0].mxu0
          %v1543 = vadd.f32 %v1485, %v1542
          %v1544 = vpop.f32.mrb[0].mxu0
          %1545 = vmatprep.mubr.bf16.mxu0 0
          %1546 = vmatmul.mubr.bf16.gmra.mrb[0].mxu0 %v1500
          %v1547 = vpop.f32.mrb[0].mxu0
          %v1548 = vadd.f32 %v1490, %v1547
          %v1549 = vpop.f32.mrb[0].mxu0
          %v1550 = vpop.f32.mrb[0].mxu0
          %v1551 = vadd.f32 %v1493, %v1550
          %v1552 = vpop.f32.mrb[0].mxu0
          %1553 = vdwg.mxu0
          %v1554 = vpack.c.bf16 %v1426, %v1425
          %v1555 = vpack.c.bf16 %v1428, %v1427
          %s1556 = scalar_lea.vmem [#allocation5], 2
          %v1557 = vld [vmem:[%s1556] sm:$0x1]
          %v1559 = vsel %vm1436, %v1554, 0
          %v1562 = vsel %vm1436, %v1555, 0
          %v1565 = vsel %vm1443, %v1557, 0
          %1567 = vmatprep.subr.bf16.mxu0 0
          %1568 = vmatpush1.bf16.msra.mxu0 %v1565
          %1569 = vmatprep.subr.bf16.mxu0 0
          %1570 = vmatpush1.bf16.msra.mxu0 0
          %1571 = vmatprep.subr.bf16.mxu0 0
          %1572 = vmatpush1.bf16.msra.mxu0 0
          %1573 = vmatprep.subr.bf16.mxu0 0
          %1574 = vmatpush1.bf16.msra.mxu0 0
          %1575 = vmatprep.subr.bf16.mxu0 0
          %1576 = vmatpush1.bf16.msra.mxu0 0
          %1577 = vmatprep.subr.bf16.mxu0 0
          %1578 = vmatpush1.bf16.msra.mxu0 0
          %1579 = vmatprep.subr.bf16.mxu0 0
          %1580 = vmatpush1.bf16.msra.mxu0 0
          %1581 = vmatprep.subr.bf16.mxu0 0
          %1582 = vmatpush1.bf16.msra.mxu0 0
          %1583 = vmatprep.subr.bf16.mxu0 0
          %1584 = vmatpush1.bf16.msra.mxu0 0
          %1585 = vmatprep.subr.bf16.mxu0 0
          %1586 = vmatpush1.bf16.msra.mxu0 0
          %1587 = vmatprep.subr.bf16.mxu0 0
          %1588 = vmatpush1.bf16.msra.mxu0 0
          %1589 = vmatprep.subr.bf16.mxu0 0
          %1590 = vmatpush1.bf16.msra.mxu0 0
          %1591 = vmatprep.subr.bf16.mxu0 0
          %1592 = vmatpush1.bf16.msra.mxu0 0
          %1593 = vmatprep.subr.bf16.mxu0 0
          %1594 = vmatpush1.bf16.msra.mxu0 0
          %1595 = vmatprep.subr.bf16.mxu0 0
          %1596 = vmatpush1.bf16.msra.mxu0 0
          %1597 = vmatprep.subr.bf16.mxu0 0
          %1598 = vmatpush1.bf16.msra.mxu0 0
          %1599 = vmatprep.mubr.bf16.mxu0 0
          %1600 = vmatmul.mubr.bf16.gmra.mrb[0].mxu0 %v1559
          %v1601 = vpop.f32.mrb[0].mxu0
          %v1602 = vadd.f32 0.0, %v1601
          %v1603 = vpop.f32.mrb[0].mxu0
          %v1604 = vpop.f32.mrb[0].mxu0
          %v1605 = vadd.f32 0.0, %v1604
          %v1606 = vpop.f32.mrb[0].mxu0
          %1607 = vmatprep.mubr.bf16.mxu0 0
          %1608 = vmatmul.mubr.bf16.gmra.mrb[0].mxu0 %v1562
          %v1609 = vpop.f32.mrb[0].mxu0
          %v1610 = vadd.f32 0.0, %v1609
          %v1611 = vpop.f32.mrb[0].mxu0
          %v1612 = vpop.f32.mrb[0].mxu0
          %v1613 = vadd.f32 0.0, %v1612
          %v1614 = vpop.f32.mrb[0].mxu0
          %1615 = vdwg.mxu0
          %v1616 = vadd.f32 %v1540, %v1602
          %v1617 = vadd.f32 %v1543, %v1605
          %v1618 = vadd.f32 %v1548, %v1610
          %v1619 = vadd.f32 %v1551, %v1613
          %v1620 = vld [vmem:[#allocation7] sm:$0x1]
          %v1622 = vlaneseq
          %v1623 = vshrl.u32 %v1622, 7
          %v1624 = vsub.s32 0, %v1623
          %v1625 = vrot.slane %v1620, %v1624
          %v1627 = vmul.f32 %v1616, %v1625
          %v1628 = vmul.f32 %v1617, %v1625
          %v1629 = vmul.f32 %v1618, %v1625
          %v1630 = vmul.f32 %v1619, %v1625
          %v1631 = vld [vmem:[#allocation9] sm:$0x1]
          %v1633 = vlaneseq
          %v1634 = vshrl.u32 %v1633, 7
          %v1635 = vsub.s32 0, %v1634
          %v1636 = vrot.slane %v1631, %v1635
          %v1638 = vadd.f32 %v1627, %v1636
          %v1639 = vadd.f32 %v1628, %v1636
          %v1640 = vadd.f32 %v1629, %v1636
          %v1641 = vadd.f32 %v1630, %v1636
          %v1642 = vmax.f32 %v1638, 0.0
          %v1643 = vmax.f32 %v1639, 0.0
          %v1644 = vmax.f32 %v1640, 0.0
          %v1645 = vmax.f32 %v1641, 0.0
          %v1646 = vrot.slane %v1642, 7
          %v1647 = vrot.slane %v1643, 7
          %v1648 = vrot.slane %v1644, 7
          %v1649 = vrot.slane %v1645, 7
          %v1650 = vsel %vm1391, %v1648, %v1649
          %v1651 = vsel %vm1391, %v1647, %v1648
          %v1652 = vsel %vm1391, %v1646, %v1647
          %v1653 = vsel %vm1391, %v1649, %v1646
          %v1654 = vsel %vm1400, %v1653, 0.0
          %v1655 = vsel %vm1401, %v1652, 0.0
          %v1656 = vsel %vm1402, %v1651, 0.0
          %v1657 = vsel %vm1403, %v1650, 0.0
          %v1658 = vrot.slane %v1642, 1
          %v1659 = vrot.slane %v1643, 1
          %v1660 = vrot.slane %v1644, 1
          %v1661 = vrot.slane %v1645, 1
          %v1662 = vsel %vm1412, %v1660, %v1661
          %v1663 = vsel %vm1412, %v1659, %v1660
          %v1664 = vsel %vm1412, %v1658, %v1659
          %v1665 = vsel %vm1412, %v1661, %v1658
          %v1666 = vsel %vm1421, %v1664, 0.0
          %v1667 = vsel %vm1422, %v1663, 0.0
          %v1668 = vsel %vm1423, %v1662, 0.0
          %v1669 = vsel %vm1424, %v1665, 0.0
          %v1670 = vpack.c.bf16 %v1655, %v1654
          %v1671 = vpack.c.bf16 %v1657, %v1656
          %v1672 = vld [vmem:[#allocation10] sm:$0xf]
          %v1673 = vld [vmem:[#allocation10 + $0x4] sm:$0xf]
          %v1674 = vld [vmem:[#allocation10 + $0x8] sm:$0xf]
          %v1675 = vld [vmem:[#allocation10 + $0xc] sm:$0xf]
          %v1676 = vld [vmem:[#allocation10 + $0x10] sm:$0xf]
          %v1677 = vld [vmem:[#allocation10 + $0x14] sm:$0xf]
          %v1678 = vld [vmem:[#allocation10 + $0x18] sm:$0xf]
          %v1679 = vld [vmem:[#allocation10 + $0x1c] sm:$0xf]
          %v1680 = vpack.c.bf16 %v1643, %v1642
          %v1681 = vpack.c.bf16 %v1645, %v1644
          %s1682 = scalar_lea.vmem [#allocation10], 32
          %v1683 = vld [vmem:[%s1682] sm:$0xf]
          %v1684 = vld [vmem:[%s1682 + $0x4] sm:$0xf]
          %v1685 = vld [vmem:[%s1682 + $0x8] sm:$0xf]
          %v1686 = vld [vmem:[%s1682 + $0xc] sm:$0xf]
          %v1687 = vld [vmem:[%s1682 + $0x10] sm:$0xf]
          %v1688 = vld [vmem:[%s1682 + $0x14] sm:$0xf]
          %v1689 = vld [vmem:[%s1682 + $0x18] sm:$0xf]
          %v1690 = vld [vmem:[%s1682 + $0x1c] sm:$0xf]
          %v1699 = vunpack.c.l.b16 %v1683
          %v1700 = vunpack.c.l.b16 %v1684
          %v1701 = vunpack.c.l.b16 %v1685
          %v1702 = vunpack.c.l.b16 %v1686
          %v1703 = vunpack.c.l.b16 %v1687
          %v1704 = vunpack.c.l.b16 %v1688
          %v1705 = vunpack.c.l.b16 %v1689
          %v1706 = vunpack.c.l.b16 %v1690
          %v1707 = vpack.c.b16 %v1700, %v1699
          %v1708 = vpack.c.b16 %v1702, %v1701
          %v1709 = vpack.c.b16 %v1704, %v1703
          %v1710 = vpack.c.b16 %v1706, %v1705
          %vm1715 = vcmask 523264
          %v1717 = vsel %vm1715, %v1680, 0
          %v1720 = vsel %vm1715, %v1681, 0
          %1722 = vmatprep.subr.bf16.mxu0 0
          %1723 = vmatpush1.bf16.msra.mxu0 %v1707
          %1724 = vmatprep.subr.bf16.mxu0 0
          %1725 = vmatpush1.bf16.msra.mxu0 %v1708
          %1726 = vmatprep.subr.bf16.mxu0 0
          %1727 = vmatpush1.bf16.msra.mxu0 %v1709
          %1728 = vmatprep.subr.bf16.mxu0 0
          %1729 = vmatpush1.bf16.msra.mxu0 %v1710
          %1730 = vmatprep.subr.bf16.mxu0 0
          %1731 = vmatpush1.bf16.msra.mxu0 0
          %1732 = vmatprep.subr.bf16.mxu0 0
          %1733 = vmatpush1.bf16.msra.mxu0 0
          %1734 = vmatprep.subr.bf16.mxu0 0
          %1735 = vmatpush1.bf16.msra.mxu0 0
          %1736 = vmatprep.subr.bf16.mxu0 0
          %1737 = vmatpush1.bf16.msra.mxu0 0
          %1738 = vmatprep.subr.bf16.mxu0 0
          %1739 = vmatpush1.bf16.msra.mxu0 0
          %1740 = vmatprep.subr.bf16.mxu0 0
          %1741 = vmatpush1.bf16.msra.mxu0 0
          %1742 = vmatprep.subr.bf16.mxu0 0
          %1743 = vmatpush1.bf16.msra.mxu0 0
          %1744 = vmatprep.subr.bf16.mxu0 0
          %1745 = vmatpush1.bf16.msra.mxu0 0
          %1746 = vmatprep.subr.bf16.mxu0 0
          %1747 = vmatpush1.bf16.msra.mxu0 0
          %1748 = vmatprep.subr.bf16.mxu0 0
          %1749 = vmatpush1.bf16.msra.mxu0 0
          %1750 = vmatprep.subr.bf16.mxu0 0
          %1751 = vmatpush1.bf16.msra.mxu0 0
          %1752 = vmatprep.subr.bf16.mxu0 0
          %1753 = vmatpush1.bf16.msra.mxu0 0
          %1754 = vmatprep.mubr.bf16.mxu0 0
          %1755 = vmatmul.mubr.bf16.gmra.mrb[0].mxu0 %v1717
          %v1756 = vpop.f32.mrb[0].mxu0
          %v1757 = vadd.f32 0.0, %v1756
          %v1758 = vpop.f32.mrb[0].mxu0
          %v1759 = vpop.f32.mrb[0].mxu0
          %v1760 = vadd.f32 0.0, %v1759
          %v1761 = vpop.f32.mrb[0].mxu0
          %1762 = vmatprep.mubr.bf16.mxu0 0
          %1763 = vmatmul.mubr.bf16.gmra.mrb[0].mxu0 %v1720
          %v1764 = vpop.f32.mrb[0].mxu0
          %v1765 = vadd.f32 0.0, %v1764
          %v1766 = vpop.f32.mrb[0].mxu0
          %v1767 = vpop.f32.mrb[0].mxu0
          %v1768 = vadd.f32 0.0, %v1767
          %v1769 = vpop.f32.mrb[0].mxu0
          %1770 = vdwg.mxu0
          %v1779 = vunpack.c.l.b16 %v1672
          %v1780 = vunpack.c.l.b16 %v1673
          %v1781 = vunpack.c.l.b16 %v1674
          %v1782 = vunpack.c.l.b16 %v1675
          %v1783 = vunpack.c.l.b16 %v1676
          %v1784 = vunpack.c.l.b16 %v1677
          %v1785 = vunpack.c.l.b16 %v1678
          %v1786 = vunpack.c.l.b16 %v1679
          %v1787 = vpack.c.b16 %v1780, %v1779
          %v1788 = vpack.c.b16 %v1782, %v1781
          %v1789 = vpack.c.b16 %v1784, %v1783
          %v1790 = vpack.c.b16 %v1786, %v1785
          %v1796 = vsel %vm1715, %v1670, 0
          %v1799 = vsel %vm1715, %v1671, 0
          %1801 = vmatprep.subr.bf16.mxu0 0
          %1802 = vmatpush1.bf16.msra.mxu0 %v1787
          %1803 = vmatprep.subr.bf16.mxu0 0
          %1804 = vmatpush1.bf16.msra.mxu0 %v1788
          %1805 = vmatprep.subr.bf16.mxu0 0
          %1806 = vmatpush1.bf16.msra.mxu0 %v1789
          %1807 = vmatprep.subr.bf16.mxu0 0
          %1808 = vmatpush1.bf16.msra.mxu0 %v1790
          %1809 = vmatprep.subr.bf16.mxu0 0
          %1810 = vmatpush1.bf16.msra.mxu0 0
          %1811 = vmatprep.subr.bf16.mxu0 0
          %1812 = vmatpush1.bf16.msra.mxu0 0
          %1813 = vmatprep.subr.bf16.mxu0 0
          %1814 = vmatpush1.bf16.msra.mxu0 0
          %1815 = vmatprep.subr.bf16.mxu0 0
          %1816 = vmatpush1.bf16.msra.mxu0 0
          %1817 = vmatprep.subr.bf16.mxu0 0
          %1818 = vmatpush1.bf16.msra.mxu0 0
          %1819 = vmatprep.subr.bf16.mxu0 0
          %1820 = vmatpush1.bf16.msra.mxu0 0
          %1821 = vmatprep.subr.bf16.mxu0 0
          %1822 = vmatpush1.bf16.msra.mxu0 0
          %1823 = vmatprep.subr.bf16.mxu0 0
          %1824 = vmatpush1.bf16.msra.mxu0 0
          %1825 = vmatprep.subr.bf16.mxu0 0
          %1826 = vmatpush1.bf16.msra.mxu0 0
          %1827 = vmatprep.subr.bf16.mxu0 0
          %1828 = vmatpush1.bf16.msra.mxu0 0
          %1829 = vmatprep.subr.bf16.mxu0 0
          %1830 = vmatpush1.bf16.msra.mxu0 0
          %1831 = vmatprep.subr.bf16.mxu0 0
          %1832 = vmatpush1.bf16.msra.mxu0 0
          %1833 = vmatprep.mubr.bf16.mxu0 0
          %1834 = vmatmul.mubr.bf16.gmra.mrb[0].mxu0 %v1796
          %v1835 = vpop.f32.mrb[0].mxu0
          %v1836 = vadd.f32 %v1757, %v1835
          %v1837 = vpop.f32.mrb[0].mxu0
          %v1838 = vpop.f32.mrb[0].mxu0
          %v1839 = vadd.f32 %v1760, %v1838
          %v1840 = vpop.f32.mrb[0].mxu0
          %1841 = vmatprep.mubr.bf16.mxu0 0
          %1842 = vmatmul.mubr.bf16.gmra.mrb[0].mxu0 %v1799
          %v1843 = vpop.f32.mrb[0].mxu0
          %v1844 = vadd.f32 %v1765, %v1843
          %v1845 = vpop.f32.mrb[0].mxu0
          %v1846 = vpop.f32.mrb[0].mxu0
          %v1847 = vadd.f32 %v1768, %v1846
          %v1848 = vpop.f32.mrb[0].mxu0
          %1849 = vdwg.mxu0
          %v1850 = vpack.c.bf16 %v1667, %v1666
          %v1851 = vpack.c.bf16 %v1669, %v1668
          %s1852 = scalar_lea.vmem [#allocation10], 64
          %v1853 = vld [vmem:[%s1852] sm:$0xf]
          %v1854 = vld [vmem:[%s1852 + $0x4] sm:$0xf]
          %v1855 = vld [vmem:[%s1852 + $0x8] sm:$0xf]
          %v1856 = vld [vmem:[%s1852 + $0xc] sm:$0xf]
          %v1857 = vld [vmem:[%s1852 + $0x10] sm:$0xf]
          %v1858 = vld [vmem:[%s1852 + $0x14] sm:$0xf]
          %v1859 = vld [vmem:[%s1852 + $0x18] sm:$0xf]
          %v1860 = vld [vmem:[%s1852 + $0x1c] sm:$0xf]
          %v1869 = vunpack.c.l.b16 %v1853
          %v1870 = vunpack.c.l.b16 %v1854
          %v1871 = vunpack.c.l.b16 %v1855
          %v1872 = vunpack.c.l.b16 %v1856
          %v1873 = vunpack.c.l.b16 %v1857
          %v1874 = vunpack.c.l.b16 %v1858
          %v1875 = vunpack.c.l.b16 %v1859
          %v1876 = vunpack.c.l.b16 %v1860
          %v1877 = vpack.c.b16 %v1870, %v1869
          %v1878 = vpack.c.b16 %v1872, %v1871
          %v1879 = vpack.c.b16 %v1874, %v1873
          %v1880 = vpack.c.b16 %v1876, %v1875
          %v1886 = vsel %vm1715, %v1850, 0
          %v1889 = vsel %vm1715, %v1851, 0
          %1891 = vmatprep.subr.bf16.mxu0 0
          %1892 = vmatpush1.bf16.msra.mxu0 %v1877
          %1893 = vmatprep.subr.bf16.mxu0 0
          %1894 = vmatpush1.bf16.msra.mxu0 %v1878
          %1895 = vmatprep.subr.bf16.mxu0 0
          %1896 = vmatpush1.bf16.msra.mxu0 %v1879
          %1897 = vmatprep.subr.bf16.mxu0 0
          %1898 = vmatpush1.bf16.msra.mxu0 %v1880
          %1899 = vmatprep.subr.bf16.mxu0 0
          %1900 = vmatpush1.bf16.msra.mxu0 0
          %1901 = vmatprep.subr.bf16.mxu0 0
          %1902 = vmatpush1.bf16.msra.mxu0 0
          %1903 = vmatprep.subr.bf16.mxu0 0
          %1904 = vmatpush1.bf16.msra.mxu0 0
          %1905 = vmatprep.subr.bf16.mxu0 0
          %1906 = vmatpush1.bf16.msra.mxu0 0
          %1907 = vmatprep.subr.bf16.mxu0 0
          %1908 = vmatpush1.bf16.msra.mxu0 0
          %1909 = vmatprep.subr.bf16.mxu0 0
          %1910 = vmatpush1.bf16.msra.mxu0 0
          %1911 = vmatprep.subr.bf16.mxu0 0
          %1912 = vmatpush1.bf16.msra.mxu0 0
          %1913 = vmatprep.subr.bf16.mxu0 0
          %1914 = vmatpush1.bf16.msra.mxu0 0
          %1915 = vmatprep.subr.bf16.mxu0 0
          %1916 = vmatpush1.bf16.msra.mxu0 0
          %1917 = vmatprep.subr.bf16.mxu0 0
          %1918 = vmatpush1.bf16.msra.mxu0 0
          %1919 = vmatprep.subr.bf16.mxu0 0
          %1920 = vmatpush1.bf16.msra.mxu0 0
          %1921 = vmatprep.subr.bf16.mxu0 0
          %1922 = vmatpush1.bf16.msra.mxu0 0
          %1923 = vmatprep.mubr.bf16.mxu0 0
          %1924 = vmatmul.mubr.bf16.gmra.mrb[0].mxu0 %v1886
          %v1925 = vpop.f32.mrb[0].mxu0
          %v1926 = vadd.f32 0.0, %v1925
          %v1927 = vpop.f32.mrb[0].mxu0
          %v1928 = vpop.f32.mrb[0].mxu0
          %v1929 = vadd.f32 0.0, %v1928
          %v1930 = vpop.f32.mrb[0].mxu0
          %1931 = vmatprep.mubr.bf16.mxu0 0
          %1932 = vmatmul.mubr.bf16.gmra.mrb[0].mxu0 %v1889
          %v1933 = vpop.f32.mrb[0].mxu0
          %v1934 = vadd.f32 0.0, %v1933
          %v1935 = vpop.f32.mrb[0].mxu0
          %v1936 = vpop.f32.mrb[0].mxu0
          %v1937 = vadd.f32 0.0, %v1936
          %v1938 = vpop.f32.mrb[0].mxu0
          %1939 = vdwg.mxu0
          %v1940 = vadd.f32 %v1836, %v1926
          %v1941 = vadd.f32 %v1839, %v1929
          %v1942 = vadd.f32 %v1844, %v1934
          %v1943 = vadd.f32 %v1847, %v1937
          %v1944 = vld [vmem:[#allocation12] sm:$0x1]
          %v1946 = vlaneseq
          %v1947 = vshrl.u32 %v1946, 7
          %v1948 = vsub.s32 0, %v1947
          %v1949 = vrot.slane %v1944, %v1948
          %v1951 = vmul.f32 %v1940, %v1949
          %v1952 = vmul.f32 %v1941, %v1949
          %v1953 = vmul.f32 %v1942, %v1949
          %v1954 = vmul.f32 %v1943, %v1949
          %v1955 = vld [vmem:[#allocation13] sm:$0x1]
          %v1957 = vlaneseq
          %v1958 = vshrl.u32 %v1957, 7
          %v1959 = vsub.s32 0, %v1958
          %v1960 = vrot.slane %v1955, %v1959
          %v1962 = vadd.f32 %v1951, %v1960
          %v1963 = vadd.f32 %v1952, %v1960
          %v1964 = vadd.f32 %v1953, %v1960
          %v1965 = vadd.f32 %v1954, %v1960
          %v1966 = vmax.f32 %v1962, 0.0
          %v1967 = vmax.f32 %v1963, 0.0
          %v1968 = vmax.f32 %v1964, 0.0
          %v1969 = vmax.f32 %v1965, 0.0
          %v1970 = vlaneseq
          %v1971 = vand.u32 %v1970, 127
          %v1972 = vmul.u32 %v1371, 2
          %v1973 = vmul.u32 %v1372, 2
          %vm1974 = vcmp.eq.s32.totalorder %v1971, %v1972
          %vm1975 = vcmp.eq.s32.totalorder %v1971, %v1973
          %v1976 = vsel %vm1974, 1.0, 0.0
          %v1977 = vsel %vm1975, 1.0, 0.0
          %v1978 = vadd.s32 %v1972, 1
          %v1979 = vadd.s32 %v1973, 1
          %vm1980 = vcmp.eq.s32.totalorder %v1971, %v1978
          %vm1981 = vcmp.eq.s32.totalorder %v1971, %v1979
          %v1982 = vsel %vm1980, 1.0, 0.0
          %v1983 = vsel %vm1981, 1.0, 0.0
          %vm1984 = vcmask 261120
          %v1986 = vsel %vm1984, %v1976, 0
          %v1989 = vsel %vm1984, %v1977, 0
          %1991 = vmatprep.subr.mxu0 0.0
          %1992 = vmatpush1.msra.mxu0 %v1966
          %1993 = vmatprep.subr.mxu0 0.0
          %1994 = vmatpush1.msra.mxu0 %v1967
          %1995 = vmatprep.subr.mxu0 0.0
          %1996 = vmatpush1.msra.mxu0 %v1968
          %1997 = vmatprep.subr.mxu0 0.0
          %1998 = vmatpush1.msra.mxu0 %v1969
          %1999 = vmatprep.subr.mxu0 0.0
          %2000 = vmatpush1.msra.mxu0 0.0
          %2001 = vmatprep.subr.mxu0 0.0
          %2002 = vmatpush1.msra.mxu0 0.0
          %2003 = vmatprep.subr.mxu0 0.0
          %2004 = vmatpush1.msra.mxu0 0.0
          %2005 = vmatprep.subr.mxu0 0.0
          %2006 = vmatpush1.msra.mxu0 0.0
          %2007 = vmatprep.subr.mxu0 0.0
          %2008 = vmatpush1.msra.mxu0 0.0
          %2009 = vmatprep.subr.mxu0 0.0
          %2010 = vmatpush1.msra.mxu0 0.0
          %2011 = vmatprep.subr.mxu0 0.0
          %2012 = vmatpush1.msra.mxu0 0.0
          %2013 = vmatprep.subr.mxu0 0.0
          %2014 = vmatpush1.msra.mxu0 0.0
          %2015 = vmatprep.subr.mxu0 0.0
          %2016 = vmatpush1.msra.mxu0 0.0
          %2017 = vmatprep.subr.mxu0 0.0
          %2018 = vmatpush1.msra.mxu0 0.0
          %2019 = vmatprep.subr.mxu0 0.0
          %2020 = vmatpush1.msra.mxu0 0.0
          %2021 = vmatprep.subr.mxu0 0.0
          %2022 = vmatpush1.msra.mxu0 0.0
          %2023 = vmatprep.subr.mxu0 0.0
          %2024 = vmatpush1.msra.mxu0 0.0
          %2025 = vmatprep.subr.mxu0 0.0
          %2026 = vmatpush1.msra.mxu0 0.0
          %2027 = vmatprep.subr.mxu0 0.0
          %2028 = vmatpush1.msra.mxu0 0.0
          %2029 = vmatprep.subr.mxu0 0.0
          %2030 = vmatpush1.msra.mxu0 0.0
          %2031 = vmatprep.subr.mxu0 0.0
          %2032 = vmatpush1.msra.mxu0 0.0
          %2033 = vmatprep.subr.mxu0 0.0
          %2034 = vmatpush1.msra.mxu0 0.0
          %2035 = vmatprep.subr.mxu0 0.0
          %2036 = vmatpush1.msra.mxu0 0.0
          %2037 = vmatprep.subr.mxu0 0.0
          %2038 = vmatpush1.msra.mxu0 0.0
          %2039 = vmatprep.subr.mxu0 0.0
          %2040 = vmatpush1.msra.mxu0 0.0
          %2041 = vmatprep.subr.mxu0 0.0
          %2042 = vmatpush1.msra.mxu0 0.0
          %2043 = vmatprep.subr.mxu0 0.0
          %2044 = vmatpush1.msra.mxu0 0.0
          %2045 = vmatprep.subr.mxu0 0.0
          %2046 = vmatpush1.msra.mxu0 0.0
          %2047 = vmatprep.subr.mxu0 0.0
          %2048 = vmatpush1.msra.mxu0 0.0
          %2049 = vmatprep.subr.mxu0 0.0
          %2050 = vmatpush1.msra.mxu0 0.0
          %2051 = vmatprep.subr.mxu0 0.0
          %2052 = vmatpush1.msra.mxu0 0.0
          %2053 = vmatprep.subr.mxu0 0.0
          %2054 = vmatpush1.msra.mxu0 0.0
          %2055 = vmatprep.mubr.f32.mxu0 0.0
          %2056 = vmatmul.mubr.f32.gmra.mrb[0].mxu0 %v1986
          %v2057 = vpop.f32.mrb[0].mxu0
          %v2058 = vadd.f32 0.0, %v2057
          %v2059 = vpop.f32.mrb[0].mxu0
          %2060 = vmatprep.mubr.f32.mxu0 0.0
          %2061 = vmatmul.mubr.f32.gmra.mrb[0].mxu0 %v1989
          %v2062 = vpop.f32.mrb[0].mxu0
          %v2063 = vadd.f32 0.0, %v2062
          %v2064 = vpop.f32.mrb[0].mxu0
          %2065 = vdwg.mxu0
          %v2067 = vsel %vm1984, %v1982, 0
          %v2070 = vsel %vm1984, %v1983, 0
          %2072 = vmatprep.subr.mxu0 0.0
          %2073 = vmatpush1.msra.mxu0 %v1966
          %2074 = vmatprep.subr.mxu0 0.0
          %2075 = vmatpush1.msra.mxu0 %v1967
          %2076 = vmatprep.subr.mxu0 0.0
          %2077 = vmatpush1.msra.mxu0 %v1968
          %2078 = vmatprep.subr.mxu0 0.0
          %2079 = vmatpush1.msra.mxu0 %v1969
          %2080 = vmatprep.subr.mxu0 0.0
          %2081 = vmatpush1.msra.mxu0 0.0
          %2082 = vmatprep.subr.mxu0 0.0
          %2083 = vmatpush1.msra.mxu0 0.0
          %2084 = vmatprep.subr.mxu0 0.0
          %2085 = vmatpush1.msra.mxu0 0.0
          %2086 = vmatprep.subr.mxu0 0.0
          %2087 = vmatpush1.msra.mxu0 0.0
          %2088 = vmatprep.subr.mxu0 0.0
          %2089 = vmatpush1.msra.mxu0 0.0
          %2090 = vmatprep.subr.mxu0 0.0
          %2091 = vmatpush1.msra.mxu0 0.0
          %2092 = vmatprep.subr.mxu0 0.0
          %2093 = vmatpush1.msra.mxu0 0.0
          %2094 = vmatprep.subr.mxu0 0.0
          %2095 = vmatpush1.msra.mxu0 0.0
          %2096 = vmatprep.subr.mxu0 0.0
          %2097 = vmatpush1.msra.mxu0 0.0
          %2098 = vmatprep.subr.mxu0 0.0
          %2099 = vmatpush1.msra.mxu0 0.0
          %2100 = vmatprep.subr.mxu0 0.0
          %2101 = vmatpush1.msra.mxu0 0.0
          %2102 = vmatprep.subr.mxu0 0.0
          %2103 = vmatpush1.msra.mxu0 0.0
          %2104 = vmatprep.subr.mxu0 0.0
          %2105 = vmatpush1.msra.mxu0 0.0
          %2106 = vmatprep.subr.mxu0 0.0
          %2107 = vmatpush1.msra.mxu0 0.0
          %2108 = vmatprep.subr.mxu0 0.0
          %2109 = vmatpush1.msra.mxu0 0.0
          %2110 = vmatprep.subr.mxu0 0.0
          %2111 = vmatpush1.msra.mxu0 0.0
          %2112 = vmatprep.subr.mxu0 0.0
          %2113 = vmatpush1.msra.mxu0 0.0
          %2114 = vmatprep.subr.mxu0 0.0
          %2115 = vmatpush1.msra.mxu0 0.0
          %2116 = vmatprep.subr.mxu0 0.0
          %2117 = vmatpush1.msra.mxu0 0.0
          %2118 = vmatprep.subr.mxu0 0.0
          %2119 = vmatpush1.msra.mxu0 0.0
          %2120 = vmatprep.subr.mxu0 0.0
          %2121 = vmatpush1.msra.mxu0 0.0
          %2122 = vmatprep.subr.mxu0 0.0
          %2123 = vmatpush1.msra.mxu0 0.0
          %2124 = vmatprep.subr.mxu0 0.0
          %2125 = vmatpush1.msra.mxu0 0.0
          %2126 = vmatprep.subr.mxu0 0.0
          %2127 = vmatpush1.msra.mxu0 0.0
          %2128 = vmatprep.subr.mxu0 0.0
          %2129 = vmatpush1.msra.mxu0 0.0
          %2130 = vmatprep.subr.mxu0 0.0
          %2131 = vmatpush1.msra.mxu0 0.0
          %2132 = vmatprep.subr.mxu0 0.0
          %2133 = vmatpush1.msra.mxu0 0.0
          %2134 = vmatprep.subr.mxu0 0.0
          %2135 = vmatpush1.msra.mxu0 0.0
          %2136 = vmatprep.mubr.f32.mxu0 0.0
          %2137 = vmatmul.mubr.f32.gmra.mrb[0].mxu0 %v2067
          %v2138 = vpop.f32.mrb[0].mxu0
          %v2139 = vadd.f32 0.0, %v2138
          %v2140 = vpop.f32.mrb[0].mxu0
          %2141 = vmatprep.mubr.f32.mxu0 0.0
          %2142 = vmatmul.mubr.f32.gmra.mrb[0].mxu0 %v2070
          %v2143 = vpop.f32.mrb[0].mxu0
          %v2144 = vadd.f32 0.0, %v2143
          %v2145 = vpop.f32.mrb[0].mxu0
          %2146 = vdwg.mxu0
          %v2147 = vmax.f32 %v2058, %v2139
          %v2148 = vmax.f32 %v2063, %v2144
          %v2149 = vand.u32 %v1371, 7
          %v2150 = vand.u32 %v1372, 7
          %vm2151 = vcmp.ne.s32.totalorder %v2149, 0
          %vm2152 = vcmp.ne.s32.totalorder %v2150, 0
          %vm2153 = vcmp.ne.s32.totalorder %v2149, 7
          %vm2154 = vcmp.ne.s32.totalorder %v2150, 7
          %v2155 = vrot.slane %v2147, 7
          %v2156 = vrot.slane %v2148, 7
          %v2157 = vsel %vm1391, %v2155, %v2156
          %v2158 = vsel %vm1391, %v2156, %v2155
          %v2159 = vsel %vm2151, 1, 0
          %v2160 = vsel %vm2152, 1, 0
          %vm2161 = vcmp.eq.s32.totalorder %v2159, 1
          %vm2162 = vcmp.eq.s32.totalorder %v2160, 1
          %v2163 = vsel %vm2161, %v2158, 0.0
          %v2164 = vsel %vm2162, %v2157, 0.0
          %v2165 = vrot.slane %v2147, 1
          %v2166 = vrot.slane %v2148, 1
          %v2167 = vsel %vm1412, %v2165, %v2166
          %v2168 = vsel %vm1412, %v2166, %v2165
          %v2169 = vsel %vm2153, 1, 0
          %v2170 = vsel %vm2154, 1, 0
          %vm2171 = vcmp.eq.s32.totalorder %v2169, 1
          %vm2172 = vcmp.eq.s32.totalorder %v2170, 1
          %v2173 = vsel %vm2171, %v2167, 0.0
          %v2174 = vsel %vm2172, %v2168, 0.0
          %v2175 = vpack.c.bf16 %v2164, %v2163
          %v2176 = vld [vmem:[#allocation15] sm:$0xf]
          %v2177 = vld [vmem:[#allocation15 + $0x4] sm:$0xf]
          %v2178 = vld [vmem:[#allocation15 + $0x8] sm:$0xf]
          %v2179 = vld [vmem:[#allocation15 + $0xc] sm:$0xf]
          %v2180 = vld [vmem:[#allocation15 + $0x10] sm:$0xf]
          %v2181 = vld [vmem:[#allocation15 + $0x14] sm:$0xf]
          %v2182 = vld [vmem:[#allocation15 + $0x18] sm:$0xf]
          %v2183 = vld [vmem:[#allocation15 + $0x1c] sm:$0xf]
          %v2184 = vpack.c.bf16 %v2148, %v2147
          %s2185 = scalar_lea.vmem [#allocation15], 32
          %v2186 = vld [vmem:[%s2185] sm:$0xf]
          %v2187 = vld [vmem:[%s2185 + $0x4] sm:$0xf]
          %v2188 = vld [vmem:[%s2185 + $0x8] sm:$0xf]
          %v2189 = vld [vmem:[%s2185 + $0xc] sm:$0xf]
          %v2190 = vld [vmem:[%s2185 + $0x10] sm:$0xf]
          %v2191 = vld [vmem:[%s2185 + $0x14] sm:$0xf]
          %v2192 = vld [vmem:[%s2185 + $0x18] sm:$0xf]
          %v2193 = vld [vmem:[%s2185 + $0x1c] sm:$0xf]
          %v2202 = vunpack.c.l.b16 %v2186
          %v2203 = vunpack.c.l.b16 %v2187
          %v2204 = vunpack.c.l.b16 %v2188
          %v2205 = vunpack.c.l.b16 %v2189
          %v2206 = vunpack.c.l.b16 %v2190
          %v2207 = vunpack.c.l.b16 %v2191
          %v2208 = vunpack.c.l.b16 %v2192
          %v2209 = vunpack.c.l.b16 %v2193
          %v2210 = vpack.c.b16 %v2203, %v2202
          %v2211 = vpack.c.b16 %v2205, %v2204
          %v2212 = vpack.c.b16 %v2207, %v2206
          %v2213 = vpack.c.b16 %v2209, %v2208
          %v2219 = vsel %vm1715, %v2184, 0
          %2221 = vmatprep.subr.bf16.mxu0 0
          %2222 = vmatpush1.bf16.msra.mxu0 %v2210
          %2223 = vmatprep.subr.bf16.mxu0 0
          %2224 = vmatpush1.bf16.msra.mxu0 %v2211
          %2225 = vmatprep.subr.bf16.mxu0 0
          %2226 = vmatpush1.bf16.msra.mxu0 %v2212
          %2227 = vmatprep.subr.bf16.mxu0 0
          %2228 = vmatpush1.bf16.msra.mxu0 %v2213
          %2229 = vmatprep.subr.bf16.mxu0 0
          %2230 = vmatpush1.bf16.msra.mxu0 0
          %2231 = vmatprep.subr.bf16.mxu0 0
          %2232 = vmatpush1.bf16.msra.mxu0 0
          %2233 = vmatprep.subr.bf16.mxu0 0
          %2234 = vmatpush1.bf16.msra.mxu0 0
          %2235 = vmatprep.subr.bf16.mxu0 0
          %2236 = vmatpush1.bf16.msra.mxu0 0
          %2237 = vmatprep.subr.bf16.mxu0 0
          %2238 = vmatpush1.bf16.msra.mxu0 0
          %2239 = vmatprep.subr.bf16.mxu0 0
          %2240 = vmatpush1.bf16.msra.mxu0 0
          %2241 = vmatprep.subr.bf16.mxu0 0
          %2242 = vmatpush1.bf16.msra.mxu0 0
          %2243 = vmatprep.subr.bf16.mxu0 0
          %2244 = vmatpush1.bf16.msra.mxu0 0
          %2245 = vmatprep.subr.bf16.mxu0 0
          %2246 = vmatpush1.bf16.msra.mxu0 0
          %2247 = vmatprep.subr.bf16.mxu0 0
          %2248 = vmatpush1.bf16.msra.mxu0 0
          %2249 = vmatprep.subr.bf16.mxu0 0
          %2250 = vmatpush1.bf16.msra.mxu0 0
          %2251 = vmatprep.subr.bf16.mxu0 0
          %2252 = vmatpush1.bf16.msra.mxu0 0
          %2253 = vmatprep.mubr.bf16.mxu0 0
          %2254 = vmatmul.mubr.bf16.gmra.mrb[0].mxu0 %v2219
          %v2255 = vpop.f32.mrb[0].mxu0
          %v2256 = vadd.f32 0.0, %v2255
          %v2257 = vpop.f32.mrb[0].mxu0
          %v2258 = vpop.f32.mrb[0].mxu0
          %v2259 = vadd.f32 0.0, %v2258
          %v2260 = vpop.f32.mrb[0].mxu0
          %2261 = vdwg.mxu0
          %v2270 = vunpack.c.l.b16 %v2176
          %v2271 = vunpack.c.l.b16 %v2177
          %v2272 = vunpack.c.l.b16 %v2178
          %v2273 = vunpack.c.l.b16 %v2179
          %v2274 = vunpack.c.l.b16 %v2180
          %v2275 = vunpack.c.l.b16 %v2181
          %v2276 = vunpack.c.l.b16 %v2182
          %v2277 = vunpack.c.l.b16 %v2183
          %v2278 = vpack.c.b16 %v2271, %v2270
          %v2279 = vpack.c.b16 %v2273, %v2272
          %v2280 = vpack.c.b16 %v2275, %v2274
          %v2281 = vpack.c.b16 %v2277, %v2276
          %v2287 = vsel %vm1715, %v2175, 0
          %2289 = vmatprep.subr.bf16.mxu0 0
          %2290 = vmatpush1.bf16.msra.mxu0 %v2278
          %2291 = vmatprep.subr.bf16.mxu0 0
          %2292 = vmatpush1.bf16.msra.mxu0 %v2279
          %2293 = vmatprep.subr.bf16.mxu0 0
          %2294 = vmatpush1.bf16.msra.mxu0 %v2280
          %2295 = vmatprep.subr.bf16.mxu0 0
          %2296 = vmatpush1.bf16.msra.mxu0 %v2281
          %2297 = vmatprep.subr.bf16.mxu0 0
          %2298 = vmatpush1.bf16.msra.mxu0 0
          %2299 = vmatprep.subr.bf16.mxu0 0
          %2300 = vmatpush1.bf16.msra.mxu0 0
          %2301 = vmatprep.subr.bf16.mxu0 0
          %2302 = vmatpush1.bf16.msra.mxu0 0
          %2303 = vmatprep.subr.bf16.mxu0 0
          %2304 = vmatpush1.bf16.msra.mxu0 0
          %2305 = vmatprep.subr.bf16.mxu0 0
          %2306 = vmatpush1.bf16.msra.mxu0 0
          %2307 = vmatprep.subr.bf16.mxu0 0
          %2308 = vmatpush1.bf16.msra.mxu0 0
          %2309 = vmatprep.subr.bf16.mxu0 0
          %2310 = vmatpush1.bf16.msra.mxu0 0
          %2311 = vmatprep.subr.bf16.mxu0 0
          %2312 = vmatpush1.bf16.msra.mxu0 0
          %2313 = vmatprep.subr.bf16.mxu0 0
          %2314 = vmatpush1.bf16.msra.mxu0 0
          %2315 = vmatprep.subr.bf16.mxu0 0
          %2316 = vmatpush1.bf16.msra.mxu0 0
          %2317 = vmatprep.subr.bf16.mxu0 0
          %2318 = vmatpush1.bf16.msra.mxu0 0
          %2319 = vmatprep.subr.bf16.mxu0 0
          %2320 = vmatpush1.bf16.msra.mxu0 0
          %2321 = vmatprep.mubr.bf16.mxu0 0
          %2322 = vmatmul.mubr.bf16.gmra.mrb[0].mxu0 %v2287
          %v2323 = vpop.f32.mrb[0].mxu0
          %v2324 = vadd.f32 %v2256, %v2323
          %v2325 = vpop.f32.mrb[0].mxu0
          %v2326 = vpop.f32.mrb[0].mxu0
          %v2327 = vadd.f32 %v2259, %v2326
          %v2328 = vpop.f32.mrb[0].mxu0
          %2329 = vdwg.mxu0
          %v2330 = vpack.c.bf16 %v2174, %v2173
          %s2331 = scalar_lea.vmem [#allocation15], 64
          %v2332 = vld [vmem:[%s2331] sm:$0xf]
          %v2333 = vld [vmem:[%s2331 + $0x4] sm:$0xf]
          %v2334 = vld [vmem:[%s2331 + $0x8] sm:$0xf]
          %v2335 = vld [vmem:[%s2331 + $0xc] sm:$0xf]
          %v2336 = vld [vmem:[%s2331 + $0x10] sm:$0xf]
          %v2337 = vld [vmem:[%s2331 + $0x14] sm:$0xf]
          %v2338 = vld [vmem:[%s2331 + $0x18] sm:$0xf]
          %v2339 = vld [vmem:[%s2331 + $0x1c] sm:$0xf]
          %v2348 = vunpack.c.l.b16 %v2332
          %v2349 = vunpack.c.l.b16 %v2333
          %v2350 = vunpack.c.l.b16 %v2334
          %v2351 = vunpack.c.l.b16 %v2335
          %v2352 = vunpack.c.l.b16 %v2336
          %v2353 = vunpack.c.l.b16 %v2337
          %v2354 = vunpack.c.l.b16 %v2338
          %v2355 = vunpack.c.l.b16 %v2339
          %v2356 = vpack.c.b16 %v2349, %v2348
          %v2357 = vpack.c.b16 %v2351, %v2350
          %v2358 = vpack.c.b16 %v2353, %v2352
          %v2359 = vpack.c.b16 %v2355, %v2354
          %v2365 = vsel %vm1715, %v2330, 0
          %2367 = vmatprep.subr.bf16.mxu0 0
          %2368 = vmatpush1.bf16.msra.mxu0 %v2356
          %2369 = vmatprep.subr.bf16.mxu0 0
          %2370 = vmatpush1.bf16.msra.mxu0 %v2357
          %2371 = vmatprep.subr.bf16.mxu0 0
          %2372 = vmatpush1.bf16.msra.mxu0 %v2358
          %2373 = vmatprep.subr.bf16.mxu0 0
          %2374 = vmatpush1.bf16.msra.mxu0 %v2359
          %2375 = vmatprep.subr.bf16.mxu0 0
          %2376 = vmatpush1.bf16.msra.mxu0 0
          %2377 = vmatprep.subr.bf16.mxu0 0
          %2378 = vmatpush1.bf16.msra.mxu0 0
          %2379 = vmatprep.subr.bf16.mxu0 0
          %2380 = vmatpush1.bf16.msra.mxu0 0
          %2381 = vmatprep.subr.bf16.mxu0 0
          %2382 = vmatpush1.bf16.msra.mxu0 0
          %2383 = vmatprep.subr.bf16.mxu0 0
          %2384 = vmatpush1.bf16.msra.mxu0 0
          %2385 = vmatprep.subr.bf16.mxu0 0
          %2386 = vmatpush1.bf16.msra.mxu0 0
          %2387 = vmatprep.subr.bf16.mxu0 0
          %2388 = vmatpush1.bf16.msra.mxu0 0
          %2389 = vmatprep.subr.bf16.mxu0 0
          %2390 = vmatpush1.bf16.msra.mxu0 0
          %2391 = vmatprep.subr.bf16.mxu0 0
          %2392 = vmatpush1.bf16.msra.mxu0 0
          %2393 = vmatprep.subr.bf16.mxu0 0
          %2394 = vmatpush1.bf16.msra.mxu0 0
          %2395 = vmatprep.subr.bf16.mxu0 0
          %2396 = vmatpush1.bf16.msra.mxu0 0
          %2397 = vmatprep.subr.bf16.mxu0 0
          %2398 = vmatpush1.bf16.msra.mxu0 0
          %2399 = vmatprep.mubr.bf16.mxu0 0
          %2400 = vmatmul.mubr.bf16.gmra.mrb[0].mxu0 %v2365
          %v2401 = vpop.f32.mrb[0].mxu0
          %v2402 = vadd.f32 0.0, %v2401
          %v2403 = vpop.f32.mrb[0].mxu0
          %v2404 = vpop.f32.mrb[0].mxu0
          %v2405 = vadd.f32 0.0, %v2404
          %v2406 = vpop.f32.mrb[0].mxu0
          %2407 = vdwg.mxu0
          %v2408 = vadd.f32 %v2324, %v2402
          %v2409 = vadd.f32 %v2327, %v2405
          %v2410 = vld [vmem:[#allocation16] sm:$0x1]
          %v2412 = vlaneseq
          %v2413 = vshrl.u32 %v2412, 7
          %v2414 = vsub.s32 0, %v2413
          %v2415 = vrot.slane %v2410, %v2414
          %v2417 = vmul.f32 %v2408, %v2415
          %v2418 = vmul.f32 %v2409, %v2415
          %v2419 = vld [vmem:[#allocation18] sm:$0x1]
          %v2421 = vlaneseq
          %v2422 = vshrl.u32 %v2421, 7
          %v2423 = vsub.s32 0, %v2422
          %v2424 = vrot.slane %v2419, %v2423
          %v2426 = vadd.f32 %v2417, %v2424
          %v2427 = vadd.f32 %v2418, %v2424
          %v2428 = vmax.f32 %v2426, 0.0
          %v2429 = vmax.f32 %v2427, 0.0
          %v2430 = vrot.slane %v2428, 7
          %v2431 = vrot.slane %v2429, 7
          %v2432 = vsel %vm1391, %v2430, %v2431
          %v2433 = vsel %vm1391, %v2431, %v2430
          %v2434 = vsel %vm2161, %v2433, 0.0
          %v2435 = vsel %vm2162, %v2432, 0.0
          %v2436 = vrot.slane %v2428, 1
          %v2437 = vrot.slane %v2429, 1
          %v2438 = vsel %vm1412, %v2436, %v2437
          %v2439 = vsel %vm1412, %v2437, %v2436
          %v2440 = vsel %vm2171, %v2438, 0.0
          %v2441 = vsel %vm2172, %v2439, 0.0
          %v2442 = vpack.c.bf16 %v2435, %v2434
          %v2443 = vld [vmem:[#allocation19] sm:$0xf]
          %v2444 = vld [vmem:[#allocation19 + $0x4] sm:$0xf]
          %v2445 = vld [vmem:[#allocation19 + $0x8] sm:$0xf]
          %v2446 = vld [vmem:[#allocation19 + $0xc] sm:$0xf]
          %v2447 = vld [vmem:[#allocation19 + $0x10] sm:$0xf]
          %v2448 = vld [vmem:[#allocation19 + $0x14] sm:$0xf]
          %v2449 = vld [vmem:[#allocation19 + $0x18] sm:$0xf]
          %v2450 = vld [vmem:[#allocation19 + $0x1c] sm:$0xf]
          %v2451 = vld [vmem:[#allocation19 + $0x20] sm:$0xf]
          %v2452 = vld [vmem:[#allocation19 + $0x24] sm:$0xf]
          %v2453 = vld [vmem:[#allocation19 + $0x28] sm:$0xf]
          %v2454 = vld [vmem:[#allocation19 + $0x2c] sm:$0xf]
          %v2455 = vld [vmem:[#allocation19 + $0x30] sm:$0xf]
          %v2456 = vld [vmem:[#allocation19 + $0x34] sm:$0xf]
          %v2457 = vld [vmem:[#allocation19 + $0x38] sm:$0xf]
          %v2458 = vld [vmem:[#allocation19 + $0x3c] sm:$0xf]
          %v2459 = vpack.c.bf16 %v2429, %v2428
          %s2460 = scalar_lea.vmem [#allocation19], 64
          %v2461 = vld [vmem:[%s2460] sm:$0xf]
          %v2462 = vld [vmem:[%s2460 + $0x4] sm:$0xf]
          %v2463 = vld [vmem:[%s2460 + $0x8] sm:$0xf]
          %v2464 = vld [vmem:[%s2460 + $0xc] sm:$0xf]
          %v2465 = vld [vmem:[%s2460 + $0x10] sm:$0xf]
          %v2466 = vld [vmem:[%s2460 + $0x14] sm:$0xf]
          %v2467 = vld [vmem:[%s2460 + $0x18] sm:$0xf]
          %v2468 = vld [vmem:[%s2460 + $0x1c] sm:$0xf]
          %v2469 = vld [vmem:[%s2460 + $0x20] sm:$0xf]
          %v2470 = vld [vmem:[%s2460 + $0x24] sm:$0xf]
          %v2471 = vld [vmem:[%s2460 + $0x28] sm:$0xf]
          %v2472 = vld [vmem:[%s2460 + $0x2c] sm:$0xf]
          %v2473 = vld [vmem:[%s2460 + $0x30] sm:$0xf]
          %v2474 = vld [vmem:[%s2460 + $0x34] sm:$0xf]
          %v2475 = vld [vmem:[%s2460 + $0x38] sm:$0xf]
          %v2476 = vld [vmem:[%s2460 + $0x3c] sm:$0xf]
          %v2493 = vunpack.c.l.b16 %v2461
          %v2494 = vunpack.c.l.b16 %v2462
          %v2495 = vunpack.c.l.b16 %v2463
          %v2496 = vunpack.c.l.b16 %v2464
          %v2497 = vunpack.c.l.b16 %v2465
          %v2498 = vunpack.c.l.b16 %v2466
          %v2499 = vunpack.c.l.b16 %v2467
          %v2500 = vunpack.c.l.b16 %v2468
          %v2501 = vunpack.c.l.b16 %v2469
          %v2502 = vunpack.c.l.b16 %v2470
          %v2503 = vunpack.c.l.b16 %v2471
          %v2504 = vunpack.c.l.b16 %v2472
          %v2505 = vunpack.c.l.b16 %v2473
          %v2506 = vunpack.c.l.b16 %v2474
          %v2507 = vunpack.c.l.b16 %v2475
          %v2508 = vunpack.c.l.b16 %v2476
          %v2509 = vpack.c.b16 %v2494, %v2493
          %v2510 = vpack.c.b16 %v2496, %v2495
          %v2511 = vpack.c.b16 %v2498, %v2497
          %v2512 = vpack.c.b16 %v2500, %v2499
          %v2513 = vpack.c.b16 %v2502, %v2501
          %v2514 = vpack.c.b16 %v2504, %v2503
          %v2515 = vpack.c.b16 %v2506, %v2505
          %v2516 = vpack.c.b16 %v2508, %v2507
          %2525 = vmatprep.subr.bf16.mxu0 0
          %2526 = vmatpush1.bf16.msra.mxu0 %v2509
          %2527 = vmatprep.subr.bf16.mxu0 0
          %2528 = vmatpush1.bf16.msra.mxu0 %v2510
          %2529 = vmatprep.subr.bf16.mxu0 0
          %2530 = vmatpush1.bf16.msra.mxu0 %v2511
          %2531 = vmatprep.subr.bf16.mxu0 0
          %2532 = vmatpush1.bf16.msra.mxu0 %v2512
          %2533 = vmatprep.subr.bf16.mxu0 0
          %2534 = vmatpush1.bf16.msra.mxu0 %v2513
          %2535 = vmatprep.subr.bf16.mxu0 0
          %2536 = vmatpush1.bf16.msra.mxu0 %v2514
          %2537 = vmatprep.subr.bf16.mxu0 0
          %2538 = vmatpush1.bf16.msra.mxu0 %v2515
          %2539 = vmatprep.subr.bf16.mxu0 0
          %2540 = vmatpush1.bf16.msra.mxu0 %v2516
          %2541 = vmatprep.subr.bf16.mxu0 0
          %2542 = vmatpush1.bf16.msra.mxu0 0
          %2543 = vmatprep.subr.bf16.mxu0 0
          %2544 = vmatpush1.bf16.msra.mxu0 0
          %2545 = vmatprep.subr.bf16.mxu0 0
          %2546 = vmatpush1.bf16.msra.mxu0 0
          %2547 = vmatprep.subr.bf16.mxu0 0
          %2548 = vmatpush1.bf16.msra.mxu0 0
          %2549 = vmatprep.subr.bf16.mxu0 0
          %2550 = vmatpush1.bf16.msra.mxu0 0
          %2551 = vmatprep.subr.bf16.mxu0 0
          %2552 = vmatpush1.bf16.msra.mxu0 0
          %2553 = vmatprep.subr.bf16.mxu0 0
          %2554 = vmatpush1.bf16.msra.mxu0 0
          %2555 = vmatprep.subr.bf16.mxu0 0
          %2556 = vmatpush1.bf16.msra.mxu0 0
          %2557 = vmatprep.mubr.bf16.mxu0 0
          %2558 = vmatmul.mubr.bf16.gmra.mrb[0].mxu0 %v2459
          %v2559 = vpop.f32.mrb[0].mxu0
          %v2560 = vadd.f32 0.0, %v2559
          %v2561 = vpop.f32.mrb[0].mxu0
          %v2562 = vpop.f32.mrb[0].mxu0
          %v2563 = vadd.f32 0.0, %v2562
          %v2564 = vpop.f32.mrb[0].mxu0
          %2565 = vdwg.mxu0
          %v2582 = vunpack.c.l.b16 %v2443
          %v2583 = vunpack.c.l.b16 %v2444
          %v2584 = vunpack.c.l.b16 %v2445
          %v2585 = vunpack.c.l.b16 %v2446
          %v2586 = vunpack.c.l.b16 %v2447
          %v2587 = vunpack.c.l.b16 %v2448
          %v2588 = vunpack.c.l.b16 %v2449
          %v2589 = vunpack.c.l.b16 %v2450
          %v2590 = vunpack.c.l.b16 %v2451
          %v2591 = vunpack.c.l.b16 %v2452
          %v2592 = vunpack.c.l.b16 %v2453
          %v2593 = vunpack.c.l.b16 %v2454
          %v2594 = vunpack.c.l.b16 %v2455
          %v2595 = vunpack.c.l.b16 %v2456
          %v2596 = vunpack.c.l.b16 %v2457
          %v2597 = vunpack.c.l.b16 %v2458
          %v2598 = vpack.c.b16 %v2583, %v2582
          %v2599 = vpack.c.b16 %v2585, %v2584
          %v2600 = vpack.c.b16 %v2587, %v2586
          %v2601 = vpack.c.b16 %v2589, %v2588
          %v2602 = vpack.c.b16 %v2591, %v2590
          %v2603 = vpack.c.b16 %v2593, %v2592
          %v2604 = vpack.c.b16 %v2595, %v2594
          %v2605 = vpack.c.b16 %v2597, %v2596
          %2614 = vmatprep.subr.bf16.mxu0 0
          %2615 = vmatpush1.bf16.msra.mxu0 %v2598
          %2616 = vmatprep.subr.bf16.mxu0 0
          %2617 = vmatpush1.bf16.msra.mxu0 %v2599
          %2618 = vmatprep.subr.bf16.mxu0 0
          %2619 = vmatpush1.bf16.msra.mxu0 %v2600
          %2620 = vmatprep.subr.bf16.mxu0 0
          %2621 = vmatpush1.bf16.msra.mxu0 %v2601
          %2622 = vmatprep.subr.bf16.mxu0 0
          %2623 = vmatpush1.bf16.msra.mxu0 %v2602
          %2624 = vmatprep.subr.bf16.mxu0 0
          %2625 = vmatpush1.bf16.msra.mxu0 %v2603
          %2626 = vmatprep.subr.bf16.mxu0 0
          %2627 = vmatpush1.bf16.msra.mxu0 %v2604
          %2628 = vmatprep.subr.bf16.mxu0 0
          %2629 = vmatpush1.bf16.msra.mxu0 %v2605
          %2630 = vmatprep.subr.bf16.mxu0 0
          %2631 = vmatpush1.bf16.msra.mxu0 0
          %2632 = vmatprep.subr.bf16.mxu0 0
          %2633 = vmatpush1.bf16.msra.mxu0 0
          %2634 = vmatprep.subr.bf16.mxu0 0
          %2635 = vmatpush1.bf16.msra.mxu0 0
          %2636 = vmatprep.subr.bf16.mxu0 0
          %2637 = vmatpush1.bf16.msra.mxu0 0
          %2638 = vmatprep.subr.bf16.mxu0 0
          %2639 = vmatpush1.bf16.msra.mxu0 0
          %2640 = vmatprep.subr.bf16.mxu0 0
          %2641 = vmatpush1.bf16.msra.mxu0 0
          %2642 = vmatprep.subr.bf16.mxu0 0
          %2643 = vmatpush1.bf16.msra.mxu0 0
          %2644 = vmatprep.subr.bf16.mxu0 0
          %2645 = vmatpush1.bf16.msra.mxu0 0
          %2646 = vmatprep.mubr.bf16.mxu0 0
          %2647 = vmatmul.mubr.bf16.gmra.mrb[0].mxu0 %v2442
          %v2648 = vpop.f32.mrb[0].mxu0
          %v2649 = vadd.f32 %v2560, %v2648
          %v2650 = vpop.f32.mrb[0].mxu0
          %v2651 = vpop.f32.mrb[0].mxu0
          %v2652 = vadd.f32 %v2563, %v2651
          %v2653 = vpop.f32.mrb[0].mxu0
          %2654 = vdwg.mxu0
          %v2655 = vpack.c.bf16 %v2441, %v2440
          %s2656 = scalar_lea.vmem [#allocation19], 128
          %v2657 = vld [vmem:[%s2656] sm:$0xf]
          %v2658 = vld [vmem:[%s2656 + $0x4] sm:$0xf]
          %v2659 = vld [vmem:[%s2656 + $0x8] sm:$0xf]
          %v2660 = vld [vmem:[%s2656 + $0xc] sm:$0xf]
          %v2661 = vld [vmem:[%s2656 + $0x10] sm:$0xf]
          %v2662 = vld [vmem:[%s2656 + $0x14] sm:$0xf]
          %v2663 = vld [vmem:[%s2656 + $0x18] sm:$0xf]
          %v2664 = vld [vmem:[%s2656 + $0x1c] sm:$0xf]
          %v2665 = vld [vmem:[%s2656 + $0x20] sm:$0xf]
          %v2666 = vld [vmem:[%s2656 + $0x24] sm:$0xf]
          %v2667 = vld [vmem:[%s2656 + $0x28] sm:$0xf]
          %v2668 = vld [vmem:[%s2656 + $0x2c] sm:$0xf]
          %v2669 = vld [vmem:[%s2656 + $0x30] sm:$0xf]
          %v2670 = vld [vmem:[%s2656 + $0x34] sm:$0xf]
          %v2671 = vld [vmem:[%s2656 + $0x38] sm:$0xf]
          %v2672 = vld [vmem:[%s2656 + $0x3c] sm:$0xf]
          %v2689 = vunpack.c.l.b16 %v2657
          %v2690 = vunpack.c.l.b16 %v2658
          %v2691 = vunpack.c.l.b16 %v2659
          %v2692 = vunpack.c.l.b16 %v2660
          %v2693 = vunpack.c.l.b16 %v2661
          %v2694 = vunpack.c.l.b16 %v2662
          %v2695 = vunpack.c.l.b16 %v2663
          %v2696 = vunpack.c.l.b16 %v2664
          %v2697 = vunpack.c.l.b16 %v2665
          %v2698 = vunpack.c.l.b16 %v2666
          %v2699 = vunpack.c.l.b16 %v2667
          %v2700 = vunpack.c.l.b16 %v2668
          %v2701 = vunpack.c.l.b16 %v2669
          %v2702 = vunpack.c.l.b16 %v2670
          %v2703 = vunpack.c.l.b16 %v2671
          %v2704 = vunpack.c.l.b16 %v2672
          %v2705 = vpack.c.b16 %v2690, %v2689
          %v2706 = vpack.c.b16 %v2692, %v2691
          %v2707 = vpack.c.b16 %v2694, %v2693
          %v2708 = vpack.c.b16 %v2696, %v2695
          %v2709 = vpack.c.b16 %v2698, %v2697
          %v2710 = vpack.c.b16 %v2700, %v2699
          %v2711 = vpack.c.b16 %v2702, %v2701
          %v2712 = vpack.c.b16 %v2704, %v2703
          %2721 = vmatprep.subr.bf16.mxu0 0
          %2722 = vmatpush1.bf16.msra.mxu0 %v2705
          %2723 = vmatprep.subr.bf16.mxu0 0
          %2724 = vmatpush1.bf16.msra.mxu0 %v2706
          %2725 = vmatprep.subr.bf16.mxu0 0
          %2726 = vmatpush1.bf16.msra.mxu0 %v2707
          %2727 = vmatprep.subr.bf16.mxu0 0
          %2728 = vmatpush1.bf16.msra.mxu0 %v2708
          %2729 = vmatprep.subr.bf16.mxu0 0
          %2730 = vmatpush1.bf16.msra.mxu0 %v2709
          %2731 = vmatprep.subr.bf16.mxu0 0
          %2732 = vmatpush1.bf16.msra.mxu0 %v2710
          %2733 = vmatprep.subr.bf16.mxu0 0
          %2734 = vmatpush1.bf16.msra.mxu0 %v2711
          %2735 = vmatprep.subr.bf16.mxu0 0
          %2736 = vmatpush1.bf16.msra.mxu0 %v2712
          %2737 = vmatprep.subr.bf16.mxu0 0
          %2738 = vmatpush1.bf16.msra.mxu0 0
          %2739 = vmatprep.subr.bf16.mxu0 0
          %2740 = vmatpush1.bf16.msra.mxu0 0
          %2741 = vmatprep.subr.bf16.mxu0 0
          %2742 = vmatpush1.bf16.msra.mxu0 0
          %2743 = vmatprep.subr.bf16.mxu0 0
          %2744 = vmatpush1.bf16.msra.mxu0 0
          %2745 = vmatprep.subr.bf16.mxu0 0
          %2746 = vmatpush1.bf16.msra.mxu0 0
          %2747 = vmatprep.subr.bf16.mxu0 0
          %2748 = vmatpush1.bf16.msra.mxu0 0
          %2749 = vmatprep.subr.bf16.mxu0 0
          %2750 = vmatpush1.bf16.msra.mxu0 0
          %2751 = vmatprep.subr.bf16.mxu0 0
          %2752 = vmatpush1.bf16.msra.mxu0 0
          %2753 = vmatprep.mubr.bf16.mxu0 0
          %2754 = vmatmul.mubr.bf16.gmra.mrb[0].mxu0 %v2655
          %v2755 = vpop.f32.mrb[0].mxu0
          %v2756 = vadd.f32 0.0, %v2755
          %v2757 = vpop.f32.mrb[0].mxu0
          %v2758 = vpop.f32.mrb[0].mxu0
          %v2759 = vadd.f32 0.0, %v2758
          %v2760 = vpop.f32.mrb[0].mxu0
          %2761 = vdwg.mxu0
          %v2762 = vadd.f32 %v2649, %v2756
          %v2763 = vadd.f32 %v2652, %v2759
          %v2764 = vld [vmem:[#allocation21] sm:$0x1]
          %v2766 = vlaneseq
          %v2767 = vshrl.u32 %v2766, 7
          %v2768 = vsub.s32 0, %v2767
          %v2769 = vrot.slane %v2764, %v2768
          %v2771 = vmul.f32 %v2762, %v2769
          %v2772 = vmul.f32 %v2763, %v2769
          %v2773 = vld [vmem:[#allocation22] sm:$0x1]
          %v2775 = vlaneseq
          %v2776 = vshrl.u32 %v2775, 7
          %v2777 = vsub.s32 0, %v2776
          %v2778 = vrot.slane %v2773, %v2777
          %v2780 = vadd.f32 %v2771, %v2778
          %v2781 = vadd.f32 %v2772, %v2778
          %v2782 = vmax.f32 %v2780, 0.0
          %v2783 = vmax.f32 %v2781, 0.0
          %vm2784 = vcmask 130048
          %v2785 = vsel %vm2784, %v1976, 0
          %2787 = vmatprep.subr.mxu0 0.0
          %2788 = vmatpush1.msra.mxu0 %v2782
          %2789 = vmatprep.subr.mxu0 0.0
          %2790 = vmatpush1.msra.mxu0 %v2783
          %2791 = vmatprep.subr.mxu0 0.0
          %2792 = vmatpush1.msra.mxu0 0.0
          %2793 = vmatprep.subr.mxu0 0.0
          %2794 = vmatpush1.msra.mxu0 0.0
          %2795 = vmatprep.subr.mxu0 0.0
          %2796 = vmatpush1.msra.mxu0 0.0
          %2797 = vmatprep.subr.mxu0 0.0
          %2798 = vmatpush1.msra.mxu0 0.0
          %2799 = vmatprep.subr.mxu0 0.0
          %2800 = vmatpush1.msra.mxu0 0.0
          %2801 = vmatprep.subr.mxu0 0.0
          %2802 = vmatpush1.msra.mxu0 0.0
          %2803 = vmatprep.subr.mxu0 0.0
          %2804 = vmatpush1.msra.mxu0 0.0
          %2805 = vmatprep.subr.mxu0 0.0
          %2806 = vmatpush1.msra.mxu0 0.0
          %2807 = vmatprep.subr.mxu0 0.0
          %2808 = vmatpush1.msra.mxu0 0.0
          %2809 = vmatprep.subr.mxu0 0.0
          %2810 = vmatpush1.msra.mxu0 0.0
          %2811 = vmatprep.subr.mxu0 0.0
          %2812 = vmatpush1.msra.mxu0 0.0
          %2813 = vmatprep.subr.mxu0 0.0
          %2814 = vmatpush1.msra.mxu0 0.0
          %2815 = vmatprep.subr.mxu0 0.0
          %2816 = vmatpush1.msra.mxu0 0.0
          %2817 = vmatprep.subr.mxu0 0.0
          %2818 = vmatpush1.msra.mxu0 0.0
          %2819 = vmatprep.subr.mxu0 0.0
          %2820 = vmatpush1.msra.mxu0 0.0
          %2821 = vmatprep.subr.mxu0 0.0
          %2822 = vmatpush1.msra.mxu0 0.0
          %2823 = vmatprep.subr.mxu0 0.0
          %2824 = vmatpush1.msra.mxu0 0.0
          %2825 = vmatprep.subr.mxu0 0.0
          %2826 = vmatpush1.msra.mxu0 0.0
          %2827 = vmatprep.subr.mxu0 0.0
          %2828 = vmatpush1.msra.mxu0 0.0
          %2829 = vmatprep.subr.mxu0 0.0
          %2830 = vmatpush1.msra.mxu0 0.0
          %2831 = vmatprep.subr.mxu0 0.0
          %2832 = vmatpush1.msra.mxu0 0.0
          %2833 = vmatprep.subr.mxu0 0.0
          %2834 = vmatpush1.msra.mxu0 0.0
          %2835 = vmatprep.subr.mxu0 0.0
          %2836 = vmatpush1.msra.mxu0 0.0
          %2837 = vmatprep.subr.mxu0 0.0
          %2838 = vmatpush1.msra.mxu0 0.0
          %2839 = vmatprep.subr.mxu0 0.0
          %2840 = vmatpush1.msra.mxu0 0.0
          %2841 = vmatprep.subr.mxu0 0.0
          %2842 = vmatpush1.msra.mxu0 0.0
          %2843 = vmatprep.subr.mxu0 0.0
          %2844 = vmatpush1.msra.mxu0 0.0
          %2845 = vmatprep.subr.mxu0 0.0
          %2846 = vmatpush1.msra.mxu0 0.0
          %2847 = vmatprep.subr.mxu0 0.0
          %2848 = vmatpush1.msra.mxu0 0.0
          %2849 = vmatprep.subr.mxu0 0.0
          %2850 = vmatpush1.msra.mxu0 0.0
          %2851 = vmatprep.mubr.f32.mxu0 0.0
          %2852 = vmatmul.mubr.f32.gmra.mrb[0].mxu0 %v2785
          %v2853 = vpop.f32.mrb[0].mxu0
          %v2854 = vadd.f32 0.0, %v2853
          %v2855 = vpop.f32.mrb[0].mxu0
          %2856 = vdwg.mxu0
          %v2857 = vsel %vm2784, %v1982, 0
          %2859 = vmatprep.subr.mxu0 0.0
          %2860 = vmatpush1.msra.mxu0 %v2782
          %2861 = vmatprep.subr.mxu0 0.0
          %2862 = vmatpush1.msra.mxu0 %v2783
          %2863 = vmatprep.subr.mxu0 0.0
          %2864 = vmatpush1.msra.mxu0 0.0
          %2865 = vmatprep.subr.mxu0 0.0
          %2866 = vmatpush1.msra.mxu0 0.0
          %2867 = vmatprep.subr.mxu0 0.0
          %2868 = vmatpush1.msra.mxu0 0.0
          %2869 = vmatprep.subr.mxu0 0.0
          %2870 = vmatpush1.msra.mxu0 0.0
          %2871 = vmatprep.subr.mxu0 0.0
          %2872 = vmatpush1.msra.mxu0 0.0
          %2873 = vmatprep.subr.mxu0 0.0
          %2874 = vmatpush1.msra.mxu0 0.0
          %2875 = vmatprep.subr.mxu0 0.0
          %2876 = vmatpush1.msra.mxu0 0.0
          %2877 = vmatprep.subr.mxu0 0.0
          %2878 = vmatpush1.msra.mxu0 0.0
          %2879 = vmatprep.subr.mxu0 0.0
          %2880 = vmatpush1.msra.mxu0 0.0
          %2881 = vmatprep.subr.mxu0 0.0
          %2882 = vmatpush1.msra.mxu0 0.0
          %2883 = vmatprep.subr.mxu0 0.0
          %2884 = vmatpush1.msra.mxu0 0.0
          %2885 = vmatprep.subr.mxu0 0.0
          %2886 = vmatpush1.msra.mxu0 0.0
          %2887 = vmatprep.subr.mxu0 0.0
          %2888 = vmatpush1.msra.mxu0 0.0
          %2889 = vmatprep.subr.mxu0 0.0
          %2890 = vmatpush1.msra.mxu0 0.0
          %2891 = vmatprep.subr.mxu0 0.0
          %2892 = vmatpush1.msra.mxu0 0.0
          %2893 = vmatprep.subr.mxu0 0.0
          %2894 = vmatpush1.msra.mxu0 0.0
          %2895 = vmatprep.subr.mxu0 0.0
          %2896 = vmatpush1.msra.mxu0 0.0
          %2897 = vmatprep.subr.mxu0 0.0
          %2898 = vmatpush1.msra.mxu0 0.0
          %2899 = vmatprep.subr.mxu0 0.0
          %2900 = vmatpush1.msra.mxu0 0.0
          %2901 = vmatprep.subr.mxu0 0.0
          %2902 = vmatpush1.msra.mxu0 0.0
          %2903 = vmatprep.subr.mxu0 0.0
          %2904 = vmatpush1.msra.mxu0 0.0
          %2905 = vmatprep.subr.mxu0 0.0
          %2906 = vmatpush1.msra.mxu0 0.0
          %2907 = vmatprep.subr.mxu0 0.0
          %2908 = vmatpush1.msra.mxu0 0.0
          %2909 = vmatprep.subr.mxu0 0.0
          %2910 = vmatpush1.msra.mxu0 0.0
          %2911 = vmatprep.subr.mxu0 0.0
          %2912 = vmatpush1.msra.mxu0 0.0
          %2913 = vmatprep.subr.mxu0 0.0
          %2914 = vmatpush1.msra.mxu0 0.0
          %2915 = vmatprep.subr.mxu0 0.0
          %2916 = vmatpush1.msra.mxu0 0.0
          %2917 = vmatprep.subr.mxu0 0.0
          %2918 = vmatpush1.msra.mxu0 0.0
          %2919 = vmatprep.subr.mxu0 0.0
          %2920 = vmatpush1.msra.mxu0 0.0
          %2921 = vmatprep.subr.mxu0 0.0
          %2922 = vmatpush1.msra.mxu0 0.0
          %2923 = vmatprep.mubr.f32.mxu0 0.0
          %2924 = vmatmul.mubr.f32.gmra.mrb[0].mxu0 %v2857
          %v2925 = vpop.f32.mrb[0].mxu0
          %v2926 = vadd.f32 0.0, %v2925
          %v2927 = vpop.f32.mrb[0].mxu0
          %2928 = vdwg.mxu0
          %v2929 = vmax.f32 %v2854, %v2926
          %v2930 = vand.u32 %v1371, 3
          %vm2931 = vcmp.ne.s32.totalorder %v2930, 0
          %vm2932 = vcmp.ne.s32.totalorder %v2930, 3
          %v2933 = vrot.slane %v2929, 7
          %v2934 = vsel %vm2931, 1, 0
          %vm2935 = vcmp.eq.s32.totalorder %v2934, 1
          %v2936 = vsel %vm2935, %v2933, 0.0
          %v2937 = vrot.slane %v2929, 1
          %v2938 = vsel %vm2932, 1, 0
          %vm2939 = vcmp.eq.s32.totalorder %v2938, 1
          %v2940 = vsel %vm2939, %v2937, 0.0
          %v2941 = vpack.c.bf16 %v2936, %v2936
          %v2942 = vld [vmem:[#allocation24] sm:$0xff]
          %v2943 = vld [vmem:[#allocation24 + $0x8] sm:$0xff]
          %v2944 = vld [vmem:[#allocation24 + $0x10] sm:$0xff]
          %v2945 = vld [vmem:[#allocation24 + $0x18] sm:$0xff]
          %v2946 = vld [vmem:[#allocation24 + $0x20] sm:$0xff]
          %v2947 = vld [vmem:[#allocation24 + $0x28] sm:$0xff]
          %v2948 = vld [vmem:[#allocation24 + $0x30] sm:$0xff]
          %v2949 = vld [vmem:[#allocation24 + $0x38] sm:$0xff]
          %v2950 = vld [vmem:[#allocation24 + $0x40] sm:$0xff]
          %v2951 = vld [vmem:[#allocation24 + $0x48] sm:$0xff]
          %v2952 = vld [vmem:[#allocation24 + $0x50] sm:$0xff]
          %v2953 = vld [vmem:[#allocation24 + $0x58] sm:$0xff]
          %v2954 = vld [vmem:[#allocation24 + $0x60] sm:$0xff]
          %v2955 = vld [vmem:[#allocation24 + $0x68] sm:$0xff]
          %v2956 = vld [vmem:[#allocation24 + $0x70] sm:$0xff]
          %v2957 = vld [vmem:[#allocation24 + $0x78] sm:$0xff]
          %v2958 = vpack.c.bf16 %v2929, %v2929
          %s2959 = scalar_lea.vmem [#allocation24], 128
          %v2960 = vld [vmem:[%s2959] sm:$0xff]
          %v2961 = vld [vmem:[%s2959 + $0x8] sm:$0xff]
          %v2962 = vld [vmem:[%s2959 + $0x10] sm:$0xff]
          %v2963 = vld [vmem:[%s2959 + $0x18] sm:$0xff]
          %v2964 = vld [vmem:[%s2959 + $0x20] sm:$0xff]
          %v2965 = vld [vmem:[%s2959 + $0x28] sm:$0xff]
          %v2966 = vld [vmem:[%s2959 + $0x30] sm:$0xff]
          %v2967 = vld [vmem:[%s2959 + $0x38] sm:$0xff]
          %v2968 = vld [vmem:[%s2959 + $0x40] sm:$0xff]
          %v2969 = vld [vmem:[%s2959 + $0x48] sm:$0xff]
          %v2970 = vld [vmem:[%s2959 + $0x50] sm:$0xff]
          %v2971 = vld [vmem:[%s2959 + $0x58] sm:$0xff]
          %v2972 = vld [vmem:[%s2959 + $0x60] sm:$0xff]
          %v2973 = vld [vmem:[%s2959 + $0x68] sm:$0xff]
          %v2974 = vld [vmem:[%s2959 + $0x70] sm:$0xff]
          %v2975 = vld [vmem:[%s2959 + $0x78] sm:$0xff]
          %v2992 = vunpack.c.l.b16 %v2960
          %v2993 = vunpack.c.h.b16 %v2960
          %v2994 = vunpack.c.l.b16 %v2961
          %v2995 = vunpack.c.h.b16 %v2961
          %v2996 = vunpack.c.l.b16 %v2962
          %v2997 = vunpack.c.h.b16 %v2962
          %v2998 = vunpack.c.l.b16 %v2963
          %v2999 = vunpack.c.h.b16 %v2963
          %v3000 = vunpack.c.l.b16 %v2964
          %v3001 = vunpack.c.h.b16 %v2964
          %v3002 = vunpack.c.l.b16 %v2965
          %v3003 = vunpack.c.h.b16 %v2965
          %v3004 = vunpack.c.l.b16 %v2966
          %v3005 = vunpack.c.h.b16 %v2966
          %v3006 = vunpack.c.l.b16 %v2967
          %v3007 = vunpack.c.h.b16 %v2967
          %v3008 = vunpack.c.l.b16 %v2968
          %v3009 = vunpack.c.h.b16 %v2968
          %v3010 = vunpack.c.l.b16 %v2969
          %v3011 = vunpack.c.h.b16 %v2969
          %v3012 = vunpack.c.l.b16 %v2970
          %v3013 = vunpack.c.h.b16 %v2970
          %v3014 = vunpack.c.l.b16 %v2971
          %v3015 = vunpack.c.h.b16 %v2971
          %v3016 = vunpack.c.l.b16 %v2972
          %v3017 = vunpack.c.h.b16 %v2972
          %v3018 = vunpack.c.l.b16 %v2973
          %v3019 = vunpack.c.h.b16 %v2973
          %v3020 = vunpack.c.l.b16 %v2974
          %v3021 = vunpack.c.h.b16 %v2974
          %v3022 = vunpack.c.l.b16 %v2975
          %v3023 = vunpack.c.h.b16 %v2975
          %v3024 = vpack.c.b16 %v2994, %v2992
          %v3025 = vpack.c.b16 %v2995, %v2993
          %v3026 = vpack.c.b16 %v2998, %v2996
          %v3027 = vpack.c.b16 %v2999, %v2997
          %v3028 = vpack.c.b16 %v3002, %v3000
          %v3029 = vpack.c.b16 %v3003, %v3001
          %v3030 = vpack.c.b16 %v3006, %v3004
          %v3031 = vpack.c.b16 %v3007, %v3005
          %v3032 = vpack.c.b16 %v3010, %v3008
          %v3033 = vpack.c.b16 %v3011, %v3009
          %v3034 = vpack.c.b16 %v3014, %v3012
          %v3035 = vpack.c.b16 %v3015, %v3013
          %v3036 = vpack.c.b16 %v3018, %v3016
          %v3037 = vpack.c.b16 %v3019, %v3017
          %v3038 = vpack.c.b16 %v3022, %v3020
          %v3039 = vpack.c.b16 %v3023, %v3021
          %3056 = vmatprep.subr.bf16.mxu0 %v3025
          %3057 = vmatpush1.bf16.msra.mxu0 %v3024
          %3058 = vmatprep.subr.bf16.mxu0 %v3027
          %3059 = vmatpush1.bf16.msra.mxu0 %v3026
          %3060 = vmatprep.subr.bf16.mxu0 %v3029
          %3061 = vmatpush1.bf16.msra.mxu0 %v3028
          %3062 = vmatprep.subr.bf16.mxu0 %v3031
          %3063 = vmatpush1.bf16.msra.mxu0 %v3030
          %3064 = vmatprep.subr.bf16.mxu0 %v3033
          %3065 = vmatpush1.bf16.msra.mxu0 %v3032
          %3066 = vmatprep.subr.bf16.mxu0 %v3035
          %3067 = vmatpush1.bf16.msra.mxu0 %v3034
          %3068 = vmatprep.subr.bf16.mxu0 %v3037
          %3069 = vmatpush1.bf16.msra.mxu0 %v3036
          %3070 = vmatprep.subr.bf16.mxu0 %v3039
          %3071 = vmatpush1.bf16.msra.mxu0 %v3038
          %3072 = vmatprep.subr.bf16.mxu0 0
          %3073 = vmatpush1.bf16.msra.mxu0 0
          %3074 = vmatprep.subr.bf16.mxu0 0
          %3075 = vmatpush1.bf16.msra.mxu0 0
          %3076 = vmatprep.subr.bf16.mxu0 0
          %3077 = vmatpush1.bf16.msra.mxu0 0
          %3078 = vmatprep.subr.bf16.mxu0 0
          %3079 = vmatpush1.bf16.msra.mxu0 0
          %3080 = vmatprep.subr.bf16.mxu0 0
          %3081 = vmatpush1.bf16.msra.mxu0 0
          %3082 = vmatprep.subr.bf16.mxu0 0
          %3083 = vmatpush1.bf16.msra.mxu0 0
          %3084 = vmatprep.subr.bf16.mxu0 0
          %3085 = vmatpush1.bf16.msra.mxu0 0
          %3086 = vmatprep.subr.bf16.mxu0 0
          %3087 = vmatpush1.bf16.msra.mxu0 0
          %3088 = vmatprep.mubr.bf16.mxu0 0
          %3089 = vmatmul.mubr.bf16.gmra.mrb[0].mxu0 %v2958
          %v3090 = vpop.f32.mrb[0].mxu0
          %v3091 = vadd.f32 0.0, %v3090
          %v3092 = vpop.f32.mrb[0].mxu0
          %v3093 = vadd.f32 0.0, %v3092
          %v3094 = vpop.f32.mrb[0].mxu0
          %v3095 = vpop.f32.mrb[0].mxu0
          %3096 = vdwg.mxu0
          %v3113 = vunpack.c.l.b16 %v2942
          %v3114 = vunpack.c.h.b16 %v2942
          %v3115 = vunpack.c.l.b16 %v2943
          %v3116 = vunpack.c.h.b16 %v2943
          %v3117 = vunpack.c.l.b16 %v2944
          %v3118 = vunpack.c.h.b16 %v2944
          %v3119 = vunpack.c.l.b16 %v2945
          %v3120 = vunpack.c.h.b16 %v2945
          %v3121 = vunpack.c.l.b16 %v2946
          %v3122 = vunpack.c.h.b16 %v2946
          %v3123 = vunpack.c.l.b16 %v2947
          %v3124 = vunpack.c.h.b16 %v2947
          %v3125 = vunpack.c.l.b16 %v2948
          %v3126 = vunpack.c.h.b16 %v2948
          %v3127 = vunpack.c.l.b16 %v2949
          %v3128 = vunpack.c.h.b16 %v2949
          %v3129 = vunpack.c.l.b16 %v2950
          %v3130 = vunpack.c.h.b16 %v2950
          %v3131 = vunpack.c.l.b16 %v2951
          %v3132 = vunpack.c.h.b16 %v2951
          %v3133 = vunpack.c.l.b16 %v2952
          %v3134 = vunpack.c.h.b16 %v2952
          %v3135 = vunpack.c.l.b16 %v2953
          %v3136 = vunpack.c.h.b16 %v2953
          %v3137 = vunpack.c.l.b16 %v2954
          %v3138 = vunpack.c.h.b16 %v2954
          %v3139 = vunpack.c.l.b16 %v2955
          %v3140 = vunpack.c.h.b16 %v2955
          %v3141 = vunpack.c.l.b16 %v2956
          %v3142 = vunpack.c.h.b16 %v2956
          %v3143 = vunpack.c.l.b16 %v2957
          %v3144 = vunpack.c.h.b16 %v2957
          %v3145 = vpack.c.b16 %v3115, %v3113
          %v3146 = vpack.c.b16 %v3116, %v3114
          %v3147 = vpack.c.b16 %v3119, %v3117
          %v3148 = vpack.c.b16 %v3120, %v3118
          %v3149 = vpack.c.b16 %v3123, %v3121
          %v3150 = vpack.c.b16 %v3124, %v3122
          %v3151 = vpack.c.b16 %v3127, %v3125
          %v3152 = vpack.c.b16 %v3128, %v3126
          %v3153 = vpack.c.b16 %v3131, %v3129
          %v3154 = vpack.c.b16 %v3132, %v3130
          %v3155 = vpack.c.b16 %v3135, %v3133
          %v3156 = vpack.c.b16 %v3136, %v3134
          %v3157 = vpack.c.b16 %v3139, %v3137
          %v3158 = vpack.c.b16 %v3140, %v3138
          %v3159 = vpack.c.b16 %v3143, %v3141
          %v3160 = vpack.c.b16 %v3144, %v3142
          %3177 = vmatprep.subr.bf16.mxu0 %v3146
          %3178 = vmatpush1.bf16.msra.mxu0 %v3145
          %3179 = vmatprep.subr.bf16.mxu0 %v3148
          %3180 = vmatpush1.bf16.msra.mxu0 %v3147
          %3181 = vmatprep.subr.bf16.mxu0 %v3150
          %3182 = vmatpush1.bf16.msra.mxu0 %v3149
          %3183 = vmatprep.subr.bf16.mxu0 %v3152
          %3184 = vmatpush1.bf16.msra.mxu0 %v3151
          %3185 = vmatprep.subr.bf16.mxu0 %v3154
          %3186 = vmatpush1.bf16.msra.mxu0 %v3153
          %3187 = vmatprep.subr.bf16.mxu0 %v3156
          %3188 = vmatpush1.bf16.msra.mxu0 %v3155
          %3189 = vmatprep.subr.bf16.mxu0 %v3158
          %3190 = vmatpush1.bf16.msra.mxu0 %v3157
          %3191 = vmatprep.subr.bf16.mxu0 %v3160
          %3192 = vmatpush1.bf16.msra.mxu0 %v3159
          %3193 = vmatprep.subr.bf16.mxu0 0
          %3194 = vmatpush1.bf16.msra.mxu0 0
          %3195 = vmatprep.subr.bf16.mxu0 0
          %3196 = vmatpush1.bf16.msra.mxu0 0
          %3197 = vmatprep.subr.bf16.mxu0 0
          %3198 = vmatpush1.bf16.msra.mxu0 0
          %3199 = vmatprep.subr.bf16.mxu0 0
          %3200 = vmatpush1.bf16.msra.mxu0 0
          %3201 = vmatprep.subr.bf16.mxu0 0
          %3202 = vmatpush1.bf16.msra.mxu0 0
          %3203 = vmatprep.subr.bf16.mxu0 0
          %3204 = vmatpush1.bf16.msra.mxu0 0
          %3205 = vmatprep.subr.bf16.mxu0 0
          %3206 = vmatpush1.bf16.msra.mxu0 0
          %3207 = vmatprep.subr.bf16.mxu0 0
          %3208 = vmatpush1.bf16.msra.mxu0 0
          %3209 = vmatprep.mubr.bf16.mxu0 0
          %3210 = vmatmul.mubr.bf16.gmra.mrb[0].mxu0 %v2941
          %v3211 = vpop.f32.mrb[0].mxu0
          %v3212 = vadd.f32 %v3091, %v3211
          %v3213 = vpop.f32.mrb[0].mxu0
          %v3214 = vadd.f32 %v3093, %v3213
          %v3215 = vpop.f32.mrb[0].mxu0
          %v3216 = vpop.f32.mrb[0].mxu0
          %3217 = vdwg.mxu0
          %v3218 = vpack.c.bf16 %v2940, %v2940
          %s3219 = scalar_lea.vmem [#allocation24], 256
          %v3220 = vld [vmem:[%s3219] sm:$0xff]
          %v3221 = vld [vmem:[%s3219 + $0x8] sm:$0xff]
          %v3222 = vld [vmem:[%s3219 + $0x10] sm:$0xff]
          %v3223 = vld [vmem:[%s3219 + $0x18] sm:$0xff]
          %v3224 = vld [vmem:[%s3219 + $0x20] sm:$0xff]
          %v3225 = vld [vmem:[%s3219 + $0x28] sm:$0xff]
          %v3226 = vld [vmem:[%s3219 + $0x30] sm:$0xff]
          %v3227 = vld [vmem:[%s3219 + $0x38] sm:$0xff]
          %v3228 = vld [vmem:[%s3219 + $0x40] sm:$0xff]
          %v3229 = vld [vmem:[%s3219 + $0x48] sm:$0xff]
          %v3230 = vld [vmem:[%s3219 + $0x50] sm:$0xff]
          %v3231 = vld [vmem:[%s3219 + $0x58] sm:$0xff]
          %v3232 = vld [vmem:[%s3219 + $0x60] sm:$0xff]
          %v3233 = vld [vmem:[%s3219 + $0x68] sm:$0xff]
          %v3234 = vld [vmem:[%s3219 + $0x70] sm:$0xff]
          %v3235 = vld [vmem:[%s3219 + $0x78] sm:$0xff]
          %v3252 = vunpack.c.l.b16 %v3220
          %v3253 = vunpack.c.h.b16 %v3220
          %v3254 = vunpack.c.l.b16 %v3221
          %v3255 = vunpack.c.h.b16 %v3221
          %v3256 = vunpack.c.l.b16 %v3222
          %v3257 = vunpack.c.h.b16 %v3222
          %v3258 = vunpack.c.l.b16 %v3223
          %v3259 = vunpack.c.h.b16 %v3223
          %v3260 = vunpack.c.l.b16 %v3224
          %v3261 = vunpack.c.h.b16 %v3224
          %v3262 = vunpack.c.l.b16 %v3225
          %v3263 = vunpack.c.h.b16 %v3225
          %v3264 = vunpack.c.l.b16 %v3226
          %v3265 = vunpack.c.h.b16 %v3226
          %v3266 = vunpack.c.l.b16 %v3227
          %v3267 = vunpack.c.h.b16 %v3227
          %v3268 = vunpack.c.l.b16 %v3228
          %v3269 = vunpack.c.h.b16 %v3228
          %v3270 = vunpack.c.l.b16 %v3229
          %v3271 = vunpack.c.h.b16 %v3229
          %v3272 = vunpack.c.l.b16 %v3230
          %v3273 = vunpack.c.h.b16 %v3230
          %v3274 = vunpack.c.l.b16 %v3231
          %v3275 = vunpack.c.h.b16 %v3231
          %v3276 = vunpack.c.l.b16 %v3232
          %v3277 = vunpack.c.h.b16 %v3232
          %v3278 = vunpack.c.l.b16 %v3233
          %v3279 = vunpack.c.h.b16 %v3233
          %v3280 = vunpack.c.l.b16 %v3234
          %v3281 = vunpack.c.h.b16 %v3234
          %v3282 = vunpack.c.l.b16 %v3235
          %v3283 = vunpack.c.h.b16 %v3235
          %v3284 = vpack.c.b16 %v3254, %v3252
          %v3285 = vpack.c.b16 %v3255, %v3253
          %v3286 = vpack.c.b16 %v3258, %v3256
          %v3287 = vpack.c.b16 %v3259, %v3257
          %v3288 = vpack.c.b16 %v3262, %v3260
          %v3289 = vpack.c.b16 %v3263, %v3261
          %v3290 = vpack.c.b16 %v3266, %v3264
          %v3291 = vpack.c.b16 %v3267, %v3265
          %v3292 = vpack.c.b16 %v3270, %v3268
          %v3293 = vpack.c.b16 %v3271, %v3269
          %v3294 = vpack.c.b16 %v3274, %v3272
          %v3295 = vpack.c.b16 %v3275, %v3273
          %v3296 = vpack.c.b16 %v3278, %v3276
          %v3297 = vpack.c.b16 %v3279, %v3277
          %v3298 = vpack.c.b16 %v3282, %v3280
          %v3299 = vpack.c.b16 %v3283, %v3281
          %3316 = vmatprep.subr.bf16.mxu0 %v3285
          %3317 = vmatpush1.bf16.msra.mxu0 %v3284
          %3318 = vmatprep.subr.bf16.mxu0 %v3287
          %3319 = vmatpush1.bf16.msra.mxu0 %v3286
          %3320 = vmatprep.subr.bf16.mxu0 %v3289
          %3321 = vmatpush1.bf16.msra.mxu0 %v3288
          %3322 = vmatprep.subr.bf16.mxu0 %v3291
          %3323 = vmatpush1.bf16.msra.mxu0 %v3290
          %3324 = vmatprep.subr.bf16.mxu0 %v3293
          %3325 = vmatpush1.bf16.msra.mxu0 %v3292
          %3326 = vmatprep.subr.bf16.mxu0 %v3295
          %3327 = vmatpush1.bf16.msra.mxu0 %v3294
          %3328 = vmatprep.subr.bf16.mxu0 %v3297
          %3329 = vmatpush1.bf16.msra.mxu0 %v3296
          %3330 = vmatprep.subr.bf16.mxu0 %v3299
          %3331 = vmatpush1.bf16.msra.mxu0 %v3298
          %3332 = vmatprep.subr.bf16.mxu0 0
          %3333 = vmatpush1.bf16.msra.mxu0 0
          %3334 = vmatprep.subr.bf16.mxu0 0
          %3335 = vmatpush1.bf16.msra.mxu0 0
          %3336 = vmatprep.subr.bf16.mxu0 0
          %3337 = vmatpush1.bf16.msra.mxu0 0
          %3338 = vmatprep.subr.bf16.mxu0 0
          %3339 = vmatpush1.bf16.msra.mxu0 0
          %3340 = vmatprep.subr.bf16.mxu0 0
          %3341 = vmatpush1.bf16.msra.mxu0 0
          %3342 = vmatprep.subr.bf16.mxu0 0
          %3343 = vmatpush1.bf16.msra.mxu0 0
          %3344 = vmatprep.subr.bf16.mxu0 0
          %3345 = vmatpush1.bf16.msra.mxu0 0
          %3346 = vmatprep.subr.bf16.mxu0 0
          %3347 = vmatpush1.bf16.msra.mxu0 0
          %3348 = vmatprep.mubr.bf16.mxu0 0
          %3349 = vmatmul.mubr.bf16.gmra.mrb[0].mxu0 %v3218
          %v3350 = vpop.f32.mrb[0].mxu0
          %v3351 = vadd.f32 0.0, %v3350
          %v3352 = vpop.f32.mrb[0].mxu0
          %v3353 = vadd.f32 0.0, %v3352
          %v3354 = vpop.f32.mrb[0].mxu0
          %v3355 = vpop.f32.mrb[0].mxu0
          %3356 = vdwg.mxu0
          %v3357 = vadd.f32 %v3212, %v3351
          %v3358 = vadd.f32 %v3214, %v3353
          %v3359 = vld [vmem:[#allocation25] sm:$0x3]
          %v3361 = vlaneseq
          %v3362 = vshrl.u32 %v3361, 7
          %v3363 = vsub.s32 0, %v3362
          %v3364 = vrot.slane %v3359, %v3363
          %v3365 = vlaneseq
          %v3366 = vshrl.u32 %v3365, 7
          %v3367 = vsub.s32 1, %v3366
          %v3368 = vrot.slane %v3359, %v3367
          %v3371 = vmul.f32 %v3357, %v3364
          %v3372 = vmul.f32 %v3358, %v3368
          %v3373 = vld [vmem:[#allocation27] sm:$0x3]
          %v3375 = vlaneseq
          %v3376 = vshrl.u32 %v3375, 7
          %v3377 = vsub.s32 0, %v3376
          %v3378 = vrot.slane %v3373, %v3377
          %v3379 = vlaneseq
          %v3380 = vshrl.u32 %v3379, 7
          %v3381 = vsub.s32 1, %v3380
          %v3382 = vrot.slane %v3373, %v3381
          %v3385 = vadd.f32 %v3371, %v3378
          %v3386 = vadd.f32 %v3372, %v3382
          %v3387 = vmax.f32 %v3385, 0.0
          %v3388 = vmax.f32 %v3386, 0.0
          %v3389 = vrot.slane %v3387, 7
          %v3390 = vrot.slane %v3388, 7
          %v3391 = vsel %vm2935, %v3389, 0.0
          %v3392 = vsel %vm2935, %v3390, 0.0
          %v3393 = vrot.slane %v3387, 1
          %v3394 = vrot.slane %v3388, 1
          %v3395 = vsel %vm2939, %v3393, 0.0
          %v3396 = vsel %vm2939, %v3394, 0.0
          %v3397 = vpack.c.bf16 %v3391, %v3391
          %v3398 = vpack.c.bf16 %v3392, %v3392
          %v3399 = vld [vmem:[#allocation28] sm:$0xff]
          %v3400 = vld [vmem:[#allocation28 + $0x8] sm:$0xff]
          %v3401 = vld [vmem:[#allocation28 + $0x10] sm:$0xff]
          %v3402 = vld [vmem:[#allocation28 + $0x18] sm:$0xff]
          %v3403 = vld [vmem:[#allocation28 + $0x20] sm:$0xff]
          %v3404 = vld [vmem:[#allocation28 + $0x28] sm:$0xff]
          %v3405 = vld [vmem:[#allocation28 + $0x30] sm:$0xff]
          %v3406 = vld [vmem:[#allocation28 + $0x38] sm:$0xff]
          %v3407 = vld [vmem:[#allocation28 + $0x40] sm:$0xff]
          %v3408 = vld [vmem:[#allocation28 + $0x48] sm:$0xff]
          %v3409 = vld [vmem:[#allocation28 + $0x50] sm:$0xff]
          %v3410 = vld [vmem:[#allocation28 + $0x58] sm:$0xff]
          %v3411 = vld [vmem:[#allocation28 + $0x60] sm:$0xff]
          %v3412 = vld [vmem:[#allocation28 + $0x68] sm:$0xff]
          %v3413 = vld [vmem:[#allocation28 + $0x70] sm:$0xff]
          %v3414 = vld [vmem:[#allocation28 + $0x78] sm:$0xff]
          %v3415 = vld [vmem:[#allocation28 + $0x80] sm:$0xff]
          %v3416 = vld [vmem:[#allocation28 + $0x88] sm:$0xff]
          %v3417 = vld [vmem:[#allocation28 + $0x90] sm:$0xff]
          %v3418 = vld [vmem:[#allocation28 + $0x98] sm:$0xff]
          %v3419 = vld [vmem:[#allocation28 + $0xa0] sm:$0xff]
          %v3420 = vld [vmem:[#allocation28 + $0xa8] sm:$0xff]
          %v3421 = vld [vmem:[#allocation28 + $0xb0] sm:$0xff]
          %v3422 = vld [vmem:[#allocation28 + $0xb8] sm:$0xff]
          %v3423 = vld [vmem:[#allocation28 + $0xc0] sm:$0xff]
          %v3424 = vld [vmem:[#allocation28 + $0xc8] sm:$0xff]
          %v3425 = vld [vmem:[#allocation28 + $0xd0] sm:$0xff]
          %v3426 = vld [vmem:[#allocation28 + $0xd8] sm:$0xff]
          %v3427 = vld [vmem:[#allocation28 + $0xe0] sm:$0xff]
          %v3428 = vld [vmem:[#allocation28 + $0xe8] sm:$0xff]
          %v3429 = vld [vmem:[#allocation28 + $0xf0] sm:$0xff]
          %v3430 = vld [vmem:[#allocation28 + $0xf8] sm:$0xff]
          %v3431 = vpack.c.bf16 %v3387, %v3387
          %v3432 = vpack.c.bf16 %v3388, %v3388
          %s3433 = scalar_lea.vmem [#allocation28], 256
          %v3434 = vld [vmem:[%s3433] sm:$0xff]
          %v3435 = vld [vmem:[%s3433 + $0x8] sm:$0xff]
          %v3436 = vld [vmem:[%s3433 + $0x10] sm:$0xff]
          %v3437 = vld [vmem:[%s3433 + $0x18] sm:$0xff]
          %v3438 = vld [vmem:[%s3433 + $0x20] sm:$0xff]
          %v3439 = vld [vmem:[%s3433 + $0x28] sm:$0xff]
          %v3440 = vld [vmem:[%s3433 + $0x30] sm:$0xff]
          %v3441 = vld [vmem:[%s3433 + $0x38] sm:$0xff]
          %v3442 = vld [vmem:[%s3433 + $0x40] sm:$0xff]
          %v3443 = vld [vmem:[%s3433 + $0x48] sm:$0xff]
          %v3444 = vld [vmem:[%s3433 + $0x50] sm:$0xff]
          %v3445 = vld [vmem:[%s3433 + $0x58] sm:$0xff]
          %v3446 = vld [vmem:[%s3433 + $0x60] sm:$0xff]
          %v3447 = vld [vmem:[%s3433 + $0x68] sm:$0xff]
          %v3448 = vld [vmem:[%s3433 + $0x70] sm:$0xff]
          %v3449 = vld [vmem:[%s3433 + $0x78] sm:$0xff]
          %v3450 = vld [vmem:[%s3433 + $0x80] sm:$0xff]
          %v3451 = vld [vmem:[%s3433 + $0x88] sm:$0xff]
          %v3452 = vld [vmem:[%s3433 + $0x90] sm:$0xff]
          %v3453 = vld [vmem:[%s3433 + $0x98] sm:$0xff]
          %v3454 = vld [vmem:[%s3433 + $0xa0] sm:$0xff]
          %v3455 = vld [vmem:[%s3433 + $0xa8] sm:$0xff]
          %v3456 = vld [vmem:[%s3433 + $0xb0] sm:$0xff]
          %v3457 = vld [vmem:[%s3433 + $0xb8] sm:$0xff]
          %v3458 = vld [vmem:[%s3433 + $0xc0] sm:$0xff]
          %v3459 = vld [vmem:[%s3433 + $0xc8] sm:$0xff]
          %v3460 = vld [vmem:[%s3433 + $0xd0] sm:$0xff]
          %v3461 = vld [vmem:[%s3433 + $0xd8] sm:$0xff]
          %v3462 = vld [vmem:[%s3433 + $0xe0] sm:$0xff]
          %v3463 = vld [vmem:[%s3433 + $0xe8] sm:$0xff]
          %v3464 = vld [vmem:[%s3433 + $0xf0] sm:$0xff]
          %v3465 = vld [vmem:[%s3433 + $0xf8] sm:$0xff]
          %v3498 = vunpack.c.l.b16 %v3434
          %v3499 = vunpack.c.h.b16 %v3434
          %v3500 = vunpack.c.l.b16 %v3435
          %v3501 = vunpack.c.h.b16 %v3435
          %v3502 = vunpack.c.l.b16 %v3436
          %v3503 = vunpack.c.h.b16 %v3436
          %v3504 = vunpack.c.l.b16 %v3437
          %v3505 = vunpack.c.h.b16 %v3437
          %v3506 = vunpack.c.l.b16 %v3438
          %v3507 = vunpack.c.h.b16 %v3438
          %v3508 = vunpack.c.l.b16 %v3439
          %v3509 = vunpack.c.h.b16 %v3439
          %v3510 = vunpack.c.l.b16 %v3440
          %v3511 = vunpack.c.h.b16 %v3440
          %v3512 = vunpack.c.l.b16 %v3441
          %v3513 = vunpack.c.h.b16 %v3441
          %v3514 = vunpack.c.l.b16 %v3442
          %v3515 = vunpack.c.h.b16 %v3442
          %v3516 = vunpack.c.l.b16 %v3443
          %v3517 = vunpack.c.h.b16 %v3443
          %v3518 = vunpack.c.l.b16 %v3444
          %v3519 = vunpack.c.h.b16 %v3444
          %v3520 = vunpack.c.l.b16 %v3445
          %v3521 = vunpack.c.h.b16 %v3445
          %v3522 = vunpack.c.l.b16 %v3446
          %v3523 = vunpack.c.h.b16 %v3446
          %v3524 = vunpack.c.l.b16 %v3447
          %v3525 = vunpack.c.h.b16 %v3447
          %v3526 = vunpack.c.l.b16 %v3448
          %v3527 = vunpack.c.h.b16 %v3448
          %v3528 = vunpack.c.l.b16 %v3449
          %v3529 = vunpack.c.h.b16 %v3449
          %v3530 = vunpack.c.l.b16 %v3450
          %v3531 = vunpack.c.h.b16 %v3450
          %v3532 = vunpack.c.l.b16 %v3451
          %v3533 = vunpack.c.h.b16 %v3451
          %v3534 = vunpack.c.l.b16 %v3452
          %v3535 = vunpack.c.h.b16 %v3452
          %v3536 = vunpack.c.l.b16 %v3453
          %v3537 = vunpack.c.h.b16 %v3453
          %v3538 = vunpack.c.l.b16 %v3454
          %v3539 = vunpack.c.h.b16 %v3454
          %v3540 = vunpack.c.l.b16 %v3455
          %v3541 = vunpack.c.h.b16 %v3455
          %v3542 = vunpack.c.l.b16 %v3456
          %v3543 = vunpack.c.h.b16 %v3456
          %v3544 = vunpack.c.l.b16 %v3457
          %v3545 = vunpack.c.h.b16 %v3457
          %v3546 = vunpack.c.l.b16 %v3458
          %v3547 = vunpack.c.h.b16 %v3458
          %v3548 = vunpack.c.l.b16 %v3459
          %v3549 = vunpack.c.h.b16 %v3459
          %v3550 = vunpack.c.l.b16 %v3460
          %v3551 = vunpack.c.h.b16 %v3460
          %v3552 = vunpack.c.l.b16 %v3461
          %v3553 = vunpack.c.h.b16 %v3461
          %v3554 = vunpack.c.l.b16 %v3462
          %v3555 = vunpack.c.h.b16 %v3462
          %v3556 = vunpack.c.l.b16 %v3463
          %v3557 = vunpack.c.h.b16 %v3463
          %v3558 = vunpack.c.l.b16 %v3464
          %v3559 = vunpack.c.h.b16 %v3464
          %v3560 = vunpack.c.l.b16 %v3465
          %v3561 = vunpack.c.h.b16 %v3465
          %v3562 = vpack.c.b16 %v3500, %v3498
          %v3563 = vpack.c.b16 %v3501, %v3499
          %v3564 = vpack.c.b16 %v3504, %v3502
          %v3565 = vpack.c.b16 %v3505, %v3503
          %v3566 = vpack.c.b16 %v3508, %v3506
          %v3567 = vpack.c.b16 %v3509, %v3507
          %v3568 = vpack.c.b16 %v3512, %v3510
          %v3569 = vpack.c.b16 %v3513, %v3511
          %v3570 = vpack.c.b16 %v3516, %v3514
          %v3571 = vpack.c.b16 %v3517, %v3515
          %v3572 = vpack.c.b16 %v3520, %v3518
          %v3573 = vpack.c.b16 %v3521, %v3519
          %v3574 = vpack.c.b16 %v3524, %v3522
          %v3575 = vpack.c.b16 %v3525, %v3523
          %v3576 = vpack.c.b16 %v3528, %v3526
          %v3577 = vpack.c.b16 %v3529, %v3527
          %v3578 = vpack.c.b16 %v3532, %v3530
          %v3579 = vpack.c.b16 %v3533, %v3531
          %v3580 = vpack.c.b16 %v3536, %v3534
          %v3581 = vpack.c.b16 %v3537, %v3535
          %v3582 = vpack.c.b16 %v3540, %v3538
          %v3583 = vpack.c.b16 %v3541, %v3539
          %v3584 = vpack.c.b16 %v3544, %v3542
          %v3585 = vpack.c.b16 %v3545, %v3543
          %v3586 = vpack.c.b16 %v3548, %v3546
          %v3587 = vpack.c.b16 %v3549, %v3547
          %v3588 = vpack.c.b16 %v3552, %v3550
          %v3589 = vpack.c.b16 %v3553, %v3551
          %v3590 = vpack.c.b16 %v3556, %v3554
          %v3591 = vpack.c.b16 %v3557, %v3555
          %v3592 = vpack.c.b16 %v3560, %v3558
          %v3593 = vpack.c.b16 %v3561, %v3559
          %3626 = vmatprep.subr.bf16.mxu0 %v3563
          %3627 = vmatpush1.bf16.msra.mxu0 %v3562
          %3628 = vmatprep.subr.bf16.mxu0 %v3565
          %3629 = vmatpush1.bf16.msra.mxu0 %v3564
          %3630 = vmatprep.subr.bf16.mxu0 %v3567
          %3631 = vmatpush1.bf16.msra.mxu0 %v3566
          %3632 = vmatprep.subr.bf16.mxu0 %v3569
          %3633 = vmatpush1.bf16.msra.mxu0 %v3568
          %3634 = vmatprep.subr.bf16.mxu0 %v3571
          %3635 = vmatpush1.bf16.msra.mxu0 %v3570
          %3636 = vmatprep.subr.bf16.mxu0 %v3573
          %3637 = vmatpush1.bf16.msra.mxu0 %v3572
          %3638 = vmatprep.subr.bf16.mxu0 %v3575
          %3639 = vmatpush1.bf16.msra.mxu0 %v3574
          %3640 = vmatprep.subr.bf16.mxu0 %v3577
          %3641 = vmatpush1.bf16.msra.mxu0 %v3576
          %3642 = vmatprep.subr.bf16.mxu0 %v3579
          %3643 = vmatpush1.bf16.msra.mxu0 %v3578
          %3644 = vmatprep.subr.bf16.mxu0 %v3581
          %3645 = vmatpush1.bf16.msra.mxu0 %v3580
          %3646 = vmatprep.subr.bf16.mxu0 %v3583
          %3647 = vmatpush1.bf16.msra.mxu0 %v3582
          %3648 = vmatprep.subr.bf16.mxu0 %v3585
          %3649 = vmatpush1.bf16.msra.mxu0 %v3584
          %3650 = vmatprep.subr.bf16.mxu0 %v3587
          %3651 = vmatpush1.bf16.msra.mxu0 %v3586
          %3652 = vmatprep.subr.bf16.mxu0 %v3589
          %3653 = vmatpush1.bf16.msra.mxu0 %v3588
          %3654 = vmatprep.subr.bf16.mxu0 %v3591
          %3655 = vmatpush1.bf16.msra.mxu0 %v3590
          %3656 = vmatprep.subr.bf16.mxu0 %v3593
          %3657 = vmatpush1.bf16.msra.mxu0 %v3592
          %3658 = vmatprep.mubr.bf16.mxu0 %v3432
          %3659 = vmatmul.mubr.bf16.gmra.mrb[0].mxu0 %v3431
          %v3660 = vpop.f32.mrb[0].mxu0
          %v3661 = vadd.f32 0.0, %v3660
          %v3662 = vpop.f32.mrb[0].mxu0
          %v3663 = vadd.f32 0.0, %v3662
          %v3664 = vpop.f32.mrb[0].mxu0
          %v3665 = vpop.f32.mrb[0].mxu0
          %3666 = vdwg.mxu0
          %v3699 = vunpack.c.l.b16 %v3399
          %v3700 = vunpack.c.h.b16 %v3399
          %v3701 = vunpack.c.l.b16 %v3400
          %v3702 = vunpack.c.h.b16 %v3400
          %v3703 = vunpack.c.l.b16 %v3401
          %v3704 = vunpack.c.h.b16 %v3401
          %v3705 = vunpack.c.l.b16 %v3402
          %v3706 = vunpack.c.h.b16 %v3402
          %v3707 = vunpack.c.l.b16 %v3403
          %v3708 = vunpack.c.h.b16 %v3403
          %v3709 = vunpack.c.l.b16 %v3404
          %v3710 = vunpack.c.h.b16 %v3404
          %v3711 = vunpack.c.l.b16 %v3405
          %v3712 = vunpack.c.h.b16 %v3405
          %v3713 = vunpack.c.l.b16 %v3406
          %v3714 = vunpack.c.h.b16 %v3406
          %v3715 = vunpack.c.l.b16 %v3407
          %v3716 = vunpack.c.h.b16 %v3407
          %v3717 = vunpack.c.l.b16 %v3408
          %v3718 = vunpack.c.h.b16 %v3408
          %v3719 = vunpack.c.l.b16 %v3409
          %v3720 = vunpack.c.h.b16 %v3409
          %v3721 = vunpack.c.l.b16 %v3410
          %v3722 = vunpack.c.h.b16 %v3410
          %v3723 = vunpack.c.l.b16 %v3411
          %v3724 = vunpack.c.h.b16 %v3411
          %v3725 = vunpack.c.l.b16 %v3412
          %v3726 = vunpack.c.h.b16 %v3412
          %v3727 = vunpack.c.l.b16 %v3413
          %v3728 = vunpack.c.h.b16 %v3413
          %v3729 = vunpack.c.l.b16 %v3414
          %v3730 = vunpack.c.h.b16 %v3414
          %v3731 = vunpack.c.l.b16 %v3415
          %v3732 = vunpack.c.h.b16 %v3415
          %v3733 = vunpack.c.l.b16 %v3416
          %v3734 = vunpack.c.h.b16 %v3416
          %v3735 = vunpack.c.l.b16 %v3417
          %v3736 = vunpack.c.h.b16 %v3417
          %v3737 = vunpack.c.l.b16 %v3418
          %v3738 = vunpack.c.h.b16 %v3418
          %v3739 = vunpack.c.l.b16 %v3419
          %v3740 = vunpack.c.h.b16 %v3419
          %v3741 = vunpack.c.l.b16 %v3420
          %v3742 = vunpack.c.h.b16 %v3420
          %v3743 = vunpack.c.l.b16 %v3421
          %v3744 = vunpack.c.h.b16 %v3421
          %v3745 = vunpack.c.l.b16 %v3422
          %v3746 = vunpack.c.h.b16 %v3422
          %v3747 = vunpack.c.l.b16 %v3423
          %v3748 = vunpack.c.h.b16 %v3423
          %v3749 = vunpack.c.l.b16 %v3424
          %v3750 = vunpack.c.h.b16 %v3424
          %v3751 = vunpack.c.l.b16 %v3425
          %v3752 = vunpack.c.h.b16 %v3425
          %v3753 = vunpack.c.l.b16 %v3426
          %v3754 = vunpack.c.h.b16 %v3426
          %v3755 = vunpack.c.l.b16 %v3427
          %v3756 = vunpack.c.h.b16 %v3427
          %v3757 = vunpack.c.l.b16 %v3428
          %v3758 = vunpack.c.h.b16 %v3428
          %v3759 = vunpack.c.l.b16 %v3429
          %v3760 = vunpack.c.h.b16 %v3429
          %v3761 = vunpack.c.l.b16 %v3430
          %v3762 = vunpack.c.h.b16 %v3430
          %v3763 = vpack.c.b16 %v3701, %v3699
          %v3764 = vpack.c.b16 %v3702, %v3700
          %v3765 = vpack.c.b16 %v3705, %v3703
          %v3766 = vpack.c.b16 %v3706, %v3704
          %v3767 = vpack.c.b16 %v3709, %v3707
          %v3768 = vpack.c.b16 %v3710, %v3708
          %v3769 = vpack.c.b16 %v3713, %v3711
          %v3770 = vpack.c.b16 %v3714, %v3712
          %v3771 = vpack.c.b16 %v3717, %v3715
          %v3772 = vpack.c.b16 %v3718, %v3716
          %v3773 = vpack.c.b16 %v3721, %v3719
          %v3774 = vpack.c.b16 %v3722, %v3720
          %v3775 = vpack.c.b16 %v3725, %v3723
          %v3776 = vpack.c.b16 %v3726, %v3724
          %v3777 = vpack.c.b16 %v3729, %v3727
          %v3778 = vpack.c.b16 %v3730, %v3728
          %v3779 = vpack.c.b16 %v3733, %v3731
          %v3780 = vpack.c.b16 %v3734, %v3732
          %v3781 = vpack.c.b16 %v3737, %v3735
          %v3782 = vpack.c.b16 %v3738, %v3736
          %v3783 = vpack.c.b16 %v3741, %v3739
          %v3784 = vpack.c.b16 %v3742, %v3740
          %v3785 = vpack.c.b16 %v3745, %v3743
          %v3786 = vpack.c.b16 %v3746, %v3744
          %v3787 = vpack.c.b16 %v3749, %v3747
          %v3788 = vpack.c.b16 %v3750, %v3748
          %v3789 = vpack.c.b16 %v3753, %v3751
          %v3790 = vpack.c.b16 %v3754, %v3752
          %v3791 = vpack.c.b16 %v3757, %v3755
          %v3792 = vpack.c.b16 %v3758, %v3756
          %v3793 = vpack.c.b16 %v3761, %v3759
          %v3794 = vpack.c.b16 %v3762, %v3760
          %3827 = vmatprep.subr.bf16.mxu0 %v3764
          %3828 = vmatpush1.bf16.msra.mxu0 %v3763
          %3829 = vmatprep.subr.bf16.mxu0 %v3766
          %3830 = vmatpush1.bf16.msra.mxu0 %v3765
          %3831 = vmatprep.subr.bf16.mxu0 %v3768
          %3832 = vmatpush1.bf16.msra.mxu0 %v3767
          %3833 = vmatprep.subr.bf16.mxu0 %v3770
          %3834 = vmatpush1.bf16.msra.mxu0 %v3769
          %3835 = vmatprep.subr.bf16.mxu0 %v3772
          %3836 = vmatpush1.bf16.msra.mxu0 %v3771
          %3837 = vmatprep.subr.bf16.mxu0 %v3774
          %3838 = vmatpush1.bf16.msra.mxu0 %v3773
          %3839 = vmatprep.subr.bf16.mxu0 %v3776
          %3840 = vmatpush1.bf16.msra.mxu0 %v3775
          %3841 = vmatprep.subr.bf16.mxu0 %v3778
          %3842 = vmatpush1.bf16.msra.mxu0 %v3777
          %3843 = vmatprep.subr.bf16.mxu0 %v3780
          %3844 = vmatpush1.bf16.msra.mxu0 %v3779
          %3845 = vmatprep.subr.bf16.mxu0 %v3782
          %3846 = vmatpush1.bf16.msra.mxu0 %v3781
          %3847 = vmatprep.subr.bf16.mxu0 %v3784
          %3848 = vmatpush1.bf16.msra.mxu0 %v3783
          %3849 = vmatprep.subr.bf16.mxu0 %v3786
          %3850 = vmatpush1.bf16.msra.mxu0 %v3785
          %3851 = vmatprep.subr.bf16.mxu0 %v3788
          %3852 = vmatpush1.bf16.msra.mxu0 %v3787
          %3853 = vmatprep.subr.bf16.mxu0 %v3790
          %3854 = vmatpush1.bf16.msra.mxu0 %v3789
          %3855 = vmatprep.subr.bf16.mxu0 %v3792
          %3856 = vmatpush1.bf16.msra.mxu0 %v3791
          %3857 = vmatprep.subr.bf16.mxu0 %v3794
          %3858 = vmatpush1.bf16.msra.mxu0 %v3793
          %3859 = vmatprep.mubr.bf16.mxu0 %v3398
          %3860 = vmatmul.mubr.bf16.gmra.mrb[0].mxu0 %v3397
          %v3861 = vpop.f32.mrb[0].mxu0
          %v3862 = vadd.f32 %v3661, %v3861
          %v3863 = vpop.f32.mrb[0].mxu0
          %v3864 = vadd.f32 %v3663, %v3863
          %v3865 = vpop.f32.mrb[0].mxu0
          %v3866 = vpop.f32.mrb[0].mxu0
          %3867 = vdwg.mxu0
          %v3868 = vpack.c.bf16 %v3395, %v3395
          %v3869 = vpack.c.bf16 %v3396, %v3396
          %s3870 = scalar_lea.vmem [#allocation28], 512
          %v3871 = vld [vmem:[%s3870] sm:$0xff]
          %v3872 = vld [vmem:[%s3870 + $0x8] sm:$0xff]
          %v3873 = vld [vmem:[%s3870 + $0x10] sm:$0xff]
          %v3874 = vld [vmem:[%s3870 + $0x18] sm:$0xff]
          %v3875 = vld [vmem:[%s3870 + $0x20] sm:$0xff]
          %v3876 = vld [vmem:[%s3870 + $0x28] sm:$0xff]
          %v3877 = vld [vmem:[%s3870 + $0x30] sm:$0xff]
          %v3878 = vld [vmem:[%s3870 + $0x38] sm:$0xff]
          %v3879 = vld [vmem:[%s3870 + $0x40] sm:$0xff]
          %v3880 = vld [vmem:[%s3870 + $0x48] sm:$0xff]
          %v3881 = vld [vmem:[%s3870 + $0x50] sm:$0xff]
          %v3882 = vld [vmem:[%s3870 + $0x58] sm:$0xff]
          %v3883 = vld [vmem:[%s3870 + $0x60] sm:$0xff]
          %v3884 = vld [vmem:[%s3870 + $0x68] sm:$0xff]
          %v3885 = vld [vmem:[%s3870 + $0x70] sm:$0xff]
          %v3886 = vld [vmem:[%s3870 + $0x78] sm:$0xff]
          %v3887 = vld [vmem:[%s3870 + $0x80] sm:$0xff]
          %v3888 = vld [vmem:[%s3870 + $0x88] sm:$0xff]
          %v3889 = vld [vmem:[%s3870 + $0x90] sm:$0xff]
          %v3890 = vld [vmem:[%s3870 + $0x98] sm:$0xff]
          %v3891 = vld [vmem:[%s3870 + $0xa0] sm:$0xff]
          %v3892 = vld [vmem:[%s3870 + $0xa8] sm:$0xff]
          %v3893 = vld [vmem:[%s3870 + $0xb0] sm:$0xff]
          %v3894 = vld [vmem:[%s3870 + $0xb8] sm:$0xff]
          %v3895 = vld [vmem:[%s3870 + $0xc0] sm:$0xff]
          %v3896 = vld [vmem:[%s3870 + $0xc8] sm:$0xff]
          %v3897 = vld [vmem:[%s3870 + $0xd0] sm:$0xff]
          %v3898 = vld [vmem:[%s3870 + $0xd8] sm:$0xff]
          %v3899 = vld [vmem:[%s3870 + $0xe0] sm:$0xff]
          %v3900 = vld [vmem:[%s3870 + $0xe8] sm:$0xff]
          %v3901 = vld [vmem:[%s3870 + $0xf0] sm:$0xff]
          %v3902 = vld [vmem:[%s3870 + $0xf8] sm:$0xff]
          %v3935 = vunpack.c.l.b16 %v3871
          %v3936 = vunpack.c.h.b16 %v3871
          %v3937 = vunpack.c.l.b16 %v3872
          %v3938 = vunpack.c.h.b16 %v3872
          %v3939 = vunpack.c.l.b16 %v3873
          %v3940 = vunpack.c.h.b16 %v3873
          %v3941 = vunpack.c.l.b16 %v3874
          %v3942 = vunpack.c.h.b16 %v3874
          %v3943 = vunpack.c.l.b16 %v3875
          %v3944 = vunpack.c.h.b16 %v3875
          %v3945 = vunpack.c.l.b16 %v3876
          %v3946 = vunpack.c.h.b16 %v3876
          %v3947 = vunpack.c.l.b16 %v3877
          %v3948 = vunpack.c.h.b16 %v3877
          %v3949 = vunpack.c.l.b16 %v3878
          %v3950 = vunpack.c.h.b16 %v3878
          %v3951 = vunpack.c.l.b16 %v3879
          %v3952 = vunpack.c.h.b16 %v3879
          %v3953 = vunpack.c.l.b16 %v3880
          %v3954 = vunpack.c.h.b16 %v3880
          %v3955 = vunpack.c.l.b16 %v3881
          %v3956 = vunpack.c.h.b16 %v3881
          %v3957 = vunpack.c.l.b16 %v3882
          %v3958 = vunpack.c.h.b16 %v3882
          %v3959 = vunpack.c.l.b16 %v3883
          %v3960 = vunpack.c.h.b16 %v3883
          %v3961 = vunpack.c.l.b16 %v3884
          %v3962 = vunpack.c.h.b16 %v3884
          %v3963 = vunpack.c.l.b16 %v3885
          %v3964 = vunpack.c.h.b16 %v3885
          %v3965 = vunpack.c.l.b16 %v3886
          %v3966 = vunpack.c.h.b16 %v3886
          %v3967 = vunpack.c.l.b16 %v3887
          %v3968 = vunpack.c.h.b16 %v3887
          %v3969 = vunpack.c.l.b16 %v3888
          %v3970 = vunpack.c.h.b16 %v3888
          %v3971 = vunpack.c.l.b16 %v3889
          %v3972 = vunpack.c.h.b16 %v3889
          %v3973 = vunpack.c.l.b16 %v3890
          %v3974 = vunpack.c.h.b16 %v3890
          %v3975 = vunpack.c.l.b16 %v3891
          %v3976 = vunpack.c.h.b16 %v3891
          %v3977 = vunpack.c.l.b16 %v3892
          %v3978 = vunpack.c.h.b16 %v3892
          %v3979 = vunpack.c.l.b16 %v3893
          %v3980 = vunpack.c.h.b16 %v3893
          %v3981 = vunpack.c.l.b16 %v3894
          %v3982 = vunpack.c.h.b16 %v3894
          %v3983 = vunpack.c.l.b16 %v3895
          %v3984 = vunpack.c.h.b16 %v3895
          %v3985 = vunpack.c.l.b16 %v3896
          %v3986 = vunpack.c.h.b16 %v3896
          %v3987 = vunpack.c.l.b16 %v3897
          %v3988 = vunpack.c.h.b16 %v3897
          %v3989 = vunpack.c.l.b16 %v3898
          %v3990 = vunpack.c.h.b16 %v3898
          %v3991 = vunpack.c.l.b16 %v3899
          %v3992 = vunpack.c.h.b16 %v3899
          %v3993 = vunpack.c.l.b16 %v3900
          %v3994 = vunpack.c.h.b16 %v3900
          %v3995 = vunpack.c.l.b16 %v3901
          %v3996 = vunpack.c.h.b16 %v3901
          %v3997 = vunpack.c.l.b16 %v3902
          %v3998 = vunpack.c.h.b16 %v3902
          %v3999 = vpack.c.b16 %v3937, %v3935
          %v4000 = vpack.c.b16 %v3938, %v3936
          %v4001 = vpack.c.b16 %v3941, %v3939
          %v4002 = vpack.c.b16 %v3942, %v3940
          %v4003 = vpack.c.b16 %v3945, %v3943
          %v4004 = vpack.c.b16 %v3946, %v3944
          %v4005 = vpack.c.b16 %v3949, %v3947
          %v4006 = vpack.c.b16 %v3950, %v3948
          %v4007 = vpack.c.b16 %v3953, %v3951
          %v4008 = vpack.c.b16 %v3954, %v3952
          %v4009 = vpack.c.b16 %v3957, %v3955
          %v4010 = vpack.c.b16 %v3958, %v3956
          %v4011 = vpack.c.b16 %v3961, %v3959
          %v4012 = vpack.c.b16 %v3962, %v3960
          %v4013 = vpack.c.b16 %v3965, %v3963
          %v4014 = vpack.c.b16 %v3966, %v3964
          %v4015 = vpack.c.b16 %v3969, %v3967
          %v4016 = vpack.c.b16 %v3970, %v3968
          %v4017 = vpack.c.b16 %v3973, %v3971
          %v4018 = vpack.c.b16 %v3974, %v3972
          %v4019 = vpack.c.b16 %v3977, %v3975
          %v4020 = vpack.c.b16 %v3978, %v3976
          %v4021 = vpack.c.b16 %v3981, %v3979
          %v4022 = vpack.c.b16 %v3982, %v3980
          %v4023 = vpack.c.b16 %v3985, %v3983
          %v4024 = vpack.c.b16 %v3986, %v3984
          %v4025 = vpack.c.b16 %v3989, %v3987
          %v4026 = vpack.c.b16 %v3990, %v3988
          %v4027 = vpack.c.b16 %v3993, %v3991
          %v4028 = vpack.c.b16 %v3994, %v3992
          %v4029 = vpack.c.b16 %v3997, %v3995
          %v4030 = vpack.c.b16 %v3998, %v3996
          %4063 = vmatprep.subr.bf16.mxu0 %v4000
          %4064 = vmatpush1.bf16.msra.mxu0 %v3999
          %4065 = vmatprep.subr.bf16.mxu0 %v4002
          %4066 = vmatpush1.bf16.msra.mxu0 %v4001
          %4067 = vmatprep.subr.bf16.mxu0 %v4004
          %4068 = vmatpush1.bf16.msra.mxu0 %v4003
          %4069 = vmatprep.subr.bf16.mxu0 %v4006
          %4070 = vmatpush1.bf16.msra.mxu0 %v4005
          %4071 = vmatprep.subr.bf16.mxu0 %v4008
          %4072 = vmatpush1.bf16.msra.mxu0 %v4007
          %4073 = vmatprep.subr.bf16.mxu0 %v4010
          %4074 = vmatpush1.bf16.msra.mxu0 %v4009
          %4075 = vmatprep.subr.bf16.mxu0 %v4012
          %4076 = vmatpush1.bf16.msra.mxu0 %v4011
          %4077 = vmatprep.subr.bf16.mxu0 %v4014
          %4078 = vmatpush1.bf16.msra.mxu0 %v4013
          %4079 = vmatprep.subr.bf16.mxu0 %v4016
          %4080 = vmatpush1.bf16.msra.mxu0 %v4015
          %4081 = vmatprep.subr.bf16.mxu0 %v4018
          %4082 = vmatpush1.bf16.msra.mxu0 %v4017
          %4083 = vmatprep.subr.bf16.mxu0 %v4020
          %4084 = vmatpush1.bf16.msra.mxu0 %v4019
          %4085 = vmatprep.subr.bf16.mxu0 %v4022
          %4086 = vmatpush1.bf16.msra.mxu0 %v4021
          %4087 = vmatprep.subr.bf16.mxu0 %v4024
          %4088 = vmatpush1.bf16.msra.mxu0 %v4023
          %4089 = vmatprep.subr.bf16.mxu0 %v4026
          %4090 = vmatpush1.bf16.msra.mxu0 %v4025
          %4091 = vmatprep.subr.bf16.mxu0 %v4028
          %4092 = vmatpush1.bf16.msra.mxu0 %v4027
          %4093 = vmatprep.subr.bf16.mxu0 %v4030
          %4094 = vmatpush1.bf16.msra.mxu0 %v4029
          %4095 = vmatprep.mubr.bf16.mxu0 %v3869
          %4096 = vmatmul.mubr.bf16.gmra.mrb[0].mxu0 %v3868
          %v4097 = vpop.f32.mrb[0].mxu0
          %v4098 = vadd.f32 0.0, %v4097
          %v4099 = vpop.f32.mrb[0].mxu0
          %v4100 = vadd.f32 0.0, %v4099
          %v4101 = vpop.f32.mrb[0].mxu0
          %v4102 = vpop.f32.mrb[0].mxu0
          %4103 = vdwg.mxu0
          %v4104 = vadd.f32 %v3862, %v4098
          %v4105 = vadd.f32 %v3864, %v4100
          %v4106 = vld [vmem:[#allocation30] sm:$0x3]
          %v4108 = vlaneseq
          %v4109 = vshrl.u32 %v4108, 7
          %v4110 = vsub.s32 0, %v4109
          %v4111 = vrot.slane %v4106, %v4110
          %v4112 = vlaneseq
          %v4113 = vshrl.u32 %v4112, 7
          %v4114 = vsub.s32 1, %v4113
          %v4115 = vrot.slane %v4106, %v4114
          %v4118 = vmul.f32 %v4104, %v4111
          %v4119 = vmul.f32 %v4105, %v4115
          %v4120 = vld [vmem:[#allocation31] sm:$0x3]
          %v4122 = vlaneseq
          %v4123 = vshrl.u32 %v4122, 7
          %v4124 = vsub.s32 0, %v4123
          %v4125 = vrot.slane %v4120, %v4124
          %v4126 = vlaneseq
          %v4127 = vshrl.u32 %v4126, 7
          %v4128 = vsub.s32 1, %v4127
          %v4129 = vrot.slane %v4120, %v4128
          %v4132 = vadd.f32 %v4118, %v4125
          %v4133 = vadd.f32 %v4119, %v4129
          %v4134 = vmax.f32 %v4132, 0.0
          %v4135 = vmax.f32 %v4133, 0.0
          %v4136 = vrot.slane %v4134, 7
          %v4137 = vrot.slane %v4135, 7
          %v4138 = vsel %vm2935, %v4136, 0.0
          %v4139 = vsel %vm2935, %v4137, 0.0
          %v4140 = vrot.slane %v4134, 1
          %v4141 = vrot.slane %v4135, 1
          %v4142 = vsel %vm2939, %v4140, 0.0
          %v4143 = vsel %vm2939, %v4141, 0.0
          %v4144 = vpack.c.bf16 %v4138, %v4138
          %v4145 = vpack.c.bf16 %v4139, %v4139
          %v4146 = vld [vmem:[#allocation33] sm:$0xff]
          %v4147 = vld [vmem:[#allocation33 + $0x8] sm:$0xff]
          %v4148 = vld [vmem:[#allocation33 + $0x10] sm:$0xff]
          %v4149 = vld [vmem:[#allocation33 + $0x18] sm:$0xff]
          %v4150 = vld [vmem:[#allocation33 + $0x20] sm:$0xff]
          %v4151 = vld [vmem:[#allocation33 + $0x28] sm:$0xff]
          %v4152 = vld [vmem:[#allocation33 + $0x30] sm:$0xff]
          %v4153 = vld [vmem:[#allocation33 + $0x38] sm:$0xff]
          %v4154 = vld [vmem:[#allocation33 + $0x40] sm:$0xff]
          %v4155 = vld [vmem:[#allocation33 + $0x48] sm:$0xff]
          %v4156 = vld [vmem:[#allocation33 + $0x50] sm:$0xff]
          %v4157 = vld [vmem:[#allocation33 + $0x58] sm:$0xff]
          %v4158 = vld [vmem:[#allocation33 + $0x60] sm:$0xff]
          %v4159 = vld [vmem:[#allocation33 + $0x68] sm:$0xff]
          %v4160 = vld [vmem:[#allocation33 + $0x70] sm:$0xff]
          %v4161 = vld [vmem:[#allocation33 + $0x78] sm:$0xff]
          %v4162 = vld [vmem:[#allocation33 + $0x80] sm:$0xff]
          %v4163 = vld [vmem:[#allocation33 + $0x88] sm:$0xff]
          %v4164 = vld [vmem:[#allocation33 + $0x90] sm:$0xff]
          %v4165 = vld [vmem:[#allocation33 + $0x98] sm:$0xff]
          %v4166 = vld [vmem:[#allocation33 + $0xa0] sm:$0xff]
          %v4167 = vld [vmem:[#allocation33 + $0xa8] sm:$0xff]
          %v4168 = vld [vmem:[#allocation33 + $0xb0] sm:$0xff]
          %v4169 = vld [vmem:[#allocation33 + $0xb8] sm:$0xff]
          %v4170 = vld [vmem:[#allocation33 + $0xc0] sm:$0xff]
          %v4171 = vld [vmem:[#allocation33 + $0xc8] sm:$0xff]
          %v4172 = vld [vmem:[#allocation33 + $0xd0] sm:$0xff]
          %v4173 = vld [vmem:[#allocation33 + $0xd8] sm:$0xff]
          %v4174 = vld [vmem:[#allocation33 + $0xe0] sm:$0xff]
          %v4175 = vld [vmem:[#allocation33 + $0xe8] sm:$0xff]
          %v4176 = vld [vmem:[#allocation33 + $0xf0] sm:$0xff]
          %v4177 = vld [vmem:[#allocation33 + $0xf8] sm:$0xff]
          %v4178 = vpack.c.bf16 %v4134, %v4134
          %v4179 = vpack.c.bf16 %v4135, %v4135
          %s4180 = scalar_lea.vmem [#allocation33], 256
          %v4181 = vld [vmem:[%s4180] sm:$0xff]
          %v4182 = vld [vmem:[%s4180 + $0x8] sm:$0xff]
          %v4183 = vld [vmem:[%s4180 + $0x10] sm:$0xff]
          %v4184 = vld [vmem:[%s4180 + $0x18] sm:$0xff]
          %v4185 = vld [vmem:[%s4180 + $0x20] sm:$0xff]
          %v4186 = vld [vmem:[%s4180 + $0x28] sm:$0xff]
          %v4187 = vld [vmem:[%s4180 + $0x30] sm:$0xff]
          %v4188 = vld [vmem:[%s4180 + $0x38] sm:$0xff]
          %v4189 = vld [vmem:[%s4180 + $0x40] sm:$0xff]
          %v4190 = vld [vmem:[%s4180 + $0x48] sm:$0xff]
          %v4191 = vld [vmem:[%s4180 + $0x50] sm:$0xff]
          %v4192 = vld [vmem:[%s4180 + $0x58] sm:$0xff]
          %v4193 = vld [vmem:[%s4180 + $0x60] sm:$0xff]
          %v4194 = vld [vmem:[%s4180 + $0x68] sm:$0xff]
          %v4195 = vld [vmem:[%s4180 + $0x70] sm:$0xff]
          %v4196 = vld [vmem:[%s4180 + $0x78] sm:$0xff]
          %v4197 = vld [vmem:[%s4180 + $0x80] sm:$0xff]
          %v4198 = vld [vmem:[%s4180 + $0x88] sm:$0xff]
          %v4199 = vld [vmem:[%s4180 + $0x90] sm:$0xff]
          %v4200 = vld [vmem:[%s4180 + $0x98] sm:$0xff]
          %v4201 = vld [vmem:[%s4180 + $0xa0] sm:$0xff]
          %v4202 = vld [vmem:[%s4180 + $0xa8] sm:$0xff]
          %v4203 = vld [vmem:[%s4180 + $0xb0] sm:$0xff]
          %v4204 = vld [vmem:[%s4180 + $0xb8] sm:$0xff]
          %v4205 = vld [vmem:[%s4180 + $0xc0] sm:$0xff]
          %v4206 = vld [vmem:[%s4180 + $0xc8] sm:$0xff]
          %v4207 = vld [vmem:[%s4180 + $0xd0] sm:$0xff]
          %v4208 = vld [vmem:[%s4180 + $0xd8] sm:$0xff]
          %v4209 = vld [vmem:[%s4180 + $0xe0] sm:$0xff]
          %v4210 = vld [vmem:[%s4180 + $0xe8] sm:$0xff]
          %v4211 = vld [vmem:[%s4180 + $0xf0] sm:$0xff]
          %v4212 = vld [vmem:[%s4180 + $0xf8] sm:$0xff]
          %v4245 = vunpack.c.l.b16 %v4181
          %v4246 = vunpack.c.h.b16 %v4181
          %v4247 = vunpack.c.l.b16 %v4182
          %v4248 = vunpack.c.h.b16 %v4182
          %v4249 = vunpack.c.l.b16 %v4183
          %v4250 = vunpack.c.h.b16 %v4183
          %v4251 = vunpack.c.l.b16 %v4184
          %v4252 = vunpack.c.h.b16 %v4184
          %v4253 = vunpack.c.l.b16 %v4185
          %v4254 = vunpack.c.h.b16 %v4185
          %v4255 = vunpack.c.l.b16 %v4186
          %v4256 = vunpack.c.h.b16 %v4186
          %v4257 = vunpack.c.l.b16 %v4187
          %v4258 = vunpack.c.h.b16 %v4187
          %v4259 = vunpack.c.l.b16 %v4188
          %v4260 = vunpack.c.h.b16 %v4188
          %v4261 = vunpack.c.l.b16 %v4189
          %v4262 = vunpack.c.h.b16 %v4189
          %v4263 = vunpack.c.l.b16 %v4190
          %v4264 = vunpack.c.h.b16 %v4190
          %v4265 = vunpack.c.l.b16 %v4191
          %v4266 = vunpack.c.h.b16 %v4191
          %v4267 = vunpack.c.l.b16 %v4192
          %v4268 = vunpack.c.h.b16 %v4192
          %v4269 = vunpack.c.l.b16 %v4193
          %v4270 = vunpack.c.h.b16 %v4193
          %v4271 = vunpack.c.l.b16 %v4194
          %v4272 = vunpack.c.h.b16 %v4194
          %v4273 = vunpack.c.l.b16 %v4195
          %v4274 = vunpack.c.h.b16 %v4195
          %v4275 = vunpack.c.l.b16 %v4196
          %v4276 = vunpack.c.h.b16 %v4196
          %v4277 = vunpack.c.l.b16 %v4197
          %v4278 = vunpack.c.h.b16 %v4197
          %v4279 = vunpack.c.l.b16 %v4198
          %v4280 = vunpack.c.h.b16 %v4198
          %v4281 = vunpack.c.l.b16 %v4199
          %v4282 = vunpack.c.h.b16 %v4199
          %v4283 = vunpack.c.l.b16 %v4200
          %v4284 = vunpack.c.h.b16 %v4200
          %v4285 = vunpack.c.l.b16 %v4201
          %v4286 = vunpack.c.h.b16 %v4201
          %v4287 = vunpack.c.l.b16 %v4202
          %v4288 = vunpack.c.h.b16 %v4202
          %v4289 = vunpack.c.l.b16 %v4203
          %v4290 = vunpack.c.h.b16 %v4203
          %v4291 = vunpack.c.l.b16 %v4204
          %v4292 = vunpack.c.h.b16 %v4204
          %v4293 = vunpack.c.l.b16 %v4205
          %v4294 = vunpack.c.h.b16 %v4205
          %v4295 = vunpack.c.l.b16 %v4206
          %v4296 = vunpack.c.h.b16 %v4206
          %v4297 = vunpack.c.l.b16 %v4207
          %v4298 = vunpack.c.h.b16 %v4207
          %v4299 = vunpack.c.l.b16 %v4208
          %v4300 = vunpack.c.h.b16 %v4208
          %v4301 = vunpack.c.l.b16 %v4209
          %v4302 = vunpack.c.h.b16 %v4209
          %v4303 = vunpack.c.l.b16 %v4210
          %v4304 = vunpack.c.h.b16 %v4210
          %v4305 = vunpack.c.l.b16 %v4211
          %v4306 = vunpack.c.h.b16 %v4211
          %v4307 = vunpack.c.l.b16 %v4212
          %v4308 = vunpack.c.h.b16 %v4212
          %v4309 = vpack.c.b16 %v4247, %v4245
          %v4310 = vpack.c.b16 %v4248, %v4246
          %v4311 = vpack.c.b16 %v4251, %v4249
          %v4312 = vpack.c.b16 %v4252, %v4250
          %v4313 = vpack.c.b16 %v4255, %v4253
          %v4314 = vpack.c.b16 %v4256, %v4254
          %v4315 = vpack.c.b16 %v4259, %v4257
          %v4316 = vpack.c.b16 %v4260, %v4258
          %v4317 = vpack.c.b16 %v4263, %v4261
          %v4318 = vpack.c.b16 %v4264, %v4262
          %v4319 = vpack.c.b16 %v4267, %v4265
          %v4320 = vpack.c.b16 %v4268, %v4266
          %v4321 = vpack.c.b16 %v4271, %v4269
          %v4322 = vpack.c.b16 %v4272, %v4270
          %v4323 = vpack.c.b16 %v4275, %v4273
          %v4324 = vpack.c.b16 %v4276, %v4274
          %v4325 = vpack.c.b16 %v4279, %v4277
          %v4326 = vpack.c.b16 %v4280, %v4278
          %v4327 = vpack.c.b16 %v4283, %v4281
          %v4328 = vpack.c.b16 %v4284, %v4282
          %v4329 = vpack.c.b16 %v4287, %v4285
          %v4330 = vpack.c.b16 %v4288, %v4286
          %v4331 = vpack.c.b16 %v4291, %v4289
          %v4332 = vpack.c.b16 %v4292, %v4290
          %v4333 = vpack.c.b16 %v4295, %v4293
          %v4334 = vpack.c.b16 %v4296, %v4294
          %v4335 = vpack.c.b16 %v4299, %v4297
          %v4336 = vpack.c.b16 %v4300, %v4298
          %v4337 = vpack.c.b16 %v4303, %v4301
          %v4338 = vpack.c.b16 %v4304, %v4302
          %v4339 = vpack.c.b16 %v4307, %v4305
          %v4340 = vpack.c.b16 %v4308, %v4306
          %4373 = vmatprep.subr.bf16.mxu0 %v4310
          %4374 = vmatpush1.bf16.msra.mxu0 %v4309
          %4375 = vmatprep.subr.bf16.mxu0 %v4312
          %4376 = vmatpush1.bf16.msra.mxu0 %v4311
          %4377 = vmatprep.subr.bf16.mxu0 %v4314
          %4378 = vmatpush1.bf16.msra.mxu0 %v4313
          %4379 = vmatprep.subr.bf16.mxu0 %v4316
          %4380 = vmatpush1.bf16.msra.mxu0 %v4315
          %4381 = vmatprep.subr.bf16.mxu0 %v4318
          %4382 = vmatpush1.bf16.msra.mxu0 %v4317
          %4383 = vmatprep.subr.bf16.mxu0 %v4320
          %4384 = vmatpush1.bf16.msra.mxu0 %v4319
          %4385 = vmatprep.subr.bf16.mxu0 %v4322
          %4386 = vmatpush1.bf16.msra.mxu0 %v4321
          %4387 = vmatprep.subr.bf16.mxu0 %v4324
          %4388 = vmatpush1.bf16.msra.mxu0 %v4323
          %4389 = vmatprep.subr.bf16.mxu0 %v4326
          %4390 = vmatpush1.bf16.msra.mxu0 %v4325
          %4391 = vmatprep.subr.bf16.mxu0 %v4328
          %4392 = vmatpush1.bf16.msra.mxu0 %v4327
          %4393 = vmatprep.subr.bf16.mxu0 %v4330
          %4394 = vmatpush1.bf16.msra.mxu0 %v4329
          %4395 = vmatprep.subr.bf16.mxu0 %v4332
          %4396 = vmatpush1.bf16.msra.mxu0 %v4331
          %4397 = vmatprep.subr.bf16.mxu0 %v4334
          %4398 = vmatpush1.bf16.msra.mxu0 %v4333
          %4399 = vmatprep.subr.bf16.mxu0 %v4336
          %4400 = vmatpush1.bf16.msra.mxu0 %v4335
          %4401 = vmatprep.subr.bf16.mxu0 %v4338
          %4402 = vmatpush1.bf16.msra.mxu0 %v4337
          %4403 = vmatprep.subr.bf16.mxu0 %v4340
          %4404 = vmatpush1.bf16.msra.mxu0 %v4339
          %4405 = vmatprep.mubr.bf16.mxu0 %v4179
          %4406 = vmatmul.mubr.bf16.gmra.mrb[0].mxu0 %v4178
          %v4407 = vpop.f32.mrb[0].mxu0
          %v4408 = vadd.f32 0.0, %v4407
          %v4409 = vpop.f32.mrb[0].mxu0
          %v4410 = vadd.f32 0.0, %v4409
          %v4411 = vpop.f32.mrb[0].mxu0
          %v4412 = vpop.f32.mrb[0].mxu0
          %4413 = vdwg.mxu0
          %v4446 = vunpack.c.l.b16 %v4146
          %v4447 = vunpack.c.h.b16 %v4146
          %v4448 = vunpack.c.l.b16 %v4147
          %v4449 = vunpack.c.h.b16 %v4147
          %v4450 = vunpack.c.l.b16 %v4148
          %v4451 = vunpack.c.h.b16 %v4148
          %v4452 = vunpack.c.l.b16 %v4149
          %v4453 = vunpack.c.h.b16 %v4149
          %v4454 = vunpack.c.l.b16 %v4150
          %v4455 = vunpack.c.h.b16 %v4150
          %v4456 = vunpack.c.l.b16 %v4151
          %v4457 = vunpack.c.h.b16 %v4151
          %v4458 = vunpack.c.l.b16 %v4152
          %v4459 = vunpack.c.h.b16 %v4152
          %v4460 = vunpack.c.l.b16 %v4153
          %v4461 = vunpack.c.h.b16 %v4153
          %v4462 = vunpack.c.l.b16 %v4154
          %v4463 = vunpack.c.h.b16 %v4154
          %v4464 = vunpack.c.l.b16 %v4155
          %v4465 = vunpack.c.h.b16 %v4155
          %v4466 = vunpack.c.l.b16 %v4156
          %v4467 = vunpack.c.h.b16 %v4156
          %v4468 = vunpack.c.l.b16 %v4157
          %v4469 = vunpack.c.h.b16 %v4157
          %v4470 = vunpack.c.l.b16 %v4158
          %v4471 = vunpack.c.h.b16 %v4158
          %v4472 = vunpack.c.l.b16 %v4159
          %v4473 = vunpack.c.h.b16 %v4159
          %v4474 = vunpack.c.l.b16 %v4160
          %v4475 = vunpack.c.h.b16 %v4160
          %v4476 = vunpack.c.l.b16 %v4161
          %v4477 = vunpack.c.h.b16 %v4161
          %v4478 = vunpack.c.l.b16 %v4162
          %v4479 = vunpack.c.h.b16 %v4162
          %v4480 = vunpack.c.l.b16 %v4163
          %v4481 = vunpack.c.h.b16 %v4163
          %v4482 = vunpack.c.l.b16 %v4164
          %v4483 = vunpack.c.h.b16 %v4164
          %v4484 = vunpack.c.l.b16 %v4165
          %v4485 = vunpack.c.h.b16 %v4165
          %v4486 = vunpack.c.l.b16 %v4166
          %v4487 = vunpack.c.h.b16 %v4166
          %v4488 = vunpack.c.l.b16 %v4167
          %v4489 = vunpack.c.h.b16 %v4167
          %v4490 = vunpack.c.l.b16 %v4168
          %v4491 = vunpack.c.h.b16 %v4168
          %v4492 = vunpack.c.l.b16 %v4169
          %v4493 = vunpack.c.h.b16 %v4169
          %v4494 = vunpack.c.l.b16 %v4170
          %v4495 = vunpack.c.h.b16 %v4170
          %v4496 = vunpack.c.l.b16 %v4171
          %v4497 = vunpack.c.h.b16 %v4171
          %v4498 = vunpack.c.l.b16 %v4172
          %v4499 = vunpack.c.h.b16 %v4172
          %v4500 = vunpack.c.l.b16 %v4173
          %v4501 = vunpack.c.h.b16 %v4173
          %v4502 = vunpack.c.l.b16 %v4174
          %v4503 = vunpack.c.h.b16 %v4174
          %v4504 = vunpack.c.l.b16 %v4175
          %v4505 = vunpack.c.h.b16 %v4175
          %v4506 = vunpack.c.l.b16 %v4176
          %v4507 = vunpack.c.h.b16 %v4176
          %v4508 = vunpack.c.l.b16 %v4177
          %v4509 = vunpack.c.h.b16 %v4177
          %v4510 = vpack.c.b16 %v4448, %v4446
          %v4511 = vpack.c.b16 %v4449, %v4447
          %v4512 = vpack.c.b16 %v4452, %v4450
          %v4513 = vpack.c.b16 %v4453, %v4451
          %v4514 = vpack.c.b16 %v4456, %v4454
          %v4515 = vpack.c.b16 %v4457, %v4455
          %v4516 = vpack.c.b16 %v4460, %v4458
          %v4517 = vpack.c.b16 %v4461, %v4459
          %v4518 = vpack.c.b16 %v4464, %v4462
          %v4519 = vpack.c.b16 %v4465, %v4463
          %v4520 = vpack.c.b16 %v4468, %v4466
          %v4521 = vpack.c.b16 %v4469, %v4467
          %v4522 = vpack.c.b16 %v4472, %v4470
          %v4523 = vpack.c.b16 %v4473, %v4471
          %v4524 = vpack.c.b16 %v4476, %v4474
          %v4525 = vpack.c.b16 %v4477, %v4475
          %v4526 = vpack.c.b16 %v4480, %v4478
          %v4527 = vpack.c.b16 %v4481, %v4479
          %v4528 = vpack.c.b16 %v4484, %v4482
          %v4529 = vpack.c.b16 %v4485, %v4483
          %v4530 = vpack.c.b16 %v4488, %v4486
          %v4531 = vpack.c.b16 %v4489, %v4487
          %v4532 = vpack.c.b16 %v4492, %v4490
          %v4533 = vpack.c.b16 %v4493, %v4491
          %v4534 = vpack.c.b16 %v4496, %v4494
          %v4535 = vpack.c.b16 %v4497, %v4495
          %v4536 = vpack.c.b16 %v4500, %v4498
          %v4537 = vpack.c.b16 %v4501, %v4499
          %v4538 = vpack.c.b16 %v4504, %v4502
          %v4539 = vpack.c.b16 %v4505, %v4503
          %v4540 = vpack.c.b16 %v4508, %v4506
          %v4541 = vpack.c.b16 %v4509, %v4507
          %4574 = vmatprep.subr.bf16.mxu0 %v4511
          %4575 = vmatpush1.bf16.msra.mxu0 %v4510
          %4576 = vmatprep.subr.bf16.mxu0 %v4513
          %4577 = vmatpush1.bf16.msra.mxu0 %v4512
          %4578 = vmatprep.subr.bf16.mxu0 %v4515
          %4579 = vmatpush1.bf16.msra.mxu0 %v4514
          %4580 = vmatprep.subr.bf16.mxu0 %v4517
          %4581 = vmatpush1.bf16.msra.mxu0 %v4516
          %4582 = vmatprep.subr.bf16.mxu0 %v4519
          %4583 = vmatpush1.bf16.msra.mxu0 %v4518
          %4584 = vmatprep.subr.bf16.mxu0 %v4521
          %4585 = vmatpush1.bf16.msra.mxu0 %v4520
          %4586 = vmatprep.subr.bf16.mxu0 %v4523
          %4587 = vmatpush1.bf16.msra.mxu0 %v4522
          %4588 = vmatprep.subr.bf16.mxu0 %v4525
          %4589 = vmatpush1.bf16.msra.mxu0 %v4524
          %4590 = vmatprep.subr.bf16.mxu0 %v4527
          %4591 = vmatpush1.bf16.msra.mxu0 %v4526
          %4592 = vmatprep.subr.bf16.mxu0 %v4529
          %4593 = vmatpush1.bf16.msra.mxu0 %v4528
          %4594 = vmatprep.subr.bf16.mxu0 %v4531
          %4595 = vmatpush1.bf16.msra.mxu0 %v4530
          %4596 = vmatprep.subr.bf16.mxu0 %v4533
          %4597 = vmatpush1.bf16.msra.mxu0 %v4532
          %4598 = vmatprep.subr.bf16.mxu0 %v4535
          %4599 = vmatpush1.bf16.msra.mxu0 %v4534
          %4600 = vmatprep.subr.bf16.mxu0 %v4537
          %4601 = vmatpush1.bf16.msra.mxu0 %v4536
          %4602 = vmatprep.subr.bf16.mxu0 %v4539
          %4603 = vmatpush1.bf16.msra.mxu0 %v4538
          %4604 = vmatprep.subr.bf16.mxu0 %v4541
          %4605 = vmatpush1.bf16.msra.mxu0 %v4540
          %4606 = vmatprep.mubr.bf16.mxu0 %v4145
          %4607 = vmatmul.mubr.bf16.gmra.mrb[0].mxu0 %v4144
          %v4608 = vpop.f32.mrb[0].mxu0
          %v4609 = vadd.f32 %v4408, %v4608
          %v4610 = vpop.f32.mrb[0].mxu0
          %v4611 = vadd.f32 %v4410, %v4610
          %v4612 = vpop.f32.mrb[0].mxu0
          %v4613 = vpop.f32.mrb[0].mxu0
          %4614 = vdwg.mxu0
          %v4615 = vpack.c.bf16 %v4142, %v4142
          %v4616 = vpack.c.bf16 %v4143, %v4143
          %s4617 = scalar_lea.vmem [#allocation33], 512
          %v4618 = vld [vmem:[%s4617] sm:$0xff]
          %v4619 = vld [vmem:[%s4617 + $0x8] sm:$0xff]
          %v4620 = vld [vmem:[%s4617 + $0x10] sm:$0xff]
          %v4621 = vld [vmem:[%s4617 + $0x18] sm:$0xff]
          %v4622 = vld [vmem:[%s4617 + $0x20] sm:$0xff]
          %v4623 = vld [vmem:[%s4617 + $0x28] sm:$0xff]
          %v4624 = vld [vmem:[%s4617 + $0x30] sm:$0xff]
          %v4625 = vld [vmem:[%s4617 + $0x38] sm:$0xff]
          %v4626 = vld [vmem:[%s4617 + $0x40] sm:$0xff]
          %v4627 = vld [vmem:[%s4617 + $0x48] sm:$0xff]
          %v4628 = vld [vmem:[%s4617 + $0x50] sm:$0xff]
          %v4629 = vld [vmem:[%s4617 + $0x58] sm:$0xff]
          %v4630 = vld [vmem:[%s4617 + $0x60] sm:$0xff]
          %v4631 = vld [vmem:[%s4617 + $0x68] sm:$0xff]
          %v4632 = vld [vmem:[%s4617 + $0x70] sm:$0xff]
          %v4633 = vld [vmem:[%s4617 + $0x78] sm:$0xff]
          %v4634 = vld [vmem:[%s4617 + $0x80] sm:$0xff]
          %v4635 = vld [vmem:[%s4617 + $0x88] sm:$0xff]
          %v4636 = vld [vmem:[%s4617 + $0x90] sm:$0xff]
          %v4637 = vld [vmem:[%s4617 + $0x98] sm:$0xff]
          %v4638 = vld [vmem:[%s4617 + $0xa0] sm:$0xff]
          %v4639 = vld [vmem:[%s4617 + $0xa8] sm:$0xff]
          %v4640 = vld [vmem:[%s4617 + $0xb0] sm:$0xff]
          %v4641 = vld [vmem:[%s4617 + $0xb8] sm:$0xff]
          %v4642 = vld [vmem:[%s4617 + $0xc0] sm:$0xff]
          %v4643 = vld [vmem:[%s4617 + $0xc8] sm:$0xff]
          %v4644 = vld [vmem:[%s4617 + $0xd0] sm:$0xff]
          %v4645 = vld [vmem:[%s4617 + $0xd8] sm:$0xff]
          %v4646 = vld [vmem:[%s4617 + $0xe0] sm:$0xff]
          %v4647 = vld [vmem:[%s4617 + $0xe8] sm:$0xff]
          %v4648 = vld [vmem:[%s4617 + $0xf0] sm:$0xff]
          %v4649 = vld [vmem:[%s4617 + $0xf8] sm:$0xff]
          %v4682 = vunpack.c.l.b16 %v4618
          %v4683 = vunpack.c.h.b16 %v4618
          %v4684 = vunpack.c.l.b16 %v4619
          %v4685 = vunpack.c.h.b16 %v4619
          %v4686 = vunpack.c.l.b16 %v4620
          %v4687 = vunpack.c.h.b16 %v4620
          %v4688 = vunpack.c.l.b16 %v4621
          %v4689 = vunpack.c.h.b16 %v4621
          %v4690 = vunpack.c.l.b16 %v4622
          %v4691 = vunpack.c.h.b16 %v4622
          %v4692 = vunpack.c.l.b16 %v4623
          %v4693 = vunpack.c.h.b16 %v4623
          %v4694 = vunpack.c.l.b16 %v4624
          %v4695 = vunpack.c.h.b16 %v4624
          %v4696 = vunpack.c.l.b16 %v4625
          %v4697 = vunpack.c.h.b16 %v4625
          %v4698 = vunpack.c.l.b16 %v4626
          %v4699 = vunpack.c.h.b16 %v4626
          %v4700 = vunpack.c.l.b16 %v4627
          %v4701 = vunpack.c.h.b16 %v4627
          %v4702 = vunpack.c.l.b16 %v4628
          %v4703 = vunpack.c.h.b16 %v4628
          %v4704 = vunpack.c.l.b16 %v4629
          %v4705 = vunpack.c.h.b16 %v4629
          %v4706 = vunpack.c.l.b16 %v4630
          %v4707 = vunpack.c.h.b16 %v4630
          %v4708 = vunpack.c.l.b16 %v4631
          %v4709 = vunpack.c.h.b16 %v4631
          %v4710 = vunpack.c.l.b16 %v4632
          %v4711 = vunpack.c.h.b16 %v4632
          %v4712 = vunpack.c.l.b16 %v4633
          %v4713 = vunpack.c.h.b16 %v4633
          %v4714 = vunpack.c.l.b16 %v4634
          %v4715 = vunpack.c.h.b16 %v4634
          %v4716 = vunpack.c.l.b16 %v4635
          %v4717 = vunpack.c.h.b16 %v4635
          %v4718 = vunpack.c.l.b16 %v4636
          %v4719 = vunpack.c.h.b16 %v4636
          %v4720 = vunpack.c.l.b16 %v4637
          %v4721 = vunpack.c.h.b16 %v4637
          %v4722 = vunpack.c.l.b16 %v4638
          %v4723 = vunpack.c.h.b16 %v4638
          %v4724 = vunpack.c.l.b16 %v4639
          %v4725 = vunpack.c.h.b16 %v4639
          %v4726 = vunpack.c.l.b16 %v4640
          %v4727 = vunpack.c.h.b16 %v4640
          %v4728 = vunpack.c.l.b16 %v4641
          %v4729 = vunpack.c.h.b16 %v4641
          %v4730 = vunpack.c.l.b16 %v4642
          %v4731 = vunpack.c.h.b16 %v4642
          %v4732 = vunpack.c.l.b16 %v4643
          %v4733 = vunpack.c.h.b16 %v4643
          %v4734 = vunpack.c.l.b16 %v4644
          %v4735 = vunpack.c.h.b16 %v4644
          %v4736 = vunpack.c.l.b16 %v4645
          %v4737 = vunpack.c.h.b16 %v4645
          %v4738 = vunpack.c.l.b16 %v4646
          %v4739 = vunpack.c.h.b16 %v4646
          %v4740 = vunpack.c.l.b16 %v4647
          %v4741 = vunpack.c.h.b16 %v4647
          %v4742 = vunpack.c.l.b16 %v4648
          %v4743 = vunpack.c.h.b16 %v4648
          %v4744 = vunpack.c.l.b16 %v4649
          %v4745 = vunpack.c.h.b16 %v4649
          %v4746 = vpack.c.b16 %v4684, %v4682
          %v4747 = vpack.c.b16 %v4685, %v4683
          %v4748 = vpack.c.b16 %v4688, %v4686
          %v4749 = vpack.c.b16 %v4689, %v4687
          %v4750 = vpack.c.b16 %v4692, %v4690
          %v4751 = vpack.c.b16 %v4693, %v4691
          %v4752 = vpack.c.b16 %v4696, %v4694
          %v4753 = vpack.c.b16 %v4697, %v4695
          %v4754 = vpack.c.b16 %v4700, %v4698
          %v4755 = vpack.c.b16 %v4701, %v4699
          %v4756 = vpack.c.b16 %v4704, %v4702
          %v4757 = vpack.c.b16 %v4705, %v4703
          %v4758 = vpack.c.b16 %v4708, %v4706
          %v4759 = vpack.c.b16 %v4709, %v4707
          %v4760 = vpack.c.b16 %v4712, %v4710
          %v4761 = vpack.c.b16 %v4713, %v4711
          %v4762 = vpack.c.b16 %v4716, %v4714
          %v4763 = vpack.c.b16 %v4717, %v4715
          %v4764 = vpack.c.b16 %v4720, %v4718
          %v4765 = vpack.c.b16 %v4721, %v4719
          %v4766 = vpack.c.b16 %v4724, %v4722
          %v4767 = vpack.c.b16 %v4725, %v4723
          %v4768 = vpack.c.b16 %v4728, %v4726
          %v4769 = vpack.c.b16 %v4729, %v4727
          %v4770 = vpack.c.b16 %v4732, %v4730
          %v4771 = vpack.c.b16 %v4733, %v4731
          %v4772 = vpack.c.b16 %v4736, %v4734
          %v4773 = vpack.c.b16 %v4737, %v4735
          %v4774 = vpack.c.b16 %v4740, %v4738
          %v4775 = vpack.c.b16 %v4741, %v4739
          %v4776 = vpack.c.b16 %v4744, %v4742
          %v4777 = vpack.c.b16 %v4745, %v4743
          %4810 = vmatprep.subr.bf16.mxu0 %v4747
          %4811 = vmatpush1.bf16.msra.mxu0 %v4746
          %4812 = vmatprep.subr.bf16.mxu0 %v4749
          %4813 = vmatpush1.bf16.msra.mxu0 %v4748
          %4814 = vmatprep.subr.bf16.mxu0 %v4751
          %4815 = vmatpush1.bf16.msra.mxu0 %v4750
          %4816 = vmatprep.subr.bf16.mxu0 %v4753
          %4817 = vmatpush1.bf16.msra.mxu0 %v4752
          %4818 = vmatprep.subr.bf16.mxu0 %v4755
          %4819 = vmatpush1.bf16.msra.mxu0 %v4754
          %4820 = vmatprep.subr.bf16.mxu0 %v4757
          %4821 = vmatpush1.bf16.msra.mxu0 %v4756
          %4822 = vmatprep.subr.bf16.mxu0 %v4759
          %4823 = vmatpush1.bf16.msra.mxu0 %v4758
          %4824 = vmatprep.subr.bf16.mxu0 %v4761
          %4825 = vmatpush1.bf16.msra.mxu0 %v4760
          %4826 = vmatprep.subr.bf16.mxu0 %v4763
          %4827 = vmatpush1.bf16.msra.mxu0 %v4762
          %4828 = vmatprep.subr.bf16.mxu0 %v4765
          %4829 = vmatpush1.bf16.msra.mxu0 %v4764
          %4830 = vmatprep.subr.bf16.mxu0 %v4767
          %4831 = vmatpush1.bf16.msra.mxu0 %v4766
          %4832 = vmatprep.subr.bf16.mxu0 %v4769
          %4833 = vmatpush1.bf16.msra.mxu0 %v4768
          %4834 = vmatprep.subr.bf16.mxu0 %v4771
          %4835 = vmatpush1.bf16.msra.mxu0 %v4770
          %4836 = vmatprep.subr.bf16.mxu0 %v4773
          %4837 = vmatpush1.bf16.msra.mxu0 %v4772
          %4838 = vmatprep.subr.bf16.mxu0 %v4775
          %4839 = vmatpush1.bf16.msra.mxu0 %v4774
          %4840 = vmatprep.subr.bf16.mxu0 %v4777
          %4841 = vmatpush1.bf16.msra.mxu0 %v4776
          %4842 = vmatprep.mubr.bf16.mxu0 %v4616
          %4843 = vmatmul.mubr.bf16.gmra.mrb[0].mxu0 %v4615
          %v4844 = vpop.f32.mrb[0].mxu0
          %v4845 = vadd.f32 0.0, %v4844
          %v4846 = vpop.f32.mrb[0].mxu0
          %v4847 = vadd.f32 0.0, %v4846
          %v4848 = vpop.f32.mrb[0].mxu0
          %v4849 = vpop.f32.mrb[0].mxu0
          %4850 = vdwg.mxu0
          %v4851 = vadd.f32 %v4609, %v4845
          %v4852 = vadd.f32 %v4611, %v4847
          %v4853 = vld [vmem:[#allocation34] sm:$0x3]
          %v4855 = vlaneseq
          %v4856 = vshrl.u32 %v4855, 7
          %v4857 = vsub.s32 0, %v4856
          %v4858 = vrot.slane %v4853, %v4857
          %v4859 = vlaneseq
          %v4860 = vshrl.u32 %v4859, 7
          %v4861 = vsub.s32 1, %v4860
          %v4862 = vrot.slane %v4853, %v4861
          %v4865 = vmul.f32 %v4851, %v4858
          %v4866 = vmul.f32 %v4852, %v4862
          %v4867 = vld [vmem:[#allocation36] sm:$0x3]
          %v4869 = vlaneseq
          %v4870 = vshrl.u32 %v4869, 7
          %v4871 = vsub.s32 0, %v4870
          %v4872 = vrot.slane %v4867, %v4871
          %v4873 = vlaneseq
          %v4874 = vshrl.u32 %v4873, 7
          %v4875 = vsub.s32 1, %v4874
          %v4876 = vrot.slane %v4867, %v4875
          %v4879 = vadd.f32 %v4865, %v4872
          %v4880 = vadd.f32 %v4866, %v4876
          %v4881 = vmax.f32 %v4879, 0.0
          %v4882 = vmax.f32 %v4880, 0.0
          %v4883 = vrot.slane %v4881, 7
          %v4884 = vrot.slane %v4882, 7
          %v4885 = vsel %vm2935, %v4883, 0.0
          %v4886 = vsel %vm2935, %v4884, 0.0
          %v4887 = vrot.slane %v4881, 1
          %v4888 = vrot.slane %v4882, 1
          %v4889 = vsel %vm2939, %v4887, 0.0
          %v4890 = vsel %vm2939, %v4888, 0.0
          %v4891 = vpack.c.bf16 %v4885, %v4885
          %v4892 = vpack.c.bf16 %v4886, %v4886
          %v4893 = vld [vmem:[#allocation37] sm:$0xff]
          %v4894 = vld [vmem:[#allocation37 + $0x8] sm:$0xff]
          %v4895 = vld [vmem:[#allocation37 + $0x10] sm:$0xff]
          %v4896 = vld [vmem:[#allocation37 + $0x18] sm:$0xff]
          %v4897 = vld [vmem:[#allocation37 + $0x20] sm:$0xff]
          %v4898 = vld [vmem:[#allocation37 + $0x28] sm:$0xff]
          %v4899 = vld [vmem:[#allocation37 + $0x30] sm:$0xff]
          %v4900 = vld [vmem:[#allocation37 + $0x38] sm:$0xff]
          %v4901 = vld [vmem:[#allocation37 + $0x40] sm:$0xff]
          %v4902 = vld [vmem:[#allocation37 + $0x48] sm:$0xff]
          %v4903 = vld [vmem:[#allocation37 + $0x50] sm:$0xff]
          %v4904 = vld [vmem:[#allocation37 + $0x58] sm:$0xff]
          %v4905 = vld [vmem:[#allocation37 + $0x60] sm:$0xff]
          %v4906 = vld [vmem:[#allocation37 + $0x68] sm:$0xff]
          %v4907 = vld [vmem:[#allocation37 + $0x70] sm:$0xff]
          %v4908 = vld [vmem:[#allocation37 + $0x78] sm:$0xff]
          %v4909 = vld [vmem:[#allocation37 + $0x80] sm:$0xff]
          %v4910 = vld [vmem:[#allocation37 + $0x88] sm:$0xff]
          %v4911 = vld [vmem:[#allocation37 + $0x90] sm:$0xff]
          %v4912 = vld [vmem:[#allocation37 + $0x98] sm:$0xff]
          %v4913 = vld [vmem:[#allocation37 + $0xa0] sm:$0xff]
          %v4914 = vld [vmem:[#allocation37 + $0xa8] sm:$0xff]
          %v4915 = vld [vmem:[#allocation37 + $0xb0] sm:$0xff]
          %v4916 = vld [vmem:[#allocation37 + $0xb8] sm:$0xff]
          %v4917 = vld [vmem:[#allocation37 + $0xc0] sm:$0xff]
          %v4918 = vld [vmem:[#allocation37 + $0xc8] sm:$0xff]
          %v4919 = vld [vmem:[#allocation37 + $0xd0] sm:$0xff]
          %v4920 = vld [vmem:[#allocation37 + $0xd8] sm:$0xff]
          %v4921 = vld [vmem:[#allocation37 + $0xe0] sm:$0xff]
          %v4922 = vld [vmem:[#allocation37 + $0xe8] sm:$0xff]
          %v4923 = vld [vmem:[#allocation37 + $0xf0] sm:$0xff]
          %v4924 = vld [vmem:[#allocation37 + $0xf8] sm:$0xff]
          %v4925 = vld [vmem:[#allocation37 + $0x100] sm:$0xff]
          %v4926 = vld [vmem:[#allocation37 + $0x108] sm:$0xff]
          %v4927 = vld [vmem:[#allocation37 + $0x110] sm:$0xff]
          %v4928 = vld [vmem:[#allocation37 + $0x118] sm:$0xff]
          %v4929 = vld [vmem:[#allocation37 + $0x120] sm:$0xff]
          %v4930 = vld [vmem:[#allocation37 + $0x128] sm:$0xff]
          %v4931 = vld [vmem:[#allocation37 + $0x130] sm:$0xff]
          %v4932 = vld [vmem:[#allocation37 + $0x138] sm:$0xff]
          %v4933 = vld [vmem:[#allocation37 + $0x140] sm:$0xff]
          %v4934 = vld [vmem:[#allocation37 + $0x148] sm:$0xff]
          %v4935 = vld [vmem:[#allocation37 + $0x150] sm:$0xff]
          %v4936 = vld [vmem:[#allocation37 + $0x158] sm:$0xff]
          %v4937 = vld [vmem:[#allocation37 + $0x160] sm:$0xff]
          %v4938 = vld [vmem:[#allocation37 + $0x168] sm:$0xff]
          %v4939 = vld [vmem:[#allocation37 + $0x170] sm:$0xff]
          %v4940 = vld [vmem:[#allocation37 + $0x178] sm:$0xff]
          %v4941 = vld [vmem:[#allocation37 + $0x180] sm:$0xff]
          %v4942 = vld [vmem:[#allocation37 + $0x188] sm:$0xff]
          %v4943 = vld [vmem:[#allocation37 + $0x190] sm:$0xff]
          %v4944 = vld [vmem:[#allocation37 + $0x198] sm:$0xff]
          %v4945 = vld [vmem:[#allocation37 + $0x1a0] sm:$0xff]
          %v4946 = vld [vmem:[#allocation37 + $0x1a8] sm:$0xff]
          %v4947 = vld [vmem:[#allocation37 + $0x1b0] sm:$0xff]
          %v4948 = vld [vmem:[#allocation37 + $0x1b8] sm:$0xff]
          %v4949 = vld [vmem:[#allocation37 + $0x1c0] sm:$0xff]
          %v4950 = vld [vmem:[#allocation37 + $0x1c8] sm:$0xff]
          %v4951 = vld [vmem:[#allocation37 + $0x1d0] sm:$0xff]
          %v4952 = vld [vmem:[#allocation37 + $0x1d8] sm:$0xff]
          %v4953 = vld [vmem:[#allocation37 + $0x1e0] sm:$0xff]
          %v4954 = vld [vmem:[#allocation37 + $0x1e8] sm:$0xff]
          %v4955 = vld [vmem:[#allocation37 + $0x1f0] sm:$0xff]
          %v4956 = vld [vmem:[#allocation37 + $0x1f8] sm:$0xff]
          %v4957 = vpack.c.bf16 %v4881, %v4881
          %v4958 = vpack.c.bf16 %v4882, %v4882
          %s4959 = scalar_lea.vmem [#allocation37], 512
          %v4960 = vld [vmem:[%s4959] sm:$0xff]
          %v4961 = vld [vmem:[%s4959 + $0x8] sm:$0xff]
          %v4962 = vld [vmem:[%s4959 + $0x10] sm:$0xff]
          %v4963 = vld [vmem:[%s4959 + $0x18] sm:$0xff]
          %v4964 = vld [vmem:[%s4959 + $0x20] sm:$0xff]
          %v4965 = vld [vmem:[%s4959 + $0x28] sm:$0xff]
          %v4966 = vld [vmem:[%s4959 + $0x30] sm:$0xff]
          %v4967 = vld [vmem:[%s4959 + $0x38] sm:$0xff]
          %v4968 = vld [vmem:[%s4959 + $0x40] sm:$0xff]
          %v4969 = vld [vmem:[%s4959 + $0x48] sm:$0xff]
          %v4970 = vld [vmem:[%s4959 + $0x50] sm:$0xff]
          %v4971 = vld [vmem:[%s4959 + $0x58] sm:$0xff]
          %v4972 = vld [vmem:[%s4959 + $0x60] sm:$0xff]
          %v4973 = vld [vmem:[%s4959 + $0x68] sm:$0xff]
          %v4974 = vld [vmem:[%s4959 + $0x70] sm:$0xff]
          %v4975 = vld [vmem:[%s4959 + $0x78] sm:$0xff]
          %v4976 = vld [vmem:[%s4959 + $0x80] sm:$0xff]
          %v4977 = vld [vmem:[%s4959 + $0x88] sm:$0xff]
          %v4978 = vld [vmem:[%s4959 + $0x90] sm:$0xff]
          %v4979 = vld [vmem:[%s4959 + $0x98] sm:$0xff]
          %v4980 = vld [vmem:[%s4959 + $0xa0] sm:$0xff]
          %v4981 = vld [vmem:[%s4959 + $0xa8] sm:$0xff]
          %v4982 = vld [vmem:[%s4959 + $0xb0] sm:$0xff]
          %v4983 = vld [vmem:[%s4959 + $0xb8] sm:$0xff]
          %v4984 = vld [vmem:[%s4959 + $0xc0] sm:$0xff]
          %v4985 = vld [vmem:[%s4959 + $0xc8] sm:$0xff]
          %v4986 = vld [vmem:[%s4959 + $0xd0] sm:$0xff]
          %v4987 = vld [vmem:[%s4959 + $0xd8] sm:$0xff]
          %v4988 = vld [vmem:[%s4959 + $0xe0] sm:$0xff]
          %v4989 = vld [vmem:[%s4959 + $0xe8] sm:$0xff]
          %v4990 = vld [vmem:[%s4959 + $0xf0] sm:$0xff]
          %v4991 = vld [vmem:[%s4959 + $0xf8] sm:$0xff]
          %v4992 = vld [vmem:[%s4959 + $0x100] sm:$0xff]
          %v4993 = vld [vmem:[%s4959 + $0x108] sm:$0xff]
          %v4994 = vld [vmem:[%s4959 + $0x110] sm:$0xff]
          %v4995 = vld [vmem:[%s4959 + $0x118] sm:$0xff]
          %v4996 = vld [vmem:[%s4959 + $0x120] sm:$0xff]
          %v4997 = vld [vmem:[%s4959 + $0x128] sm:$0xff]
          %v4998 = vld [vmem:[%s4959 + $0x130] sm:$0xff]
          %v4999 = vld [vmem:[%s4959 + $0x138] sm:$0xff]
          %v5000 = vld [vmem:[%s4959 + $0x140] sm:$0xff]
          %v5001 = vld [vmem:[%s4959 + $0x148] sm:$0xff]
          %v5002 = vld [vmem:[%s4959 + $0x150] sm:$0xff]
          %v5003 = vld [vmem:[%s4959 + $0x158] sm:$0xff]
          %v5004 = vld [vmem:[%s4959 + $0x160] sm:$0xff]
          %v5005 = vld [vmem:[%s4959 + $0x168] sm:$0xff]
          %v5006 = vld [vmem:[%s4959 + $0x170] sm:$0xff]
          %v5007 = vld [vmem:[%s4959 + $0x178] sm:$0xff]
          %v5008 = vld [vmem:[%s4959 + $0x180] sm:$0xff]
          %v5009 = vld [vmem:[%s4959 + $0x188] sm:$0xff]
          %v5010 = vld [vmem:[%s4959 + $0x190] sm:$0xff]
          %v5011 = vld [vmem:[%s4959 + $0x198] sm:$0xff]
          %v5012 = vld [vmem:[%s4959 + $0x1a0] sm:$0xff]
          %v5013 = vld [vmem:[%s4959 + $0x1a8] sm:$0xff]
          %v5014 = vld [vmem:[%s4959 + $0x1b0] sm:$0xff]
          %v5015 = vld [vmem:[%s4959 + $0x1b8] sm:$0xff]
          %v5016 = vld [vmem:[%s4959 + $0x1c0] sm:$0xff]
          %v5017 = vld [vmem:[%s4959 + $0x1c8] sm:$0xff]
          %v5018 = vld [vmem:[%s4959 + $0x1d0] sm:$0xff]
          %v5019 = vld [vmem:[%s4959 + $0x1d8] sm:$0xff]
          %v5020 = vld [vmem:[%s4959 + $0x1e0] sm:$0xff]
          %v5021 = vld [vmem:[%s4959 + $0x1e8] sm:$0xff]
          %v5022 = vld [vmem:[%s4959 + $0x1f0] sm:$0xff]
          %v5023 = vld [vmem:[%s4959 + $0x1f8] sm:$0xff]
          %v5088 = vunpack.c.l.b16 %v4960
          %v5089 = vunpack.c.h.b16 %v4960
          %v5090 = vunpack.c.l.b16 %v4961
          %v5091 = vunpack.c.h.b16 %v4961
          %v5092 = vunpack.c.l.b16 %v4962
          %v5093 = vunpack.c.h.b16 %v4962
          %v5094 = vunpack.c.l.b16 %v4963
          %v5095 = vunpack.c.h.b16 %v4963
          %v5096 = vunpack.c.l.b16 %v4964
          %v5097 = vunpack.c.h.b16 %v4964
          %v5098 = vunpack.c.l.b16 %v4965
          %v5099 = vunpack.c.h.b16 %v4965
          %v5100 = vunpack.c.l.b16 %v4966
          %v5101 = vunpack.c.h.b16 %v4966
          %v5102 = vunpack.c.l.b16 %v4967
          %v5103 = vunpack.c.h.b16 %v4967
          %v5104 = vunpack.c.l.b16 %v4968
          %v5105 = vunpack.c.h.b16 %v4968
          %v5106 = vunpack.c.l.b16 %v4969
          %v5107 = vunpack.c.h.b16 %v4969
          %v5108 = vunpack.c.l.b16 %v4970
          %v5109 = vunpack.c.h.b16 %v4970
          %v5110 = vunpack.c.l.b16 %v4971
          %v5111 = vunpack.c.h.b16 %v4971
          %v5112 = vunpack.c.l.b16 %v4972
          %v5113 = vunpack.c.h.b16 %v4972
          %v5114 = vunpack.c.l.b16 %v4973
          %v5115 = vunpack.c.h.b16 %v4973
          %v5116 = vunpack.c.l.b16 %v4974
          %v5117 = vunpack.c.h.b16 %v4974
          %v5118 = vunpack.c.l.b16 %v4975
          %v5119 = vunpack.c.h.b16 %v4975
          %v5120 = vunpack.c.l.b16 %v4976
          %v5121 = vunpack.c.h.b16 %v4976
          %v5122 = vunpack.c.l.b16 %v4977
          %v5123 = vunpack.c.h.b16 %v4977
          %v5124 = vunpack.c.l.b16 %v4978
          %v5125 = vunpack.c.h.b16 %v4978
          %v5126 = vunpack.c.l.b16 %v4979
          %v5127 = vunpack.c.h.b16 %v4979
          %v5128 = vunpack.c.l.b16 %v4980
          %v5129 = vunpack.c.h.b16 %v4980
          %v5130 = vunpack.c.l.b16 %v4981
          %v5131 = vunpack.c.h.b16 %v4981
          %v5132 = vunpack.c.l.b16 %v4982
          %v5133 = vunpack.c.h.b16 %v4982
          %v5134 = vunpack.c.l.b16 %v4983
          %v5135 = vunpack.c.h.b16 %v4983
          %v5136 = vunpack.c.l.b16 %v4984
          %v5137 = vunpack.c.h.b16 %v4984
          %v5138 = vunpack.c.l.b16 %v4985
          %v5139 = vunpack.c.h.b16 %v4985
          %v5140 = vunpack.c.l.b16 %v4986
          %v5141 = vunpack.c.h.b16 %v4986
          %v5142 = vunpack.c.l.b16 %v4987
          %v5143 = vunpack.c.h.b16 %v4987
          %v5144 = vunpack.c.l.b16 %v4988
          %v5145 = vunpack.c.h.b16 %v4988
          %v5146 = vunpack.c.l.b16 %v4989
          %v5147 = vunpack.c.h.b16 %v4989
          %v5148 = vunpack.c.l.b16 %v4990
          %v5149 = vunpack.c.h.b16 %v4990
          %v5150 = vunpack.c.l.b16 %v4991
          %v5151 = vunpack.c.h.b16 %v4991
          %v5152 = vunpack.c.l.b16 %v4992
          %v5153 = vunpack.c.h.b16 %v4992
          %v5154 = vunpack.c.l.b16 %v4993
          %v5155 = vunpack.c.h.b16 %v4993
          %v5156 = vunpack.c.l.b16 %v4994
          %v5157 = vunpack.c.h.b16 %v4994
          %v5158 = vunpack.c.l.b16 %v4995
          %v5159 = vunpack.c.h.b16 %v4995
          %v5160 = vunpack.c.l.b16 %v4996
          %v5161 = vunpack.c.h.b16 %v4996
          %v5162 = vunpack.c.l.b16 %v4997
          %v5163 = vunpack.c.h.b16 %v4997
          %v5164 = vunpack.c.l.b16 %v4998
          %v5165 = vunpack.c.h.b16 %v4998
          %v5166 = vunpack.c.l.b16 %v4999
          %v5167 = vunpack.c.h.b16 %v4999
          %v5168 = vunpack.c.l.b16 %v5000
          %v5169 = vunpack.c.h.b16 %v5000
          %v5170 = vunpack.c.l.b16 %v5001
          %v5171 = vunpack.c.h.b16 %v5001
          %v5172 = vunpack.c.l.b16 %v5002
          %v5173 = vunpack.c.h.b16 %v5002
          %v5174 = vunpack.c.l.b16 %v5003
          %v5175 = vunpack.c.h.b16 %v5003
          %v5176 = vunpack.c.l.b16 %v5004
          %v5177 = vunpack.c.h.b16 %v5004
          %v5178 = vunpack.c.l.b16 %v5005
          %v5179 = vunpack.c.h.b16 %v5005
          %v5180 = vunpack.c.l.b16 %v5006
          %v5181 = vunpack.c.h.b16 %v5006
          %v5182 = vunpack.c.l.b16 %v5007
          %v5183 = vunpack.c.h.b16 %v5007
          %v5184 = vunpack.c.l.b16 %v5008
          %v5185 = vunpack.c.h.b16 %v5008
          %v5186 = vunpack.c.l.b16 %v5009
          %v5187 = vunpack.c.h.b16 %v5009
          %v5188 = vunpack.c.l.b16 %v5010
          %v5189 = vunpack.c.h.b16 %v5010
          %v5190 = vunpack.c.l.b16 %v5011
          %v5191 = vunpack.c.h.b16 %v5011
          %v5192 = vunpack.c.l.b16 %v5012
          %v5193 = vunpack.c.h.b16 %v5012
          %v5194 = vunpack.c.l.b16 %v5013
          %v5195 = vunpack.c.h.b16 %v5013
          %v5196 = vunpack.c.l.b16 %v5014
          %v5197 = vunpack.c.h.b16 %v5014
          %v5198 = vunpack.c.l.b16 %v5015
          %v5199 = vunpack.c.h.b16 %v5015
          %v5200 = vunpack.c.l.b16 %v5016
          %v5201 = vunpack.c.h.b16 %v5016
          %v5202 = vunpack.c.l.b16 %v5017
          %v5203 = vunpack.c.h.b16 %v5017
          %v5204 = vunpack.c.l.b16 %v5018
          %v5205 = vunpack.c.h.b16 %v5018
          %v5206 = vunpack.c.l.b16 %v5019
          %v5207 = vunpack.c.h.b16 %v5019
          %v5208 = vunpack.c.l.b16 %v5020
          %v5209 = vunpack.c.h.b16 %v5020
          %v5210 = vunpack.c.l.b16 %v5021
          %v5211 = vunpack.c.h.b16 %v5021
          %v5212 = vunpack.c.l.b16 %v5022
          %v5213 = vunpack.c.h.b16 %v5022
          %v5214 = vunpack.c.l.b16 %v5023
          %v5215 = vunpack.c.h.b16 %v5023
          %v5216 = vpack.c.b16 %v5092, %v5088
          %v5217 = vpack.c.b16 %v5093, %v5089
          %v5218 = vpack.c.b16 %v5094, %v5090
          %v5219 = vpack.c.b16 %v5095, %v5091
          %v5220 = vpack.c.b16 %v5100, %v5096
          %v5221 = vpack.c.b16 %v5101, %v5097
          %v5222 = vpack.c.b16 %v5102, %v5098
          %v5223 = vpack.c.b16 %v5103, %v5099
          %v5224 = vpack.c.b16 %v5108, %v5104
          %v5225 = vpack.c.b16 %v5109, %v5105
          %v5226 = vpack.c.b16 %v5110, %v5106
          %v5227 = vpack.c.b16 %v5111, %v5107
          %v5228 = vpack.c.b16 %v5116, %v5112
          %v5229 = vpack.c.b16 %v5117, %v5113
          %v5230 = vpack.c.b16 %v5118, %v5114
          %v5231 = vpack.c.b16 %v5119, %v5115
          %v5232 = vpack.c.b16 %v5124, %v5120
          %v5233 = vpack.c.b16 %v5125, %v5121
          %v5234 = vpack.c.b16 %v5126, %v5122
          %v5235 = vpack.c.b16 %v5127, %v5123
          %v5236 = vpack.c.b16 %v5132, %v5128
          %v5237 = vpack.c.b16 %v5133, %v5129
          %v5238 = vpack.c.b16 %v5134, %v5130
          %v5239 = vpack.c.b16 %v5135, %v5131
          %v5240 = vpack.c.b16 %v5140, %v5136
          %v5241 = vpack.c.b16 %v5141, %v5137
          %v5242 = vpack.c.b16 %v5142, %v5138
          %v5243 = vpack.c.b16 %v5143, %v5139
          %v5244 = vpack.c.b16 %v5148, %v5144
          %v5245 = vpack.c.b16 %v5149, %v5145
          %v5246 = vpack.c.b16 %v5150, %v5146
          %v5247 = vpack.c.b16 %v5151, %v5147
          %v5248 = vpack.c.b16 %v5156, %v5152
          %v5249 = vpack.c.b16 %v5157, %v5153
          %v5250 = vpack.c.b16 %v5158, %v5154
          %v5251 = vpack.c.b16 %v5159, %v5155
          %v5252 = vpack.c.b16 %v5164, %v5160
          %v5253 = vpack.c.b16 %v5165, %v5161
          %v5254 = vpack.c.b16 %v5166, %v5162
          %v5255 = vpack.c.b16 %v5167, %v5163
          %v5256 = vpack.c.b16 %v5172, %v5168
          %v5257 = vpack.c.b16 %v5173, %v5169
          %v5258 = vpack.c.b16 %v5174, %v5170
          %v5259 = vpack.c.b16 %v5175, %v5171
          %v5260 = vpack.c.b16 %v5180, %v5176
          %v5261 = vpack.c.b16 %v5181, %v5177
          %v5262 = vpack.c.b16 %v5182, %v5178
          %v5263 = vpack.c.b16 %v5183, %v5179
          %v5264 = vpack.c.b16 %v5188, %v5184
          %v5265 = vpack.c.b16 %v5189, %v5185
          %v5266 = vpack.c.b16 %v5190, %v5186
          %v5267 = vpack.c.b16 %v5191, %v5187
          %v5268 = vpack.c.b16 %v5196, %v5192
          %v5269 = vpack.c.b16 %v5197, %v5193
          %v5270 = vpack.c.b16 %v5198, %v5194
          %v5271 = vpack.c.b16 %v5199, %v5195
          %v5272 = vpack.c.b16 %v5204, %v5200
          %v5273 = vpack.c.b16 %v5205, %v5201
          %v5274 = vpack.c.b16 %v5206, %v5202
          %v5275 = vpack.c.b16 %v5207, %v5203
          %v5276 = vpack.c.b16 %v5212, %v5208
          %v5277 = vpack.c.b16 %v5213, %v5209
          %v5278 = vpack.c.b16 %v5214, %v5210
          %v5279 = vpack.c.b16 %v5215, %v5211
          %5344 = vmatprep.subr.bf16.mxu0 %v5217
          %5345 = vmatpush1.bf16.msra.mxu0 %v5216
          %5346 = vmatprep.subr.bf16.mxu0 %v5221
          %5347 = vmatpush1.bf16.msra.mxu0 %v5220
          %5348 = vmatprep.subr.bf16.mxu0 %v5225
          %5349 = vmatpush1.bf16.msra.mxu0 %v5224
          %5350 = vmatprep.subr.bf16.mxu0 %v5229
          %5351 = vmatpush1.bf16.msra.mxu0 %v5228
          %5352 = vmatprep.subr.bf16.mxu0 %v5233
          %5353 = vmatpush1.bf16.msra.mxu0 %v5232
          %5354 = vmatprep.subr.bf16.mxu0 %v5237
          %5355 = vmatpush1.bf16.msra.mxu0 %v5236
          %5356 = vmatprep.subr.bf16.mxu0 %v5241
          %5357 = vmatpush1.bf16.msra.mxu0 %v5240
          %5358 = vmatprep.subr.bf16.mxu0 %v5245
          %5359 = vmatpush1.bf16.msra.mxu0 %v5244
          %5360 = vmatprep.subr.bf16.mxu0 %v5249
          %5361 = vmatpush1.bf16.msra.mxu0 %v5248
          %5362 = vmatprep.subr.bf16.mxu0 %v5253
          %5363 = vmatpush1.bf16.msra.mxu0 %v5252
          %5364 = vmatprep.subr.bf16.mxu0 %v5257
          %5365 = vmatpush1.bf16.msra.mxu0 %v5256
          %5366 = vmatprep.subr.bf16.mxu0 %v5261
          %5367 = vmatpush1.bf16.msra.mxu0 %v5260
          %5368 = vmatprep.subr.bf16.mxu0 %v5265
          %5369 = vmatpush1.bf16.msra.mxu0 %v5264
          %5370 = vmatprep.subr.bf16.mxu0 %v5269
          %5371 = vmatpush1.bf16.msra.mxu0 %v5268
          %5372 = vmatprep.subr.bf16.mxu0 %v5273
          %5373 = vmatpush1.bf16.msra.mxu0 %v5272
          %5374 = vmatprep.subr.bf16.mxu0 %v5277
          %5375 = vmatpush1.bf16.msra.mxu0 %v5276
          %5376 = vmatprep.mubr.bf16.mxu0 %v4958
          %5377 = vmatmul.mubr.bf16.gmra.mrb[0].mxu0 %v4957
          %v5378 = vpop.f32.mrb[0].mxu0
          %v5379 = vadd.f32 0.0, %v5378
          %v5380 = vpop.f32.mrb[0].mxu0
          %v5381 = vadd.f32 0.0, %v5380
          %v5382 = vpop.f32.mrb[0].mxu0
          %v5383 = vpop.f32.mrb[0].mxu0
          %5384 = vdwg.mxu0
          %5385 = vmatprep.subr.bf16.mxu0 %v5219
          %5386 = vmatpush1.bf16.msra.mxu0 %v5218
          %5387 = vmatprep.subr.bf16.mxu0 %v5223
          %5388 = vmatpush1.bf16.msra.mxu0 %v5222
          %5389 = vmatprep.subr.bf16.mxu0 %v5227
          %5390 = vmatpush1.bf16.msra.mxu0 %v5226
          %5391 = vmatprep.subr.bf16.mxu0 %v5231
          %5392 = vmatpush1.bf16.msra.mxu0 %v5230
          %5393 = vmatprep.subr.bf16.mxu0 %v5235
          %5394 = vmatpush1.bf16.msra.mxu0 %v5234
          %5395 = vmatprep.subr.bf16.mxu0 %v5239
          %5396 = vmatpush1.bf16.msra.mxu0 %v5238
          %5397 = vmatprep.subr.bf16.mxu0 %v5243
          %5398 = vmatpush1.bf16.msra.mxu0 %v5242
          %5399 = vmatprep.subr.bf16.mxu0 %v5247
          %5400 = vmatpush1.bf16.msra.mxu0 %v5246
          %5401 = vmatprep.subr.bf16.mxu0 %v5251
          %5402 = vmatpush1.bf16.msra.mxu0 %v5250
          %5403 = vmatprep.subr.bf16.mxu0 %v5255
          %5404 = vmatpush1.bf16.msra.mxu0 %v5254
          %5405 = vmatprep.subr.bf16.mxu0 %v5259
          %5406 = vmatpush1.bf16.msra.mxu0 %v5258
          %5407 = vmatprep.subr.bf16.mxu0 %v5263
          %5408 = vmatpush1.bf16.msra.mxu0 %v5262
          %5409 = vmatprep.subr.bf16.mxu0 %v5267
          %5410 = vmatpush1.bf16.msra.mxu0 %v5266
          %5411 = vmatprep.subr.bf16.mxu0 %v5271
          %5412 = vmatpush1.bf16.msra.mxu0 %v5270
          %5413 = vmatprep.subr.bf16.mxu0 %v5275
          %5414 = vmatpush1.bf16.msra.mxu0 %v5274
          %5415 = vmatprep.subr.bf16.mxu0 %v5279
          %5416 = vmatpush1.bf16.msra.mxu0 %v5278
          %5417 = vmatprep.mubr.bf16.mxu0 %v4958
          %5418 = vmatmul.mubr.bf16.gmra.mrb[0].mxu0 %v4957
          %v5419 = vpop.f32.mrb[0].mxu0
          %v5420 = vadd.f32 0.0, %v5419
          %v5421 = vpop.f32.mrb[0].mxu0
          %v5422 = vadd.f32 0.0, %v5421
          %v5423 = vpop.f32.mrb[0].mxu0
          %v5424 = vpop.f32.mrb[0].mxu0
          %5425 = vdwg.mxu0
          %v5490 = vunpack.c.l.b16 %v4893
          %v5491 = vunpack.c.h.b16 %v4893
          %v5492 = vunpack.c.l.b16 %v4894
          %v5493 = vunpack.c.h.b16 %v4894
          %v5494 = vunpack.c.l.b16 %v4895
          %v5495 = vunpack.c.h.b16 %v4895
          %v5496 = vunpack.c.l.b16 %v4896
          %v5497 = vunpack.c.h.b16 %v4896
          %v5498 = vunpack.c.l.b16 %v4897
          %v5499 = vunpack.c.h.b16 %v4897
          %v5500 = vunpack.c.l.b16 %v4898
          %v5501 = vunpack.c.h.b16 %v4898
          %v5502 = vunpack.c.l.b16 %v4899
          %v5503 = vunpack.c.h.b16 %v4899
          %v5504 = vunpack.c.l.b16 %v4900
          %v5505 = vunpack.c.h.b16 %v4900
          %v5506 = vunpack.c.l.b16 %v4901
          %v5507 = vunpack.c.h.b16 %v4901
          %v5508 = vunpack.c.l.b16 %v4902
          %v5509 = vunpack.c.h.b16 %v4902
          %v5510 = vunpack.c.l.b16 %v4903
          %v5511 = vunpack.c.h.b16 %v4903
          %v5512 = vunpack.c.l.b16 %v4904
          %v5513 = vunpack.c.h.b16 %v4904
          %v5514 = vunpack.c.l.b16 %v4905
          %v5515 = vunpack.c.h.b16 %v4905
          %v5516 = vunpack.c.l.b16 %v4906
          %v5517 = vunpack.c.h.b16 %v4906
          %v5518 = vunpack.c.l.b16 %v4907
          %v5519 = vunpack.c.h.b16 %v4907
          %v5520 = vunpack.c.l.b16 %v4908
          %v5521 = vunpack.c.h.b16 %v4908
          %v5522 = vunpack.c.l.b16 %v4909
          %v5523 = vunpack.c.h.b16 %v4909
          %v5524 = vunpack.c.l.b16 %v4910
          %v5525 = vunpack.c.h.b16 %v4910
          %v5526 = vunpack.c.l.b16 %v4911
          %v5527 = vunpack.c.h.b16 %v4911
          %v5528 = vunpack.c.l.b16 %v4912
          %v5529 = vunpack.c.h.b16 %v4912
          %v5530 = vunpack.c.l.b16 %v4913
          %v5531 = vunpack.c.h.b16 %v4913
          %v5532 = vunpack.c.l.b16 %v4914
          %v5533 = vunpack.c.h.b16 %v4914
          %v5534 = vunpack.c.l.b16 %v4915
          %v5535 = vunpack.c.h.b16 %v4915
          %v5536 = vunpack.c.l.b16 %v4916
          %v5537 = vunpack.c.h.b16 %v4916
          %v5538 = vunpack.c.l.b16 %v4917
          %v5539 = vunpack.c.h.b16 %v4917
          %v5540 = vunpack.c.l.b16 %v4918
          %v5541 = vunpack.c.h.b16 %v4918
          %v5542 = vunpack.c.l.b16 %v4919
          %v5543 = vunpack.c.h.b16 %v4919
          %v5544 = vunpack.c.l.b16 %v4920
          %v5545 = vunpack.c.h.b16 %v4920
          %v5546 = vunpack.c.l.b16 %v4921
          %v5547 = vunpack.c.h.b16 %v4921
          %v5548 = vunpack.c.l.b16 %v4922
          %v5549 = vunpack.c.h.b16 %v4922
          %v5550 = vunpack.c.l.b16 %v4923
          %v5551 = vunpack.c.h.b16 %v4923
          %v5552 = vunpack.c.l.b16 %v4924
          %v5553 = vunpack.c.h.b16 %v4924
          %v5554 = vunpack.c.l.b16 %v4925
          %v5555 = vunpack.c.h.b16 %v4925
          %v5556 = vunpack.c.l.b16 %v4926
          %v5557 = vunpack.c.h.b16 %v4926
          %v5558 = vunpack.c.l.b16 %v4927
          %v5559 = vunpack.c.h.b16 %v4927
          %v5560 = vunpack.c.l.b16 %v4928
          %v5561 = vunpack.c.h.b16 %v4928
          %v5562 = vunpack.c.l.b16 %v4929
          %v5563 = vunpack.c.h.b16 %v4929
          %v5564 = vunpack.c.l.b16 %v4930
          %v5565 = vunpack.c.h.b16 %v4930
          %v5566 = vunpack.c.l.b16 %v4931
          %v5567 = vunpack.c.h.b16 %v4931
          %v5568 = vunpack.c.l.b16 %v4932
          %v5569 = vunpack.c.h.b16 %v4932
          %v5570 = vunpack.c.l.b16 %v4933
          %v5571 = vunpack.c.h.b16 %v4933
          %v5572 = vunpack.c.l.b16 %v4934
          %v5573 = vunpack.c.h.b16 %v4934
          %v5574 = vunpack.c.l.b16 %v4935
          %v5575 = vunpack.c.h.b16 %v4935
          %v5576 = vunpack.c.l.b16 %v4936
          %v5577 = vunpack.c.h.b16 %v4936
          %v5578 = vunpack.c.l.b16 %v4937
          %v5579 = vunpack.c.h.b16 %v4937
          %v5580 = vunpack.c.l.b16 %v4938
          %v5581 = vunpack.c.h.b16 %v4938
          %v5582 = vunpack.c.l.b16 %v4939
          %v5583 = vunpack.c.h.b16 %v4939
          %v5584 = vunpack.c.l.b16 %v4940
          %v5585 = vunpack.c.h.b16 %v4940
          %v5586 = vunpack.c.l.b16 %v4941
          %v5587 = vunpack.c.h.b16 %v4941
          %v5588 = vunpack.c.l.b16 %v4942
          %v5589 = vunpack.c.h.b16 %v4942
          %v5590 = vunpack.c.l.b16 %v4943
          %v5591 = vunpack.c.h.b16 %v4943
          %v5592 = vunpack.c.l.b16 %v4944
          %v5593 = vunpack.c.h.b16 %v4944
          %v5594 = vunpack.c.l.b16 %v4945
          %v5595 = vunpack.c.h.b16 %v4945
          %v5596 = vunpack.c.l.b16 %v4946
          %v5597 = vunpack.c.h.b16 %v4946
          %v5598 = vunpack.c.l.b16 %v4947
          %v5599 = vunpack.c.h.b16 %v4947
          %v5600 = vunpack.c.l.b16 %v4948
          %v5601 = vunpack.c.h.b16 %v4948
          %v5602 = vunpack.c.l.b16 %v4949
          %v5603 = vunpack.c.h.b16 %v4949
          %v5604 = vunpack.c.l.b16 %v4950
          %v5605 = vunpack.c.h.b16 %v4950
          %v5606 = vunpack.c.l.b16 %v4951
          %v5607 = vunpack.c.h.b16 %v4951
          %v5608 = vunpack.c.l.b16 %v4952
          %v5609 = vunpack.c.h.b16 %v4952
          %v5610 = vunpack.c.l.b16 %v4953
          %v5611 = vunpack.c.h.b16 %v4953
          %v5612 = vunpack.c.l.b16 %v4954
          %v5613 = vunpack.c.h.b16 %v4954
          %v5614 = vunpack.c.l.b16 %v4955
          %v5615 = vunpack.c.h.b16 %v4955
          %v5616 = vunpack.c.l.b16 %v4956
          %v5617 = vunpack.c.h.b16 %v4956
          %v5618 = vpack.c.b16 %v5494, %v5490
          %v5619 = vpack.c.b16 %v5495, %v5491
          %v5620 = vpack.c.b16 %v5496, %v5492
          %v5621 = vpack.c.b16 %v5497, %v5493
          %v5622 = vpack.c.b16 %v5502, %v5498
          %v5623 = vpack.c.b16 %v5503, %v5499
          %v5624 = vpack.c.b16 %v5504, %v5500
          %v5625 = vpack.c.b16 %v5505, %v5501
          %v5626 = vpack.c.b16 %v5510, %v5506
          %v5627 = vpack.c.b16 %v5511, %v5507
          %v5628 = vpack.c.b16 %v5512, %v5508
          %v5629 = vpack.c.b16 %v5513, %v5509
          %v5630 = vpack.c.b16 %v5518, %v5514
          %v5631 = vpack.c.b16 %v5519, %v5515
          %v5632 = vpack.c.b16 %v5520, %v5516
          %v5633 = vpack.c.b16 %v5521, %v5517
          %v5634 = vpack.c.b16 %v5526, %v5522
          %v5635 = vpack.c.b16 %v5527, %v5523
          %v5636 = vpack.c.b16 %v5528, %v5524
          %v5637 = vpack.c.b16 %v5529, %v5525
          %v5638 = vpack.c.b16 %v5534, %v5530
          %v5639 = vpack.c.b16 %v5535, %v5531
          %v5640 = vpack.c.b16 %v5536, %v5532
          %v5641 = vpack.c.b16 %v5537, %v5533
          %v5642 = vpack.c.b16 %v5542, %v5538
          %v5643 = vpack.c.b16 %v5543, %v5539
          %v5644 = vpack.c.b16 %v5544, %v5540
          %v5645 = vpack.c.b16 %v5545, %v5541
          %v5646 = vpack.c.b16 %v5550, %v5546
          %v5647 = vpack.c.b16 %v5551, %v5547
          %v5648 = vpack.c.b16 %v5552, %v5548
          %v5649 = vpack.c.b16 %v5553, %v5549
          %v5650 = vpack.c.b16 %v5558, %v5554
          %v5651 = vpack.c.b16 %v5559, %v5555
          %v5652 = vpack.c.b16 %v5560, %v5556
          %v5653 = vpack.c.b16 %v5561, %v5557
          %v5654 = vpack.c.b16 %v5566, %v5562
          %v5655 = vpack.c.b16 %v5567, %v5563
          %v5656 = vpack.c.b16 %v5568, %v5564
          %v5657 = vpack.c.b16 %v5569, %v5565
          %v5658 = vpack.c.b16 %v5574, %v5570
          %v5659 = vpack.c.b16 %v5575, %v5571
          %v5660 = vpack.c.b16 %v5576, %v5572
          %v5661 = vpack.c.b16 %v5577, %v5573
          %v5662 = vpack.c.b16 %v5582, %v5578
          %v5663 = vpack.c.b16 %v5583, %v5579
          %v5664 = vpack.c.b16 %v5584, %v5580
          %v5665 = vpack.c.b16 %v5585, %v5581
          %v5666 = vpack.c.b16 %v5590, %v5586
          %v5667 = vpack.c.b16 %v5591, %v5587
          %v5668 = vpack.c.b16 %v5592, %v5588
          %v5669 = vpack.c.b16 %v5593, %v5589
          %v5670 = vpack.c.b16 %v5598, %v5594
          %v5671 = vpack.c.b16 %v5599, %v5595
          %v5672 = vpack.c.b16 %v5600, %v5596
          %v5673 = vpack.c.b16 %v5601, %v5597
          %v5674 = vpack.c.b16 %v5606, %v5602
          %v5675 = vpack.c.b16 %v5607, %v5603
          %v5676 = vpack.c.b16 %v5608, %v5604
          %v5677 = vpack.c.b16 %v5609, %v5605
          %v5678 = vpack.c.b16 %v5614, %v5610
          %v5679 = vpack.c.b16 %v5615, %v5611
          %v5680 = vpack.c.b16 %v5616, %v5612
          %v5681 = vpack.c.b16 %v5617, %v5613
          %5746 = vmatprep.subr.bf16.mxu0 %v5619
          %5747 = vmatpush1.bf16.msra.mxu0 %v5618
          %5748 = vmatprep.subr.bf16.mxu0 %v5623
          %5749 = vmatpush1.bf16.msra.mxu0 %v5622
          %5750 = vmatprep.subr.bf16.mxu0 %v5627
          %5751 = vmatpush1.bf16.msra.mxu0 %v5626
          %5752 = vmatprep.subr.bf16.mxu0 %v5631
          %5753 = vmatpush1.bf16.msra.mxu0 %v5630
          %5754 = vmatprep.subr.bf16.mxu0 %v5635
          %5755 = vmatpush1.bf16.msra.mxu0 %v5634
          %5756 = vmatprep.subr.bf16.mxu0 %v5639
          %5757 = vmatpush1.bf16.msra.mxu0 %v5638
          %5758 = vmatprep.subr.bf16.mxu0 %v5643
          %5759 = vmatpush1.bf16.msra.mxu0 %v5642
          %5760 = vmatprep.subr.bf16.mxu0 %v5647
          %5761 = vmatpush1.bf16.msra.mxu0 %v5646
          %5762 = vmatprep.subr.bf16.mxu0 %v5651
          %5763 = vmatpush1.bf16.msra.mxu0 %v5650
          %5764 = vmatprep.subr.bf16.mxu0 %v5655
          %5765 = vmatpush1.bf16.msra.mxu0 %v5654
          %5766 = vmatprep.subr.bf16.mxu0 %v5659
          %5767 = vmatpush1.bf16.msra.mxu0 %v5658
          %5768 = vmatprep.subr.bf16.mxu0 %v5663
          %5769 = vmatpush1.bf16.msra.mxu0 %v5662
          %5770 = vmatprep.subr.bf16.mxu0 %v5667
          %5771 = vmatpush1.bf16.msra.mxu0 %v5666
          %5772 = vmatprep.subr.bf16.mxu0 %v5671
          %5773 = vmatpush1.bf16.msra.mxu0 %v5670
          %5774 = vmatprep.subr.bf16.mxu0 %v5675
          %5775 = vmatpush1.bf16.msra.mxu0 %v5674
          %5776 = vmatprep.subr.bf16.mxu0 %v5679
          %5777 = vmatpush1.bf16.msra.mxu0 %v5678
          %5778 = vmatprep.mubr.bf16.mxu0 %v4892
          %5779 = vmatmul.mubr.bf16.gmra.mrb[0].mxu0 %v4891
          %v5780 = vpop.f32.mrb[0].mxu0
          %v5781 = vadd.f32 %v5379, %v5780
          %v5782 = vpop.f32.mrb[0].mxu0
          %v5783 = vadd.f32 %v5381, %v5782
          %v5784 = vpop.f32.mrb[0].mxu0
          %v5785 = vpop.f32.mrb[0].mxu0
          %5786 = vdwg.mxu0
          %5787 = vmatprep.subr.bf16.mxu0 %v5621
          %5788 = vmatpush1.bf16.msra.mxu0 %v5620
          %5789 = vmatprep.subr.bf16.mxu0 %v5625
          %5790 = vmatpush1.bf16.msra.mxu0 %v5624
          %5791 = vmatprep.subr.bf16.mxu0 %v5629
          %5792 = vmatpush1.bf16.msra.mxu0 %v5628
          %5793 = vmatprep.subr.bf16.mxu0 %v5633
          %5794 = vmatpush1.bf16.msra.mxu0 %v5632
          %5795 = vmatprep.subr.bf16.mxu0 %v5637
          %5796 = vmatpush1.bf16.msra.mxu0 %v5636
          %5797 = vmatprep.subr.bf16.mxu0 %v5641
          %5798 = vmatpush1.bf16.msra.mxu0 %v5640
          %5799 = vmatprep.subr.bf16.mxu0 %v5645
          %5800 = vmatpush1.bf16.msra.mxu0 %v5644
          %5801 = vmatprep.subr.bf16.mxu0 %v5649
          %5802 = vmatpush1.bf16.msra.mxu0 %v5648
          %5803 = vmatprep.subr.bf16.mxu0 %v5653
          %5804 = vmatpush1.bf16.msra.mxu0 %v5652
          %5805 = vmatprep.subr.bf16.mxu0 %v5657
          %5806 = vmatpush1.bf16.msra.mxu0 %v5656
          %5807 = vmatprep.subr.bf16.mxu0 %v5661
          %5808 = vmatpush1.bf16.msra.mxu0 %v5660
          %5809 = vmatprep.subr.bf16.mxu0 %v5665
          %5810 = vmatpush1.bf16.msra.mxu0 %v5664
          %5811 = vmatprep.subr.bf16.mxu0 %v5669
          %5812 = vmatpush1.bf16.msra.mxu0 %v5668
          %5813 = vmatprep.subr.bf16.mxu0 %v5673
          %5814 = vmatpush1.bf16.msra.mxu0 %v5672
          %5815 = vmatprep.subr.bf16.mxu0 %v5677
          %5816 = vmatpush1.bf16.msra.mxu0 %v5676
          %5817 = vmatprep.subr.bf16.mxu0 %v5681
          %5818 = vmatpush1.bf16.msra.mxu0 %v5680
          %5819 = vmatprep.mubr.bf16.mxu0 %v4892
          %5820 = vmatmul.mubr.bf16.gmra.mrb[0].mxu0 %v4891
          %v5821 = vpop.f32.mrb[0].mxu0
          %v5822 = vadd.f32 %v5420, %v5821
          %v5823 = vpop.f32.mrb[0].mxu0
          %v5824 = vadd.f32 %v5422, %v5823
          %v5825 = vpop.f32.mrb[0].mxu0
          %v5826 = vpop.f32.mrb[0].mxu0
          %5827 = vdwg.mxu0
          %v5828 = vpack.c.bf16 %v4889, %v4889
          %v5829 = vpack.c.bf16 %v4890, %v4890
          %s5830 = scalar_lea.vmem [#allocation37], 1024
          %v5831 = vld [vmem:[%s5830] sm:$0xff]
          %v5832 = vld [vmem:[%s5830 + $0x8] sm:$0xff]
          %v5833 = vld [vmem:[%s5830 + $0x10] sm:$0xff]
          %v5834 = vld [vmem:[%s5830 + $0x18] sm:$0xff]
          %v5835 = vld [vmem:[%s5830 + $0x20] sm:$0xff]
          %v5836 = vld [vmem:[%s5830 + $0x28] sm:$0xff]
          %v5837 = vld [vmem:[%s5830 + $0x30] sm:$0xff]
          %v5838 = vld [vmem:[%s5830 + $0x38] sm:$0xff]
          %v5839 = vld [vmem:[%s5830 + $0x40] sm:$0xff]
          %v5840 = vld [vmem:[%s5830 + $0x48] sm:$0xff]
          %v5841 = vld [vmem:[%s5830 + $0x50] sm:$0xff]
          %v5842 = vld [vmem:[%s5830 + $0x58] sm:$0xff]
          %v5843 = vld [vmem:[%s5830 + $0x60] sm:$0xff]
          %v5844 = vld [vmem:[%s5830 + $0x68] sm:$0xff]
          %v5845 = vld [vmem:[%s5830 + $0x70] sm:$0xff]
          %v5846 = vld [vmem:[%s5830 + $0x78] sm:$0xff]
          %v5847 = vld [vmem:[%s5830 + $0x80] sm:$0xff]
          %v5848 = vld [vmem:[%s5830 + $0x88] sm:$0xff]
          %v5849 = vld [vmem:[%s5830 + $0x90] sm:$0xff]
          %v5850 = vld [vmem:[%s5830 + $0x98] sm:$0xff]
          %v5851 = vld [vmem:[%s5830 + $0xa0] sm:$0xff]
          %v5852 = vld [vmem:[%s5830 + $0xa8] sm:$0xff]
          %v5853 = vld [vmem:[%s5830 + $0xb0] sm:$0xff]
          %v5854 = vld [vmem:[%s5830 + $0xb8] sm:$0xff]
          %v5855 = vld [vmem:[%s5830 + $0xc0] sm:$0xff]
          %v5856 = vld [vmem:[%s5830 + $0xc8] sm:$0xff]
          %v5857 = vld [vmem:[%s5830 + $0xd0] sm:$0xff]
          %v5858 = vld [vmem:[%s5830 + $0xd8] sm:$0xff]
          %v5859 = vld [vmem:[%s5830 + $0xe0] sm:$0xff]
          %v5860 = vld [vmem:[%s5830 + $0xe8] sm:$0xff]
          %v5861 = vld [vmem:[%s5830 + $0xf0] sm:$0xff]
          %v5862 = vld [vmem:[%s5830 + $0xf8] sm:$0xff]
          %v5863 = vld [vmem:[%s5830 + $0x100] sm:$0xff]
          %v5864 = vld [vmem:[%s5830 + $0x108] sm:$0xff]
          %v5865 = vld [vmem:[%s5830 + $0x110] sm:$0xff]
          %v5866 = vld [vmem:[%s5830 + $0x118] sm:$0xff]
          %v5867 = vld [vmem:[%s5830 + $0x120] sm:$0xff]
          %v5868 = vld [vmem:[%s5830 + $0x128] sm:$0xff]
          %v5869 = vld [vmem:[%s5830 + $0x130] sm:$0xff]
          %v5870 = vld [vmem:[%s5830 + $0x138] sm:$0xff]
          %v5871 = vld [vmem:[%s5830 + $0x140] sm:$0xff]
          %v5872 = vld [vmem:[%s5830 + $0x148] sm:$0xff]
          %v5873 = vld [vmem:[%s5830 + $0x150] sm:$0xff]
          %v5874 = vld [vmem:[%s5830 + $0x158] sm:$0xff]
          %v5875 = vld [vmem:[%s5830 + $0x160] sm:$0xff]
          %v5876 = vld [vmem:[%s5830 + $0x168] sm:$0xff]
          %v5877 = vld [vmem:[%s5830 + $0x170] sm:$0xff]
          %v5878 = vld [vmem:[%s5830 + $0x178] sm:$0xff]
          %v5879 = vld [vmem:[%s5830 + $0x180] sm:$0xff]
          %v5880 = vld [vmem:[%s5830 + $0x188] sm:$0xff]
          %v5881 = vld [vmem:[%s5830 + $0x190] sm:$0xff]
          %v5882 = vld [vmem:[%s5830 + $0x198] sm:$0xff]
          %v5883 = vld [vmem:[%s5830 + $0x1a0] sm:$0xff]
          %v5884 = vld [vmem:[%s5830 + $0x1a8] sm:$0xff]
          %v5885 = vld [vmem:[%s5830 + $0x1b0] sm:$0xff]
          %v5886 = vld [vmem:[%s5830 + $0x1b8] sm:$0xff]
          %v5887 = vld [vmem:[%s5830 + $0x1c0] sm:$0xff]
          %v5888 = vld [vmem:[%s5830 + $0x1c8] sm:$0xff]
          %v5889 = vld [vmem:[%s5830 + $0x1d0] sm:$0xff]
          %v5890 = vld [vmem:[%s5830 + $0x1d8] sm:$0xff]
          %v5891 = vld [vmem:[%s5830 + $0x1e0] sm:$0xff]
          %v5892 = vld [vmem:[%s5830 + $0x1e8] sm:$0xff]
          %v5893 = vld [vmem:[%s5830 + $0x1f0] sm:$0xff]
          %v5894 = vld [vmem:[%s5830 + $0x1f8] sm:$0xff]
          %v5959 = vunpack.c.l.b16 %v5831
          %v5960 = vunpack.c.h.b16 %v5831
          %v5961 = vunpack.c.l.b16 %v5832
          %v5962 = vunpack.c.h.b16 %v5832
          %v5963 = vunpack.c.l.b16 %v5833
          %v5964 = vunpack.c.h.b16 %v5833
          %v5965 = vunpack.c.l.b16 %v5834
          %v5966 = vunpack.c.h.b16 %v5834
          %v5967 = vunpack.c.l.b16 %v5835
          %v5968 = vunpack.c.h.b16 %v5835
          %v5969 = vunpack.c.l.b16 %v5836
          %v5970 = vunpack.c.h.b16 %v5836
          %v5971 = vunpack.c.l.b16 %v5837
          %v5972 = vunpack.c.h.b16 %v5837
          %v5973 = vunpack.c.l.b16 %v5838
          %v5974 = vunpack.c.h.b16 %v5838
          %v5975 = vunpack.c.l.b16 %v5839
          %v5976 = vunpack.c.h.b16 %v5839
          %v5977 = vunpack.c.l.b16 %v5840
          %v5978 = vunpack.c.h.b16 %v5840
          %v5979 = vunpack.c.l.b16 %v5841
          %v5980 = vunpack.c.h.b16 %v5841
          %v5981 = vunpack.c.l.b16 %v5842
          %v5982 = vunpack.c.h.b16 %v5842
          %v5983 = vunpack.c.l.b16 %v5843
          %v5984 = vunpack.c.h.b16 %v5843
          %v5985 = vunpack.c.l.b16 %v5844
          %v5986 = vunpack.c.h.b16 %v5844
          %v5987 = vunpack.c.l.b16 %v5845
          %v5988 = vunpack.c.h.b16 %v5845
          %v5989 = vunpack.c.l.b16 %v5846
          %v5990 = vunpack.c.h.b16 %v5846
          %v5991 = vunpack.c.l.b16 %v5847
          %v5992 = vunpack.c.h.b16 %v5847
          %v5993 = vunpack.c.l.b16 %v5848
          %v5994 = vunpack.c.h.b16 %v5848
          %v5995 = vunpack.c.l.b16 %v5849
          %v5996 = vunpack.c.h.b16 %v5849
          %v5997 = vunpack.c.l.b16 %v5850
          %v5998 = vunpack.c.h.b16 %v5850
          %v5999 = vunpack.c.l.b16 %v5851
          %v6000 = vunpack.c.h.b16 %v5851
          %v6001 = vunpack.c.l.b16 %v5852
          %v6002 = vunpack.c.h.b16 %v5852
          %v6003 = vunpack.c.l.b16 %v5853
          %v6004 = vunpack.c.h.b16 %v5853
          %v6005 = vunpack.c.l.b16 %v5854
          %v6006 = vunpack.c.h.b16 %v5854
          %v6007 = vunpack.c.l.b16 %v5855
          %v6008 = vunpack.c.h.b16 %v5855
          %v6009 = vunpack.c.l.b16 %v5856
          %v6010 = vunpack.c.h.b16 %v5856
          %v6011 = vunpack.c.l.b16 %v5857
          %v6012 = vunpack.c.h.b16 %v5857
          %v6013 = vunpack.c.l.b16 %v5858
          %v6014 = vunpack.c.h.b16 %v5858
          %v6015 = vunpack.c.l.b16 %v5859
          %v6016 = vunpack.c.h.b16 %v5859
          %v6017 = vunpack.c.l.b16 %v5860
          %v6018 = vunpack.c.h.b16 %v5860
          %v6019 = vunpack.c.l.b16 %v5861
          %v6020 = vunpack.c.h.b16 %v5861
          %v6021 = vunpack.c.l.b16 %v5862
          %v6022 = vunpack.c.h.b16 %v5862
          %v6023 = vunpack.c.l.b16 %v5863
          %v6024 = vunpack.c.h.b16 %v5863
          %v6025 = vunpack.c.l.b16 %v5864
          %v6026 = vunpack.c.h.b16 %v5864
          %v6027 = vunpack.c.l.b16 %v5865
          %v6028 = vunpack.c.h.b16 %v5865
          %v6029 = vunpack.c.l.b16 %v5866
          %v6030 = vunpack.c.h.b16 %v5866
          %v6031 = vunpack.c.l.b16 %v5867
          %v6032 = vunpack.c.h.b16 %v5867
          %v6033 = vunpack.c.l.b16 %v5868
          %v6034 = vunpack.c.h.b16 %v5868
          %v6035 = vunpack.c.l.b16 %v5869
          %v6036 = vunpack.c.h.b16 %v5869
          %v6037 = vunpack.c.l.b16 %v5870
          %v6038 = vunpack.c.h.b16 %v5870
          %v6039 = vunpack.c.l.b16 %v5871
          %v6040 = vunpack.c.h.b16 %v5871
          %v6041 = vunpack.c.l.b16 %v5872
          %v6042 = vunpack.c.h.b16 %v5872
          %v6043 = vunpack.c.l.b16 %v5873
          %v6044 = vunpack.c.h.b16 %v5873
          %v6045 = vunpack.c.l.b16 %v5874
          %v6046 = vunpack.c.h.b16 %v5874
          %v6047 = vunpack.c.l.b16 %v5875
          %v6048 = vunpack.c.h.b16 %v5875
          %v6049 = vunpack.c.l.b16 %v5876
          %v6050 = vunpack.c.h.b16 %v5876
          %v6051 = vunpack.c.l.b16 %v5877
          %v6052 = vunpack.c.h.b16 %v5877
          %v6053 = vunpack.c.l.b16 %v5878
          %v6054 = vunpack.c.h.b16 %v5878
          %v6055 = vunpack.c.l.b16 %v5879
          %v6056 = vunpack.c.h.b16 %v5879
          %v6057 = vunpack.c.l.b16 %v5880
          %v6058 = vunpack.c.h.b16 %v5880
          %v6059 = vunpack.c.l.b16 %v5881
          %v6060 = vunpack.c.h.b16 %v5881
          %v6061 = vunpack.c.l.b16 %v5882
          %v6062 = vunpack.c.h.b16 %v5882
          %v6063 = vunpack.c.l.b16 %v5883
          %v6064 = vunpack.c.h.b16 %v5883
          %v6065 = vunpack.c.l.b16 %v5884
          %v6066 = vunpack.c.h.b16 %v5884
          %v6067 = vunpack.c.l.b16 %v5885
          %v6068 = vunpack.c.h.b16 %v5885
          %v6069 = vunpack.c.l.b16 %v5886
          %v6070 = vunpack.c.h.b16 %v5886
          %v6071 = vunpack.c.l.b16 %v5887
          %v6072 = vunpack.c.h.b16 %v5887
          %v6073 = vunpack.c.l.b16 %v5888
          %v6074 = vunpack.c.h.b16 %v5888
          %v6075 = vunpack.c.l.b16 %v5889
          %v6076 = vunpack.c.h.b16 %v5889
          %v6077 = vunpack.c.l.b16 %v5890
          %v6078 = vunpack.c.h.b16 %v5890
          %v6079 = vunpack.c.l.b16 %v5891
          %v6080 = vunpack.c.h.b16 %v5891
          %v6081 = vunpack.c.l.b16 %v5892
          %v6082 = vunpack.c.h.b16 %v5892
          %v6083 = vunpack.c.l.b16 %v5893
          %v6084 = vunpack.c.h.b16 %v5893
          %v6085 = vunpack.c.l.b16 %v5894
          %v6086 = vunpack.c.h.b16 %v5894
          %v6087 = vpack.c.b16 %v5963, %v5959
          %v6088 = vpack.c.b16 %v5964, %v5960
          %v6089 = vpack.c.b16 %v5965, %v5961
          %v6090 = vpack.c.b16 %v5966, %v5962
          %v6091 = vpack.c.b16 %v5971, %v5967
          %v6092 = vpack.c.b16 %v5972, %v5968
          %v6093 = vpack.c.b16 %v5973, %v5969
          %v6094 = vpack.c.b16 %v5974, %v5970
          %v6095 = vpack.c.b16 %v5979, %v5975
          %v6096 = vpack.c.b16 %v5980, %v5976
          %v6097 = vpack.c.b16 %v5981, %v5977
          %v6098 = vpack.c.b16 %v5982, %v5978
          %v6099 = vpack.c.b16 %v5987, %v5983
          %v6100 = vpack.c.b16 %v5988, %v5984
          %v6101 = vpack.c.b16 %v5989, %v5985
          %v6102 = vpack.c.b16 %v5990, %v5986
          %v6103 = vpack.c.b16 %v5995, %v5991
          %v6104 = vpack.c.b16 %v5996, %v5992
          %v6105 = vpack.c.b16 %v5997, %v5993
          %v6106 = vpack.c.b16 %v5998, %v5994
          %v6107 = vpack.c.b16 %v6003, %v5999
          %v6108 = vpack.c.b16 %v6004, %v6000
          %v6109 = vpack.c.b16 %v6005, %v6001
          %v6110 = vpack.c.b16 %v6006, %v6002
          %v6111 = vpack.c.b16 %v6011, %v6007
          %v6112 = vpack.c.b16 %v6012, %v6008
          %v6113 = vpack.c.b16 %v6013, %v6009
          %v6114 = vpack.c.b16 %v6014, %v6010
          %v6115 = vpack.c.b16 %v6019, %v6015
          %v6116 = vpack.c.b16 %v6020, %v6016
          %v6117 = vpack.c.b16 %v6021, %v6017
          %v6118 = vpack.c.b16 %v6022, %v6018
          %v6119 = vpack.c.b16 %v6027, %v6023
          %v6120 = vpack.c.b16 %v6028, %v6024
          %v6121 = vpack.c.b16 %v6029, %v6025
          %v6122 = vpack.c.b16 %v6030, %v6026
          %v6123 = vpack.c.b16 %v6035, %v6031
          %v6124 = vpack.c.b16 %v6036, %v6032
          %v6125 = vpack.c.b16 %v6037, %v6033
          %v6126 = vpack.c.b16 %v6038, %v6034
          %v6127 = vpack.c.b16 %v6043, %v6039
          %v6128 = vpack.c.b16 %v6044, %v6040
          %v6129 = vpack.c.b16 %v6045, %v6041
          %v6130 = vpack.c.b16 %v6046, %v6042
          %v6131 = vpack.c.b16 %v6051, %v6047
          %v6132 = vpack.c.b16 %v6052, %v6048
          %v6133 = vpack.c.b16 %v6053, %v6049
          %v6134 = vpack.c.b16 %v6054, %v6050
          %v6135 = vpack.c.b16 %v6059, %v6055
          %v6136 = vpack.c.b16 %v6060, %v6056
          %v6137 = vpack.c.b16 %v6061, %v6057
          %v6138 = vpack.c.b16 %v6062, %v6058
          %v6139 = vpack.c.b16 %v6067, %v6063
          %v6140 = vpack.c.b16 %v6068, %v6064
          %v6141 = vpack.c.b16 %v6069, %v6065
          %v6142 = vpack.c.b16 %v6070, %v6066
          %v6143 = vpack.c.b16 %v6075, %v6071
          %v6144 = vpack.c.b16 %v6076, %v6072
          %v6145 = vpack.c.b16 %v6077, %v6073
          %v6146 = vpack.c.b16 %v6078, %v6074
          %v6147 = vpack.c.b16 %v6083, %v6079
          %v6148 = vpack.c.b16 %v6084, %v6080
          %v6149 = vpack.c.b16 %v6085, %v6081
          %v6150 = vpack.c.b16 %v6086, %v6082
          %6215 = vmatprep.subr.bf16.mxu0 %v6088
          %6216 = vmatpush1.bf16.msra.mxu0 %v6087
          %6217 = vmatprep.subr.bf16.mxu0 %v6092
          %6218 = vmatpush1.bf16.msra.mxu0 %v6091
          %6219 = vmatprep.subr.bf16.mxu0 %v6096
          %6220 = vmatpush1.bf16.msra.mxu0 %v6095
          %6221 = vmatprep.subr.bf16.mxu0 %v6100
          %6222 = vmatpush1.bf16.msra.mxu0 %v6099
          %6223 = vmatprep.subr.bf16.mxu0 %v6104
          %6224 = vmatpush1.bf16.msra.mxu0 %v6103
          %6225 = vmatprep.subr.bf16.mxu0 %v6108
          %6226 = vmatpush1.bf16.msra.mxu0 %v6107
          %6227 = vmatprep.subr.bf16.mxu0 %v6112
          %6228 = vmatpush1.bf16.msra.mxu0 %v6111
          %6229 = vmatprep.subr.bf16.mxu0 %v6116
          %6230 = vmatpush1.bf16.msra.mxu0 %v6115
          %6231 = vmatprep.subr.bf16.mxu0 %v6120
          %6232 = vmatpush1.bf16.msra.mxu0 %v6119
          %6233 = vmatprep.subr.bf16.mxu0 %v6124
          %6234 = vmatpush1.bf16.msra.mxu0 %v6123
          %6235 = vmatprep.subr.bf16.mxu0 %v6128
          %6236 = vmatpush1.bf16.msra.mxu0 %v6127
          %6237 = vmatprep.subr.bf16.mxu0 %v6132
          %6238 = vmatpush1.bf16.msra.mxu0 %v6131
          %6239 = vmatprep.subr.bf16.mxu0 %v6136
          %6240 = vmatpush1.bf16.msra.mxu0 %v6135
          %6241 = vmatprep.subr.bf16.mxu0 %v6140
          %6242 = vmatpush1.bf16.msra.mxu0 %v6139
          %6243 = vmatprep.subr.bf16.mxu0 %v6144
          %6244 = vmatpush1.bf16.msra.mxu0 %v6143
          %6245 = vmatprep.subr.bf16.mxu0 %v6148
          %6246 = vmatpush1.bf16.msra.mxu0 %v6147
          %6247 = vmatprep.mubr.bf16.mxu0 %v5829
          %6248 = vmatmul.mubr.bf16.gmra.mrb[0].mxu0 %v5828
          %v6249 = vpop.f32.mrb[0].mxu0
          %v6250 = vadd.f32 0.0, %v6249
          %v6251 = vpop.f32.mrb[0].mxu0
          %v6252 = vadd.f32 0.0, %v6251
          %v6253 = vpop.f32.mrb[0].mxu0
          %v6254 = vpop.f32.mrb[0].mxu0
          %6255 = vdwg.mxu0
          %6256 = vmatprep.subr.bf16.mxu0 %v6090
          %6257 = vmatpush1.bf16.msra.mxu0 %v6089
          %6258 = vmatprep.subr.bf16.mxu0 %v6094
          %6259 = vmatpush1.bf16.msra.mxu0 %v6093
          %6260 = vmatprep.subr.bf16.mxu0 %v6098
          %6261 = vmatpush1.bf16.msra.mxu0 %v6097
          %6262 = vmatprep.subr.bf16.mxu0 %v6102
          %6263 = vmatpush1.bf16.msra.mxu0 %v6101
          %6264 = vmatprep.subr.bf16.mxu0 %v6106
          %6265 = vmatpush1.bf16.msra.mxu0 %v6105
          %6266 = vmatprep.subr.bf16.mxu0 %v6110
          %6267 = vmatpush1.bf16.msra.mxu0 %v6109
          %6268 = vmatprep.subr.bf16.mxu0 %v6114
          %6269 = vmatpush1.bf16.msra.mxu0 %v6113
          %6270 = vmatprep.subr.bf16.mxu0 %v6118
          %6271 = vmatpush1.bf16.msra.mxu0 %v6117
          %6272 = vmatprep.subr.bf16.mxu0 %v6122
          %6273 = vmatpush1.bf16.msra.mxu0 %v6121
          %6274 = vmatprep.subr.bf16.mxu0 %v6126
          %6275 = vmatpush1.bf16.msra.mxu0 %v6125
          %6276 = vmatprep.subr.bf16.mxu0 %v6130
          %6277 = vmatpush1.bf16.msra.mxu0 %v6129
          %6278 = vmatprep.subr.bf16.mxu0 %v6134
          %6279 = vmatpush1.bf16.msra.mxu0 %v6133
          %6280 = vmatprep.subr.bf16.mxu0 %v6138
          %6281 = vmatpush1.bf16.msra.mxu0 %v6137
          %6282 = vmatprep.subr.bf16.mxu0 %v6142
          %6283 = vmatpush1.bf16.msra.mxu0 %v6141
          %6284 = vmatprep.subr.bf16.mxu0 %v6146
          %6285 = vmatpush1.bf16.msra.mxu0 %v6145
          %6286 = vmatprep.subr.bf16.mxu0 %v6150
          %6287 = vmatpush1.bf16.msra.mxu0 %v6149
          %6288 = vmatprep.mubr.bf16.mxu0 %v5829
          %6289 = vmatmul.mubr.bf16.gmra.mrb[0].mxu0 %v5828
          %v6290 = vpop.f32.mrb[0].mxu0
          %v6291 = vadd.f32 0.0, %v6290
          %v6292 = vpop.f32.mrb[0].mxu0
          %v6293 = vadd.f32 0.0, %v6292
          %v6294 = vpop.f32.mrb[0].mxu0
          %v6295 = vpop.f32.mrb[0].mxu0
          %6296 = vdwg.mxu0
          %v6297 = vadd.f32 %v5781, %v6250
          %v6298 = vadd.f32 %v5783, %v6252
          %v6299 = vadd.f32 %v5822, %v6291
          %v6300 = vadd.f32 %v5824, %v6293
          %v6301 = vld [vmem:[#allocation39] sm:$0xf]
          %v6303 = vlaneseq
          %v6304 = vshrl.u32 %v6303, 7
          %v6305 = vsub.s32 0, %v6304
          %v6306 = vrot.slane %v6301, %v6305
          %v6307 = vlaneseq
          %v6308 = vshrl.u32 %v6307, 7
          %v6309 = vsub.s32 1, %v6308
          %v6310 = vrot.slane %v6301, %v6309
          %v6311 = vlaneseq
          %v6312 = vshrl.u32 %v6311, 7
          %v6313 = vsub.s32 2, %v6312
          %v6314 = vrot.slane %v6301, %v6313
          %v6315 = vlaneseq
          %v6316 = vshrl.u32 %v6315, 7
          %v6317 = vsub.s32 3, %v6316
          %v6318 = vrot.slane %v6301, %v6317
          %v6323 = vmul.f32 %v6297, %v6306
          %v6324 = vmul.f32 %v6298, %v6310
          %v6325 = vmul.f32 %v6299, %v6314
          %v6326 = vmul.f32 %v6300, %v6318
          %v6327 = vld [vmem:[#allocation40] sm:$0xf]
          %v6329 = vlaneseq
          %v6330 = vshrl.u32 %v6329, 7
          %v6331 = vsub.s32 0, %v6330
          %v6332 = vrot.slane %v6327, %v6331
          %v6333 = vlaneseq
          %v6334 = vshrl.u32 %v6333, 7
          %v6335 = vsub.s32 1, %v6334
          %v6336 = vrot.slane %v6327, %v6335
          %v6337 = vlaneseq
          %v6338 = vshrl.u32 %v6337, 7
          %v6339 = vsub.s32 2, %v6338
          %v6340 = vrot.slane %v6327, %v6339
          %v6341 = vlaneseq
          %v6342 = vshrl.u32 %v6341, 7
          %v6343 = vsub.s32 3, %v6342
          %v6344 = vrot.slane %v6327, %v6343
          %v6349 = vadd.f32 %v6323, %v6332
          %v6350 = vadd.f32 %v6324, %v6336
          %v6351 = vadd.f32 %v6325, %v6340
          %v6352 = vadd.f32 %v6326, %v6344
          %v6353 = vmax.f32 %v6349, 0.0
          %v6354 = vmax.f32 %v6350, 0.0
          %v6355 = vmax.f32 %v6351, 0.0
          %v6356 = vmax.f32 %v6352, 0.0
          %v6357 = vmul.u32 %v1371, 4
          %vm6358 = vcmp.ge.s32.totalorder %v1971, %v6357
          %v6359 = vadd.s32 %v1371, 1
          %v6360 = vmul.u32 %v6359, 4
          %vm6361 = vcmp.lt.s32.totalorder %v1971, %v6360
          %vm6362 = vmand %vm6358, %vm6361
          %v6363 = vsel %vm6362, 1.0, 0.0
          %vm6364 = vcmask 64512
          %v6366 = vsel %vm6364, %v6363, 0
          %6368 = vmatprep.subr.mxu0 %v6354
          %6369 = vmatpush1.msra.mxu0 %v6353
          %6370 = vmatprep.subr.mxu0 0.0
          %6371 = vmatpush1.msra.mxu0 0.0
          %6372 = vmatprep.subr.mxu0 0.0
          %6373 = vmatpush1.msra.mxu0 0.0
          %6374 = vmatprep.subr.mxu0 0.0
          %6375 = vmatpush1.msra.mxu0 0.0
          %6376 = vmatprep.subr.mxu0 0.0
          %6377 = vmatpush1.msra.mxu0 0.0
          %6378 = vmatprep.subr.mxu0 0.0
          %6379 = vmatpush1.msra.mxu0 0.0
          %6380 = vmatprep.subr.mxu0 0.0
          %6381 = vmatpush1.msra.mxu0 0.0
          %6382 = vmatprep.subr.mxu0 0.0
          %6383 = vmatpush1.msra.mxu0 0.0
          %6384 = vmatprep.subr.mxu0 0.0
          %6385 = vmatpush1.msra.mxu0 0.0
          %6386 = vmatprep.subr.mxu0 0.0
          %6387 = vmatpush1.msra.mxu0 0.0
          %6388 = vmatprep.subr.mxu0 0.0
          %6389 = vmatpush1.msra.mxu0 0.0
          %6390 = vmatprep.subr.mxu0 0.0
          %6391 = vmatpush1.msra.mxu0 0.0
          %6392 = vmatprep.subr.mxu0 0.0
          %6393 = vmatpush1.msra.mxu0 0.0
          %6394 = vmatprep.subr.mxu0 0.0
          %6395 = vmatpush1.msra.mxu0 0.0
          %6396 = vmatprep.subr.mxu0 0.0
          %6397 = vmatpush1.msra.mxu0 0.0
          %6398 = vmatprep.subr.mxu0 0.0
          %6399 = vmatpush1.msra.mxu0 0.0
          %6400 = vmatprep.subr.mxu0 0.0
          %6401 = vmatpush1.msra.mxu0 0.0
          %6402 = vmatprep.subr.mxu0 0.0
          %6403 = vmatpush1.msra.mxu0 0.0
          %6404 = vmatprep.subr.mxu0 0.0
          %6405 = vmatpush1.msra.mxu0 0.0
          %6406 = vmatprep.subr.mxu0 0.0
          %6407 = vmatpush1.msra.mxu0 0.0
          %6408 = vmatprep.subr.mxu0 0.0
          %6409 = vmatpush1.msra.mxu0 0.0
          %6410 = vmatprep.subr.mxu0 0.0
          %6411 = vmatpush1.msra.mxu0 0.0
          %6412 = vmatprep.subr.mxu0 0.0
          %6413 = vmatpush1.msra.mxu0 0.0
          %6414 = vmatprep.subr.mxu0 0.0
          %6415 = vmatpush1.msra.mxu0 0.0
          %6416 = vmatprep.subr.mxu0 0.0
          %6417 = vmatpush1.msra.mxu0 0.0
          %6418 = vmatprep.subr.mxu0 0.0
          %6419 = vmatpush1.msra.mxu0 0.0
          %6420 = vmatprep.subr.mxu0 0.0
          %6421 = vmatpush1.msra.mxu0 0.0
          %6422 = vmatprep.subr.mxu0 0.0
          %6423 = vmatpush1.msra.mxu0 0.0
          %6424 = vmatprep.subr.mxu0 0.0
          %6425 = vmatpush1.msra.mxu0 0.0
          %6426 = vmatprep.subr.mxu0 0.0
          %6427 = vmatpush1.msra.mxu0 0.0
          %6428 = vmatprep.subr.mxu0 0.0
          %6429 = vmatpush1.msra.mxu0 0.0
          %6430 = vmatprep.subr.mxu0 0.0
          %6431 = vmatpush1.msra.mxu0 0.0
          %6432 = vmatprep.mubr.f32.mxu0 0.0
          %6433 = vmatmul.mubr.f32.gmra.mrb[0].mxu0 %v6366
          %v6434 = vpop.f32.mrb[0].mxu0
          %v6435 = vadd.f32 0.0, %v6434
          %v6436 = vpop.f32.mrb[0].mxu0
          %v6437 = vadd.f32 0.0, %v6436
          %6438 = vdwg.mxu0
          %6439 = vmatprep.subr.mxu0 %v6356
          %6440 = vmatpush1.msra.mxu0 %v6355
          %6441 = vmatprep.subr.mxu0 0.0
          %6442 = vmatpush1.msra.mxu0 0.0
          %6443 = vmatprep.subr.mxu0 0.0
          %6444 = vmatpush1.msra.mxu0 0.0
          %6445 = vmatprep.subr.mxu0 0.0
          %6446 = vmatpush1.msra.mxu0 0.0
          %6447 = vmatprep.subr.mxu0 0.0
          %6448 = vmatpush1.msra.mxu0 0.0
          %6449 = vmatprep.subr.mxu0 0.0
          %6450 = vmatpush1.msra.mxu0 0.0
          %6451 = vmatprep.subr.mxu0 0.0
          %6452 = vmatpush1.msra.mxu0 0.0
          %6453 = vmatprep.subr.mxu0 0.0
          %6454 = vmatpush1.msra.mxu0 0.0
          %6455 = vmatprep.subr.mxu0 0.0
          %6456 = vmatpush1.msra.mxu0 0.0
          %6457 = vmatprep.subr.mxu0 0.0
          %6458 = vmatpush1.msra.mxu0 0.0
          %6459 = vmatprep.subr.mxu0 0.0
          %6460 = vmatpush1.msra.mxu0 0.0
          %6461 = vmatprep.subr.mxu0 0.0
          %6462 = vmatpush1.msra.mxu0 0.0
          %6463 = vmatprep.subr.mxu0 0.0
          %6464 = vmatpush1.msra.mxu0 0.0
          %6465 = vmatprep.subr.mxu0 0.0
          %6466 = vmatpush1.msra.mxu0 0.0
          %6467 = vmatprep.subr.mxu0 0.0
          %6468 = vmatpush1.msra.mxu0 0.0
          %6469 = vmatprep.subr.mxu0 0.0
          %6470 = vmatpush1.msra.mxu0 0.0
          %6471 = vmatprep.subr.mxu0 0.0
          %6472 = vmatpush1.msra.mxu0 0.0
          %6473 = vmatprep.subr.mxu0 0.0
          %6474 = vmatpush1.msra.mxu0 0.0
          %6475 = vmatprep.subr.mxu0 0.0
          %6476 = vmatpush1.msra.mxu0 0.0
          %6477 = vmatprep.subr.mxu0 0.0
          %6478 = vmatpush1.msra.mxu0 0.0
          %6479 = vmatprep.subr.mxu0 0.0
          %6480 = vmatpush1.msra.mxu0 0.0
          %6481 = vmatprep.subr.mxu0 0.0
          %6482 = vmatpush1.msra.mxu0 0.0
          %6483 = vmatprep.subr.mxu0 0.0
          %6484 = vmatpush1.msra.mxu0 0.0
          %6485 = vmatprep.subr.mxu0 0.0
          %6486 = vmatpush1.msra.mxu0 0.0
          %6487 = vmatprep.subr.mxu0 0.0
          %6488 = vmatpush1.msra.mxu0 0.0
          %6489 = vmatprep.subr.mxu0 0.0
          %6490 = vmatpush1.msra.mxu0 0.0
          %6491 = vmatprep.subr.mxu0 0.0
          %6492 = vmatpush1.msra.mxu0 0.0
          %6493 = vmatprep.subr.mxu0 0.0
          %6494 = vmatpush1.msra.mxu0 0.0
          %6495 = vmatprep.subr.mxu0 0.0
          %6496 = vmatpush1.msra.mxu0 0.0
          %6497 = vmatprep.subr.mxu0 0.0
          %6498 = vmatpush1.msra.mxu0 0.0
          %6499 = vmatprep.subr.mxu0 0.0
          %6500 = vmatpush1.msra.mxu0 0.0
          %6501 = vmatprep.subr.mxu0 0.0
          %6502 = vmatpush1.msra.mxu0 0.0
          %6503 = vmatprep.mubr.f32.mxu0 0.0
          %6504 = vmatmul.mubr.f32.gmra.mrb[0].mxu0 %v6366
          %v6505 = vpop.f32.mrb[0].mxu0
          %v6506 = vadd.f32 0.0, %v6505
          %v6507 = vpop.f32.mrb[0].mxu0
          %v6508 = vadd.f32 0.0, %v6507
          %6509 = vdwg.mxu0
          %v6510 = vmul.f32 %v6435, 0.25
          %v6511 = vmul.f32 %v6437, 0.25
          %v6512 = vmul.f32 %v6506, 0.25
          %v6513 = vmul.f32 %v6508, 0.25
          %v6518 = vcombine.low %v6510, %v6511
          %v6519 = vcombine.low %v6512, %v6513
          %v6521 = vunpack.c.l.s4 1983009808
          %v6522 = vunpack.c.0.s8 %v6521
          %v6523 = vlaneseq
          %v6524 = vshrl.u32 %v6523, 7
          %v6525 = vsub.s32 %v6522, %v6524
          %v6526 = vrot.slane %v6518, %v6525
          %v6528 = vunpack.c.l.s4 1983009808
          %v6529 = vunpack.c.0.s8 %v6528
          %v6530 = vlaneseq
          %v6531 = vshrl.u32 %v6530, 7
          %v6532 = vsub.s32 %v6529, %v6531
          %v6533 = vrot.slane %v6519, %v6532
          %v6534 = vcombine.low %v6526, %v6533
          %6536 = vst [vmem:[#allocation2] sm:$0xff] %v6534
          %vm6537 = vcmask 1024
          %6538 = vst.msk [vmem:[#allocation3] sm:$0x3] %vm6537, 0.0
        $region256: #{vgg1d_forward.1} parent=139 // pred_fallthru
          _
        %v6539 = vld [vmem:[%s1243] sm:$0xff]
        %v6540 = vld [vmem:[%s1243 + $0x8] sm:$0xff]
        %v6541 = vld [vmem:[%s1243 + $0x10] sm:$0xff]
        %v6542 = vld [vmem:[%s1243 + $0x18] sm:$0xff]
        %v6543 = vld [vmem:[%s1243 + $0x20] sm:$0xff]
        %v6544 = vld [vmem:[%s1243 + $0x28] sm:$0xff]
        %v6545 = vld [vmem:[%s1243 + $0x30] sm:$0xff]
        %v6546 = vld [vmem:[%s1243 + $0x38] sm:$0xff]
        %v6547 = vld [vmem:[%s1243 + $0x40] sm:$0xff]
        %v6548 = vld [vmem:[%s1243 + $0x48] sm:$0xff]
        %v6549 = vld [vmem:[%s1243 + $0x50] sm:$0xff]
        %v6550 = vld [vmem:[%s1243 + $0x58] sm:$0xff]
        %v6551 = vld [vmem:[%s1243 + $0x60] sm:$0xff]
        %v6552 = vld [vmem:[%s1243 + $0x68] sm:$0xff]
        %v6553 = vld [vmem:[%s1243 + $0x70] sm:$0xff]
        %v6554 = vld [vmem:[%s1243 + $0x78] sm:$0xff]
        %v6555 = vld [vmem:[%s1243 + $0x80] sm:$0xff]
        %v6556 = vld [vmem:[%s1243 + $0x88] sm:$0xff]
        %v6557 = vld [vmem:[%s1243 + $0x90] sm:$0xff]
        %v6558 = vld [vmem:[%s1243 + $0x98] sm:$0xff]
        %v6559 = vld [vmem:[%s1243 + $0xa0] sm:$0xff]
        %v6560 = vld [vmem:[%s1243 + $0xa8] sm:$0xff]
        %v6561 = vld [vmem:[%s1243 + $0xb0] sm:$0xff]
        %v6562 = vld [vmem:[%s1243 + $0xb8] sm:$0xff]
        %v6563 = vld [vmem:[%s1243 + $0xc0] sm:$0xff]
        %v6564 = vld [vmem:[%s1243 + $0xc8] sm:$0xff]
        %v6565 = vld [vmem:[%s1243 + $0xd0] sm:$0xff]
        %v6566 = vld [vmem:[%s1243 + $0xd8] sm:$0xff]
        %v6567 = vld [vmem:[%s1243 + $0xe0] sm:$0xff]
        %v6568 = vld [vmem:[%s1243 + $0xe8] sm:$0xff]
        %v6569 = vld [vmem:[%s1243 + $0xf0] sm:$0xff]
        %v6570 = vld [vmem:[%s1243 + $0xf8] sm:$0xff]
        %v6571 = vld [vmem:[%s1243 + $0x100] sm:$0xff]
        %v6572 = vld [vmem:[%s1243 + $0x108] sm:$0xff]
        %v6573 = vld [vmem:[%s1243 + $0x110] sm:$0xff]
        %v6574 = vld [vmem:[%s1243 + $0x118] sm:$0xff]
        %v6575 = vld [vmem:[%s1243 + $0x120] sm:$0xff]
        %v6576 = vld [vmem:[%s1243 + $0x128] sm:$0xff]
        %v6577 = vld [vmem:[%s1243 + $0x130] sm:$0xff]
        %v6578 = vld [vmem:[%s1243 + $0x138] sm:$0xff]
        %v6579 = vld [vmem:[%s1243 + $0x140] sm:$0xff]
        %v6580 = vld [vmem:[%s1243 + $0x148] sm:$0xff]
        %v6581 = vld [vmem:[%s1243 + $0x150] sm:$0xff]
        %v6582 = vld [vmem:[%s1243 + $0x158] sm:$0xff]
        %v6583 = vld [vmem:[%s1243 + $0x160] sm:$0xff]
        %v6584 = vld [vmem:[%s1243 + $0x168] sm:$0xff]
        %v6585 = vld [vmem:[%s1243 + $0x170] sm:$0xff]
        %v6586 = vld [vmem:[%s1243 + $0x178] sm:$0xff]
        %v6587 = vld [vmem:[%s1243 + $0x180] sm:$0xff]
        %v6588 = vld [vmem:[%s1243 + $0x188] sm:$0xff]
        %v6589 = vld [vmem:[%s1243 + $0x190] sm:$0xff]
        %v6590 = vld [vmem:[%s1243 + $0x198] sm:$0xff]
        %v6591 = vld [vmem:[%s1243 + $0x1a0] sm:$0xff]
        %v6592 = vld [vmem:[%s1243 + $0x1a8] sm:$0xff]
        %v6593 = vld [vmem:[%s1243 + $0x1b0] sm:$0xff]
        %v6594 = vld [vmem:[%s1243 + $0x1b8] sm:$0xff]
        %v6595 = vld [vmem:[%s1243 + $0x1c0] sm:$0xff]
        %v6596 = vld [vmem:[%s1243 + $0x1c8] sm:$0xff]
        %v6597 = vld [vmem:[%s1243 + $0x1d0] sm:$0xff]
        %v6598 = vld [vmem:[%s1243 + $0x1d8] sm:$0xff]
        %v6599 = vld [vmem:[%s1243 + $0x1e0] sm:$0xff]
        %v6600 = vld [vmem:[%s1243 + $0x1e8] sm:$0xff]
        %v6601 = vld [vmem:[%s1243 + $0x1f0] sm:$0xff]
        %v6602 = vld [vmem:[%s1243 + $0x1f8] sm:$0xff]
        %v6603 = vld [vmem:[%s1243 + $0x200] sm:$0xff]
        %v6604 = vld [vmem:[%s1243 + $0x208] sm:$0xff]
        %v6605 = vld [vmem:[%s1243 + $0x210] sm:$0xff]
        %v6606 = vld [vmem:[%s1243 + $0x218] sm:$0xff]
        %v6607 = vld [vmem:[%s1243 + $0x220] sm:$0xff]
        %v6608 = vld [vmem:[%s1243 + $0x228] sm:$0xff]
        %v6609 = vld [vmem:[%s1243 + $0x230] sm:$0xff]
        %v6610 = vld [vmem:[%s1243 + $0x238] sm:$0xff]
        %v6611 = vld [vmem:[%s1243 + $0x240] sm:$0xff]
        %v6612 = vld [vmem:[%s1243 + $0x248] sm:$0xff]
        %v6613 = vld [vmem:[%s1243 + $0x250] sm:$0xff]
        %v6614 = vld [vmem:[%s1243 + $0x258] sm:$0xff]
        %v6615 = vld [vmem:[%s1243 + $0x260] sm:$0xff]
        %v6616 = vld [vmem:[%s1243 + $0x268] sm:$0xff]
        %v6617 = vld [vmem:[%s1243 + $0x270] sm:$0xff]
        %v6618 = vld [vmem:[%s1243 + $0x278] sm:$0xff]
        %v6619 = vld [vmem:[%s1243 + $0x280] sm:$0xff]
        %v6620 = vld [vmem:[%s1243 + $0x288] sm:$0xff]
        %v6621 = vld [vmem:[%s1243 + $0x290] sm:$0xff]
        %v6622 = vld [vmem:[%s1243 + $0x298] sm:$0xff]
        %v6623 = vld [vmem:[%s1243 + $0x2a0] sm:$0xff]
        %v6624 = vld [vmem:[%s1243 + $0x2a8] sm:$0xff]
        %v6625 = vld [vmem:[%s1243 + $0x2b0] sm:$0xff]
        %v6626 = vld [vmem:[%s1243 + $0x2b8] sm:$0xff]
        %v6627 = vld [vmem:[%s1243 + $0x2c0] sm:$0xff]
        %v6628 = vld [vmem:[%s1243 + $0x2c8] sm:$0xff]
        %v6629 = vld [vmem:[%s1243 + $0x2d0] sm:$0xff]
        %v6630 = vld [vmem:[%s1243 + $0x2d8] sm:$0xff]
        %v6631 = vld [vmem:[%s1243 + $0x2e0] sm:$0xff]
        %v6632 = vld [vmem:[%s1243 + $0x2e8] sm:$0xff]
        %v6633 = vld [vmem:[%s1243 + $0x2f0] sm:$0xff]
        %v6634 = vld [vmem:[%s1243 + $0x2f8] sm:$0xff]
        %v6635 = vld [vmem:[%s1243 + $0x300] sm:$0xff]
        %v6636 = vld [vmem:[%s1243 + $0x308] sm:$0xff]
        %v6637 = vld [vmem:[%s1243 + $0x310] sm:$0xff]
        %v6638 = vld [vmem:[%s1243 + $0x318] sm:$0xff]
        %v6639 = vld [vmem:[%s1243 + $0x320] sm:$0xff]
        %v6640 = vld [vmem:[%s1243 + $0x328] sm:$0xff]
        %v6641 = vld [vmem:[%s1243 + $0x330] sm:$0xff]
        %v6642 = vld [vmem:[%s1243 + $0x338] sm:$0xff]
        %v6643 = vld [vmem:[%s1243 + $0x340] sm:$0xff]
        %v6644 = vld [vmem:[%s1243 + $0x348] sm:$0xff]
        %v6645 = vld [vmem:[%s1243 + $0x350] sm:$0xff]
        %v6646 = vld [vmem:[%s1243 + $0x358] sm:$0xff]
        %v6647 = vld [vmem:[%s1243 + $0x360] sm:$0xff]
        %v6648 = vld [vmem:[%s1243 + $0x368] sm:$0xff]
        %v6649 = vld [vmem:[%s1243 + $0x370] sm:$0xff]
        %v6650 = vld [vmem:[%s1243 + $0x378] sm:$0xff]
        %v6651 = vld [vmem:[%s1243 + $0x380] sm:$0xff]
        %v6652 = vld [vmem:[%s1243 + $0x388] sm:$0xff]
        %v6653 = vld [vmem:[%s1243 + $0x390] sm:$0xff]
        %v6654 = vld [vmem:[%s1243 + $0x398] sm:$0xff]
        %v6655 = vld [vmem:[%s1243 + $0x3a0] sm:$0xff]
        %v6656 = vld [vmem:[%s1243 + $0x3a8] sm:$0xff]
        %v6657 = vld [vmem:[%s1243 + $0x3b0] sm:$0xff]
        %v6658 = vld [vmem:[%s1243 + $0x3b8] sm:$0xff]
        %v6659 = vld [vmem:[%s1243 + $0x3c0] sm:$0xff]
        %v6660 = vld [vmem:[%s1243 + $0x3c8] sm:$0xff]
        %v6661 = vld [vmem:[%s1243 + $0x3d0] sm:$0xff]
        %v6662 = vld [vmem:[%s1243 + $0x3d8] sm:$0xff]
        %v6663 = vld [vmem:[%s1243 + $0x3e0] sm:$0xff]
        %v6664 = vld [vmem:[%s1243 + $0x3e8] sm:$0xff]
        %v6665 = vld [vmem:[%s1243 + $0x3f0] sm:$0xff]
        %v6666 = vld [vmem:[%s1243 + $0x3f8] sm:$0xff]
        %v6667 = vunpack.c.0.s8 %v6539
        %v6668 = vunpack.c.0.s8 %v6540
        %v6669 = vunpack.c.0.s8 %v6541
        %v6670 = vunpack.c.0.s8 %v6542
        %v6671 = vunpack.c.0.s8 %v6543
        %v6672 = vunpack.c.0.s8 %v6544
        %v6673 = vunpack.c.0.s8 %v6545
        %v6674 = vunpack.c.0.s8 %v6546
        %v6675 = vunpack.c.1.s8 %v6539
        %v6676 = vunpack.c.1.s8 %v6540
        %v6677 = vunpack.c.1.s8 %v6541
        %v6678 = vunpack.c.1.s8 %v6542
        %v6679 = vunpack.c.1.s8 %v6543
        %v6680 = vunpack.c.1.s8 %v6544
        %v6681 = vunpack.c.1.s8 %v6545
        %v6682 = vunpack.c.1.s8 %v6546
        %v6683 = vunpack.c.2.s8 %v6539
        %v6684 = vunpack.c.2.s8 %v6540
        %v6685 = vunpack.c.2.s8 %v6541
        %v6686 = vunpack.c.2.s8 %v6542
        %v6687 = vunpack.c.2.s8 %v6543
        %v6688 = vunpack.c.2.s8 %v6544
        %v6689 = vunpack.c.2.s8 %v6545
        %v6690 = vunpack.c.2.s8 %v6546
        %v6691 = vunpack.c.3.s8 %v6539
        %v6692 = vunpack.c.3.s8 %v6540
        %v6693 = vunpack.c.3.s8 %v6541
        %v6694 = vunpack.c.3.s8 %v6542
        %v6695 = vunpack.c.3.s8 %v6543
        %v6696 = vunpack.c.3.s8 %v6544
        %v6697 = vunpack.c.3.s8 %v6545
        %v6698 = vunpack.c.3.s8 %v6546
        %v6699 = vunpack.c.0.s8 %v6547
        %v6700 = vunpack.c.0.s8 %v6548
        %v6701 = vunpack.c.0.s8 %v6549
        %v6702 = vunpack.c.0.s8 %v6550
        %v6703 = vunpack.c.0.s8 %v6551
        %v6704 = vunpack.c.0.s8 %v6552
        %v6705 = vunpack.c.0.s8 %v6553
        %v6706 = vunpack.c.0.s8 %v6554
        %v6707 = vunpack.c.1.s8 %v6547
        %v6708 = vunpack.c.1.s8 %v6548
        %v6709 = vunpack.c.1.s8 %v6549
        %v6710 = vunpack.c.1.s8 %v6550
        %v6711 = vunpack.c.1.s8 %v6551
        %v6712 = vunpack.c.1.s8 %v6552
        %v6713 = vunpack.c.1.s8 %v6553
        %v6714 = vunpack.c.1.s8 %v6554
        %v6715 = vunpack.c.2.s8 %v6547
        %v6716 = vunpack.c.2.s8 %v6548
        %v6717 = vunpack.c.2.s8 %v6549
        %v6718 = vunpack.c.2.s8 %v6550
        %v6719 = vunpack.c.2.s8 %v6551
        %v6720 = vunpack.c.2.s8 %v6552
        %v6721 = vunpack.c.2.s8 %v6553
        %v6722 = vunpack.c.2.s8 %v6554
        %v6723 = vunpack.c.3.s8 %v6547
        %v6724 = vunpack.c.3.s8 %v6548
        %v6725 = vunpack.c.3.s8 %v6549
        %v6726 = vunpack.c.3.s8 %v6550
        %v6727 = vunpack.c.3.s8 %v6551
        %v6728 = vunpack.c.3.s8 %v6552
        %v6729 = vunpack.c.3.s8 %v6553
        %v6730 = vunpack.c.3.s8 %v6554
        %v6731 = vunpack.c.0.s8 %v6555
        %v6732 = vunpack.c.0.s8 %v6556
        %v6733 = vunpack.c.0.s8 %v6557
        %v6734 = vunpack.c.0.s8 %v6558
        %v6735 = vunpack.c.0.s8 %v6559
        %v6736 = vunpack.c.0.s8 %v6560
        %v6737 = vunpack.c.0.s8 %v6561
        %v6738 = vunpack.c.0.s8 %v6562
        %v6739 = vunpack.c.1.s8 %v6555
        %v6740 = vunpack.c.1.s8 %v6556
        %v6741 = vunpack.c.1.s8 %v6557
        %v6742 = vunpack.c.1.s8 %v6558
        %v6743 = vunpack.c.1.s8 %v6559
        %v6744 = vunpack.c.1.s8 %v6560
        %v6745 = vunpack.c.1.s8 %v6561
        %v6746 = vunpack.c.1.s8 %v6562
        %v6747 = vunpack.c.2.s8 %v6555
        %v6748 = vunpack.c.2.s8 %v6556
        %v6749 = vunpack.c.2.s8 %v6557
        %v6750 = vunpack.c.2.s8 %v6558
        %v6751 = vunpack.c.2.s8 %v6559
        %v6752 = vunpack.c.2.s8 %v6560
        %v6753 = vunpack.c.2.s8 %v6561
        %v6754 = vunpack.c.2.s8 %v6562
        %v6755 = vunpack.c.3.s8 %v6555
        %v6756 = vunpack.c.3.s8 %v6556
        %v6757 = vunpack.c.3.s8 %v6557
        %v6758 = vunpack.c.3.s8 %v6558
        %v6759 = vunpack.c.3.s8 %v6559
        %v6760 = vunpack.c.3.s8 %v6560
        %v6761 = vunpack.c.3.s8 %v6561
        %v6762 = vunpack.c.3.s8 %v6562
        %v6763 = vunpack.c.0.s8 %v6563
        %v6764 = vunpack.c.0.s8 %v6564
        %v6765 = vunpack.c.0.s8 %v6565
        %v6766 = vunpack.c.0.s8 %v6566
        %v6767 = vunpack.c.0.s8 %v6567
        %v6768 = vunpack.c.0.s8 %v6568
        %v6769 = vunpack.c.0.s8 %v6569
        %v6770 = vunpack.c.0.s8 %v6570
        %v6771 = vunpack.c.1.s8 %v6563
        %v6772 = vunpack.c.1.s8 %v6564
        %v6773 = vunpack.c.1.s8 %v6565
        %v6774 = vunpack.c.1.s8 %v6566
        %v6775 = vunpack.c.1.s8 %v6567
        %v6776 = vunpack.c.1.s8 %v6568
        %v6777 = vunpack.c.1.s8 %v6569
        %v6778 = vunpack.c.1.s8 %v6570
        %v6779 = vunpack.c.2.s8 %v6563
        %v6780 = vunpack.c.2.s8 %v6564
        %v6781 = vunpack.c.2.s8 %v6565
        %v6782 = vunpack.c.2.s8 %v6566
        %v6783 = vunpack.c.2.s8 %v6567
        %v6784 = vunpack.c.2.s8 %v6568
        %v6785 = vunpack.c.2.s8 %v6569
        %v6786 = vunpack.c.2.s8 %v6570
        %v6787 = vunpack.c.3.s8 %v6563
        %v6788 = vunpack.c.3.s8 %v6564
        %v6789 = vunpack.c.3.s8 %v6565
        %v6790 = vunpack.c.3.s8 %v6566
        %v6791 = vunpack.c.3.s8 %v6567
        %v6792 = vunpack.c.3.s8 %v6568
        %v6793 = vunpack.c.3.s8 %v6569
        %v6794 = vunpack.c.3.s8 %v6570
        %v6795 = vunpack.c.0.s8 %v6571
        %v6796 = vunpack.c.0.s8 %v6572
        %v6797 = vunpack.c.0.s8 %v6573
        %v6798 = vunpack.c.0.s8 %v6574
        %v6799 = vunpack.c.0.s8 %v6575
        %v6800 = vunpack.c.0.s8 %v6576
        %v6801 = vunpack.c.0.s8 %v6577
        %v6802 = vunpack.c.0.s8 %v6578
        %v6803 = vunpack.c.1.s8 %v6571
        %v6804 = vunpack.c.1.s8 %v6572
        %v6805 = vunpack.c.1.s8 %v6573
        %v6806 = vunpack.c.1.s8 %v6574
        %v6807 = vunpack.c.1.s8 %v6575
        %v6808 = vunpack.c.1.s8 %v6576
        %v6809 = vunpack.c.1.s8 %v6577
        %v6810 = vunpack.c.1.s8 %v6578
        %v6811 = vunpack.c.2.s8 %v6571
        %v6812 = vunpack.c.2.s8 %v6572
        %v6813 = vunpack.c.2.s8 %v6573
        %v6814 = vunpack.c.2.s8 %v6574
        %v6815 = vunpack.c.2.s8 %v6575
        %v6816 = vunpack.c.2.s8 %v6576
        %v6817 = vunpack.c.2.s8 %v6577
        %v6818 = vunpack.c.2.s8 %v6578
        %v6819 = vunpack.c.3.s8 %v6571
        %v6820 = vunpack.c.3.s8 %v6572
        %v6821 = vunpack.c.3.s8 %v6573
        %v6822 = vunpack.c.3.s8 %v6574
        %v6823 = vunpack.c.3.s8 %v6575
        %v6824 = vunpack.c.3.s8 %v6576
        %v6825 = vunpack.c.3.s8 %v6577
        %v6826 = vunpack.c.3.s8 %v6578
        %v6827 = vunpack.c.0.s8 %v6579
        %v6828 = vunpack.c.0.s8 %v6580
        %v6829 = vunpack.c.0.s8 %v6581
        %v6830 = vunpack.c.0.s8 %v6582
        %v6831 = vunpack.c.0.s8 %v6583
        %v6832 = vunpack.c.0.s8 %v6584
        %v6833 = vunpack.c.0.s8 %v6585
        %v6834 = vunpack.c.0.s8 %v6586
        %v6835 = vunpack.c.1.s8 %v6579
        %v6836 = vunpack.c.1.s8 %v6580
        %v6837 = vunpack.c.1.s8 %v6581
        %v6838 = vunpack.c.1.s8 %v6582
        %v6839 = vunpack.c.1.s8 %v6583
        %v6840 = vunpack.c.1.s8 %v6584
        %v6841 = vunpack.c.1.s8 %v6585
        %v6842 = vunpack.c.1.s8 %v6586
        %v6843 = vunpack.c.2.s8 %v6579
        %v6844 = vunpack.c.2.s8 %v6580
        %v6845 = vunpack.c.2.s8 %v6581
        %v6846 = vunpack.c.2.s8 %v6582
        %v6847 = vunpack.c.2.s8 %v6583
        %v6848 = vunpack.c.2.s8 %v6584
        %v6849 = vunpack.c.2.s8 %v6585
        %v6850 = vunpack.c.2.s8 %v6586
        %v6851 = vunpack.c.3.s8 %v6579
        %v6852 = vunpack.c.3.s8 %v6580
        %v6853 = vunpack.c.3.s8 %v6581
        %v6854 = vunpack.c.3.s8 %v6582
        %v6855 = vunpack.c.3.s8 %v6583
        %v6856 = vunpack.c.3.s8 %v6584
        %v6857 = vunpack.c.3.s8 %v6585
        %v6858 = vunpack.c.3.s8 %v6586
        %v6859 = vunpack.c.0.s8 %v6587
        %v6860 = vunpack.c.0.s8 %v6588
        %v6861 = vunpack.c.0.s8 %v6589
        %v6862 = vunpack.c.0.s8 %v6590
        %v6863 = vunpack.c.0.s8 %v6591
        %v6864 = vunpack.c.0.s8 %v6592
        %v6865 = vunpack.c.0.s8 %v6593
        %v6866 = vunpack.c.0.s8 %v6594
        %v6867 = vunpack.c.1.s8 %v6587
        %v6868 = vunpack.c.1.s8 %v6588
        %v6869 = vunpack.c.1.s8 %v6589
        %v6870 = vunpack.c.1.s8 %v6590
        %v6871 = vunpack.c.1.s8 %v6591
        %v6872 = vunpack.c.1.s8 %v6592
        %v6873 = vunpack.c.1.s8 %v6593
        %v6874 = vunpack.c.1.s8 %v6594
        %v6875 = vunpack.c.2.s8 %v6587
        %v6876 = vunpack.c.2.s8 %v6588
        %v6877 = vunpack.c.2.s8 %v6589
        %v6878 = vunpack.c.2.s8 %v6590
        %v6879 = vunpack.c.2.s8 %v6591
        %v6880 = vunpack.c.2.s8 %v6592
        %v6881 = vunpack.c.2.s8 %v6593
        %v6882 = vunpack.c.2.s8 %v6594
        %v6883 = vunpack.c.3.s8 %v6587
        %v6884 = vunpack.c.3.s8 %v6588
        %v6885 = vunpack.c.3.s8 %v6589
        %v6886 = vunpack.c.3.s8 %v6590
        %v6887 = vunpack.c.3.s8 %v6591
        %v6888 = vunpack.c.3.s8 %v6592
        %v6889 = vunpack.c.3.s8 %v6593
        %v6890 = vunpack.c.3.s8 %v6594
        %v6891 = vunpack.c.0.s8 %v6595
        %v6892 = vunpack.c.0.s8 %v6596
        %v6893 = vunpack.c.0.s8 %v6597
        %v6894 = vunpack.c.0.s8 %v6598
        %v6895 = vunpack.c.0.s8 %v6599
        %v6896 = vunpack.c.0.s8 %v6600
        %v6897 = vunpack.c.0.s8 %v6601
        %v6898 = vunpack.c.0.s8 %v6602
        %v6899 = vunpack.c.1.s8 %v6595
        %v6900 = vunpack.c.1.s8 %v6596
        %v6901 = vunpack.c.1.s8 %v6597
        %v6902 = vunpack.c.1.s8 %v6598
        %v6903 = vunpack.c.1.s8 %v6599
        %v6904 = vunpack.c.1.s8 %v6600
        %v6905 = vunpack.c.1.s8 %v6601
        %v6906 = vunpack.c.1.s8 %v6602
        %v6907 = vunpack.c.2.s8 %v6595
        %v6908 = vunpack.c.2.s8 %v6596
        %v6909 = vunpack.c.2.s8 %v6597
        %v6910 = vunpack.c.2.s8 %v6598
        %v6911 = vunpack.c.2.s8 %v6599
        %v6912 = vunpack.c.2.s8 %v6600
        %v6913 = vunpack.c.2.s8 %v6601
        %v6914 = vunpack.c.2.s8 %v6602
        %v6915 = vunpack.c.3.s8 %v6595
        %v6916 = vunpack.c.3.s8 %v6596
        %v6917 = vunpack.c.3.s8 %v6597
        %v6918 = vunpack.c.3.s8 %v6598
        %v6919 = vunpack.c.3.s8 %v6599
        %v6920 = vunpack.c.3.s8 %v6600
        %v6921 = vunpack.c.3.s8 %v6601
        %v6922 = vunpack.c.3.s8 %v6602
        %v6923 = vunpack.c.0.s8 %v6603
        %v6924 = vunpack.c.0.s8 %v6604
        %v6925 = vunpack.c.0.s8 %v6605
        %v6926 = vunpack.c.0.s8 %v6606
        %v6927 = vunpack.c.0.s8 %v6607
        %v6928 = vunpack.c.0.s8 %v6608
        %v6929 = vunpack.c.0.s8 %v6609
        %v6930 = vunpack.c.0.s8 %v6610
        %v6931 = vunpack.c.1.s8 %v6603
        %v6932 = vunpack.c.1.s8 %v6604
        %v6933 = vunpack.c.1.s8 %v6605
        %v6934 = vunpack.c.1.s8 %v6606
        %v6935 = vunpack.c.1.s8 %v6607
        %v6936 = vunpack.c.1.s8 %v6608
        %v6937 = vunpack.c.1.s8 %v6609
        %v6938 = vunpack.c.1.s8 %v6610
        %v6939 = vunpack.c.2.s8 %v6603
        %v6940 = vunpack.c.2.s8 %v6604
        %v6941 = vunpack.c.2.s8 %v6605
        %v6942 = vunpack.c.2.s8 %v6606
        %v6943 = vunpack.c.2.s8 %v6607
        %v6944 = vunpack.c.2.s8 %v6608
        %v6945 = vunpack.c.2.s8 %v6609
        %v6946 = vunpack.c.2.s8 %v6610
        %v6947 = vunpack.c.3.s8 %v6603
        %v6948 = vunpack.c.3.s8 %v6604
        %v6949 = vunpack.c.3.s8 %v6605
        %v6950 = vunpack.c.3.s8 %v6606
        %v6951 = vunpack.c.3.s8 %v6607
        %v6952 = vunpack.c.3.s8 %v6608
        %v6953 = vunpack.c.3.s8 %v6609
        %v6954 = vunpack.c.3.s8 %v6610
        %v6955 = vunpack.c.0.s8 %v6611
        %v6956 = vunpack.c.0.s8 %v6612
        %v6957 = vunpack.c.0.s8 %v6613
        %v6958 = vunpack.c.0.s8 %v6614
        %v6959 = vunpack.c.0.s8 %v6615
        %v6960 = vunpack.c.0.s8 %v6616
        %v6961 = vunpack.c.0.s8 %v6617
        %v6962 = vunpack.c.0.s8 %v6618
        %v6963 = vunpack.c.1.s8 %v6611
        %v6964 = vunpack.c.1.s8 %v6612
        %v6965 = vunpack.c.1.s8 %v6613
        %v6966 = vunpack.c.1.s8 %v6614
        %v6967 = vunpack.c.1.s8 %v6615
        %v6968 = vunpack.c.1.s8 %v6616
        %v6969 = vunpack.c.1.s8 %v6617
        %v6970 = vunpack.c.1.s8 %v6618
        %v6971 = vunpack.c.2.s8 %v6611
        %v6972 = vunpack.c.2.s8 %v6612
        %v6973 = vunpack.c.2.s8 %v6613
        %v6974 = vunpack.c.2.s8 %v6614
        %v6975 = vunpack.c.2.s8 %v6615
        %v6976 = vunpack.c.2.s8 %v6616
        %v6977 = vunpack.c.2.s8 %v6617
        %v6978 = vunpack.c.2.s8 %v6618
        %v6979 = vunpack.c.3.s8 %v6611
        %v6980 = vunpack.c.3.s8 %v6612
        %v6981 = vunpack.c.3.s8 %v6613
        %v6982 = vunpack.c.3.s8 %v6614
        %v6983 = vunpack.c.3.s8 %v6615
        %v6984 = vunpack.c.3.s8 %v6616
        %v6985 = vunpack.c.3.s8 %v6617
        %v6986 = vunpack.c.3.s8 %v6618
        %v6987 = vunpack.c.0.s8 %v6619
        %v6988 = vunpack.c.0.s8 %v6620
        %v6989 = vunpack.c.0.s8 %v6621
        %v6990 = vunpack.c.0.s8 %v6622
        %v6991 = vunpack.c.0.s8 %v6623
        %v6992 = vunpack.c.0.s8 %v6624
        %v6993 = vunpack.c.0.s8 %v6625
        %v6994 = vunpack.c.0.s8 %v6626
        %v6995 = vunpack.c.1.s8 %v6619
        %v6996 = vunpack.c.1.s8 %v6620
        %v6997 = vunpack.c.1.s8 %v6621
        %v6998 = vunpack.c.1.s8 %v6622
        %v6999 = vunpack.c.1.s8 %v6623
        %v7000 = vunpack.c.1.s8 %v6624
        %v7001 = vunpack.c.1.s8 %v6625
        %v7002 = vunpack.c.1.s8 %v6626
        %v7003 = vunpack.c.2.s8 %v6619
        %v7004 = vunpack.c.2.s8 %v6620
        %v7005 = vunpack.c.2.s8 %v6621
        %v7006 = vunpack.c.2.s8 %v6622
        %v7007 = vunpack.c.2.s8 %v6623
        %v7008 = vunpack.c.2.s8 %v6624
        %v7009 = vunpack.c.2.s8 %v6625
        %v7010 = vunpack.c.2.s8 %v6626
        %v7011 = vunpack.c.3.s8 %v6619
        %v7012 = vunpack.c.3.s8 %v6620
        %v7013 = vunpack.c.3.s8 %v6621
        %v7014 = vunpack.c.3.s8 %v6622
        %v7015 = vunpack.c.3.s8 %v6623
        %v7016 = vunpack.c.3.s8 %v6624
        %v7017 = vunpack.c.3.s8 %v6625
        %v7018 = vunpack.c.3.s8 %v6626
        %v7019 = vunpack.c.0.s8 %v6627
        %v7020 = vunpack.c.0.s8 %v6628
        %v7021 = vunpack.c.0.s8 %v6629
        %v7022 = vunpack.c.0.s8 %v6630
        %v7023 = vunpack.c.0.s8 %v6631
        %v7024 = vunpack.c.0.s8 %v6632
        %v7025 = vunpack.c.0.s8 %v6633
        %v7026 = vunpack.c.0.s8 %v6634
        %v7027 = vunpack.c.1.s8 %v6627
        %v7028 = vunpack.c.1.s8 %v6628
        %v7029 = vunpack.c.1.s8 %v6629
        %v7030 = vunpack.c.1.s8 %v6630
        %v7031 = vunpack.c.1.s8 %v6631
        %v7032 = vunpack.c.1.s8 %v6632
        %v7033 = vunpack.c.1.s8 %v6633
        %v7034 = vunpack.c.1.s8 %v6634
        %v7035 = vunpack.c.2.s8 %v6627
        %v7036 = vunpack.c.2.s8 %v6628
        %v7037 = vunpack.c.2.s8 %v6629
        %v7038 = vunpack.c.2.s8 %v6630
        %v7039 = vunpack.c.2.s8 %v6631
        %v7040 = vunpack.c.2.s8 %v6632
        %v7041 = vunpack.c.2.s8 %v6633
        %v7042 = vunpack.c.2.s8 %v6634
        %v7043 = vunpack.c.3.s8 %v6627
        %v7044 = vunpack.c.3.s8 %v6628
        %v7045 = vunpack.c.3.s8 %v6629
        %v7046 = vunpack.c.3.s8 %v6630
        %v7047 = vunpack.c.3.s8 %v6631
        %v7048 = vunpack.c.3.s8 %v6632
        %v7049 = vunpack.c.3.s8 %v6633
        %v7050 = vunpack.c.3.s8 %v6634
        %v7051 = vunpack.c.0.s8 %v6635
        %v7052 = vunpack.c.0.s8 %v6636
        %v7053 = vunpack.c.0.s8 %v6637
        %v7054 = vunpack.c.0.s8 %v6638
        %v7055 = vunpack.c.0.s8 %v6639
        %v7056 = vunpack.c.0.s8 %v6640
        %v7057 = vunpack.c.0.s8 %v6641
        %v7058 = vunpack.c.0.s8 %v6642
        %v7059 = vunpack.c.1.s8 %v6635
        %v7060 = vunpack.c.1.s8 %v6636
        %v7061 = vunpack.c.1.s8 %v6637
        %v7062 = vunpack.c.1.s8 %v6638
        %v7063 = vunpack.c.1.s8 %v6639
        %v7064 = vunpack.c.1.s8 %v6640
        %v7065 = vunpack.c.1.s8 %v6641
        %v7066 = vunpack.c.1.s8 %v6642
        %v7067 = vunpack.c.2.s8 %v6635
        %v7068 = vunpack.c.2.s8 %v6636
        %v7069 = vunpack.c.2.s8 %v6637
        %v7070 = vunpack.c.2.s8 %v6638
        %v7071 = vunpack.c.2.s8 %v6639
        %v7072 = vunpack.c.2.s8 %v6640
        %v7073 = vunpack.c.2.s8 %v6641
        %v7074 = vunpack.c.2.s8 %v6642
        %v7075 = vunpack.c.3.s8 %v6635
        %v7076 = vunpack.c.3.s8 %v6636
        %v7077 = vunpack.c.3.s8 %v6637
        %v7078 = vunpack.c.3.s8 %v6638
        %v7079 = vunpack.c.3.s8 %v6639
        %v7080 = vunpack.c.3.s8 %v6640
        %v7081 = vunpack.c.3.s8 %v6641
        %v7082 = vunpack.c.3.s8 %v6642
        %v7083 = vunpack.c.0.s8 %v6643
        %v7084 = vunpack.c.0.s8 %v6644
        %v7085 = vunpack.c.0.s8 %v6645
        %v7086 = vunpack.c.0.s8 %v6646
        %v7087 = vunpack.c.0.s8 %v6647
        %v7088 = vunpack.c.0.s8 %v6648
        %v7089 = vunpack.c.0.s8 %v6649
        %v7090 = vunpack.c.0.s8 %v6650
        %v7091 = vunpack.c.1.s8 %v6643
        %v7092 = vunpack.c.1.s8 %v6644
        %v7093 = vunpack.c.1.s8 %v6645
        %v7094 = vunpack.c.1.s8 %v6646
        %v7095 = vunpack.c.1.s8 %v6647
        %v7096 = vunpack.c.1.s8 %v6648
        %v7097 = vunpack.c.1.s8 %v6649
        %v7098 = vunpack.c.1.s8 %v6650
        %v7099 = vunpack.c.2.s8 %v6643
        %v7100 = vunpack.c.2.s8 %v6644
        %v7101 = vunpack.c.2.s8 %v6645
        %v7102 = vunpack.c.2.s8 %v6646
        %v7103 = vunpack.c.2.s8 %v6647
        %v7104 = vunpack.c.2.s8 %v6648
        %v7105 = vunpack.c.2.s8 %v6649
        %v7106 = vunpack.c.2.s8 %v6650
        %v7107 = vunpack.c.3.s8 %v6643
        %v7108 = vunpack.c.3.s8 %v6644
        %v7109 = vunpack.c.3.s8 %v6645
        %v7110 = vunpack.c.3.s8 %v6646
        %v7111 = vunpack.c.3.s8 %v6647
        %v7112 = vunpack.c.3.s8 %v6648
        %v7113 = vunpack.c.3.s8 %v6649
        %v7114 = vunpack.c.3.s8 %v6650
        %v7115 = vunpack.c.0.s8 %v6651
        %v7116 = vunpack.c.0.s8 %v6652
        %v7117 = vunpack.c.0.s8 %v6653
        %v7118 = vunpack.c.0.s8 %v6654
        %v7119 = vunpack.c.0.s8 %v6655
        %v7120 = vunpack.c.0.s8 %v6656
        %v7121 = vunpack.c.0.s8 %v6657
        %v7122 = vunpack.c.0.s8 %v6658
        %v7123 = vunpack.c.1.s8 %v6651
        %v7124 = vunpack.c.1.s8 %v6652
        %v7125 = vunpack.c.1.s8 %v6653
        %v7126 = vunpack.c.1.s8 %v6654
        %v7127 = vunpack.c.1.s8 %v6655
        %v7128 = vunpack.c.1.s8 %v6656
        %v7129 = vunpack.c.1.s8 %v6657
        %v7130 = vunpack.c.1.s8 %v6658
        %v7131 = vunpack.c.2.s8 %v6651
        %v7132 = vunpack.c.2.s8 %v6652
        %v7133 = vunpack.c.2.s8 %v6653
        %v7134 = vunpack.c.2.s8 %v6654
        %v7135 = vunpack.c.2.s8 %v6655
        %v7136 = vunpack.c.2.s8 %v6656
        %v7137 = vunpack.c.2.s8 %v6657
        %v7138 = vunpack.c.2.s8 %v6658
        %v7139 = vunpack.c.3.s8 %v6651
        %v7140 = vunpack.c.3.s8 %v6652
        %v7141 = vunpack.c.3.s8 %v6653
        %v7142 = vunpack.c.3.s8 %v6654
        %v7143 = vunpack.c.3.s8 %v6655
        %v7144 = vunpack.c.3.s8 %v6656
        %v7145 = vunpack.c.3.s8 %v6657
        %v7146 = vunpack.c.3.s8 %v6658
        %v7147 = vunpack.c.0.s8 %v6659
        %v7148 = vunpack.c.0.s8 %v6660
        %v7149 = vunpack.c.0.s8 %v6661
        %v7150 = vunpack.c.0.s8 %v6662
        %v7151 = vunpack.c.0.s8 %v6663
        %v7152 = vunpack.c.0.s8 %v6664
        %v7153 = vunpack.c.0.s8 %v6665
        %v7154 = vunpack.c.0.s8 %v6666
        %v7155 = vunpack.c.1.s8 %v6659
        %v7156 = vunpack.c.1.s8 %v6660
        %v7157 = vunpack.c.1.s8 %v6661
        %v7158 = vunpack.c.1.s8 %v6662
        %v7159 = vunpack.c.1.s8 %v6663
        %v7160 = vunpack.c.1.s8 %v6664
        %v7161 = vunpack.c.1.s8 %v6665
        %v7162 = vunpack.c.1.s8 %v6666
        %v7163 = vunpack.c.2.s8 %v6659
        %v7164 = vunpack.c.2.s8 %v6660
        %v7165 = vunpack.c.2.s8 %v6661
        %v7166 = vunpack.c.2.s8 %v6662
        %v7167 = vunpack.c.2.s8 %v6663
        %v7168 = vunpack.c.2.s8 %v6664
        %v7169 = vunpack.c.2.s8 %v6665
        %v7170 = vunpack.c.2.s8 %v6666
        %v7171 = vunpack.c.3.s8 %v6659
        %v7172 = vunpack.c.3.s8 %v6660
        %v7173 = vunpack.c.3.s8 %v6661
        %v7174 = vunpack.c.3.s8 %v6662
        %v7175 = vunpack.c.3.s8 %v6663
        %v7176 = vunpack.c.3.s8 %v6664
        %v7177 = vunpack.c.3.s8 %v6665
        %v7178 = vunpack.c.3.s8 %v6666
        %v7179 = vcvt.s32.f32 %v6667
        %v7180 = vcvt.s32.f32 %v6668
        %v7181 = vcvt.s32.f32 %v6669
        %v7182 = vcvt.s32.f32 %v6670
        %v7183 = vcvt.s32.f32 %v6671
        %v7184 = vcvt.s32.f32 %v6672
        %v7185 = vcvt.s32.f32 %v6673
        %v7186 = vcvt.s32.f32 %v6674
        %v7187 = vcvt.s32.f32 %v6675
        %v7188 = vcvt.s32.f32 %v6676
        %v7189 = vcvt.s32.f32 %v6677
        %v7190 = vcvt.s32.f32 %v6678
        %v7191 = vcvt.s32.f32 %v6679
        %v7192 = vcvt.s32.f32 %v6680
        %v7193 = vcvt.s32.f32 %v6681
        %v7194 = vcvt.s32.f32 %v6682
        %v7195 = vcvt.s32.f32 %v6683
        %v7196 = vcvt.s32.f32 %v6684
        %v7197 = vcvt.s32.f32 %v6685
        %v7198 = vcvt.s32.f32 %v6686
        %v7199 = vcvt.s32.f32 %v6687
        %v7200 = vcvt.s32.f32 %v6688
        %v7201 = vcvt.s32.f32 %v6689
        %v7202 = vcvt.s32.f32 %v6690
        %v7203 = vcvt.s32.f32 %v6691
        %v7204 = vcvt.s32.f32 %v6692
        %v7205 = vcvt.s32.f32 %v6693
        %v7206 = vcvt.s32.f32 %v6694
        %v7207 = vcvt.s32.f32 %v6695
        %v7208 = vcvt.s32.f32 %v6696
        %v7209 = vcvt.s32.f32 %v6697
        %v7210 = vcvt.s32.f32 %v6698
        %v7211 = vcvt.s32.f32 %v6699
        %v7212 = vcvt.s32.f32 %v6700
        %v7213 = vcvt.s32.f32 %v6701
        %v7214 = vcvt.s32.f32 %v6702
        %v7215 = vcvt.s32.f32 %v6703
        %v7216 = vcvt.s32.f32 %v6704
        %v7217 = vcvt.s32.f32 %v6705
        %v7218 = vcvt.s32.f32 %v6706
        %v7219 = vcvt.s32.f32 %v6707
        %v7220 = vcvt.s32.f32 %v6708
        %v7221 = vcvt.s32.f32 %v6709
        %v7222 = vcvt.s32.f32 %v6710
        %v7223 = vcvt.s32.f32 %v6711
        %v7224 = vcvt.s32.f32 %v6712
        %v7225 = vcvt.s32.f32 %v6713
        %v7226 = vcvt.s32.f32 %v6714
        %v7227 = vcvt.s32.f32 %v6715
        %v7228 = vcvt.s32.f32 %v6716
        %v7229 = vcvt.s32.f32 %v6717
        %v7230 = vcvt.s32.f32 %v6718
        %v7231 = vcvt.s32.f32 %v6719
        %v7232 = vcvt.s32.f32 %v6720
        %v7233 = vcvt.s32.f32 %v6721
        %v7234 = vcvt.s32.f32 %v6722
        %v7235 = vcvt.s32.f32 %v6723
        %v7236 = vcvt.s32.f32 %v6724
        %v7237 = vcvt.s32.f32 %v6725
        %v7238 = vcvt.s32.f32 %v6726
        %v7239 = vcvt.s32.f32 %v6727
        %v7240 = vcvt.s32.f32 %v6728
        %v7241 = vcvt.s32.f32 %v6729
        %v7242 = vcvt.s32.f32 %v6730
        %v7243 = vcvt.s32.f32 %v6731
        %v7244 = vcvt.s32.f32 %v6732
        %v7245 = vcvt.s32.f32 %v6733
        %v7246 = vcvt.s32.f32 %v6734
        %v7247 = vcvt.s32.f32 %v6735
        %v7248 = vcvt.s32.f32 %v6736
        %v7249 = vcvt.s32.f32 %v6737
        %v7250 = vcvt.s32.f32 %v6738
        %v7251 = vcvt.s32.f32 %v6739
        %v7252 = vcvt.s32.f32 %v6740
        %v7253 = vcvt.s32.f32 %v6741
        %v7254 = vcvt.s32.f32 %v6742
        %v7255 = vcvt.s32.f32 %v6743
        %v7256 = vcvt.s32.f32 %v6744
        %v7257 = vcvt.s32.f32 %v6745
        %v7258 = vcvt.s32.f32 %v6746
        %v7259 = vcvt.s32.f32 %v6747
        %v7260 = vcvt.s32.f32 %v6748
        %v7261 = vcvt.s32.f32 %v6749
        %v7262 = vcvt.s32.f32 %v6750
        %v7263 = vcvt.s32.f32 %v6751
        %v7264 = vcvt.s32.f32 %v6752
        %v7265 = vcvt.s32.f32 %v6753
        %v7266 = vcvt.s32.f32 %v6754
        %v7267 = vcvt.s32.f32 %v6755
        %v7268 = vcvt.s32.f32 %v6756
        %v7269 = vcvt.s32.f32 %v6757
        %v7270 = vcvt.s32.f32 %v6758
        %v7271 = vcvt.s32.f32 %v6759
        %v7272 = vcvt.s32.f32 %v6760
        %v7273 = vcvt.s32.f32 %v6761
        %v7274 = vcvt.s32.f32 %v6762
        %v7275 = vcvt.s32.f32 %v6763
        %v7276 = vcvt.s32.f32 %v6764
        %v7277 = vcvt.s32.f32 %v6765
        %v7278 = vcvt.s32.f32 %v6766
        %v7279 = vcvt.s32.f32 %v6767
        %v7280 = vcvt.s32.f32 %v6768
        %v7281 = vcvt.s32.f32 %v6769
        %v7282 = vcvt.s32.f32 %v6770
        %v7283 = vcvt.s32.f32 %v6771
        %v7284 = vcvt.s32.f32 %v6772
        %v7285 = vcvt.s32.f32 %v6773
        %v7286 = vcvt.s32.f32 %v6774
        %v7287 = vcvt.s32.f32 %v6775
        %v7288 = vcvt.s32.f32 %v6776
        %v7289 = vcvt.s32.f32 %v6777
        %v7290 = vcvt.s32.f32 %v6778
        %v7291 = vcvt.s32.f32 %v6779
        %v7292 = vcvt.s32.f32 %v6780
        %v7293 = vcvt.s32.f32 %v6781
        %v7294 = vcvt.s32.f32 %v6782
        %v7295 = vcvt.s32.f32 %v6783
        %v7296 = vcvt.s32.f32 %v6784
        %v7297 = vcvt.s32.f32 %v6785
        %v7298 = vcvt.s32.f32 %v6786
        %v7299 = vcvt.s32.f32 %v6787
        %v7300 = vcvt.s32.f32 %v6788
        %v7301 = vcvt.s32.f32 %v6789
        %v7302 = vcvt.s32.f32 %v6790
        %v7303 = vcvt.s32.f32 %v6791
        %v7304 = vcvt.s32.f32 %v6792
        %v7305 = vcvt.s32.f32 %v6793
        %v7306 = vcvt.s32.f32 %v6794
        %v7307 = vcvt.s32.f32 %v6795
        %v7308 = vcvt.s32.f32 %v6796
        %v7309 = vcvt.s32.f32 %v6797
        %v7310 = vcvt.s32.f32 %v6798
        %v7311 = vcvt.s32.f32 %v6799
        %v7312 = vcvt.s32.f32 %v6800
        %v7313 = vcvt.s32.f32 %v6801
        %v7314 = vcvt.s32.f32 %v6802
        %v7315 = vcvt.s32.f32 %v6803
        %v7316 = vcvt.s32.f32 %v6804
        %v7317 = vcvt.s32.f32 %v6805
        %v7318 = vcvt.s32.f32 %v6806
        %v7319 = vcvt.s32.f32 %v6807
        %v7320 = vcvt.s32.f32 %v6808
        %v7321 = vcvt.s32.f32 %v6809
        %v7322 = vcvt.s32.f32 %v6810
        %v7323 = vcvt.s32.f32 %v6811
        %v7324 = vcvt.s32.f32 %v6812
        %v7325 = vcvt.s32.f32 %v6813
        %v7326 = vcvt.s32.f32 %v6814
        %v7327 = vcvt.s32.f32 %v6815
        %v7328 = vcvt.s32.f32 %v6816
        %v7329 = vcvt.s32.f32 %v6817
        %v7330 = vcvt.s32.f32 %v6818
        %v7331 = vcvt.s32.f32 %v6819
        %v7332 = vcvt.s32.f32 %v6820
        %v7333 = vcvt.s32.f32 %v6821
        %v7334 = vcvt.s32.f32 %v6822
        %v7335 = vcvt.s32.f32 %v6823
        %v7336 = vcvt.s32.f32 %v6824
        %v7337 = vcvt.s32.f32 %v6825
        %v7338 = vcvt.s32.f32 %v6826
        %v7339 = vcvt.s32.f32 %v6827
        %v7340 = vcvt.s32.f32 %v6828
        %v7341 = vcvt.s32.f32 %v6829
        %v7342 = vcvt.s32.f32 %v6830
        %v7343 = vcvt.s32.f32 %v6831
        %v7344 = vcvt.s32.f32 %v6832
        %v7345 = vcvt.s32.f32 %v6833
        %v7346 = vcvt.s32.f32 %v6834
        %v7347 = vcvt.s32.f32 %v6835
        %v7348 = vcvt.s32.f32 %v6836
        %v7349 = vcvt.s32.f32 %v6837
        %v7350 = vcvt.s32.f32 %v6838
        %v7351 = vcvt.s32.f32 %v6839
        %v7352 = vcvt.s32.f32 %v6840
        %v7353 = vcvt.s32.f32 %v6841
        %v7354 = vcvt.s32.f32 %v6842
        %v7355 = vcvt.s32.f32 %v6843
        %v7356 = vcvt.s32.f32 %v6844
        %v7357 = vcvt.s32.f32 %v6845
        %v7358 = vcvt.s32.f32 %v6846
        %v7359 = vcvt.s32.f32 %v6847
        %v7360 = vcvt.s32.f32 %v6848
        %v7361 = vcvt.s32.f32 %v6849
        %v7362 = vcvt.s32.f32 %v6850
        %v7363 = vcvt.s32.f32 %v6851
        %v7364 = vcvt.s32.f32 %v6852
        %v7365 = vcvt.s32.f32 %v6853
        %v7366 = vcvt.s32.f32 %v6854
        %v7367 = vcvt.s32.f32 %v6855
        %v7368 = vcvt.s32.f32 %v6856
        %v7369 = vcvt.s32.f32 %v6857
        %v7370 = vcvt.s32.f32 %v6858
        %v7371 = vcvt.s32.f32 %v6859
        %v7372 = vcvt.s32.f32 %v6860
        %v7373 = vcvt.s32.f32 %v6861
        %v7374 = vcvt.s32.f32 %v6862
        %v7375 = vcvt.s32.f32 %v6863
        %v7376 = vcvt.s32.f32 %v6864
        %v7377 = vcvt.s32.f32 %v6865
        %v7378 = vcvt.s32.f32 %v6866
        %v7379 = vcvt.s32.f32 %v6867
        %v7380 = vcvt.s32.f32 %v6868
        %v7381 = vcvt.s32.f32 %v6869
        %v7382 = vcvt.s32.f32 %v6870
        %v7383 = vcvt.s32.f32 %v6871
        %v7384 = vcvt.s32.f32 %v6872
        %v7385 = vcvt.s32.f32 %v6873
        %v7386 = vcvt.s32.f32 %v6874
        %v7387 = vcvt.s32.f32 %v6875
        %v7388 = vcvt.s32.f32 %v6876
        %v7389 = vcvt.s32.f32 %v6877
        %v7390 = vcvt.s32.f32 %v6878
        %v7391 = vcvt.s32.f32 %v6879
        %v7392 = vcvt.s32.f32 %v6880
        %v7393 = vcvt.s32.f32 %v6881
        %v7394 = vcvt.s32.f32 %v6882
        %v7395 = vcvt.s32.f32 %v6883
        %v7396 = vcvt.s32.f32 %v6884
        %v7397 = vcvt.s32.f32 %v6885
        %v7398 = vcvt.s32.f32 %v6886
        %v7399 = vcvt.s32.f32 %v6887
        %v7400 = vcvt.s32.f32 %v6888
        %v7401 = vcvt.s32.f32 %v6889
        %v7402 = vcvt.s32.f32 %v6890
        %v7403 = vcvt.s32.f32 %v6891
        %v7404 = vcvt.s32.f32 %v6892
        %v7405 = vcvt.s32.f32 %v6893
        %v7406 = vcvt.s32.f32 %v6894
        %v7407 = vcvt.s32.f32 %v6895
        %v7408 = vcvt.s32.f32 %v6896
        %v7409 = vcvt.s32.f32 %v6897
        %v7410 = vcvt.s32.f32 %v6898
        %v7411 = vcvt.s32.f32 %v6899
        %v7412 = vcvt.s32.f32 %v6900
        %v7413 = vcvt.s32.f32 %v6901
        %v7414 = vcvt.s32.f32 %v6902
        %v7415 = vcvt.s32.f32 %v6903
        %v7416 = vcvt.s32.f32 %v6904
        %v7417 = vcvt.s32.f32 %v6905
        %v7418 = vcvt.s32.f32 %v6906
        %v7419 = vcvt.s32.f32 %v6907
        %v7420 = vcvt.s32.f32 %v6908
        %v7421 = vcvt.s32.f32 %v6909
        %v7422 = vcvt.s32.f32 %v6910
        %v7423 = vcvt.s32.f32 %v6911
        %v7424 = vcvt.s32.f32 %v6912
        %v7425 = vcvt.s32.f32 %v6913
        %v7426 = vcvt.s32.f32 %v6914
        %v7427 = vcvt.s32.f32 %v6915
        %v7428 = vcvt.s32.f32 %v6916
        %v7429 = vcvt.s32.f32 %v6917
        %v7430 = vcvt.s32.f32 %v6918
        %v7431 = vcvt.s32.f32 %v6919
        %v7432 = vcvt.s32.f32 %v6920
        %v7433 = vcvt.s32.f32 %v6921
        %v7434 = vcvt.s32.f32 %v6922
        %v7435 = vcvt.s32.f32 %v6923
        %v7436 = vcvt.s32.f32 %v6924
        %v7437 = vcvt.s32.f32 %v6925
        %v7438 = vcvt.s32.f32 %v6926
        %v7439 = vcvt.s32.f32 %v6927
        %v7440 = vcvt.s32.f32 %v6928
        %v7441 = vcvt.s32.f32 %v6929
        %v7442 = vcvt.s32.f32 %v6930
        %v7443 = vcvt.s32.f32 %v6931
        %v7444 = vcvt.s32.f32 %v6932
        %v7445 = vcvt.s32.f32 %v6933
        %v7446 = vcvt.s32.f32 %v6934
        %v7447 = vcvt.s32.f32 %v6935
        %v7448 = vcvt.s32.f32 %v6936
        %v7449 = vcvt.s32.f32 %v6937
        %v7450 = vcvt.s32.f32 %v6938
        %v7451 = vcvt.s32.f32 %v6939
        %v7452 = vcvt.s32.f32 %v6940
        %v7453 = vcvt.s32.f32 %v6941
        %v7454 = vcvt.s32.f32 %v6942
        %v7455 = vcvt.s32.f32 %v6943
        %v7456 = vcvt.s32.f32 %v6944
        %v7457 = vcvt.s32.f32 %v6945
        %v7458 = vcvt.s32.f32 %v6946
        %v7459 = vcvt.s32.f32 %v6947
        %v7460 = vcvt.s32.f32 %v6948
        %v7461 = vcvt.s32.f32 %v6949
        %v7462 = vcvt.s32.f32 %v6950
        %v7463 = vcvt.s32.f32 %v6951
        %v7464 = vcvt.s32.f32 %v6952
        %v7465 = vcvt.s32.f32 %v6953
        %v7466 = vcvt.s32.f32 %v6954
        %v7467 = vcvt.s32.f32 %v6955
        %v7468 = vcvt.s32.f32 %v6956
        %v7469 = vcvt.s32.f32 %v6957
        %v7470 = vcvt.s32.f32 %v6958
        %v7471 = vcvt.s32.f32 %v6959
        %v7472 = vcvt.s32.f32 %v6960
        %v7473 = vcvt.s32.f32 %v6961
        %v7474 = vcvt.s32.f32 %v6962
        %v7475 = vcvt.s32.f32 %v6963
        %v7476 = vcvt.s32.f32 %v6964
        %v7477 = vcvt.s32.f32 %v6965
        %v7478 = vcvt.s32.f32 %v6966
        %v7479 = vcvt.s32.f32 %v6967
        %v7480 = vcvt.s32.f32 %v6968
        %v7481 = vcvt.s32.f32 %v6969
        %v7482 = vcvt.s32.f32 %v6970
        %v7483 = vcvt.s32.f32 %v6971
        %v7484 = vcvt.s32.f32 %v6972
        %v7485 = vcvt.s32.f32 %v6973
        %v7486 = vcvt.s32.f32 %v6974
        %v7487 = vcvt.s32.f32 %v6975
        %v7488 = vcvt.s32.f32 %v6976
        %v7489 = vcvt.s32.f32 %v6977
        %v7490 = vcvt.s32.f32 %v6978
        %v7491 = vcvt.s32.f32 %v6979
        %v7492 = vcvt.s32.f32 %v6980
        %v7493 = vcvt.s32.f32 %v6981
        %v7494 = vcvt.s32.f32 %v6982
        %v7495 = vcvt.s32.f32 %v6983
        %v7496 = vcvt.s32.f32 %v6984
        %v7497 = vcvt.s32.f32 %v6985
        %v7498 = vcvt.s32.f32 %v6986
        %v7499 = vcvt.s32.f32 %v6987
        %v7500 = vcvt.s32.f32 %v6988
        %v7501 = vcvt.s32.f32 %v6989
        %v7502 = vcvt.s32.f32 %v6990
        %v7503 = vcvt.s32.f32 %v6991
        %v7504 = vcvt.s32.f32 %v6992
        %v7505 = vcvt.s32.f32 %v6993
        %v7506 = vcvt.s32.f32 %v6994
        %v7507 = vcvt.s32.f32 %v6995
        %v7508 = vcvt.s32.f32 %v6996
        %v7509 = vcvt.s32.f32 %v6997
        %v7510 = vcvt.s32.f32 %v6998
        %v7511 = vcvt.s32.f32 %v6999
        %v7512 = vcvt.s32.f32 %v7000
        %v7513 = vcvt.s32.f32 %v7001
        %v7514 = vcvt.s32.f32 %v7002
        %v7515 = vcvt.s32.f32 %v7003
        %v7516 = vcvt.s32.f32 %v7004
        %v7517 = vcvt.s32.f32 %v7005
        %v7518 = vcvt.s32.f32 %v7006
        %v7519 = vcvt.s32.f32 %v7007
        %v7520 = vcvt.s32.f32 %v7008
        %v7521 = vcvt.s32.f32 %v7009
        %v7522 = vcvt.s32.f32 %v7010
        %v7523 = vcvt.s32.f32 %v7011
        %v7524 = vcvt.s32.f32 %v7012
        %v7525 = vcvt.s32.f32 %v7013
        %v7526 = vcvt.s32.f32 %v7014
        %v7527 = vcvt.s32.f32 %v7015
        %v7528 = vcvt.s32.f32 %v7016
        %v7529 = vcvt.s32.f32 %v7017
        %v7530 = vcvt.s32.f32 %v7018
        %v7531 = vcvt.s32.f32 %v7019
        %v7532 = vcvt.s32.f32 %v7020
        %v7533 = vcvt.s32.f32 %v7021
        %v7534 = vcvt.s32.f32 %v7022
        %v7535 = vcvt.s32.f32 %v7023
        %v7536 = vcvt.s32.f32 %v7024
        %v7537 = vcvt.s32.f32 %v7025
        %v7538 = vcvt.s32.f32 %v7026
        %v7539 = vcvt.s32.f32 %v7027
        %v7540 = vcvt.s32.f32 %v7028
        %v7541 = vcvt.s32.f32 %v7029
        %v7542 = vcvt.s32.f32 %v7030
        %v7543 = vcvt.s32.f32 %v7031
        %v7544 = vcvt.s32.f32 %v7032
        %v7545 = vcvt.s32.f32 %v7033
        %v7546 = vcvt.s32.f32 %v7034
        %v7547 = vcvt.s32.f32 %v7035
        %v7548 = vcvt.s32.f32 %v7036
        %v7549 = vcvt.s32.f32 %v7037
        %v7550 = vcvt.s32.f32 %v7038
        %v7551 = vcvt.s32.f32 %v7039
        %v7552 = vcvt.s32.f32 %v7040
        %v7553 = vcvt.s32.f32 %v7041
        %v7554 = vcvt.s32.f32 %v7042
        %v7555 = vcvt.s32.f32 %v7043
        %v7556 = vcvt.s32.f32 %v7044
        %v7557 = vcvt.s32.f32 %v7045
        %v7558 = vcvt.s32.f32 %v7046
        %v7559 = vcvt.s32.f32 %v7047
        %v7560 = vcvt.s32.f32 %v7048
        %v7561 = vcvt.s32.f32 %v7049
        %v7562 = vcvt.s32.f32 %v7050
        %v7563 = vcvt.s32.f32 %v7051
        %v7564 = vcvt.s32.f32 %v7052
        %v7565 = vcvt.s32.f32 %v7053
        %v7566 = vcvt.s32.f32 %v7054
        %v7567 = vcvt.s32.f32 %v7055
        %v7568 = vcvt.s32.f32 %v7056
        %v7569 = vcvt.s32.f32 %v7057
        %v7570 = vcvt.s32.f32 %v7058
        %v7571 = vcvt.s32.f32 %v7059
        %v7572 = vcvt.s32.f32 %v7060
        %v7573 = vcvt.s32.f32 %v7061
        %v7574 = vcvt.s32.f32 %v7062
        %v7575 = vcvt.s32.f32 %v7063
        %v7576 = vcvt.s32.f32 %v7064
        %v7577 = vcvt.s32.f32 %v7065
        %v7578 = vcvt.s32.f32 %v7066
        %v7579 = vcvt.s32.f32 %v7067
        %v7580 = vcvt.s32.f32 %v7068
        %v7581 = vcvt.s32.f32 %v7069
        %v7582 = vcvt.s32.f32 %v7070
        %v7583 = vcvt.s32.f32 %v7071
        %v7584 = vcvt.s32.f32 %v7072
        %v7585 = vcvt.s32.f32 %v7073
        %v7586 = vcvt.s32.f32 %v7074
        %v7587 = vcvt.s32.f32 %v7075
        %v7588 = vcvt.s32.f32 %v7076
        %v7589 = vcvt.s32.f32 %v7077
        %v7590 = vcvt.s32.f32 %v7078
        %v7591 = vcvt.s32.f32 %v7079
        %v7592 = vcvt.s32.f32 %v7080
        %v7593 = vcvt.s32.f32 %v7081
        %v7594 = vcvt.s32.f32 %v7082
        %v7595 = vcvt.s32.f32 %v7083
        %v7596 = vcvt.s32.f32 %v7084
        %v7597 = vcvt.s32.f32 %v7085
        %v7598 = vcvt.s32.f32 %v7086
        %v7599 = vcvt.s32.f32 %v7087
        %v7600 = vcvt.s32.f32 %v7088
        %v7601 = vcvt.s32.f32 %v7089
        %v7602 = vcvt.s32.f32 %v7090
        %v7603 = vcvt.s32.f32 %v7091
        %v7604 = vcvt.s32.f32 %v7092
        %v7605 = vcvt.s32.f32 %v7093
        %v7606 = vcvt.s32.f32 %v7094
        %v7607 = vcvt.s32.f32 %v7095
        %v7608 = vcvt.s32.f32 %v7096
        %v7609 = vcvt.s32.f32 %v7097
        %v7610 = vcvt.s32.f32 %v7098
        %v7611 = vcvt.s32.f32 %v7099
        %v7612 = vcvt.s32.f32 %v7100
        %v7613 = vcvt.s32.f32 %v7101
        %v7614 = vcvt.s32.f32 %v7102
        %v7615 = vcvt.s32.f32 %v7103
        %v7616 = vcvt.s32.f32 %v7104
        %v7617 = vcvt.s32.f32 %v7105
        %v7618 = vcvt.s32.f32 %v7106
        %v7619 = vcvt.s32.f32 %v7107
        %v7620 = vcvt.s32.f32 %v7108
        %v7621 = vcvt.s32.f32 %v7109
        %v7622 = vcvt.s32.f32 %v7110
        %v7623 = vcvt.s32.f32 %v7111
        %v7624 = vcvt.s32.f32 %v7112
        %v7625 = vcvt.s32.f32 %v7113
        %v7626 = vcvt.s32.f32 %v7114
        %v7627 = vcvt.s32.f32 %v7115
        %v7628 = vcvt.s32.f32 %v7116
        %v7629 = vcvt.s32.f32 %v7117
        %v7630 = vcvt.s32.f32 %v7118
        %v7631 = vcvt.s32.f32 %v7119
        %v7632 = vcvt.s32.f32 %v7120
        %v7633 = vcvt.s32.f32 %v7121
        %v7634 = vcvt.s32.f32 %v7122
        %v7635 = vcvt.s32.f32 %v7123
        %v7636 = vcvt.s32.f32 %v7124
        %v7637 = vcvt.s32.f32 %v7125
        %v7638 = vcvt.s32.f32 %v7126
        %v7639 = vcvt.s32.f32 %v7127
        %v7640 = vcvt.s32.f32 %v7128
        %v7641 = vcvt.s32.f32 %v7129
        %v7642 = vcvt.s32.f32 %v7130
        %v7643 = vcvt.s32.f32 %v7131
        %v7644 = vcvt.s32.f32 %v7132
        %v7645 = vcvt.s32.f32 %v7133
        %v7646 = vcvt.s32.f32 %v7134
        %v7647 = vcvt.s32.f32 %v7135
        %v7648 = vcvt.s32.f32 %v7136
        %v7649 = vcvt.s32.f32 %v7137
        %v7650 = vcvt.s32.f32 %v7138
        %v7651 = vcvt.s32.f32 %v7139
        %v7652 = vcvt.s32.f32 %v7140
        %v7653 = vcvt.s32.f32 %v7141
        %v7654 = vcvt.s32.f32 %v7142
        %v7655 = vcvt.s32.f32 %v7143
        %v7656 = vcvt.s32.f32 %v7144
        %v7657 = vcvt.s32.f32 %v7145
        %v7658 = vcvt.s32.f32 %v7146
        %v7659 = vcvt.s32.f32 %v7147
        %v7660 = vcvt.s32.f32 %v7148
        %v7661 = vcvt.s32.f32 %v7149
        %v7662 = vcvt.s32.f32 %v7150
        %v7663 = vcvt.s32.f32 %v7151
        %v7664 = vcvt.s32.f32 %v7152
        %v7665 = vcvt.s32.f32 %v7153
        %v7666 = vcvt.s32.f32 %v7154
        %v7667 = vcvt.s32.f32 %v7155
        %v7668 = vcvt.s32.f32 %v7156
        %v7669 = vcvt.s32.f32 %v7157
        %v7670 = vcvt.s32.f32 %v7158
        %v7671 = vcvt.s32.f32 %v7159
        %v7672 = vcvt.s32.f32 %v7160
        %v7673 = vcvt.s32.f32 %v7161
        %v7674 = vcvt.s32.f32 %v7162
        %v7675 = vcvt.s32.f32 %v7163
        %v7676 = vcvt.s32.f32 %v7164
        %v7677 = vcvt.s32.f32 %v7165
        %v7678 = vcvt.s32.f32 %v7166
        %v7679 = vcvt.s32.f32 %v7167
        %v7680 = vcvt.s32.f32 %v7168
        %v7681 = vcvt.s32.f32 %v7169
        %v7682 = vcvt.s32.f32 %v7170
        %v7683 = vcvt.s32.f32 %v7171
        %v7684 = vcvt.s32.f32 %v7172
        %v7685 = vcvt.s32.f32 %v7173
        %v7686 = vcvt.s32.f32 %v7174
        %v7687 = vcvt.s32.f32 %v7175
        %v7688 = vcvt.s32.f32 %v7176
        %v7689 = vcvt.s32.f32 %v7177
        %v7690 = vcvt.s32.f32 %v7178
        %v7691 = vld [vmem:[#allocation2] sm:$0xff]
        %v7693 = vcombine.high %v7691, %v7691
        %v7695 = vunpack.c.l.s4 1983009808
        %v7696 = vunpack.c.0.s8 %v7695
        %v7697 = vlaneseq
        %v7698 = vshrl.u32 %v7697, 7
        %v7699 = vsub.s32 %v7696, %v7698
        %v7700 = vrot.slane %v7691, %v7699
        %v7702 = vunpack.c.l.s4 1983009808
        %v7703 = vunpack.c.0.s8 %v7702
        %v7704 = vlaneseq
        %v7705 = vshrl.u32 %v7704, 7
        %v7706 = vsub.s32 %v7703, %v7705
        %v7707 = vrot.slane %v7693, %v7706
        %v7708 = vcombine.high %v7700, %v7700
        %v7709 = vcombine.high %v7707, %v7707
        %7714 = vmatprep.subr.mxu0 %v7180
        %7715 = vmatpush1.msra.mxu0 %v7179
        %7716 = vmatprep.subr.mxu0 %v7188
        %7717 = vmatpush1.msra.mxu0 %v7187
        %7718 = vmatprep.subr.mxu0 %v7196
        %7719 = vmatpush1.msra.mxu0 %v7195
        %7720 = vmatprep.subr.mxu0 %v7204
        %7721 = vmatpush1.msra.mxu0 %v7203
        %7722 = vmatprep.subr.mxu0 %v7212
        %7723 = vmatpush1.msra.mxu0 %v7211
        %7724 = vmatprep.subr.mxu0 %v7220
        %7725 = vmatpush1.msra.mxu0 %v7219
        %7726 = vmatprep.subr.mxu0 %v7228
        %7727 = vmatpush1.msra.mxu0 %v7227
        %7728 = vmatprep.subr.mxu0 %v7236
        %7729 = vmatpush1.msra.mxu0 %v7235
        %7730 = vmatprep.subr.mxu0 %v7244
        %7731 = vmatpush1.msra.mxu0 %v7243
        %7732 = vmatprep.subr.mxu0 %v7252
        %7733 = vmatpush1.msra.mxu0 %v7251
        %7734 = vmatprep.subr.mxu0 %v7260
        %7735 = vmatpush1.msra.mxu0 %v7259
        %7736 = vmatprep.subr.mxu0 %v7268
        %7737 = vmatpush1.msra.mxu0 %v7267
        %7738 = vmatprep.subr.mxu0 %v7276
        %7739 = vmatpush1.msra.mxu0 %v7275
        %7740 = vmatprep.subr.mxu0 %v7284
        %7741 = vmatpush1.msra.mxu0 %v7283
        %7742 = vmatprep.subr.mxu0 %v7292
        %7743 = vmatpush1.msra.mxu0 %v7291
        %7744 = vmatprep.subr.mxu0 %v7300
        %7745 = vmatpush1.msra.mxu0 %v7299
        %7746 = vmatprep.subr.mxu0 %v7308
        %7747 = vmatpush1.msra.mxu0 %v7307
        %7748 = vmatprep.subr.mxu0 %v7316
        %7749 = vmatpush1.msra.mxu0 %v7315
        %7750 = vmatprep.subr.mxu0 %v7324
        %7751 = vmatpush1.msra.mxu0 %v7323
        %7752 = vmatprep.subr.mxu0 %v7332
        %7753 = vmatpush1.msra.mxu0 %v7331
        %7754 = vmatprep.subr.mxu0 %v7340
        %7755 = vmatpush1.msra.mxu0 %v7339
        %7756 = vmatprep.subr.mxu0 %v7348
        %7757 = vmatpush1.msra.mxu0 %v7347
        %7758 = vmatprep.subr.mxu0 %v7356
        %7759 = vmatpush1.msra.mxu0 %v7355
        %7760 = vmatprep.subr.mxu0 %v7364
        %7761 = vmatpush1.msra.mxu0 %v7363
        %7762 = vmatprep.subr.mxu0 %v7372
        %7763 = vmatpush1.msra.mxu0 %v7371
        %7764 = vmatprep.subr.mxu0 %v7380
        %7765 = vmatpush1.msra.mxu0 %v7379
        %7766 = vmatprep.subr.mxu0 %v7388
        %7767 = vmatpush1.msra.mxu0 %v7387
        %7768 = vmatprep.subr.mxu0 %v7396
        %7769 = vmatpush1.msra.mxu0 %v7395
        %7770 = vmatprep.subr.mxu0 %v7404
        %7771 = vmatpush1.msra.mxu0 %v7403
        %7772 = vmatprep.subr.mxu0 %v7412
        %7773 = vmatpush1.msra.mxu0 %v7411
        %7774 = vmatprep.subr.mxu0 %v7420
        %7775 = vmatpush1.msra.mxu0 %v7419
        %7776 = vmatprep.subr.mxu0 %v7428
        %7777 = vmatpush1.msra.mxu0 %v7427
        %7778 = vmatprep.mubr.f32.mxu0 %v7708
        %7779 = vmatmul.mubr.f32.gmra.mrb[0].mxu0 %v7700
        %v7780 = vpop.f32.mrb[0].mxu0
        %v7781 = vadd.f32 0.0, %v7780
        %v7782 = vpop.f32.mrb[0].mxu0
        %v7783 = vadd.f32 0.0, %v7782
        %7784 = vdwg.mxu0
        %7785 = vmatprep.subr.mxu0 %v7436
        %7786 = vmatpush1.msra.mxu0 %v7435
        %7787 = vmatprep.subr.mxu0 %v7444
        %7788 = vmatpush1.msra.mxu0 %v7443
        %7789 = vmatprep.subr.mxu0 %v7452
        %7790 = vmatpush1.msra.mxu0 %v7451
        %7791 = vmatprep.subr.mxu0 %v7460
        %7792 = vmatpush1.msra.mxu0 %v7459
        %7793 = vmatprep.subr.mxu0 %v7468
        %7794 = vmatpush1.msra.mxu0 %v7467
        %7795 = vmatprep.subr.mxu0 %v7476
        %7796 = vmatpush1.msra.mxu0 %v7475
        %7797 = vmatprep.subr.mxu0 %v7484
        %7798 = vmatpush1.msra.mxu0 %v7483
        %7799 = vmatprep.subr.mxu0 %v7492
        %7800 = vmatpush1.msra.mxu0 %v7491
        %7801 = vmatprep.subr.mxu0 %v7500
        %7802 = vmatpush1.msra.mxu0 %v7499
        %7803 = vmatprep.subr.mxu0 %v7508
        %7804 = vmatpush1.msra.mxu0 %v7507
        %7805 = vmatprep.subr.mxu0 %v7516
        %7806 = vmatpush1.msra.mxu0 %v7515
        %7807 = vmatprep.subr.mxu0 %v7524
        %7808 = vmatpush1.msra.mxu0 %v7523
        %7809 = vmatprep.subr.mxu0 %v7532
        %7810 = vmatpush1.msra.mxu0 %v7531
        %7811 = vmatprep.subr.mxu0 %v7540
        %7812 = vmatpush1.msra.mxu0 %v7539
        %7813 = vmatprep.subr.mxu0 %v7548
        %7814 = vmatpush1.msra.mxu0 %v7547
        %7815 = vmatprep.subr.mxu0 %v7556
        %7816 = vmatpush1.msra.mxu0 %v7555
        %7817 = vmatprep.subr.mxu0 %v7564
        %7818 = vmatpush1.msra.mxu0 %v7563
        %7819 = vmatprep.subr.mxu0 %v7572
        %7820 = vmatpush1.msra.mxu0 %v7571
        %7821 = vmatprep.subr.mxu0 %v7580
        %7822 = vmatpush1.msra.mxu0 %v7579
        %7823 = vmatprep.subr.mxu0 %v7588
        %7824 = vmatpush1.msra.mxu0 %v7587
        %7825 = vmatprep.subr.mxu0 %v7596
        %7826 = vmatpush1.msra.mxu0 %v7595
        %7827 = vmatprep.subr.mxu0 %v7604
        %7828 = vmatpush1.msra.mxu0 %v7603
        %7829 = vmatprep.subr.mxu0 %v7612
        %7830 = vmatpush1.msra.mxu0 %v7611
        %7831 = vmatprep.subr.mxu0 %v7620
        %7832 = vmatpush1.msra.mxu0 %v7619
        %7833 = vmatprep.subr.mxu0 %v7628
        %7834 = vmatpush1.msra.mxu0 %v7627
        %7835 = vmatprep.subr.mxu0 %v7636
        %7836 = vmatpush1.msra.mxu0 %v7635
        %7837 = vmatprep.subr.mxu0 %v7644
        %7838 = vmatpush1.msra.mxu0 %v7643
        %7839 = vmatprep.subr.mxu0 %v7652
        %7840 = vmatpush1.msra.mxu0 %v7651
        %7841 = vmatprep.subr.mxu0 %v7660
        %7842 = vmatpush1.msra.mxu0 %v7659
        %7843 = vmatprep.subr.mxu0 %v7668
        %7844 = vmatpush1.msra.mxu0 %v7667
        %7845 = vmatprep.subr.mxu0 %v7676
        %7846 = vmatpush1.msra.mxu0 %v7675
        %7847 = vmatprep.subr.mxu0 %v7684
        %7848 = vmatpush1.msra.mxu0 %v7683
        %7849 = vmatprep.mubr.f32.mxu0 %v7709
        %7850 = vmatmul.mubr.f32.gmra.mrb[0].mxu0 %v7707
        %v7851 = vpop.f32.mrb[0].mxu0
        %v7852 = vadd.f32 %v7781, %v7851
        %v7853 = vpop.f32.mrb[0].mxu0
        %v7854 = vadd.f32 %v7783, %v7853
        %7855 = vdwg.mxu0
        %7856 = vmatprep.subr.mxu0 %v7182
        %7857 = vmatpush1.msra.mxu0 %v7181
        %7858 = vmatprep.subr.mxu0 %v7190
        %7859 = vmatpush1.msra.mxu0 %v7189
        %7860 = vmatprep.subr.mxu0 %v7198
        %7861 = vmatpush1.msra.mxu0 %v7197
        %7862 = vmatprep.subr.mxu0 %v7206
        %7863 = vmatpush1.msra.mxu0 %v7205
        %7864 = vmatprep.subr.mxu0 %v7214
        %7865 = vmatpush1.msra.mxu0 %v7213
        %7866 = vmatprep.subr.mxu0 %v7222
        %7867 = vmatpush1.msra.mxu0 %v7221
        %7868 = vmatprep.subr.mxu0 %v7230
        %7869 = vmatpush1.msra.mxu0 %v7229
        %7870 = vmatprep.subr.mxu0 %v7238
        %7871 = vmatpush1.msra.mxu0 %v7237
        %7872 = vmatprep.subr.mxu0 %v7246
        %7873 = vmatpush1.msra.mxu0 %v7245
        %7874 = vmatprep.subr.mxu0 %v7254
        %7875 = vmatpush1.msra.mxu0 %v7253
        %7876 = vmatprep.subr.mxu0 %v7262
        %7877 = vmatpush1.msra.mxu0 %v7261
        %7878 = vmatprep.subr.mxu0 %v7270
        %7879 = vmatpush1.msra.mxu0 %v7269
        %7880 = vmatprep.subr.mxu0 %v7278
        %7881 = vmatpush1.msra.mxu0 %v7277
        %7882 = vmatprep.subr.mxu0 %v7286
        %7883 = vmatpush1.msra.mxu0 %v7285
        %7884 = vmatprep.subr.mxu0 %v7294
        %7885 = vmatpush1.msra.mxu0 %v7293
        %7886 = vmatprep.subr.mxu0 %v7302
        %7887 = vmatpush1.msra.mxu0 %v7301
        %7888 = vmatprep.subr.mxu0 %v7310
        %7889 = vmatpush1.msra.mxu0 %v7309
        %7890 = vmatprep.subr.mxu0 %v7318
        %7891 = vmatpush1.msra.mxu0 %v7317
        %7892 = vmatprep.subr.mxu0 %v7326
        %7893 = vmatpush1.msra.mxu0 %v7325
        %7894 = vmatprep.subr.mxu0 %v7334
        %7895 = vmatpush1.msra.mxu0 %v7333
        %7896 = vmatprep.subr.mxu0 %v7342
        %7897 = vmatpush1.msra.mxu0 %v7341
        %7898 = vmatprep.subr.mxu0 %v7350
        %7899 = vmatpush1.msra.mxu0 %v7349
        %7900 = vmatprep.subr.mxu0 %v7358
        %7901 = vmatpush1.msra.mxu0 %v7357
        %7902 = vmatprep.subr.mxu0 %v7366
        %7903 = vmatpush1.msra.mxu0 %v7365
        %7904 = vmatprep.subr.mxu0 %v7374
        %7905 = vmatpush1.msra.mxu0 %v7373
        %7906 = vmatprep.subr.mxu0 %v7382
        %7907 = vmatpush1.msra.mxu0 %v7381
        %7908 = vmatprep.subr.mxu0 %v7390
        %7909 = vmatpush1.msra.mxu0 %v7389
        %7910 = vmatprep.subr.mxu0 %v7398
        %7911 = vmatpush1.msra.mxu0 %v7397
        %7912 = vmatprep.subr.mxu0 %v7406
        %7913 = vmatpush1.msra.mxu0 %v7405
        %7914 = vmatprep.subr.mxu0 %v7414
        %7915 = vmatpush1.msra.mxu0 %v7413
        %7916 = vmatprep.subr.mxu0 %v7422
        %7917 = vmatpush1.msra.mxu0 %v7421
        %7918 = vmatprep.subr.mxu0 %v7430
        %7919 = vmatpush1.msra.mxu0 %v7429
        %7920 = vmatprep.mubr.f32.mxu0 %v7708
        %7921 = vmatmul.mubr.f32.gmra.mrb[0].mxu0 %v7700
        %v7922 = vpop.f32.mrb[0].mxu0
        %v7923 = vadd.f32 0.0, %v7922
        %v7924 = vpop.f32.mrb[0].mxu0
        %v7925 = vadd.f32 0.0, %v7924
        %7926 = vdwg.mxu0
        %7927 = vmatprep.subr.mxu0 %v7438
        %7928 = vmatpush1.msra.mxu0 %v7437
        %7929 = vmatprep.subr.mxu0 %v7446
        %7930 = vmatpush1.msra.mxu0 %v7445
        %7931 = vmatprep.subr.mxu0 %v7454
        %7932 = vmatpush1.msra.mxu0 %v7453
        %7933 = vmatprep.subr.mxu0 %v7462
        %7934 = vmatpush1.msra.mxu0 %v7461
        %7935 = vmatprep.subr.mxu0 %v7470
        %7936 = vmatpush1.msra.mxu0 %v7469
        %7937 = vmatprep.subr.mxu0 %v7478
        %7938 = vmatpush1.msra.mxu0 %v7477
        %7939 = vmatprep.subr.mxu0 %v7486
        %7940 = vmatpush1.msra.mxu0 %v7485
        %7941 = vmatprep.subr.mxu0 %v7494
        %7942 = vmatpush1.msra.mxu0 %v7493
        %7943 = vmatprep.subr.mxu0 %v7502
        %7944 = vmatpush1.msra.mxu0 %v7501
        %7945 = vmatprep.subr.mxu0 %v7510
        %7946 = vmatpush1.msra.mxu0 %v7509
        %7947 = vmatprep.subr.mxu0 %v7518
        %7948 = vmatpush1.msra.mxu0 %v7517
        %7949 = vmatprep.subr.mxu0 %v7526
        %7950 = vmatpush1.msra.mxu0 %v7525
        %7951 = vmatprep.subr.mxu0 %v7534
        %7952 = vmatpush1.msra.mxu0 %v7533
        %7953 = vmatprep.subr.mxu0 %v7542
        %7954 = vmatpush1.msra.mxu0 %v7541
        %7955 = vmatprep.subr.mxu0 %v7550
        %7956 = vmatpush1.msra.mxu0 %v7549
        %7957 = vmatprep.subr.mxu0 %v7558
        %7958 = vmatpush1.msra.mxu0 %v7557
        %7959 = vmatprep.subr.mxu0 %v7566
        %7960 = vmatpush1.msra.mxu0 %v7565
        %7961 = vmatprep.subr.mxu0 %v7574
        %7962 = vmatpush1.msra.mxu0 %v7573
        %7963 = vmatprep.subr.mxu0 %v7582
        %7964 = vmatpush1.msra.mxu0 %v7581
        %7965 = vmatprep.subr.mxu0 %v7590
        %7966 = vmatpush1.msra.mxu0 %v7589
        %7967 = vmatprep.subr.mxu0 %v7598
        %7968 = vmatpush1.msra.mxu0 %v7597
        %7969 = vmatprep.subr.mxu0 %v7606
        %7970 = vmatpush1.msra.mxu0 %v7605
        %7971 = vmatprep.subr.mxu0 %v7614
        %7972 = vmatpush1.msra.mxu0 %v7613
        %7973 = vmatprep.subr.mxu0 %v7622
        %7974 = vmatpush1.msra.mxu0 %v7621
        %7975 = vmatprep.subr.mxu0 %v7630
        %7976 = vmatpush1.msra.mxu0 %v7629
        %7977 = vmatprep.subr.mxu0 %v7638
        %7978 = vmatpush1.msra.mxu0 %v7637
        %7979 = vmatprep.subr.mxu0 %v7646
        %7980 = vmatpush1.msra.mxu0 %v7645
        %7981 = vmatprep.subr.mxu0 %v7654
        %7982 = vmatpush1.msra.mxu0 %v7653
        %7983 = vmatprep.subr.mxu0 %v7662
        %7984 = vmatpush1.msra.mxu0 %v7661
        %7985 = vmatprep.subr.mxu0 %v7670
        %7986 = vmatpush1.msra.mxu0 %v7669
        %7987 = vmatprep.subr.mxu0 %v7678
        %7988 = vmatpush1.msra.mxu0 %v7677
        %7989 = vmatprep.subr.mxu0 %v7686
        %7990 = vmatpush1.msra.mxu0 %v7685
        %7991 = vmatprep.mubr.f32.mxu0 %v7709
        %7992 = vmatmul.mubr.f32.gmra.mrb[0].mxu0 %v7707
        %v7993 = vpop.f32.mrb[0].mxu0
        %v7994 = vadd.f32 %v7923, %v7993
        %v7995 = vpop.f32.mrb[0].mxu0
        %v7996 = vadd.f32 %v7925, %v7995
        %7997 = vdwg.mxu0
        %7998 = vmatprep.subr.mxu0 %v7184
        %7999 = vmatpush1.msra.mxu0 %v7183
        %8000 = vmatprep.subr.mxu0 %v7192
        %8001 = vmatpush1.msra.mxu0 %v7191
        %8002 = vmatprep.subr.mxu0 %v7200
        %8003 = vmatpush1.msra.mxu0 %v7199
        %8004 = vmatprep.subr.mxu0 %v7208
        %8005 = vmatpush1.msra.mxu0 %v7207
        %8006 = vmatprep.subr.mxu0 %v7216
        %8007 = vmatpush1.msra.mxu0 %v7215
        %8008 = vmatprep.subr.mxu0 %v7224
        %8009 = vmatpush1.msra.mxu0 %v7223
        %8010 = vmatprep.subr.mxu0 %v7232
        %8011 = vmatpush1.msra.mxu0 %v7231
        %8012 = vmatprep.subr.mxu0 %v7240
        %8013 = vmatpush1.msra.mxu0 %v7239
        %8014 = vmatprep.subr.mxu0 %v7248
        %8015 = vmatpush1.msra.mxu0 %v7247
        %8016 = vmatprep.subr.mxu0 %v7256
        %8017 = vmatpush1.msra.mxu0 %v7255
        %8018 = vmatprep.subr.mxu0 %v7264
        %8019 = vmatpush1.msra.mxu0 %v7263
        %8020 = vmatprep.subr.mxu0 %v7272
        %8021 = vmatpush1.msra.mxu0 %v7271
        %8022 = vmatprep.subr.mxu0 %v7280
        %8023 = vmatpush1.msra.mxu0 %v7279
        %8024 = vmatprep.subr.mxu0 %v7288
        %8025 = vmatpush1.msra.mxu0 %v7287
        %8026 = vmatprep.subr.mxu0 %v7296
        %8027 = vmatpush1.msra.mxu0 %v7295
        %8028 = vmatprep.subr.mxu0 %v7304
        %8029 = vmatpush1.msra.mxu0 %v7303
        %8030 = vmatprep.subr.mxu0 %v7312
        %8031 = vmatpush1.msra.mxu0 %v7311
        %8032 = vmatprep.subr.mxu0 %v7320
        %8033 = vmatpush1.msra.mxu0 %v7319
        %8034 = vmatprep.subr.mxu0 %v7328
        %8035 = vmatpush1.msra.mxu0 %v7327
        %8036 = vmatprep.subr.mxu0 %v7336
        %8037 = vmatpush1.msra.mxu0 %v7335
        %8038 = vmatprep.subr.mxu0 %v7344
        %8039 = vmatpush1.msra.mxu0 %v7343
        %8040 = vmatprep.subr.mxu0 %v7352
        %8041 = vmatpush1.msra.mxu0 %v7351
        %8042 = vmatprep.subr.mxu0 %v7360
        %8043 = vmatpush1.msra.mxu0 %v7359
        %8044 = vmatprep.subr.mxu0 %v7368
        %8045 = vmatpush1.msra.mxu0 %v7367
        %8046 = vmatprep.subr.mxu0 %v7376
        %8047 = vmatpush1.msra.mxu0 %v7375
        %8048 = vmatprep.subr.mxu0 %v7384
        %8049 = vmatpush1.msra.mxu0 %v7383
        %8050 = vmatprep.subr.mxu0 %v7392
        %8051 = vmatpush1.msra.mxu0 %v7391
        %8052 = vmatprep.subr.mxu0 %v7400
        %8053 = vmatpush1.msra.mxu0 %v7399
        %8054 = vmatprep.subr.mxu0 %v7408
        %8055 = vmatpush1.msra.mxu0 %v7407
        %8056 = vmatprep.subr.mxu0 %v7416
        %8057 = vmatpush1.msra.mxu0 %v7415
        %8058 = vmatprep.subr.mxu0 %v7424
        %8059 = vmatpush1.msra.mxu0 %v7423
        %8060 = vmatprep.subr.mxu0 %v7432
        %8061 = vmatpush1.msra.mxu0 %v7431
        %8062 = vmatprep.mubr.f32.mxu0 %v7708
        %8063 = vmatmul.mubr.f32.gmra.mrb[0].mxu0 %v7700
        %v8064 = vpop.f32.mrb[0].mxu0
        %v8065 = vadd.f32 0.0, %v8064
        %v8066 = vpop.f32.mrb[0].mxu0
        %v8067 = vadd.f32 0.0, %v8066
        %8068 = vdwg.mxu0
        %8069 = vmatprep.subr.mxu0 %v7440
        %8070 = vmatpush1.msra.mxu0 %v7439
        %8071 = vmatprep.subr.mxu0 %v7448
        %8072 = vmatpush1.msra.mxu0 %v7447
        %8073 = vmatprep.subr.mxu0 %v7456
        %8074 = vmatpush1.msra.mxu0 %v7455
        %8075 = vmatprep.subr.mxu0 %v7464
        %8076 = vmatpush1.msra.mxu0 %v7463
        %8077 = vmatprep.subr.mxu0 %v7472
        %8078 = vmatpush1.msra.mxu0 %v7471
        %8079 = vmatprep.subr.mxu0 %v7480
        %8080 = vmatpush1.msra.mxu0 %v7479
        %8081 = vmatprep.subr.mxu0 %v7488
        %8082 = vmatpush1.msra.mxu0 %v7487
        %8083 = vmatprep.subr.mxu0 %v7496
        %8084 = vmatpush1.msra.mxu0 %v7495
        %8085 = vmatprep.subr.mxu0 %v7504
        %8086 = vmatpush1.msra.mxu0 %v7503
        %8087 = vmatprep.subr.mxu0 %v7512
        %8088 = vmatpush1.msra.mxu0 %v7511
        %8089 = vmatprep.subr.mxu0 %v7520
        %8090 = vmatpush1.msra.mxu0 %v7519
        %8091 = vmatprep.subr.mxu0 %v7528
        %8092 = vmatpush1.msra.mxu0 %v7527
        %8093 = vmatprep.subr.mxu0 %v7536
        %8094 = vmatpush1.msra.mxu0 %v7535
        %8095 = vmatprep.subr.mxu0 %v7544
        %8096 = vmatpush1.msra.mxu0 %v7543
        %8097 = vmatprep.subr.mxu0 %v7552
        %8098 = vmatpush1.msra.mxu0 %v7551
        %8099 = vmatprep.subr.mxu0 %v7560
        %8100 = vmatpush1.msra.mxu0 %v7559
        %8101 = vmatprep.subr.mxu0 %v7568
        %8102 = vmatpush1.msra.mxu0 %v7567
        %8103 = vmatprep.subr.mxu0 %v7576
        %8104 = vmatpush1.msra.mxu0 %v7575
        %8105 = vmatprep.subr.mxu0 %v7584
        %8106 = vmatpush1.msra.mxu0 %v7583
        %8107 = vmatprep.subr.mxu0 %v7592
        %8108 = vmatpush1.msra.mxu0 %v7591
        %8109 = vmatprep.subr.mxu0 %v7600
        %8110 = vmatpush1.msra.mxu0 %v7599
        %8111 = vmatprep.subr.mxu0 %v7608
        %8112 = vmatpush1.msra.mxu0 %v7607
        %8113 = vmatprep.subr.mxu0 %v7616
        %8114 = vmatpush1.msra.mxu0 %v7615
        %8115 = vmatprep.subr.mxu0 %v7624
        %8116 = vmatpush1.msra.mxu0 %v7623
        %8117 = vmatprep.subr.mxu0 %v7632
        %8118 = vmatpush1.msra.mxu0 %v7631
        %8119 = vmatprep.subr.mxu0 %v7640
        %8120 = vmatpush1.msra.mxu0 %v7639
        %8121 = vmatprep.subr.mxu0 %v7648
        %8122 = vmatpush1.msra.mxu0 %v7647
        %8123 = vmatprep.subr.mxu0 %v7656
        %8124 = vmatpush1.msra.mxu0 %v7655
        %8125 = vmatprep.subr.mxu0 %v7664
        %8126 = vmatpush1.msra.mxu0 %v7663
        %8127 = vmatprep.subr.mxu0 %v7672
        %8128 = vmatpush1.msra.mxu0 %v7671
        %8129 = vmatprep.subr.mxu0 %v7680
        %8130 = vmatpush1.msra.mxu0 %v7679
        %8131 = vmatprep.subr.mxu0 %v7688
        %8132 = vmatpush1.msra.mxu0 %v7687
        %8133 = vmatprep.mubr.f32.mxu0 %v7709
        %8134 = vmatmul.mubr.f32.gmra.mrb[0].mxu0 %v7707
        %v8135 = vpop.f32.mrb[0].mxu0
        %v8136 = vadd.f32 %v8065, %v8135
        %v8137 = vpop.f32.mrb[0].mxu0
        %v8138 = vadd.f32 %v8067, %v8137
        %8139 = vdwg.mxu0
        %8140 = vmatprep.subr.mxu0 %v7186
        %8141 = vmatpush1.msra.mxu0 %v7185
        %8142 = vmatprep.subr.mxu0 %v7194
        %8143 = vmatpush1.msra.mxu0 %v7193
        %8144 = vmatprep.subr.mxu0 %v7202
        %8145 = vmatpush1.msra.mxu0 %v7201
        %8146 = vmatprep.subr.mxu0 %v7210
        %8147 = vmatpush1.msra.mxu0 %v7209
        %8148 = vmatprep.subr.mxu0 %v7218
        %8149 = vmatpush1.msra.mxu0 %v7217
        %8150 = vmatprep.subr.mxu0 %v7226
        %8151 = vmatpush1.msra.mxu0 %v7225
        %8152 = vmatprep.subr.mxu0 %v7234
        %8153 = vmatpush1.msra.mxu0 %v7233
        %8154 = vmatprep.subr.mxu0 %v7242
        %8155 = vmatpush1.msra.mxu0 %v7241
        %8156 = vmatprep.subr.mxu0 %v7250
        %8157 = vmatpush1.msra.mxu0 %v7249
        %8158 = vmatprep.subr.mxu0 %v7258
        %8159 = vmatpush1.msra.mxu0 %v7257
        %8160 = vmatprep.subr.mxu0 %v7266
        %8161 = vmatpush1.msra.mxu0 %v7265
        %8162 = vmatprep.subr.mxu0 %v7274
        %8163 = vmatpush1.msra.mxu0 %v7273
        %8164 = vmatprep.subr.mxu0 %v7282
        %8165 = vmatpush1.msra.mxu0 %v7281
        %8166 = vmatprep.subr.mxu0 %v7290
        %8167 = vmatpush1.msra.mxu0 %v7289
        %8168 = vmatprep.subr.mxu0 %v7298
        %8169 = vmatpush1.msra.mxu0 %v7297
        %8170 = vmatprep.subr.mxu0 %v7306
        %8171 = vmatpush1.msra.mxu0 %v7305
        %8172 = vmatprep.subr.mxu0 %v7314
        %8173 = vmatpush1.msra.mxu0 %v7313
        %8174 = vmatprep.subr.mxu0 %v7322
        %8175 = vmatpush1.msra.mxu0 %v7321
        %8176 = vmatprep.subr.mxu0 %v7330
        %8177 = vmatpush1.msra.mxu0 %v7329
        %8178 = vmatprep.subr.mxu0 %v7338
        %8179 = vmatpush1.msra.mxu0 %v7337
        %8180 = vmatprep.subr.mxu0 %v7346
        %8181 = vmatpush1.msra.mxu0 %v7345
        %8182 = vmatprep.subr.mxu0 %v7354
        %8183 = vmatpush1.msra.mxu0 %v7353
        %8184 = vmatprep.subr.mxu0 %v7362
        %8185 = vmatpush1.msra.mxu0 %v7361
        %8186 = vmatprep.subr.mxu0 %v7370
        %8187 = vmatpush1.msra.mxu0 %v7369
        %8188 = vmatprep.subr.mxu0 %v7378
        %8189 = vmatpush1.msra.mxu0 %v7377
        %8190 = vmatprep.subr.mxu0 %v7386
        %8191 = vmatpush1.msra.mxu0 %v7385
        %8192 = vmatprep.subr.mxu0 %v7394
        %8193 = vmatpush1.msra.mxu0 %v7393
        %8194 = vmatprep.subr.mxu0 %v7402
        %8195 = vmatpush1.msra.mxu0 %v7401
        %8196 = vmatprep.subr.mxu0 %v7410
        %8197 = vmatpush1.msra.mxu0 %v7409
        %8198 = vmatprep.subr.mxu0 %v7418
        %8199 = vmatpush1.msra.mxu0 %v7417
        %8200 = vmatprep.subr.mxu0 %v7426
        %8201 = vmatpush1.msra.mxu0 %v7425
        %8202 = vmatprep.subr.mxu0 %v7434
        %8203 = vmatpush1.msra.mxu0 %v7433
        %8204 = vmatprep.mubr.f32.mxu0 %v7708
        %8205 = vmatmul.mubr.f32.gmra.mrb[0].mxu0 %v7700
        %v8206 = vpop.f32.mrb[0].mxu0
        %v8207 = vadd.f32 0.0, %v8206
        %v8208 = vpop.f32.mrb[0].mxu0
        %v8209 = vadd.f32 0.0, %v8208
        %8210 = vdwg.mxu0
        %8211 = vmatprep.subr.mxu0 %v7442
        %8212 = vmatpush1.msra.mxu0 %v7441
        %8213 = vmatprep.subr.mxu0 %v7450
        %8214 = vmatpush1.msra.mxu0 %v7449
        %8215 = vmatprep.subr.mxu0 %v7458
        %8216 = vmatpush1.msra.mxu0 %v7457
        %8217 = vmatprep.subr.mxu0 %v7466
        %8218 = vmatpush1.msra.mxu0 %v7465
        %8219 = vmatprep.subr.mxu0 %v7474
        %8220 = vmatpush1.msra.mxu0 %v7473
        %8221 = vmatprep.subr.mxu0 %v7482
        %8222 = vmatpush1.msra.mxu0 %v7481
        %8223 = vmatprep.subr.mxu0 %v7490
        %8224 = vmatpush1.msra.mxu0 %v7489
        %8225 = vmatprep.subr.mxu0 %v7498
        %8226 = vmatpush1.msra.mxu0 %v7497
        %8227 = vmatprep.subr.mxu0 %v7506
        %8228 = vmatpush1.msra.mxu0 %v7505
        %8229 = vmatprep.subr.mxu0 %v7514
        %8230 = vmatpush1.msra.mxu0 %v7513
        %8231 = vmatprep.subr.mxu0 %v7522
        %8232 = vmatpush1.msra.mxu0 %v7521
        %8233 = vmatprep.subr.mxu0 %v7530
        %8234 = vmatpush1.msra.mxu0 %v7529
        %8235 = vmatprep.subr.mxu0 %v7538
        %8236 = vmatpush1.msra.mxu0 %v7537
        %8237 = vmatprep.subr.mxu0 %v7546
        %8238 = vmatpush1.msra.mxu0 %v7545
        %8239 = vmatprep.subr.mxu0 %v7554
        %8240 = vmatpush1.msra.mxu0 %v7553
        %8241 = vmatprep.subr.mxu0 %v7562
        %8242 = vmatpush1.msra.mxu0 %v7561
        %8243 = vmatprep.subr.mxu0 %v7570
        %8244 = vmatpush1.msra.mxu0 %v7569
        %8245 = vmatprep.subr.mxu0 %v7578
        %8246 = vmatpush1.msra.mxu0 %v7577
        %8247 = vmatprep.subr.mxu0 %v7586
        %8248 = vmatpush1.msra.mxu0 %v7585
        %8249 = vmatprep.subr.mxu0 %v7594
        %8250 = vmatpush1.msra.mxu0 %v7593
        %8251 = vmatprep.subr.mxu0 %v7602
        %8252 = vmatpush1.msra.mxu0 %v7601
        %8253 = vmatprep.subr.mxu0 %v7610
        %8254 = vmatpush1.msra.mxu0 %v7609
        %8255 = vmatprep.subr.mxu0 %v7618
        %8256 = vmatpush1.msra.mxu0 %v7617
        %8257 = vmatprep.subr.mxu0 %v7626
        %8258 = vmatpush1.msra.mxu0 %v7625
        %8259 = vmatprep.subr.mxu0 %v7634
        %8260 = vmatpush1.msra.mxu0 %v7633
        %8261 = vmatprep.subr.mxu0 %v7642
        %8262 = vmatpush1.msra.mxu0 %v7641
        %8263 = vmatprep.subr.mxu0 %v7650
        %8264 = vmatpush1.msra.mxu0 %v7649
        %8265 = vmatprep.subr.mxu0 %v7658
        %8266 = vmatpush1.msra.mxu0 %v7657
        %8267 = vmatprep.subr.mxu0 %v7666
        %8268 = vmatpush1.msra.mxu0 %v7665
        %8269 = vmatprep.subr.mxu0 %v7674
        %8270 = vmatpush1.msra.mxu0 %v7673
        %8271 = vmatprep.subr.mxu0 %v7682
        %8272 = vmatpush1.msra.mxu0 %v7681
        %8273 = vmatprep.subr.mxu0 %v7690
        %8274 = vmatpush1.msra.mxu0 %v7689
        %8275 = vmatprep.mubr.f32.mxu0 %v7709
        %8276 = vmatmul.mubr.f32.gmra.mrb[0].mxu0 %v7707
        %v8277 = vpop.f32.mrb[0].mxu0
        %v8278 = vadd.f32 %v8207, %v8277
        %v8279 = vpop.f32.mrb[0].mxu0
        %v8280 = vadd.f32 %v8209, %v8279
        %8281 = vdwg.mxu0
        %v8282 = vld [vmem:[%s1252] sm:$0xff]
        %v8284 = vlaneseq
        %v8285 = vshrl.u32 %v8284, 7
        %v8286 = vsub.s32 0, %v8285
        %v8287 = vrot.slane %v8282, %v8286
        %v8288 = vlaneseq
        %v8289 = vshrl.u32 %v8288, 7
        %v8290 = vsub.s32 1, %v8289
        %v8291 = vrot.slane %v8282, %v8290
        %v8292 = vlaneseq
        %v8293 = vshrl.u32 %v8292, 7
        %v8294 = vsub.s32 2, %v8293
        %v8295 = vrot.slane %v8282, %v8294
        %v8296 = vlaneseq
        %v8297 = vshrl.u32 %v8296, 7
        %v8298 = vsub.s32 3, %v8297
        %v8299 = vrot.slane %v8282, %v8298
        %v8300 = vlaneseq
        %v8301 = vshrl.u32 %v8300, 7
        %v8302 = vsub.s32 4, %v8301
        %v8303 = vrot.slane %v8282, %v8302
        %v8304 = vlaneseq
        %v8305 = vshrl.u32 %v8304, 7
        %v8306 = vsub.s32 5, %v8305
        %v8307 = vrot.slane %v8282, %v8306
        %v8308 = vlaneseq
        %v8309 = vshrl.u32 %v8308, 7
        %v8310 = vsub.s32 6, %v8309
        %v8311 = vrot.slane %v8282, %v8310
        %v8312 = vlaneseq
        %v8313 = vshrl.u32 %v8312, 7
        %v8314 = vsub.s32 7, %v8313
        %v8315 = vrot.slane %v8282, %v8314
        %v8324 = vmul.f32 %v7852, %v8287
        %v8325 = vmul.f32 %v7854, %v8291
        %v8326 = vmul.f32 %v7994, %v8295
        %v8327 = vmul.f32 %v7996, %v8299
        %v8328 = vmul.f32 %v8136, %v8303
        %v8329 = vmul.f32 %v8138, %v8307
        %v8330 = vmul.f32 %v8278, %v8311
        %v8331 = vmul.f32 %v8280, %v8315
        %v8332 = vld [vmem:[%s1261] sm:$0xff]
        %v8334 = vlaneseq
        %v8335 = vshrl.u32 %v8334, 7
        %v8336 = vsub.s32 0, %v8335
        %v8337 = vrot.slane %v8332, %v8336
        %v8338 = vlaneseq
        %v8339 = vshrl.u32 %v8338, 7
        %v8340 = vsub.s32 1, %v8339
        %v8341 = vrot.slane %v8332, %v8340
        %v8342 = vlaneseq
        %v8343 = vshrl.u32 %v8342, 7
        %v8344 = vsub.s32 2, %v8343
        %v8345 = vrot.slane %v8332, %v8344
        %v8346 = vlaneseq
        %v8347 = vshrl.u32 %v8346, 7
        %v8348 = vsub.s32 3, %v8347
        %v8349 = vrot.slane %v8332, %v8348
        %v8350 = vlaneseq
        %v8351 = vshrl.u32 %v8350, 7
        %v8352 = vsub.s32 4, %v8351
        %v8353 = vrot.slane %v8332, %v8352
        %v8354 = vlaneseq
        %v8355 = vshrl.u32 %v8354, 7
        %v8356 = vsub.s32 5, %v8355
        %v8357 = vrot.slane %v8332, %v8356
        %v8358 = vlaneseq
        %v8359 = vshrl.u32 %v8358, 7
        %v8360 = vsub.s32 6, %v8359
        %v8361 = vrot.slane %v8332, %v8360
        %v8362 = vlaneseq
        %v8363 = vshrl.u32 %v8362, 7
        %v8364 = vsub.s32 7, %v8363
        %v8365 = vrot.slane %v8332, %v8364
        %v8374 = vadd.f32 %v8324, %v8337
        %v8375 = vadd.f32 %v8325, %v8341
        %v8376 = vadd.f32 %v8326, %v8345
        %v8377 = vadd.f32 %v8327, %v8349
        %v8378 = vadd.f32 %v8328, %v8353
        %v8379 = vadd.f32 %v8329, %v8357
        %v8380 = vadd.f32 %v8330, %v8361
        %v8381 = vadd.f32 %v8331, %v8365
        %v8382 = vmax.f32 %v8374, 0.0
        %v8383 = vmax.f32 %v8375, 0.0
        %v8384 = vmax.f32 %v8376, 0.0
        %v8385 = vmax.f32 %v8377, 0.0
        %v8386 = vmax.f32 %v8378, 0.0
        %v8387 = vmax.f32 %v8379, 0.0
        %v8388 = vmax.f32 %v8380, 0.0
        %v8389 = vmax.f32 %v8381, 0.0
        %v8390 = vld [vmem:[#allocation3] sm:$0x3]
        %v8391 = vld [vmem:[%s1270] sm:$0xff]
        %v8393 = vlaneseq
        %v8394 = vshrl.u32 %v8393, 7
        %v8395 = vsub.s32 0, %v8394
        %v8396 = vrot.slane %v8391, %v8395
        %v8397 = vlaneseq
        %v8398 = vshrl.u32 %v8397, 7
        %v8399 = vsub.s32 1, %v8398
        %v8400 = vrot.slane %v8391, %v8399
        %v8401 = vlaneseq
        %v8402 = vshrl.u32 %v8401, 7
        %v8403 = vsub.s32 2, %v8402
        %v8404 = vrot.slane %v8391, %v8403
        %v8405 = vlaneseq
        %v8406 = vshrl.u32 %v8405, 7
        %v8407 = vsub.s32 3, %v8406
        %v8408 = vrot.slane %v8391, %v8407
        %v8409 = vlaneseq
        %v8410 = vshrl.u32 %v8409, 7
        %v8411 = vsub.s32 4, %v8410
        %v8412 = vrot.slane %v8391, %v8411
        %v8413 = vlaneseq
        %v8414 = vshrl.u32 %v8413, 7
        %v8415 = vsub.s32 5, %v8414
        %v8416 = vrot.slane %v8391, %v8415
        %v8417 = vlaneseq
        %v8418 = vshrl.u32 %v8417, 7
        %v8419 = vsub.s32 6, %v8418
        %v8420 = vrot.slane %v8391, %v8419
        %v8421 = vlaneseq
        %v8422 = vshrl.u32 %v8421, 7
        %v8423 = vsub.s32 7, %v8422
        %v8424 = vrot.slane %v8391, %v8423
        %v8433 = vmul.f32 %v8382, %v8396
        %v8434 = vmul.f32 %v8383, %v8400
        %v8435 = vmul.f32 %v8384, %v8404
        %v8436 = vmul.f32 %v8385, %v8408
        %v8437 = vmul.f32 %v8386, %v8412
        %v8438 = vmul.f32 %v8387, %v8416
        %v8439 = vmul.f32 %v8388, %v8420
        %v8440 = vmul.f32 %v8389, %v8424
        %vm8441 = vcmask 1041408
        %v8442 = vsel %vm8441, %v8433, 0.0
        %v8443 = vsel %vm8441, %v8434, 0.0
        %v8444 = vadd.f32 %v8442, %v8443
        %v8445 = vsel %vm8441, %v8435, 0.0
        %v8446 = vadd.f32 %v8444, %v8445
        %v8447 = vsel %vm8441, %v8436, 0.0
        %v8448 = vadd.f32 %v8446, %v8447
        %v8449 = vsel %vm8441, %v8437, 0.0
        %v8450 = vadd.f32 %v8448, %v8449
        %v8451 = vsel %vm8441, %v8438, 0.0
        %v8452 = vadd.f32 %v8450, %v8451
        %v8453 = vsel %vm8441, %v8439, 0.0
        %v8454 = vadd.f32 %v8452, %v8453
        %v8455 = vsel %vm8441, %v8440, 0.0
        %v8456 = vadd.f32 %v8454, %v8455
        %8457 = vadd.xlane.f32.xlu0 %v8456
        %v8458 = vpop.xlane.xlu0 %8457
        %v8459 = vadd.f32 %v8390, %v8458
        %vm8460 = vcmask 1024
        %8461 = vst.msk [vmem:[#allocation3] sm:$0x3] %vm8460, %v8459
        %p8462 = scmp.eq.s32.totalorder %s87, 3
        // Predicated region
        $region257: #{vgg1d_forward.1} parent=139 // pred_check
          %p8463 = pneg %p8462
        $region258: #{vgg1d_forward.1} parent=139 // pred_check_branch
          %8465 = sbr.rel (%p8463) target = $region260
        $region259: #{vgg1d_forward.1} parent=139 // pred_region
          %v8466 = vld [vmem:[#allocation3] sm:$0x3]
          %v8467 = vld [vmem:[#allocation4] sm:$0x1]
          %v8469 = vlaneseq
          %v8470 = vshrl.u32 %v8469, 7
          %v8471 = vsub.s32 0, %v8470
          %v8472 = vrot.slane %v8467, %v8471
          %v8474 = vadd.f32 %v8466, %v8472
          %v8475 = vsub.f32 0.0, %v8474
          %v8476 = vmul.f32 %v8475, 1.442695
          %v8477 = vpow.pop %v8476
          %v8478 = vadd.f32 %v8477, 1.0
          %v8479 = vrcp.pop %v8478
          %v8480 = vmul.f32 1.0, %v8479
          %8481 = vst.msk [vmem:[%s61] sm:$0x3] %vm8460, %v8480
        $region260: #{vgg1d_forward.1} parent=139 // pred_fallthru
          _
        // Predicated region
        $region261: #{vgg1d_forward.1} parent=139 // pred_check
          %p8482 = pneg %p750
        $region262: #{vgg1d_forward.1} parent=139 // pred_check_branch
          %8484 = sbr.rel (%p8482) target = $region264
        $region263: #{vgg1d_forward.1} parent=139 // pred_region
          _
        $region264: #{vgg1d_forward.1} parent=139 // pred_fallthru
          _
        // Predicated region
        $region265: #{vgg1d_forward.1} parent=139 // pred_check
          %p8485 = pneg %p750
        $region266: #{vgg1d_forward.1} parent=139 // pred_check_branch
          %8487 = sbr.rel (%p8485) target = $region268
        $region267: #{vgg1d_forward.1} parent=139 // pred_region
          _
        $region268: #{vgg1d_forward.1} parent=139 // pred_fallthru
          _
      $region140: #{vgg1d_forward.1} parent=5 // pred_fallthru
        _
      %p8488 = scmp.le.s32.totalorder 2, %s82
      // Predicated region
      $region269: #{vgg1d_forward.1} parent=5 // pred_check
        %p8489 = pneg %p8488
      $region270: #{vgg1d_forward.1} parent=5 // pred_check_branch
        %8491 = sbr.rel (%p8489) target = $region272
      $region271: #{vgg1d_forward.1} parent=5 // pred_region
        %s8492 = ssub.s32 %s82, 2
      $region272: #{vgg1d_forward.1} parent=5 // pred_fallthru
        _
    $region6: #{vgg1d_forward.1} parent=1 // loop_footer
      %s86 = sadd.s32 1, %s82
    $region7: #{vgg1d_forward.1} parent=1 // loop_footer_branch
      %81 = sbr.rel target = $region3
    $region8: #{vgg1d_forward.1} parent=1 // loop_exit
      _
    %8493 = vsyncpa [#allocation6], 1
    %s8494 = scalar_lea.sflag [#allocation6], 1
    %8495 = vsyncpa %s8494, 1
    %8496 = vsyncpa [#allocation8], 1
    %8497 = vsyncpa [#allocation11], 1
    %8498 = vsyncpa [#allocation14], 1
    %8499 = vsyncpa [#allocation17], 1
    %8500 = vsyncpa [#allocation20], 1
    %8501 = vsyncpa [#allocation23], 1
    %8502 = vsyncpa [#allocation26], 1
    %8503 = vsyncpa [#allocation29], 1
    %8504 = vsyncpa [#allocation32], 1
    %8505 = vsyncpa [#allocation35], 1
    %8506 = vsyncpa [#allocation38], 1
    %8507 = vsyncpa [#allocation41], 1

</llo_original>
